<compile_context>
chip_gen: v5e
topology: v5e:2x2
jax: 0.10.0
libtpu: 0.0.40
codegen_flags: <defaults>
</compile_context>

<pallas_src>
import functools
import numpy as np

import jax
import jax.numpy as jnp
from jax import lax
from jax.experimental import pallas as pl
from jax.experimental.pallas import tpu as pltpu  # noqa: F401  (TPU backend)


_SQRT_HALF = 0.7071067811865476


# ----------------------------------------------------------------------------
# In-kernel helpers (pure value-level functions)
# ----------------------------------------------------------------------------
def _erf(x):
    # Abramowitz & Stegun 7.1.26 rational approximation (|err| < 1.5e-7, i.e. exact at
    # f32 working precision).  Uses only exp / mul / add / div, all Mosaic-supported.
    a1, a2, a3, a4, a5 = 0.254829592, -0.284496736, 1.421413741, -1.453152027, 1.061405429
    p = 0.3275911
    sgn = jnp.where(x >= 0.0, 1.0, -1.0)
    ax = jnp.abs(x)
    t = 1.0 / (1.0 + p * ax)
    poly = ((((a5 * t + a4) * t + a3) * t + a2) * t + a1) * t
    return sgn * (1.0 - poly * jnp.exp(-ax * ax))


def _gelu(x):  # exact (erf) GELU, matching nn.GELU()
    return 0.5 * x * (1.0 + _erf(x * _SQRT_HALF))


def _layernorm(x, g, b, eps=1e-5):
    mu = jnp.mean(x, axis=-1, keepdims=True)
    xc = x - mu
    var = jnp.mean(xc * xc, axis=-1, keepdims=True)
    return xc * lax.rsqrt(var + eps) * g + b


def _dot(a, b):
    return jnp.dot(a, b, preferred_element_type=jnp.float32)


def _dot_nt(a, b):
    # a @ b.T without materializing a transpose (contract both minor dims).
    return lax.dot_general(a, b, (((1,), (1,)), ((), ())),
                           preferred_element_type=jnp.float32)


def _l2norm_seq(blk, eps=1e-12):
    # F.normalize(..., dim=1) on [B, S, H]: per-(batch, channel) L2 norm over sequence.
    n = jnp.sqrt(jnp.sum(blk * blk, axis=0, keepdims=True))
    return blk * pl.reciprocal(jnp.maximum(n, eps), approx=True)


# ----------------------------------------------------------------------------
# Kernel 1: full image branch (encoder + fusion head) in one pallas_call
# ----------------------------------------------------------------------------
def _image_branch_kernel(
    x_ref, mask_ref,
    n1g_ref, n1b_ref, lin_w_ref, lin_b_ref, lout_w_ref, lout_b_ref,
    qkv_w_ref, qkv_b_ref, op_w_ref, op_b_ref,
    ff1_w_ref, ff1_b_ref, ff2_w_ref, ff2_b_ref,
    ln1_g_ref, ln1_b_ref, ln2_g_ref, ln2_b_ref,
    n2g_ref, n2b_ref,
    mlp1_w_ref, mlp1_b_ref, mlp2_w_ref, mlp2_b_ref, lay_w_ref, lay_b_ref,
    out_ref,
    *, B, S, H, nhead, num_layers):
    Dh = H // nhead
    scale = 1.0 / float(np.sqrt(Dh))

    # ---- front: LN -> Linear + GELU -> Linear (dropout = eval-mode identity) ----
    h = _layernorm(x_ref[...], n1g_ref[...], n1b_ref[...])
    h = _gelu(_dot(h, lin_w_ref[...]) + lin_b_ref[...])
    h = _dot(h, lout_w_ref[...]) + lout_b_ref[...]                  # [B*S, H]

    same_batch = mask_ref[...] > 0.5                                # [B*S, B*S] block-diag

    qkv_bias = qkv_b_ref[...]
    op_bias = op_b_ref[...]
    ff1_bias = ff1_b_ref[...]
    ff2_bias = ff2_b_ref[...]
    ln1_g = ln1_g_ref[...]
    ln1_b = ln1_b_ref[...]
    ln2_g = ln2_g_ref[...]
    ln2_b = ln2_b_ref[...]

    # ---- 4x nn.TransformerEncoderLayer (post-norm, relu FFN, no dropout),
    #      weights stay VMEM-resident across the whole unrolled layer loop ----
    for l in range(num_layers):
        qkv = _dot(h, qkv_w_ref[l]) + qkv_bias[l:l + 1, :]          # [B*S, 3H]
        heads = []
        for hd in range(nhead):
            qh = qkv[:, hd * Dh:(hd + 1) * Dh]
            kh = qkv[:, H + hd * Dh:H + (hd + 1) * Dh]
            vh = qkv[:, 2 * H + hd * Dh:2 * H + (hd + 1) * Dh]
            s = _dot_nt(qh, kh) * scale                             # [B*S, B*S]
            s = jnp.where(same_batch, s, -1e30)                     # attention stays per-batch
            m = jnp.max(s, axis=-1, keepdims=True)
            p = jnp.exp(s - m)
            p = p * pl.reciprocal(jnp.sum(p, axis=-1, keepdims=True), approx=True)
            heads.append(_dot(p, vh))                               # [B*S, Dh]
        attn = jnp.concatenate(heads, axis=-1)                      # [B*S, H]
        attn = _dot(attn, op_w_ref[l]) + op_bias[l:l + 1, :]
        h = _layernorm(h + attn, ln1_g[l:l + 1, :], ln1_b[l:l + 1, :])
        ff = jnp.maximum(_dot(h, ff1_w_ref[l]) + ff1_bias[l:l + 1, :], 0.0)
        ff = _dot(ff, ff2_w_ref[l]) + ff2_bias[l:l + 1, :]
        h = _layernorm(h + ff, ln2_g[l:l + 1, :], ln2_b[l:l + 1, :])

    h = _layernorm(h, n2g_ref[...], n2b_ref[...])                   # norm2

    # ---- F.normalize(dim=1) : per-batch L2 norm over the sequence axis ----
    feat = [_l2norm_seq(h[b * S:(b + 1) * S, :]) for b in range(B)]

    # ---- fusion head: F.softmax(image_mlp(feat[:,1:,:])) with implicit dim -> 0
    #      (the BATCH axis for a 3-D tensor), then weighted pool + CLS residual ----
    logits = []
    for b in range(B):
        tail = feat[b][1:, :]                                       # [S-1, H]
        z = _gelu(_dot(tail, mlp1_w_ref[...]) + mlp1_b_ref[...])
        logits.append(_dot(z, mlp2_w_ref[...]) + mlp2_b_ref[...])   # [S-1, 1]
    logits = jnp.concatenate(logits, axis=-1)                       # [S-1, B]
    m = jnp.max(logits, axis=-1, keepdims=True)
    e = jnp.exp(logits - m)
    w = e * pl.reciprocal(jnp.sum(e, axis=-1, keepdims=True), approx=True)

    rows = []
    for b in range(B):
        tail = feat[b][1:, :]
        f2 = _dot(tail, lay_w_ref[...]) + lay_b_ref[...]            # [S-1, H]
        pooled = jnp.sum(w[:, b:b + 1] * f2, axis=0, keepdims=True) # [1, H]
        rows.append(pooled + feat[b][0:1, :])
    out_ref[...] = jnp.concatenate(rows, axis=0)                    # [B, H]


def image_branch(img_p, fus_p, x3d):
    B, S, Dimg = x3d.shape
    H = img_p["linear_w"].shape[1]
    L = img_p["qkv_w"].shape[0]
    x2 = x3d.reshape(B * S, Dimg)
    blk = jnp.arange(B * S, dtype=jnp.int32) // S
    mask = (blk[:, None] == blk[None, :]).astype(jnp.float32)
    kern = functools.partial(_image_branch_kernel, B=B, S=S, H=H, nhead=8, num_layers=L)
    return pl.pallas_call(
        kern,
        out_shape=jax.ShapeDtypeStruct((B, H), jnp.float32),
    )(x2, mask,
      img_p["norm1_g"], img_p["norm1_b"],
      img_p["linear_w"], img_p["linear_b"],
      img_p["linear_out_w"], img_p["linear_out_b"],
      img_p["qkv_w"], img_p["qkv_b"],
      img_p["out_proj_w"], img_p["out_proj_b"],
      img_p["ff1_w"], img_p["ff1_b"],
      img_p["ff2_w"], img_p["ff2_b"],
      img_p["ln1_g"], img_p["ln1_b"],
      img_p["ln2_g"], img_p["ln2_b"],
      img_p["norm2_g"], img_p["norm2_b"],
      fus_p["mlp1_w"], fus_p["mlp1_b"],
      fus_p["mlp2_w"], fus_p["mlp2_b"],
      fus_p["layer_w"], fus_p["layer_b"])


# ----------------------------------------------------------------------------
# Kernel 2: full text branch (text_network + cap fusion head) in one pallas_call
# ----------------------------------------------------------------------------
def _text_branch_kernel(
    x_ref,
    ln1_g_ref, ln1_b_ref, fc1_w_ref, fc1_b_ref, fc2_w_ref, fc2_b_ref,
    ln2_g_ref, ln2_b_ref,
    mlp1_w_ref, mlp1_b_ref, mlp2_w_ref, mlp2_b_ref, lay_w_ref, lay_b_ref,
    out_ref,
    *, B, S, H):
    h = _layernorm(x_ref[...], ln1_g_ref[...], ln1_b_ref[...])
    h = _gelu(_dot(h, fc1_w_ref[...]) + fc1_b_ref[...])             # dropout = eval
    h = _dot(h, fc2_w_ref[...]) + fc2_b_ref[...]
    h = _layernorm(h, ln2_g_ref[...], ln2_b_ref[...])               # [B*S, H]

    rows = []
    for b in range(B):
        blk = _l2norm_seq(h[b * S:(b + 1) * S, :])                  # F.normalize(dim=1)
        tail = blk[1:, :]                                           # [S-1, H]
        z = _gelu(_dot(tail, mlp1_w_ref[...]) + mlp1_b_ref[...])
        z = _dot(z, mlp2_w_ref[...]) + mlp2_b_ref[...]              # [S-1, 1]
        m = jnp.max(z, axis=0, keepdims=True)                       # softmax over seq (dim=1)
        e = jnp.exp(z - m)
        wgt = e * pl.reciprocal(jnp.sum(e, axis=0, keepdims=True), approx=True)
        f2 = _dot(tail, lay_w_ref[...]) + lay_b_ref[...]
        pooled = jnp.sum(wgt * f2, axis=0, keepdims=True)           # [1, H]
        rows.append(pooled + blk[0:1, :])
    out_ref[...] = jnp.concatenate(rows, axis=0)                    # [B, H]


def text_branch(txt_p, fus_p, cap3d):
    B, S, Dc = cap3d.shape
    H = txt_p["fc2_w"].shape[1]
    x2 = cap3d.reshape(B * S, Dc)
    kern = functools.partial(_text_branch_kernel, B=B, S=S, H=H)
    return pl.pallas_call(
        kern,
        out_shape=jax.ShapeDtypeStruct((B, H), jnp.float32),
    )(x2,
      txt_p["ln1_g"], txt_p["ln1_b"],
      txt_p["fc1_w"], txt_p["fc1_b"],
      txt_p["fc2_w"], txt_p["fc2_b"],
      txt_p["ln2_g"], txt_p["ln2_b"],
      fus_p["mlp1_w"], fus_p["mlp1_b"],
      fus_p["mlp2_w"], fus_p["mlp2_b"],
      fus_p["layer_w"], fus_p["layer_b"])


# ----------------------------------------------------------------------------
# Kernel 3: cosine-similarity matrix + both InfoNCE directions
# ----------------------------------------------------------------------------
def _loss_kernel(cap_ref, img_ref, pos_ref, score_ref, loss_ref, *, temp):
    a = cap_ref[...]                                                # [B, H] (rows: captions)
    b = img_ref[...]                                                # [B, H] (cols: images)
    pos = pos_ref[...]                                              # [B, B]
    H = a.shape[1]

    dots = _dot_nt(a, b)                                            # [B, B]
    na = jnp.sqrt(jnp.sum(a * a, axis=-1, keepdims=True))           # [B, 1]
    nb_row = jnp.sqrt(_dot_nt(jnp.ones((1, H), jnp.float32), b * b))  # [1, B]
    score = dots / jnp.maximum(na * nb_row, 1e-8)                   # F.cosine_similarity eps
    score_ref[...] = score

    inv_t = 1.0 / temp

    def nce(axis):
        z = score * inv_t
        m = jnp.max(z, axis=axis, keepdims=True)                    # cancels in the ratio
        e = jnp.exp(z - m)
        ratio = (jnp.sum(e * pos, axis=axis, keepdims=True)
                 / jnp.sum(e, axis=axis, keepdims=True))
        return -jnp.sum(jnp.log(ratio), axis=1 - axis, keepdims=True)  # [1, 1]

    # Info_NCE(score, pos) + Info_NCE(score.T, pos.T) without materializing transposes.
    loss_ref[...] = nce(1) + nce(0)


def similarity_loss(cap_out, img_out, pos_idx, temp=0.05):
    B = cap_out.shape[0]
    kern = functools.partial(_loss_kernel, temp=temp)
    score, loss = pl.pallas_call(
        kern,
        out_shape=(jax.ShapeDtypeStruct((B, B), jnp.float32),
                   jax.ShapeDtypeStruct((1, 1), jnp.float32)),
    )(cap_out, img_out, pos_idx)
    return loss[0, 0], score


# ----------------------------------------------------------------------------
# Forward pass (thin JAX glue: concat / reshape / pos-idx construction only)
# ----------------------------------------------------------------------------
def classifier_forward(params, image_input, cap_bert, idx, img_delta, txt_delta):
    # TODO(synk): img_delta / txt_delta only feed the skipped BertForMaskedLM fusion
    # branches (loss_itm / img_kl_loss / loss_mlm), so the noisy passes are not traced.
    del img_delta, txt_delta
    B, _, Dimg = image_input.shape

    IMG = jnp.ones((B, 1, Dimg), jnp.float32)
    image_cat = jnp.concatenate([IMG, image_input], axis=1)         # [B, Nimg+1, Dimg]

    img_out = image_branch(params["image_net"], params["img_fusion"], image_cat)   # [B, H]
    # TODO(synk): self.bert_model.bert(..., mode='text') is not translatable; `cap_bert`
    # stands in for its last_hidden_state.
    cap_out = text_branch(params["text_net"], params["cap_fusion"], cap_bert)      # [B, H]

    idxv = idx.reshape(-1, 1)
    pos_idx = (idxv == idxv.T).astype(jnp.float32)

    loss_bf, score_bf = similarity_loss(cap_out, img_out, pos_idx, temp=0.05)

    # TODO(synk): loss_itm, img_kl_loss, loss_mlm require BertForMaskedLM + tokenizer masking.
    loss_num = 0.1 * loss_bf
    return loss_num, score_bf


# ----------------------------------------------------------------------------
# Deterministic parameter construction (per-layer weights stacked on axis 0)
# ----------------------------------------------------------------------------
class _KeyGen:
    def __init__(self, key):
        self.key = key

    def __call__(self):
        self.key, sub = jax.random.split(self.key)
        return sub


def init_params(key, image_dim, cap_emd, hidden_dim, num_layers=4):
    kg = _KeyGen(key)
    H = hidden_dim

    def lin(din, dout, scale=0.02):
        return (scale * jax.random.normal(kg(), (din, dout), jnp.float32),
                jnp.zeros((1, dout), jnp.float32))

    img = {
        "norm1_g": jnp.ones((1, image_dim), jnp.float32),
        "norm1_b": jnp.zeros((1, image_dim), jnp.float32),
        "norm2_g": jnp.ones((1, H), jnp.float32),
        "norm2_b": jnp.zeros((1, H), jnp.float32),
    }
    img["linear_w"], img["linear_b"] = lin(image_dim, H)
    img["linear_out_w"], img["linear_out_b"] = lin(H, H)

    qkv_w, qkv_b, op_w, op_b = [], [], [], []
    ff1_w, ff1_b, ff2_w, ff2_b = [], [], [], []
    ln1_g, ln1_b, ln2_g, ln2_b = [], [], [], []
    for _ in range(num_layers):
        w, b = lin(H, 3 * H); qkv_w.append(w); qkv_b.append(b[0])
        w, b = lin(H, H); op_w.append(w); op_b.append(b[0])
        w, b = lin(H, image_dim); ff1_w.append(w); ff1_b.append(b[0])   # dim_feedforward=image_dim
        w, b = lin(image_dim, H); ff2_w.append(w); ff2_b.append(b[0])
        ln1_g.append(jnp.ones((H,), jnp.float32)); ln1_b.append(jnp.zeros((H,), jnp.float32))
        ln2_g.append(jnp.ones((H,), jnp.float32)); ln2_b.append(jnp.zeros((H,), jnp.float32))
    img["qkv_w"] = jnp.stack(qkv_w);      img["qkv_b"] = jnp.stack(qkv_b)
    img["out_proj_w"] = jnp.stack(op_w);  img["out_proj_b"] = jnp.stack(op_b)
    img["ff1_w"] = jnp.stack(ff1_w);      img["ff1_b"] = jnp.stack(ff1_b)
    img["ff2_w"] = jnp.stack(ff2_w);      img["ff2_b"] = jnp.stack(ff2_b)
    img["ln1_g"] = jnp.stack(ln1_g);      img["ln1_b"] = jnp.stack(ln1_b)
    img["ln2_g"] = jnp.stack(ln2_g);      img["ln2_b"] = jnp.stack(ln2_b)

    txt = {
        "ln1_g": jnp.ones((1, cap_emd), jnp.float32),
        "ln1_b": jnp.zeros((1, cap_emd), jnp.float32),
        "ln2_g": jnp.ones((1, H), jnp.float32),
        "ln2_b": jnp.zeros((1, H), jnp.float32),
    }
    txt["fc1_w"], txt["fc1_b"] = lin(cap_emd, cap_emd)
    txt["fc2_w"], txt["fc2_b"] = lin(cap_emd, H)

    img_fusion = {}
    img_fusion["mlp1_w"], img_fusion["mlp1_b"] = lin(H, H)
    img_fusion["mlp2_w"], img_fusion["mlp2_b"] = lin(H, 1)
    img_fusion["layer_w"], img_fusion["layer_b"] = lin(H, H)

    cap_fusion = {}
    cap_fusion["mlp1_w"], cap_fusion["mlp1_b"] = lin(H, H)
    cap_fusion["mlp2_w"], cap_fusion["mlp2_b"] = lin(H, 1)
    cap_fusion["layer_w"], cap_fusion["layer_b"] = lin(H, H)

    params = {
        "image_net": img,
        "text_net": txt,
        "img_fusion": img_fusion,
        "cap_fusion": cap_fusion,
    }
    # TODO(synk): itm_head is unused here (it needs the skipped BERT fusion CLS output).
    params["itm_head_w"], params["itm_head_b"] = lin(H, 2)
    return params


# ----------------------------------------------------------------------------
if __name__ == "__main__":
    B, Nimg, image_dim = 2, 7, 32
    St, cap_emd, hidden_dim = 8, 32, 32

    key = jax.random.PRNGKey(0)
    k1, k2, k3, k4, k5 = jax.random.split(key, 5)

    image_input = jax.random.normal(k1, (B, Nimg, image_dim), jnp.float32)
    cap_bert = jax.random.normal(k2, (B, St, cap_emd), jnp.float32)   # stand-in for BERT text output
    img_delta = 0.01 * jax.random.normal(k3, (B, Nimg, image_dim), jnp.float32)
    txt_delta = 0.01 * jax.random.normal(k4, (B, St, cap_emd), jnp.float32)
    idx = jnp.array([0, 1], dtype=jnp.int32)

    params = init_params(k5, image_dim, cap_emd, hidden_dim)

    loss, score_bf = jax.jit(classifier_forward)(params, image_input, cap_bert, idx,
                                                 img_delta, txt_delta)
    jax.block_until_ready((loss, score_bf))
    assert jnp.isfinite(loss), "non-finite loss"
    assert score_bf.shape == (B, B)
    print("KERNEL_OK")
</pallas_src>

<mosaic_0001>
module attributes {stable_mosaic.version = 11 : i64} {
  func.func @_text_branch_kernel(%arg0: memref<16x32xf32, #tpu.memory_space<vmem>>, %arg1: memref<1x32xf32, #tpu.memory_space<vmem>>, %arg2: memref<1x32xf32, #tpu.memory_space<vmem>>, %arg3: memref<32x32xf32, #tpu.memory_space<vmem>>, %arg4: memref<1x32xf32, #tpu.memory_space<vmem>>, %arg5: memref<32x32xf32, #tpu.memory_space<vmem>>, %arg6: memref<1x32xf32, #tpu.memory_space<vmem>>, %arg7: memref<1x32xf32, #tpu.memory_space<vmem>>, %arg8: memref<1x32xf32, #tpu.memory_space<vmem>>, %arg9: memref<32x32xf32, #tpu.memory_space<vmem>>, %arg10: memref<1x32xf32, #tpu.memory_space<vmem>>, %arg11: memref<32x1xf32, #tpu.memory_space<vmem>>, %arg12: memref<1x1xf32, #tpu.memory_space<vmem>>, %arg13: memref<32x32xf32, #tpu.memory_space<vmem>>, %arg14: memref<1x32xf32, #tpu.memory_space<vmem>>, %arg15: memref<2x32xf32, #tpu.memory_space<vmem>>) attributes {dimension_semantics = [], scalar_prefetch = 0 : i64, scratch_operands = 0 : i64, tpu.core_type = #tpu.core_type<tc>} {
    %c0 = arith.constant 0 : index
    %c0_0 = arith.constant 0 : index
    %0 = vector.load %arg0[%c0, %c0_0] : memref<16x32xf32, #tpu.memory_space<vmem>>, vector<16x32xf32>
    %c0_1 = arith.constant 0 : index
    %c0_2 = arith.constant 0 : index
    %1 = vector.load %arg1[%c0_1, %c0_2] : memref<1x32xf32, #tpu.memory_space<vmem>>, vector<1x32xf32>
    %c0_3 = arith.constant 0 : index
    %c0_4 = arith.constant 0 : index
    %2 = vector.load %arg2[%c0_3, %c0_4] : memref<1x32xf32, #tpu.memory_space<vmem>>, vector<1x32xf32>
    %cst = arith.constant dense<0.000000e+00> : vector<16xf32>
    %3 = vector.multi_reduction <add>, %0, %cst [1] : vector<16x32xf32> to vector<16xf32>
    %4 = vector.shape_cast %3 : vector<16xf32> to vector<16x1xf32>
    %cst_5 = arith.constant 3.200000e+01 : f32
    %5 = vector.broadcast %cst_5 : f32 to vector<16x1xf32>
    %6 = arith.divf %4, %5 : vector<16x1xf32>
    %7 = vector.broadcast %6 : vector<16x1xf32> to vector<16x32xf32>
    %8 = arith.subf %0, %7 : vector<16x32xf32>
    %9 = arith.mulf %8, %8 : vector<16x32xf32>
    %cst_6 = arith.constant dense<0.000000e+00> : vector<16xf32>
    %10 = vector.multi_reduction <add>, %9, %cst_6 [1] : vector<16x32xf32> to vector<16xf32>
    %11 = vector.shape_cast %10 : vector<16xf32> to vector<16x1xf32>
    %cst_7 = arith.constant 3.200000e+01 : f32
    %12 = vector.broadcast %cst_7 : f32 to vector<16x1xf32>
    %13 = arith.divf %11, %12 : vector<16x1xf32>
    %cst_8 = arith.constant 9.99999974E-6 : f32
    %14 = vector.broadcast %cst_8 : f32 to vector<16x1xf32>
    %15 = arith.addf %13, %14 : vector<16x1xf32>
    %16 = math.rsqrt %15 : vector<16x1xf32>
    %17 = vector.broadcast %16 : vector<16x1xf32> to vector<16x32xf32>
    %18 = arith.mulf %8, %17 : vector<16x32xf32>
    %19 = vector.broadcast %1 : vector<1x32xf32> to vector<16x32xf32>
    %20 = arith.mulf %18, %19 : vector<16x32xf32>
    %21 = vector.broadcast %2 : vector<1x32xf32> to vector<16x32xf32>
    %22 = arith.addf %20, %21 : vector<16x32xf32>
    %c0_9 = arith.constant 0 : index
    %c0_10 = arith.constant 0 : index
    %23 = vector.load %arg3[%c0_9, %c0_10] : memref<32x32xf32, #tpu.memory_space<vmem>>, vector<32x32xf32>
    %cst_11 = arith.constant dense<0.000000e+00> : vector<16x32xf32>
    %24 = tpu.matmul %22, %23, %cst_11 {dimension_numbers = #tpu.dot_dimension_numbers<[1], [0], [0], [1], [0, 0, 1, 1], [], []>} : vector<16x32xf32>, vector<32x32xf32>, vector<16x32xf32> -> vector<16x32xf32>
    %c0_12 = arith.constant 0 : index
    %c0_13 = arith.constant 0 : index
    %25 = vector.load %arg4[%c0_12, %c0_13] : memref<1x32xf32, #tpu.memory_space<vmem>>, vector<1x32xf32>
    %26 = vector.broadcast %25 : vector<1x32xf32> to vector<16x32xf32>
    %27 = arith.addf %24, %26 : vector<16x32xf32>
    %cst_14 = arith.constant 5.000000e-01 : f32
    %28 = vector.broadcast %cst_14 : f32 to vector<16x32xf32>
    %29 = arith.mulf %28, %27 : vector<16x32xf32>
    %cst_15 = arith.constant 0.707106769 : f32
    %30 = vector.broadcast %cst_15 : f32 to vector<16x32xf32>
    %31 = arith.mulf %27, %30 : vector<16x32xf32>
    %cst_16 = arith.constant 0.000000e+00 : f32
    %32 = vector.broadcast %cst_16 : f32 to vector<16x32xf32>
    %33 = arith.cmpf oge, %31, %32 : vector<16x32xf32>
    %cst_17 = arith.constant 1.000000e+00 : f32
    %cst_18 = arith.constant -1.000000e+00 : f32
    %34 = vector.broadcast %cst_17 : f32 to vector<16x32xf32>
    %35 = vector.broadcast %cst_18 : f32 to vector<16x32xf32>
    %36 = arith.select %33, %34, %35 : vector<16x32xi1>, vector<16x32xf32>
    %37 = math.absf %31 : vector<16x32xf32>
    %cst_19 = arith.constant 0.327591091 : f32
    %38 = vector.broadcast %cst_19 : f32 to vector<16x32xf32>
    %39 = arith.mulf %38, %37 : vector<16x32xf32>
    %cst_20 = arith.constant 1.000000e+00 : f32
    %40 = vector.broadcast %cst_20 : f32 to vector<16x32xf32>
    %41 = arith.addf %40, %39 : vector<16x32xf32>
    %cst_21 = arith.constant 1.000000e+00 : f32
    %42 = vector.broadcast %cst_21 : f32 to vector<16x32xf32>
    %43 = arith.divf %42, %41 : vector<16x32xf32>
    %cst_22 = arith.constant 1.06140542 : f32
    %44 = vector.broadcast %cst_22 : f32 to vector<16x32xf32>
    %45 = arith.mulf %44, %43 : vector<16x32xf32>
    %cst_23 = arith.constant -1.45315206 : f32
    %46 = vector.broadcast %cst_23 : f32 to vector<16x32xf32>
    %47 = arith.addf %45, %46 : vector<16x32xf32>
    %48 = arith.mulf %47, %43 : vector<16x32xf32>
    %cst_24 = arith.constant 1.42141378 : f32
    %49 = vector.broadcast %cst_24 : f32 to vector<16x32xf32>
    %50 = arith.addf %48, %49 : vector<16x32xf32>
    %51 = arith.mulf %50, %43 : vector<16x32xf32>
    %cst_25 = arith.constant -0.284496725 : f32
    %52 = vector.broadcast %cst_25 : f32 to vector<16x32xf32>
    %53 = arith.addf %51, %52 : vector<16x32xf32>
    %54 = arith.mulf %53, %43 : vector<16x32xf32>
    %cst_26 = arith.constant 0.254829586 : f32
    %55 = vector.broadcast %cst_26 : f32 to vector<16x32xf32>
    %56 = arith.addf %54, %55 : vector<16x32xf32>
    %57 = arith.mulf %56, %43 : vector<16x32xf32>
    %cst_27 = arith.constant 0.000000e+00 : f32
    %58 = vector.broadcast %cst_27 : f32 to vector<16x32xf32>
    %59 = arith.subf %58, %37 : vector<16x32xf32>
    %60 = arith.mulf %59, %37 : vector<16x32xf32>
    %61 = math.exp %60 : vector<16x32xf32>
    %62 = arith.mulf %57, %61 : vector<16x32xf32>
    %cst_28 = arith.constant 1.000000e+00 : f32
    %63 = vector.broadcast %cst_28 : f32 to vector<16x32xf32>
    %64 = arith.subf %63, %62 : vector<16x32xf32>
    %65 = arith.mulf %36, %64 : vector<16x32xf32>
    %cst_29 = arith.constant 1.000000e+00 : f32
    %66 = vector.broadcast %cst_29 : f32 to vector<16x32xf32>
    %67 = arith.addf %66, %65 : vector<16x32xf32>
    %68 = arith.mulf %29, %67 : vector<16x32xf32>
    %c0_30 = arith.constant 0 : index
    %c0_31 = arith.constant 0 : index
    %69 = vector.load %arg5[%c0_30, %c0_31] : memref<32x32xf32, #tpu.memory_space<vmem>>, vector<32x32xf32>
    %cst_32 = arith.constant dense<0.000000e+00> : vector<16x32xf32>
    %70 = tpu.matmul %68, %69, %cst_32 {dimension_numbers = #tpu.dot_dimension_numbers<[1], [0], [0], [1], [0, 0, 1, 1], [], []>} : vector<16x32xf32>, vector<32x32xf32>, vector<16x32xf32> -> vector<16x32xf32>
    %c0_33 = arith.constant 0 : index
    %c0_34 = arith.constant 0 : index
    %71 = vector.load %arg6[%c0_33, %c0_34] : memref<1x32xf32, #tpu.memory_space<vmem>>, vector<1x32xf32>
    %72 = vector.broadcast %71 : vector<1x32xf32> to vector<16x32xf32>
    %73 = arith.addf %70, %72 : vector<16x32xf32>
    %c0_35 = arith.constant 0 : index
    %c0_36 = arith.constant 0 : index
    %74 = vector.load %arg7[%c0_35, %c0_36] : memref<1x32xf32, #tpu.memory_space<vmem>>, vector<1x32xf32>
    %c0_37 = arith.constant 0 : index
    %c0_38 = arith.constant 0 : index
    %75 = vector.load %arg8[%c0_37, %c0_38] : memref<1x32xf32, #tpu.memory_space<vmem>>, vector<1x32xf32>
    %cst_39 = arith.constant dense<0.000000e+00> : vector<16xf32>
    %76 = vector.multi_reduction <add>, %73, %cst_39 [1] : vector<16x32xf32> to vector<16xf32>
    %77 = vector.shape_cast %76 : vector<16xf32> to vector<16x1xf32>
    %cst_40 = arith.constant 3.200000e+01 : f32
    %78 = vector.broadcast %cst_40 : f32 to vector<16x1xf32>
    %79 = arith.divf %77, %78 : vector<16x1xf32>
    %80 = vector.broadcast %79 : vector<16x1xf32> to vector<16x32xf32>
    %81 = arith.subf %73, %80 : vector<16x32xf32>
    %82 = arith.mulf %81, %81 : vector<16x32xf32>
    %cst_41 = arith.constant dense<0.000000e+00> : vector<16xf32>
    %83 = vector.multi_reduction <add>, %82, %cst_41 [1] : vector<16x32xf32> to vector<16xf32>
    %84 = vector.shape_cast %83 : vector<16xf32> to vector<16x1xf32>
    %cst_42 = arith.constant 3.200000e+01 : f32
    %85 = vector.broadcast %cst_42 : f32 to vector<16x1xf32>
    %86 = arith.divf %84, %85 : vector<16x1xf32>
    %cst_43 = arith.constant 9.99999974E-6 : f32
    %87 = vector.broadcast %cst_43 : f32 to vector<16x1xf32>
    %88 = arith.addf %86, %87 : vector<16x1xf32>
    %89 = math.rsqrt %88 : vector<16x1xf32>
    %90 = vector.broadcast %89 : vector<16x1xf32> to vector<16x32xf32>
    %91 = arith.mulf %81, %90 : vector<16x32xf32>
    %92 = vector.broadcast %74 : vector<1x32xf32> to vector<16x32xf32>
    %93 = arith.mulf %91, %92 : vector<16x32xf32>
    %94 = vector.broadcast %75 : vector<1x32xf32> to vector<16x32xf32>
    %95 = arith.addf %93, %94 : vector<16x32xf32>
    %96 = vector.extract_strided_slice %95 {offsets = [0, 0], sizes = [8, 32], strides = [1, 1]} : vector<16x32xf32> to vector<8x32xf32>
    %97 = arith.mulf %96, %96 : vector<8x32xf32>
    %cst_44 = arith.constant dense<0.000000e+00> : vector<32xf32>
    %98 = vector.multi_reduction <add>, %97, %cst_44 [0] : vector<8x32xf32> to vector<32xf32>
    %99 = vector.shape_cast %98 : vector<32xf32> to vector<1x32xf32>
    %100 = math.sqrt %99 : vector<1x32xf32>
    %cst_45 = arith.constant 9.99999996E-13 : f32
    %101 = vector.broadcast %cst_45 : f32 to vector<1x32xf32>
    %102 = arith.maximumf %100, %101 : vector<1x32xf32>
    %103 = tpu.reciprocal %102 {approx = true} : vector<1x32xf32> -> vector<1x32xf32>
    %104 = vector.broadcast %103 : vector<1x32xf32> to vector<8x32xf32>
    %105 = arith.mulf %96, %104 : vector<8x32xf32>
    %106 = vector.extract_strided_slice %105 {offsets = [1, 0], sizes = [7, 32], strides = [1, 1]} : vector<8x32xf32> to vector<7x32xf32>
    %c0_46 = arith.constant 0 : index
    %c0_47 = arith.constant 0 : index
    %107 = vector.load %arg9[%c0_46, %c0_47] : memref<32x32xf32, #tpu.memory_space<vmem>>, vector<32x32xf32>
    %cst_48 = arith.constant dense<0.000000e+00> : vector<7x32xf32>
    %108 = tpu.matmul %106, %107, %cst_48 {dimension_numbers = #tpu.dot_dimension_numbers<[1], [0], [0], [1], [0, 0, 1, 1], [], []>} : vector<7x32xf32>, vector<32x32xf32>, vector<7x32xf32> -> vector<7x32xf32>
    %c0_49 = arith.constant 0 : index
    %c0_50 = arith.constant 0 : index
    %109 = vector.load %arg10[%c0_49, %c0_50] : memref<1x32xf32, #tpu.memory_space<vmem>>, vector<1x32xf32>
    %110 = vector.broadcast %109 : vector<1x32xf32> to vector<7x32xf32>
    %111 = arith.addf %108, %110 : vector<7x32xf32>
    %cst_51 = arith.constant 5.000000e-01 : f32
    %112 = vector.broadcast %cst_51 : f32 to vector<7x32xf32>
    %113 = arith.mulf %112, %111 : vector<7x32xf32>
    %cst_52 = arith.constant 0.707106769 : f32
    %114 = vector.broadcast %cst_52 : f32 to vector<7x32xf32>
    %115 = arith.mulf %111, %114 : vector<7x32xf32>
    %cst_53 = arith.constant 0.000000e+00 : f32
    %116 = vector.broadcast %cst_53 : f32 to vector<7x32xf32>
    %117 = arith.cmpf oge, %115, %116 : vector<7x32xf32>
    %cst_54 = arith.constant 1.000000e+00 : f32
    %cst_55 = arith.constant -1.000000e+00 : f32
    %118 = vector.broadcast %cst_54 : f32 to vector<7x32xf32>
    %119 = vector.broadcast %cst_55 : f32 to vector<7x32xf32>
    %120 = arith.select %117, %118, %119 : vector<7x32xi1>, vector<7x32xf32>
    %121 = math.absf %115 : vector<7x32xf32>
    %cst_56 = arith.constant 0.327591091 : f32
    %122 = vector.broadcast %cst_56 : f32 to vector<7x32xf32>
    %123 = arith.mulf %122, %121 : vector<7x32xf32>
    %cst_57 = arith.constant 1.000000e+00 : f32
    %124 = vector.broadcast %cst_57 : f32 to vector<7x32xf32>
    %125 = arith.addf %124, %123 : vector<7x32xf32>
    %cst_58 = arith.constant 1.000000e+00 : f32
    %126 = vector.broadcast %cst_58 : f32 to vector<7x32xf32>
    %127 = arith.divf %126, %125 : vector<7x32xf32>
    %cst_59 = arith.constant 1.06140542 : f32
    %128 = vector.broadcast %cst_59 : f32 to vector<7x32xf32>
    %129 = arith.mulf %128, %127 : vector<7x32xf32>
    %cst_60 = arith.constant -1.45315206 : f32
    %130 = vector.broadcast %cst_60 : f32 to vector<7x32xf32>
    %131 = arith.addf %129, %130 : vector<7x32xf32>
    %132 = arith.mulf %131, %127 : vector<7x32xf32>
    %cst_61 = arith.constant 1.42141378 : f32
    %133 = vector.broadcast %cst_61 : f32 to vector<7x32xf32>
    %134 = arith.addf %132, %133 : vector<7x32xf32>
    %135 = arith.mulf %134, %127 : vector<7x32xf32>
    %cst_62 = arith.constant -0.284496725 : f32
    %136 = vector.broadcast %cst_62 : f32 to vector<7x32xf32>
    %137 = arith.addf %135, %136 : vector<7x32xf32>
    %138 = arith.mulf %137, %127 : vector<7x32xf32>
    %cst_63 = arith.constant 0.254829586 : f32
    %139 = vector.broadcast %cst_63 : f32 to vector<7x32xf32>
    %140 = arith.addf %138, %139 : vector<7x32xf32>
    %141 = arith.mulf %140, %127 : vector<7x32xf32>
    %cst_64 = arith.constant 0.000000e+00 : f32
    %142 = vector.broadcast %cst_64 : f32 to vector<7x32xf32>
    %143 = arith.subf %142, %121 : vector<7x32xf32>
    %144 = arith.mulf %143, %121 : vector<7x32xf32>
    %145 = math.exp %144 : vector<7x32xf32>
    %146 = arith.mulf %141, %145 : vector<7x32xf32>
    %cst_65 = arith.constant 1.000000e+00 : f32
    %147 = vector.broadcast %cst_65 : f32 to vector<7x32xf32>
    %148 = arith.subf %147, %146 : vector<7x32xf32>
    %149 = arith.mulf %120, %148 : vector<7x32xf32>
    %cst_66 = arith.constant 1.000000e+00 : f32
    %150 = vector.broadcast %cst_66 : f32 to vector<7x32xf32>
    %151 = arith.addf %150, %149 : vector<7x32xf32>
    %152 = arith.mulf %113, %151 : vector<7x32xf32>
    %c0_67 = arith.constant 0 : index
    %c0_68 = arith.constant 0 : index
    %153 = vector.load %arg11[%c0_67, %c0_68] : memref<32x1xf32, #tpu.memory_space<vmem>>, vector<32x1xf32>
    %cst_69 = arith.constant dense<0.000000e+00> : vector<7x1xf32>
    %154 = tpu.matmul %152, %153, %cst_69 {dimension_numbers = #tpu.dot_dimension_numbers<[1], [0], [0], [1], [0, 0, 1, 1], [], []>} : vector<7x32xf32>, vector<32x1xf32>, vector<7x1xf32> -> vector<7x1xf32>
    %c0_70 = arith.constant 0 : index
    %c0_71 = arith.constant 0 : index
    %155 = vector.load %arg12[%c0_70, %c0_71] : memref<1x1xf32, #tpu.memory_space<vmem>>, vector<1x1xf32>
    %156 = vector.broadcast %155 : vector<1x1xf32> to vector<7x1xf32>
    %157 = arith.addf %154, %156 : vector<7x1xf32>
    %cst_72 = arith.constant dense<0xFF800000> : vector<1xf32>
    %158 = vector.multi_reduction <maximumf>, %157, %cst_72 [0] : vector<7x1xf32> to vector<1xf32>
    %159 = vector.shape_cast %158 : vector<1xf32> to vector<1x1xf32>
    %160 = vector.broadcast %159 : vector<1x1xf32> to vector<7x1xf32>
    %161 = arith.subf %157, %160 : vector<7x1xf32>
    %162 = math.exp %161 : vector<7x1xf32>
    %cst_73 = arith.constant dense<0.000000e+00> : vector<1xf32>
    %163 = vector.multi_reduction <add>, %162, %cst_73 [0] : vector<7x1xf32> to vector<1xf32>
    %164 = vector.shape_cast %163 : vector<1xf32> to vector<1x1xf32>
    %165 = tpu.reciprocal %164 {approx = true} : vector<1x1xf32> -> vector<1x1xf32>
    %166 = vector.broadcast %165 : vector<1x1xf32> to vector<7x1xf32>
    %167 = arith.mulf %162, %166 : vector<7x1xf32>
    %c0_74 = arith.constant 0 : index
    %c0_75 = arith.constant 0 : index
    %168 = vector.load %arg13[%c0_74, %c0_75] : memref<32x32xf32, #tpu.memory_space<vmem>>, vector<32x32xf32>
    %cst_76 = arith.constant dense<0.000000e+00> : vector<7x32xf32>
    %169 = tpu.matmul %106, %168, %cst_76 {dimension_numbers = #tpu.dot_dimension_numbers<[1], [0], [0], [1], [0, 0, 1, 1], [], []>} : vector<7x32xf32>, vector<32x32xf32>, vector<7x32xf32> -> vector<7x32xf32>
    %c0_77 = arith.constant 0 : index
    %c0_78 = arith.constant 0 : index
    %170 = vector.load %arg14[%c0_77, %c0_78] : memref<1x32xf32, #tpu.memory_space<vmem>>, vector<1x32xf32>
    %171 = vector.broadcast %170 : vector<1x32xf32> to vector<7x32xf32>
    %172 = arith.addf %169, %171 : vector<7x32xf32>
    %173 = vector.broadcast %167 : vector<7x1xf32> to vector<7x32xf32>
    %174 = arith.mulf %173, %172 : vector<7x32xf32>
    %cst_79 = arith.constant dense<0.000000e+00> : vector<32xf32>
    %175 = vector.multi_reduction <add>, %174, %cst_79 [0] : vector<7x32xf32> to vector<32xf32>
    %176 = vector.shape_cast %175 : vector<32xf32> to vector<1x32xf32>
    %177 = vector.extract_strided_slice %105 {offsets = [0, 0], sizes = [1, 32], strides = [1, 1]} : vector<8x32xf32> to vector<1x32xf32>
    %178 = arith.addf %176, %177 : vector<1x32xf32>
    %179 = vector.extract_strided_slice %95 {offsets = [8, 0], sizes = [8, 32], strides = [1, 1]} : vector<16x32xf32> to vector<8x32xf32>
    %180 = arith.mulf %179, %179 : vector<8x32xf32>
    %cst_80 = arith.constant dense<0.000000e+00> : vector<32xf32>
    %181 = vector.multi_reduction <add>, %180, %cst_80 [0] : vector<8x32xf32> to vector<32xf32>
    %182 = vector.shape_cast %181 : vector<32xf32> to vector<1x32xf32>
    %183 = math.sqrt %182 : vector<1x32xf32>
    %cst_81 = arith.constant 9.99999996E-13 : f32
    %184 = vector.broadcast %cst_81 : f32 to vector<1x32xf32>
    %185 = arith.maximumf %183, %184 : vector<1x32xf32>
    %186 = tpu.reciprocal %185 {approx = true} : vector<1x32xf32> -> vector<1x32xf32>
    %187 = vector.broadcast %186 : vector<1x32xf32> to vector<8x32xf32>
    %188 = arith.mulf %179, %187 : vector<8x32xf32>
    %189 = vector.extract_strided_slice %188 {offsets = [1, 0], sizes = [7, 32], strides = [1, 1]} : vector<8x32xf32> to vector<7x32xf32>
    %c0_82 = arith.constant 0 : index
    %c0_83 = arith.constant 0 : index
    %190 = vector.load %arg9[%c0_82, %c0_83] : memref<32x32xf32, #tpu.memory_space<vmem>>, vector<32x32xf32>
    %cst_84 = arith.constant dense<0.000000e+00> : vector<7x32xf32>
    %191 = tpu.matmul %189, %190, %cst_84 {dimension_numbers = #tpu.dot_dimension_numbers<[1], [0], [0], [1], [0, 0, 1, 1], [], []>} : vector<7x32xf32>, vector<32x32xf32>, vector<7x32xf32> -> vector<7x32xf32>
    %c0_85 = arith.constant 0 : index
    %c0_86 = arith.constant 0 : index
    %192 = vector.load %arg10[%c0_85, %c0_86] : memref<1x32xf32, #tpu.memory_space<vmem>>, vector<1x32xf32>
    %193 = vector.broadcast %192 : vector<1x32xf32> to vector<7x32xf32>
    %194 = arith.addf %191, %193 : vector<7x32xf32>
    %cst_87 = arith.constant 5.000000e-01 : f32
    %195 = vector.broadcast %cst_87 : f32 to vector<7x32xf32>
    %196 = arith.mulf %195, %194 : vector<7x32xf32>
    %cst_88 = arith.constant 0.707106769 : f32
    %197 = vector.broadcast %cst_88 : f32 to vector<7x32xf32>
    %198 = arith.mulf %194, %197 : vector<7x32xf32>
    %cst_89 = arith.constant 0.000000e+00 : f32
    %199 = vector.broadcast %cst_89 : f32 to vector<7x32xf32>
    %200 = arith.cmpf oge, %198, %199 : vector<7x32xf32>
    %cst_90 = arith.constant 1.000000e+00 : f32
    %cst_91 = arith.constant -1.000000e+00 : f32
    %201 = vector.broadcast %cst_90 : f32 to vector<7x32xf32>
    %202 = vector.broadcast %cst_91 : f32 to vector<7x32xf32>
    %203 = arith.select %200, %201, %202 : vector<7x32xi1>, vector<7x32xf32>
    %204 = math.absf %198 : vector<7x32xf32>
    %cst_92 = arith.constant 0.327591091 : f32
    %205 = vector.broadcast %cst_92 : f32 to vector<7x32xf32>
    %206 = arith.mulf %205, %204 : vector<7x32xf32>
    %cst_93 = arith.constant 1.000000e+00 : f32
    %207 = vector.broadcast %cst_93 : f32 to vector<7x32xf32>
    %208 = arith.addf %207, %206 : vector<7x32xf32>
    %cst_94 = arith.constant 1.000000e+00 : f32
    %209 = vector.broadcast %cst_94 : f32 to vector<7x32xf32>
    %210 = arith.divf %209, %208 : vector<7x32xf32>
    %cst_95 = arith.constant 1.06140542 : f32
    %211 = vector.broadcast %cst_95 : f32 to vector<7x32xf32>
    %212 = arith.mulf %211, %210 : vector<7x32xf32>
    %cst_96 = arith.constant -1.45315206 : f32
    %213 = vector.broadcast %cst_96 : f32 to vector<7x32xf32>
    %214 = arith.addf %212, %213 : vector<7x32xf32>
    %215 = arith.mulf %214, %210 : vector<7x32xf32>
    %cst_97 = arith.constant 1.42141378 : f32
    %216 = vector.broadcast %cst_97 : f32 to vector<7x32xf32>
    %217 = arith.addf %215, %216 : vector<7x32xf32>
    %218 = arith.mulf %217, %210 : vector<7x32xf32>
    %cst_98 = arith.constant -0.284496725 : f32
    %219 = vector.broadcast %cst_98 : f32 to vector<7x32xf32>
    %220 = arith.addf %218, %219 : vector<7x32xf32>
    %221 = arith.mulf %220, %210 : vector<7x32xf32>
    %cst_99 = arith.constant 0.254829586 : f32
    %222 = vector.broadcast %cst_99 : f32 to vector<7x32xf32>
    %223 = arith.addf %221, %222 : vector<7x32xf32>
    %224 = arith.mulf %223, %210 : vector<7x32xf32>
    %cst_100 = arith.constant 0.000000e+00 : f32
    %225 = vector.broadcast %cst_100 : f32 to vector<7x32xf32>
    %226 = arith.subf %225, %204 : vector<7x32xf32>
    %227 = arith.mulf %226, %204 : vector<7x32xf32>
    %228 = math.exp %227 : vector<7x32xf32>
    %229 = arith.mulf %224, %228 : vector<7x32xf32>
    %cst_101 = arith.constant 1.000000e+00 : f32
    %230 = vector.broadcast %cst_101 : f32 to vector<7x32xf32>
    %231 = arith.subf %230, %229 : vector<7x32xf32>
    %232 = arith.mulf %203, %231 : vector<7x32xf32>
    %cst_102 = arith.constant 1.000000e+00 : f32
    %233 = vector.broadcast %cst_102 : f32 to vector<7x32xf32>
    %234 = arith.addf %233, %232 : vector<7x32xf32>
    %235 = arith.mulf %196, %234 : vector<7x32xf32>
    %c0_103 = arith.constant 0 : index
    %c0_104 = arith.constant 0 : index
    %236 = vector.load %arg11[%c0_103, %c0_104] : memref<32x1xf32, #tpu.memory_space<vmem>>, vector<32x1xf32>
    %cst_105 = arith.constant dense<0.000000e+00> : vector<7x1xf32>
    %237 = tpu.matmul %235, %236, %cst_105 {dimension_numbers = #tpu.dot_dimension_numbers<[1], [0], [0], [1], [0, 0, 1, 1], [], []>} : vector<7x32xf32>, vector<32x1xf32>, vector<7x1xf32> -> vector<7x1xf32>
    %c0_106 = arith.constant 0 : index
    %c0_107 = arith.constant 0 : index
    %238 = vector.load %arg12[%c0_106, %c0_107] : memref<1x1xf32, #tpu.memory_space<vmem>>, vector<1x1xf32>
    %239 = vector.broadcast %238 : vector<1x1xf32> to vector<7x1xf32>
    %240 = arith.addf %237, %239 : vector<7x1xf32>
    %cst_108 = arith.constant dense<0xFF800000> : vector<1xf32>
    %241 = vector.multi_reduction <maximumf>, %240, %cst_108 [0] : vector<7x1xf32> to vector<1xf32>
    %242 = vector.shape_cast %241 : vector<1xf32> to vector<1x1xf32>
    %243 = vector.broadcast %242 : vector<1x1xf32> to vector<7x1xf32>
    %244 = arith.subf %240, %243 : vector<7x1xf32>
    %245 = math.exp %244 : vector<7x1xf32>
    %cst_109 = arith.constant dense<0.000000e+00> : vector<1xf32>
    %246 = vector.multi_reduction <add>, %245, %cst_109 [0] : vector<7x1xf32> to vector<1xf32>
    %247 = vector.shape_cast %246 : vector<1xf32> to vector<1x1xf32>
    %248 = tpu.reciprocal %247 {approx = true} : vector<1x1xf32> -> vector<1x1xf32>
    %249 = vector.broadcast %248 : vector<1x1xf32> to vector<7x1xf32>
    %250 = arith.mulf %245, %249 : vector<7x1xf32>
    %c0_110 = arith.constant 0 : index
    %c0_111 = arith.constant 0 : index
    %251 = vector.load %arg13[%c0_110, %c0_111] : memref<32x32xf32, #tpu.memory_space<vmem>>, vector<32x32xf32>
    %cst_112 = arith.constant dense<0.000000e+00> : vector<7x32xf32>
    %252 = tpu.matmul %189, %251, %cst_112 {dimension_numbers = #tpu.dot_dimension_numbers<[1], [0], [0], [1], [0, 0, 1, 1], [], []>} : vector<7x32xf32>, vector<32x32xf32>, vector<7x32xf32> -> vector<7x32xf32>
    %c0_113 = arith.constant 0 : index
    %c0_114 = arith.constant 0 : index
    %253 = vector.load %arg14[%c0_113, %c0_114] : memref<1x32xf32, #tpu.memory_space<vmem>>, vector<1x32xf32>
    %254 = vector.broadcast %253 : vector<1x32xf32> to vector<7x32xf32>
    %255 = arith.addf %252, %254 : vector<7x32xf32>
    %256 = vector.broadcast %250 : vector<7x1xf32> to vector<7x32xf32>
    %257 = arith.mulf %256, %255 : vector<7x32xf32>
    %cst_115 = arith.constant dense<0.000000e+00> : vector<32xf32>
    %258 = vector.multi_reduction <add>, %257, %cst_115 [0] : vector<7x32xf32> to vector<32xf32>
    %259 = vector.shape_cast %258 : vector<32xf32> to vector<1x32xf32>
    %260 = vector.extract_strided_slice %188 {offsets = [0, 0], sizes = [1, 32], strides = [1, 1]} : vector<8x32xf32> to vector<1x32xf32>
    %261 = arith.addf %259, %260 : vector<1x32xf32>
    %262 = tpu.concatenate %178, %261 in 0 : vector<1x32xf32>, vector<1x32xf32> -> vector<2x32xf32>
    %c0_116 = arith.constant 0 : index
    %c0_117 = arith.constant 0 : index
    %263 = vector.load %arg15[%c0_116, %c0_117] : memref<2x32xf32, #tpu.memory_space<vmem>>, vector<2x32xf32>
    tpu.vector_store %arg15[%c0_116, %c0_117], %262 {strides = array<i32>} : memref<2x32xf32, #tpu.memory_space<vmem>>, vector<2x32xf32>,
    return
  }
}

module attributes {stable_mosaic.version = 11 : i64} {
  func.func @_loss_kernel(%arg0: memref<2x32xf32, #tpu.memory_space<vmem>>, %arg1: memref<2x32xf32, #tpu.memory_space<vmem>>, %arg2: memref<2x2xf32, #tpu.memory_space<vmem>>, %arg3: memref<2x2xf32, #tpu.memory_space<vmem>>, %arg4: memref<1x1xf32, #tpu.memory_space<vmem>>) attributes {dimension_semantics = [], scalar_prefetch = 0 : i64, scratch_operands = 0 : i64, tpu.core_type = #tpu.core_type<tc>} {
    %c0 = arith.constant 0 : index
    %c0_0 = arith.constant 0 : index
    %0 = vector.load %arg0[%c0, %c0_0] : memref<2x32xf32, #tpu.memory_space<vmem>>, vector<2x32xf32>
    %c0_1 = arith.constant 0 : index
    %c0_2 = arith.constant 0 : index
    %1 = vector.load %arg1[%c0_1, %c0_2] : memref<2x32xf32, #tpu.memory_space<vmem>>, vector<2x32xf32>
    %c0_3 = arith.constant 0 : index
    %c0_4 = arith.constant 0 : index
    %2 = vector.load %arg2[%c0_3, %c0_4] : memref<2x2xf32, #tpu.memory_space<vmem>>, vector<2x2xf32>
    %cst = arith.constant dense<0.000000e+00> : vector<2x2xf32>
    %3 = tpu.matmul %0, %1, %cst {dimension_numbers = #tpu.dot_dimension_numbers<[1], [1], [0], [0], [0, 0, 1, 0], [], []>} : vector<2x32xf32>, vector<2x32xf32>, vector<2x2xf32> -> vector<2x2xf32>
    %4 = arith.mulf %0, %0 : vector<2x32xf32>
    %cst_5 = arith.constant dense<0.000000e+00> : vector<2xf32>
    %5 = vector.multi_reduction <add>, %4, %cst_5 [1] : vector<2x32xf32> to vector<2xf32>
    %6 = vector.shape_cast %5 : vector<2xf32> to vector<2x1xf32>
    %7 = math.sqrt %6 : vector<2x1xf32>
    %cst_6 = arith.constant 1.000000e+00 : f32
    %8 = vector.broadcast %cst_6 : f32 to vector<1x32xf32>
    %9 = arith.mulf %1, %1 : vector<2x32xf32>
    %cst_7 = arith.constant dense<0.000000e+00> : vector<1x2xf32>
    %10 = tpu.matmul %8, %9, %cst_7 {dimension_numbers = #tpu.dot_dimension_numbers<[1], [1], [0], [0], [0, 0, 1, 0], [], []>} : vector<1x32xf32>, vector<2x32xf32>, vector<1x2xf32> -> vector<1x2xf32>
    %11 = math.sqrt %10 : vector<1x2xf32>
    %12 = vector.broadcast %7 : vector<2x1xf32> to vector<2x2xf32>
    %13 = vector.broadcast %11 : vector<1x2xf32> to vector<2x2xf32>
    %14 = arith.mulf %12, %13 : vector<2x2xf32>
    %cst_8 = arith.constant 9.99999993E-9 : f32
    %15 = vector.broadcast %cst_8 : f32 to vector<2x2xf32>
    %16 = arith.maximumf %14, %15 : vector<2x2xf32>
    %17 = arith.divf %3, %16 : vector<2x2xf32>
    %c0_9 = arith.constant 0 : index
    %c0_10 = arith.constant 0 : index
    %18 = vector.load %arg3[%c0_9, %c0_10] : memref<2x2xf32, #tpu.memory_space<vmem>>, vector<2x2xf32>
    tpu.vector_store %arg3[%c0_9, %c0_10], %17 {strides = array<i32>} : memref<2x2xf32, #tpu.memory_space<vmem>>, vector<2x2xf32>,
    %cst_11 = arith.constant 2.000000e+01 : f32
    %19 = vector.broadcast %cst_11 : f32 to vector<2x2xf32>
    %20 = arith.mulf %17, %19 : vector<2x2xf32>
    %cst_12 = arith.constant dense<0xFF800000> : vector<2xf32>
    %21 = vector.multi_reduction <maximumf>, %20, %cst_12 [1] : vector<2x2xf32> to vector<2xf32>
    %22 = vector.shape_cast %21 : vector<2xf32> to vector<2x1xf32>
    %23 = vector.broadcast %22 : vector<2x1xf32> to vector<2x2xf32>
    %24 = arith.subf %20, %23 : vector<2x2xf32>
    %25 = math.exp %24 : vector<2x2xf32>
    %26 = arith.mulf %25, %2 : vector<2x2xf32>
    %cst_13 = arith.constant dense<0.000000e+00> : vector<2xf32>
    %27 = vector.multi_reduction <add>, %26, %cst_13 [1] : vector<2x2xf32> to vector<2xf32>
    %28 = vector.shape_cast %27 : vector<2xf32> to vector<2x1xf32>
    %cst_14 = arith.constant dense<0.000000e+00> : vector<2xf32>
    %29 = vector.multi_reduction <add>, %25, %cst_14 [1] : vector<2x2xf32> to vector<2xf32>
    %30 = vector.shape_cast %29 : vector<2xf32> to vector<2x1xf32>
    %31 = arith.divf %28, %30 : vector<2x1xf32>
    %32 = math.log %31 : vector<2x1xf32>
    %cst_15 = arith.constant dense<0.000000e+00> : vector<1xf32>
    %33 = vector.multi_reduction <add>, %32, %cst_15 [0] : vector<2x1xf32> to vector<1xf32>
    %34 = vector.shape_cast %33 : vector<1xf32> to vector<1x1xf32>
    %cst_16 = arith.constant 0.000000e+00 : f32
    %35 = vector.broadcast %cst_16 : f32 to vector<1x1xf32>
    %36 = arith.subf %35, %34 : vector<1x1xf32>
    %cst_17 = arith.constant 2.000000e+01 : f32
    %37 = vector.broadcast %cst_17 : f32 to vector<2x2xf32>
    %38 = arith.mulf %17, %37 : vector<2x2xf32>
    %cst_18 = arith.constant dense<0xFF800000> : vector<2xf32>
    %39 = vector.multi_reduction <maximumf>, %38, %cst_18 [0] : vector<2x2xf32> to vector<2xf32>
    %40 = vector.shape_cast %39 : vector<2xf32> to vector<1x2xf32>
    %41 = vector.broadcast %40 : vector<1x2xf32> to vector<2x2xf32>
    %42 = arith.subf %38, %41 : vector<2x2xf32>
    %43 = math.exp %42 : vector<2x2xf32>
    %44 = arith.mulf %43, %2 : vector<2x2xf32>
    %cst_19 = arith.constant dense<0.000000e+00> : vector<2xf32>
    %45 = vector.multi_reduction <add>, %44, %cst_19 [0] : vector<2x2xf32> to vector<2xf32>
    %46 = vector.shape_cast %45 : vector<2xf32> to vector<1x2xf32>
    %cst_20 = arith.constant dense<0.000000e+00> : vector<2xf32>
    %47 = vector.multi_reduction <add>, %43, %cst_20 [0] : vector<2x2xf32> to vector<2xf32>
    %48 = vector.shape_cast %47 : vector<2xf32> to vector<1x2xf32>
    %49 = arith.divf %46, %48 : vector<1x2xf32>
    %50 = math.log %49 : vector<1x2xf32>
    %cst_21 = arith.constant dense<0.000000e+00> : vector<1xf32>
    %51 = vector.multi_reduction <add>, %50, %cst_21 [1] : vector<1x2xf32> to vector<1xf32>
    %52 = vector.shape_cast %51 : vector<1xf32> to vector<1x1xf32>
    %cst_22 = arith.constant 0.000000e+00 : f32
    %53 = vector.broadcast %cst_22 : f32 to vector<1x1xf32>
    %54 = arith.subf %53, %52 : vector<1x1xf32>
    %55 = arith.addf %36, %54 : vector<1x1xf32>
    %c0_23 = arith.constant 0 : index
    %c0_24 = arith.constant 0 : index
    %56 = vector.load %arg4[%c0_23, %c0_24] : memref<1x1xf32, #tpu.memory_space<vmem>>, vector<1x1xf32>
    tpu.vector_store %arg4[%c0_23, %c0_24], %55 {strides = array<i32>} : memref<1x1xf32, #tpu.memory_space<vmem>>, vector<1x1xf32>,
    return
  }
}

module attributes {stable_mosaic.version = 11 : i64} {
  func.func @_image_branch_kernel(%arg0: memref<16x32xf32, #tpu.memory_space<vmem>>, %arg1: memref<16x16xf32, #tpu.memory_space<vmem>>, %arg2: memref<1x32xf32, #tpu.memory_space<vmem>>, %arg3: memref<1x32xf32, #tpu.memory_space<vmem>>, %arg4: memref<32x32xf32, #tpu.memory_space<vmem>>, %arg5: memref<1x32xf32, #tpu.memory_space<vmem>>, %arg6: memref<32x32xf32, #tpu.memory_space<vmem>>, %arg7: memref<1x32xf32, #tpu.memory_space<vmem>>, %arg8: memref<4x32x96xf32, #tpu.memory_space<vmem>>, %arg9: memref<4x96xf32, #tpu.memory_space<vmem>>, %arg10: memref<4x32x32xf32, #tpu.memory_space<vmem>>, %arg11: memref<4x32xf32, #tpu.memory_space<vmem>>, %arg12: memref<4x32x32xf32, #tpu.memory_space<vmem>>, %arg13: memref<4x32xf32, #tpu.memory_space<vmem>>, %arg14: memref<4x32x32xf32, #tpu.memory_space<vmem>>, %arg15: memref<4x32xf32, #tpu.memory_space<vmem>>, %arg16: memref<4x32xf32, #tpu.memory_space<vmem>>, %arg17: memref<4x32xf32, #tpu.memory_space<vmem>>, %arg18: memref<4x32xf32, #tpu.memory_space<vmem>>, %arg19: memref<4x32xf32, #tpu.memory_space<vmem>>, %arg20: memref<1x32xf32, #tpu.memory_space<vmem>>, %arg21: memref<1x32xf32, #tpu.memory_space<vmem>>, %arg22: memref<32x32xf32, #tpu.memory_space<vmem>>, %arg23: memref<1x32xf32, #tpu.memory_space<vmem>>, %arg24: memref<32x1xf32, #tpu.memory_space<vmem>>, %arg25: memref<1x1xf32, #tpu.memory_space<vmem>>, %arg26: memref<32x32xf32, #tpu.memory_space<vmem>>, %arg27: memref<1x32xf32, #tpu.memory_space<vmem>>, %arg28: memref<2x32xf32, #tpu.memory_space<vmem>>) attributes {dimension_semantics = [], scalar_prefetch = 0 : i64, scratch_operands = 0 : i64, tpu.core_type = #tpu.core_type<tc>} {
    %c0 = arith.constant 0 : index
    %c0_0 = arith.constant 0 : index
    %0 = vector.load %arg0[%c0, %c0_0] : memref<16x32xf32, #tpu.memory_space<vmem>>, vector<16x32xf32>
    %c0_1 = arith.constant 0 : index
    %c0_2 = arith.constant 0 : index
    %1 = vector.load %arg2[%c0_1, %c0_2] : memref<1x32xf32, #tpu.memory_space<vmem>>, vector<1x32xf32>
    %c0_3 = arith.constant 0 : index
    %c0_4 = arith.constant 0 : index
    %2 = vector.load %arg3[%c0_3, %c0_4] : memref<1x32xf32, #tpu.memory_space<vmem>>, vector<1x32xf32>
    %cst = arith.constant dense<0.000000e+00> : vector<16xf32>
    %3 = vector.multi_reduction <add>, %0, %cst [1] : vector<16x32xf32> to vector<16xf32>
    %4 = vector.shape_cast %3 : vector<16xf32> to vector<16x1xf32>
    %cst_5 = arith.constant 3.200000e+01 : f32
    %5 = vector.broadcast %cst_5 : f32 to vector<16x1xf32>
    %6 = arith.divf %4, %5 : vector<16x1xf32>
    %7 = vector.broadcast %6 : vector<16x1xf32> to vector<16x32xf32>
    %8 = arith.subf %0, %7 : vector<16x32xf32>
    %9 = arith.mulf %8, %8 : vector<16x32xf32>
    %cst_6 = arith.constant dense<0.000000e+00> : vector<16xf32>
    %10 = vector.multi_reduction <add>, %9, %cst_6 [1] : vector<16x32xf32> to vector<16xf32>
    %11 = vector.shape_cast %10 : vector<16xf32> to vector<16x1xf32>
    %cst_7 = arith.constant 3.200000e+01 : f32
    %12 = vector.broadcast %cst_7 : f32 to vector<16x1xf32>
    %13 = arith.divf %11, %12 : vector<16x1xf32>
    %cst_8 = arith.constant 9.99999974E-6 : f32
    %14 = vector.broadcast %cst_8 : f32 to vector<16x1xf32>
    %15 = arith.addf %13, %14 : vector<16x1xf32>
    %16 = math.rsqrt %15 : vector<16x1xf32>
    %17 = vector.broadcast %16 : vector<16x1xf32> to vector<16x32xf32>
    %18 = arith.mulf %8, %17 : vector<16x32xf32>
    %19 = vector.broadcast %1 : vector<1x32xf32> to vector<16x32xf32>
    %20 = arith.mulf %18, %19 : vector<16x32xf32>
    %21 = vector.broadcast %2 : vector<1x32xf32> to vector<16x32xf32>
    %22 = arith.addf %20, %21 : vector<16x32xf32>
    %c0_9 = arith.constant 0 : index
    %c0_10 = arith.constant 0 : index
    %23 = vector.load %arg4[%c0_9, %c0_10] : memref<32x32xf32, #tpu.memory_space<vmem>>, vector<32x32xf32>
    %cst_11 = arith.constant dense<0.000000e+00> : vector<16x32xf32>
    %24 = tpu.matmul %22, %23, %cst_11 {dimension_numbers = #tpu.dot_dimension_numbers<[1], [0], [0], [1], [0, 0, 1, 1], [], []>} : vector<16x32xf32>, vector<32x32xf32>, vector<16x32xf32> -> vector<16x32xf32>
    %c0_12 = arith.constant 0 : index
    %c0_13 = arith.constant 0 : index
    %25 = vector.load %arg5[%c0_12, %c0_13] : memref<1x32xf32, #tpu.memory_space<vmem>>, vector<1x32xf32>
    %26 = vector.broadcast %25 : vector<1x32xf32> to vector<16x32xf32>
    %27 = arith.addf %24, %26 : vector<16x32xf32>
    %cst_14 = arith.constant 5.000000e-01 : f32
    %28 = vector.broadcast %cst_14 : f32 to vector<16x32xf32>
    %29 = arith.mulf %28, %27 : vector<16x32xf32>
    %cst_15 = arith.constant 0.707106769 : f32
    %30 = vector.broadcast %cst_15 : f32 to vector<16x32xf32>
    %31 = arith.mulf %27, %30 : vector<16x32xf32>
    %cst_16 = arith.constant 0.000000e+00 : f32
    %32 = vector.broadcast %cst_16 : f32 to vector<16x32xf32>
    %33 = arith.cmpf oge, %31, %32 : vector<16x32xf32>
    %cst_17 = arith.constant 1.000000e+00 : f32
    %cst_18 = arith.constant -1.000000e+00 : f32
    %34 = vector.broadcast %cst_17 : f32 to vector<16x32xf32>
    %35 = vector.broadcast %cst_18 : f32 to vector<16x32xf32>
    %36 = arith.select %33, %34, %35 : vector<16x32xi1>, vector<16x32xf32>
    %37 = math.absf %31 : vector<16x32xf32>
    %cst_19 = arith.constant 0.327591091 : f32
    %38 = vector.broadcast %cst_19 : f32 to vector<16x32xf32>
    %39 = arith.mulf %38, %37 : vector<16x32xf32>
    %cst_20 = arith.constant 1.000000e+00 : f32
    %40 = vector.broadcast %cst_20 : f32 to vector<16x32xf32>
    %41 = arith.addf %40, %39 : vector<16x32xf32>
    %cst_21 = arith.constant 1.000000e+00 : f32
    %42 = vector.broadcast %cst_21 : f32 to vector<16x32xf32>
    %43 = arith.divf %42, %41 : vector<16x32xf32>
    %cst_22 = arith.constant 1.06140542 : f32
    %44 = vector.broadcast %cst_22 : f32 to vector<16x32xf32>
    %45 = arith.mulf %44, %43 : vector<16x32xf32>
    %cst_23 = arith.constant -1.45315206 : f32
    %46 = vector.broadcast %cst_23 : f32 to vector<16x32xf32>
    %47 = arith.addf %45, %46 : vector<16x32xf32>
    %48 = arith.mulf %47, %43 : vector<16x32xf32>
    %cst_24 = arith.constant 1.42141378 : f32
    %49 = vector.broadcast %cst_24 : f32 to vector<16x32xf32>
    %50 = arith.addf %48, %49 : vector<16x32xf32>
    %51 = arith.mulf %50, %43 : vector<16x32xf32>
    %cst_25 = arith.constant -0.284496725 : f32
    %52 = vector.broadcast %cst_25 : f32 to vector<16x32xf32>
    %53 = arith.addf %51, %52 : vector<16x32xf32>
    %54 = arith.mulf %53, %43 : vector<16x32xf32>
    %cst_26 = arith.constant 0.254829586 : f32
    %55 = vector.broadcast %cst_26 : f32 to vector<16x32xf32>
    %56 = arith.addf %54, %55 : vector<16x32xf32>
    %57 = arith.mulf %56, %43 : vector<16x32xf32>
    %cst_27 = arith.constant 0.000000e+00 : f32
    %58 = vector.broadcast %cst_27 : f32 to vector<16x32xf32>
    %59 = arith.subf %58, %37 : vector<16x32xf32>
    %60 = arith.mulf %59, %37 : vector<16x32xf32>
    %61 = math.exp %60 : vector<16x32xf32>
    %62 = arith.mulf %57, %61 : vector<16x32xf32>
    %cst_28 = arith.constant 1.000000e+00 : f32
    %63 = vector.broadcast %cst_28 : f32 to vector<16x32xf32>
    %64 = arith.subf %63, %62 : vector<16x32xf32>
    %65 = arith.mulf %36, %64 : vector<16x32xf32>
    %cst_29 = arith.constant 1.000000e+00 : f32
    %66 = vector.broadcast %cst_29 : f32 to vector<16x32xf32>
    %67 = arith.addf %66, %65 : vector<16x32xf32>
    %68 = arith.mulf %29, %67 : vector<16x32xf32>
    %c0_30 = arith.constant 0 : index
    %c0_31 = arith.constant 0 : index
    %69 = vector.load %arg6[%c0_30, %c0_31] : memref<32x32xf32, #tpu.memory_space<vmem>>, vector<32x32xf32>
    %cst_32 = arith.constant dense<0.000000e+00> : vector<16x32xf32>
    %70 = tpu.matmul %68, %69, %cst_32 {dimension_numbers = #tpu.dot_dimension_numbers<[1], [0], [0], [1], [0, 0, 1, 1], [], []>} : vector<16x32xf32>, vector<32x32xf32>, vector<16x32xf32> -> vector<16x32xf32>
    %c0_33 = arith.constant 0 : index
    %c0_34 = arith.constant 0 : index
    %71 = vector.load %arg7[%c0_33, %c0_34] : memref<1x32xf32, #tpu.memory_space<vmem>>, vector<1x32xf32>
    %72 = vector.broadcast %71 : vector<1x32xf32> to vector<16x32xf32>
    %73 = arith.addf %70, %72 : vector<16x32xf32>
    %c0_35 = arith.constant 0 : index
    %c0_36 = arith.constant 0 : index
    %74 = vector.load %arg1[%c0_35, %c0_36] : memref<16x16xf32, #tpu.memory_space<vmem>>, vector<16x16xf32>
    %cst_37 = arith.constant 5.000000e-01 : f32
    %75 = vector.broadcast %cst_37 : f32 to vector<16x16xf32>
    %76 = arith.cmpf ogt, %74, %75 : vector<16x16xf32>
    %c0_38 = arith.constant 0 : index
    %c0_39 = arith.constant 0 : index
    %77 = vector.load %arg9[%c0_38, %c0_39] : memref<4x96xf32, #tpu.memory_space<vmem>>, vector<4x96xf32>
    %c0_40 = arith.constant 0 : index
    %c0_41 = arith.constant 0 : index
    %78 = vector.load %arg11[%c0_40, %c0_41] : memref<4x32xf32, #tpu.memory_space<vmem>>, vector<4x32xf32>
    %c0_42 = arith.constant 0 : index
    %c0_43 = arith.constant 0 : index
    %79 = vector.load %arg13[%c0_42, %c0_43] : memref<4x32xf32, #tpu.memory_space<vmem>>, vector<4x32xf32>
    %c0_44 = arith.constant 0 : index
    %c0_45 = arith.constant 0 : index
    %80 = vector.load %arg15[%c0_44, %c0_45] : memref<4x32xf32, #tpu.memory_space<vmem>>, vector<4x32xf32>
    %c0_46 = arith.constant 0 : index
    %c0_47 = arith.constant 0 : index
    %81 = vector.load %arg16[%c0_46, %c0_47] : memref<4x32xf32, #tpu.memory_space<vmem>>, vector<4x32xf32>
    %c0_48 = arith.constant 0 : index
    %c0_49 = arith.constant 0 : index
    %82 = vector.load %arg17[%c0_48, %c0_49] : memref<4x32xf32, #tpu.memory_space<vmem>>, vector<4x32xf32>
    %c0_50 = arith.constant 0 : index
    %c0_51 = arith.constant 0 : index
    %83 = vector.load %arg18[%c0_50, %c0_51] : memref<4x32xf32, #tpu.memory_space<vmem>>, vector<4x32xf32>
    %c0_52 = arith.constant 0 : index
    %c0_53 = arith.constant 0 : index
    %84 = vector.load %arg19[%c0_52, %c0_53] : memref<4x32xf32, #tpu.memory_space<vmem>>, vector<4x32xf32>
    %c0_54 = arith.constant 0 : index
    %c0_55 = arith.constant 0 : index
    %c0_56 = arith.constant 0 : index
    %85 = vector.load %arg8[%c0_54, %c0_55, %c0_56] : memref<4x32x96xf32, #tpu.memory_space<vmem>>, vector<1x32x96xf32>
    %86 = vector.shape_cast %85 : vector<1x32x96xf32> to vector<32x96xf32>
    %cst_57 = arith.constant dense<0.000000e+00> : vector<16x96xf32>
    %87 = tpu.matmul %73, %86, %cst_57 {dimension_numbers = #tpu.dot_dimension_numbers<[1], [0], [0], [1], [0, 0, 1, 1], [], []>} : vector<16x32xf32>, vector<32x96xf32>, vector<16x96xf32> -> vector<16x96xf32>
    %88 = vector.extract_strided_slice %77 {offsets = [0, 0], sizes = [1, 96], strides = [1, 1]} : vector<4x96xf32> to vector<1x96xf32>
    %89 = vector.broadcast %88 : vector<1x96xf32> to vector<16x96xf32>
    %90 = arith.addf %87, %89 : vector<16x96xf32>
    %91 = vector.extract_strided_slice %90 {offsets = [0, 0], sizes = [16, 4], strides = [1, 1]} : vector<16x96xf32> to vector<16x4xf32>
    %92 = vector.extract_strided_slice %90 {offsets = [0, 32], sizes = [16, 4], strides = [1, 1]} : vector<16x96xf32> to vector<16x4xf32>
    %93 = vector.extract_strided_slice %90 {offsets = [0, 64], sizes = [16, 4], strides = [1, 1]} : vector<16x96xf32> to vector<16x4xf32>
    %cst_58 = arith.constant dense<0.000000e+00> : vector<16x16xf32>
    %94 = tpu.matmul %91, %92, %cst_58 {dimension_numbers = #tpu.dot_dimension_numbers<[1], [1], [0], [0], [0, 0, 1, 0], [], []>} : vector<16x4xf32>, vector<16x4xf32>, vector<16x16xf32> -> vector<16x16xf32>
    %cst_59 = arith.constant 5.000000e-01 : f32
    %95 = vector.broadcast %cst_59 : f32 to vector<16x16xf32>
    %96 = arith.mulf %94, %95 : vector<16x16xf32>
    %cst_60 = arith.constant -1.000000e+30 : f32
    %97 = vector.broadcast %cst_60 : f32 to vector<16x16xf32>
    %98 = arith.select %76, %96, %97 : vector<16x16xi1>, vector<16x16xf32>
    %cst_61 = arith.constant dense<0xFF800000> : vector<16xf32>
    %99 = vector.multi_reduction <maximumf>, %98, %cst_61 [1] : vector<16x16xf32> to vector<16xf32>
    %100 = vector.shape_cast %99 : vector<16xf32> to vector<16x1xf32>
    %101 = vector.broadcast %100 : vector<16x1xf32> to vector<16x16xf32>
    %102 = arith.subf %98, %101 : vector<16x16xf32>
    %103 = math.exp %102 : vector<16x16xf32>
    %cst_62 = arith.constant dense<0.000000e+00> : vector<16xf32>
    %104 = vector.multi_reduction <add>, %103, %cst_62 [1] : vector<16x16xf32> to vector<16xf32>
    %105 = vector.shape_cast %104 : vector<16xf32> to vector<16x1xf32>
    %106 = tpu.reciprocal %105 {approx = true} : vector<16x1xf32> -> vector<16x1xf32>
    %107 = vector.broadcast %106 : vector<16x1xf32> to vector<16x16xf32>
    %108 = arith.mulf %103, %107 : vector<16x16xf32>
    %cst_63 = arith.constant dense<0.000000e+00> : vector<16x4xf32>
    %109 = tpu.matmul %108, %93, %cst_63 {dimension_numbers = #tpu.dot_dimension_numbers<[1], [0], [0], [1], [0, 0, 1, 1], [], []>} : vector<16x16xf32>, vector<16x4xf32>, vector<16x4xf32> -> vector<16x4xf32>
    %110 = vector.extract_strided_slice %90 {offsets = [0, 4], sizes = [16, 4], strides = [1, 1]} : vector<16x96xf32> to vector<16x4xf32>
    %111 = vector.extract_strided_slice %90 {offsets = [0, 36], sizes = [16, 4], strides = [1, 1]} : vector<16x96xf32> to vector<16x4xf32>
    %112 = vector.extract_strided_slice %90 {offsets = [0, 68], sizes = [16, 4], strides = [1, 1]} : vector<16x96xf32> to vector<16x4xf32>
    %cst_64 = arith.constant dense<0.000000e+00> : vector<16x16xf32>
    %113 = tpu.matmul %110, %111, %cst_64 {dimension_numbers = #tpu.dot_dimension_numbers<[1], [1], [0], [0], [0, 0, 1, 0], [], []>} : vector<16x4xf32>, vector<16x4xf32>, vector<16x16xf32> -> vector<16x16xf32>
    %cst_65 = arith.constant 5.000000e-01 : f32
    %114 = vector.broadcast %cst_65 : f32 to vector<16x16xf32>
    %115 = arith.mulf %113, %114 : vector<16x16xf32>
    %cst_66 = arith.constant -1.000000e+30 : f32
    %116 = vector.broadcast %cst_66 : f32 to vector<16x16xf32>
    %117 = arith.select %76, %115, %116 : vector<16x16xi1>, vector<16x16xf32>
    %cst_67 = arith.constant dense<0xFF800000> : vector<16xf32>
    %118 = vector.multi_reduction <maximumf>, %117, %cst_67 [1] : vector<16x16xf32> to vector<16xf32>
    %119 = vector.shape_cast %118 : vector<16xf32> to vector<16x1xf32>
    %120 = vector.broadcast %119 : vector<16x1xf32> to vector<16x16xf32>
    %121 = arith.subf %117, %120 : vector<16x16xf32>
    %122 = math.exp %121 : vector<16x16xf32>
    %cst_68 = arith.constant dense<0.000000e+00> : vector<16xf32>
    %123 = vector.multi_reduction <add>, %122, %cst_68 [1] : vector<16x16xf32> to vector<16xf32>
    %124 = vector.shape_cast %123 : vector<16xf32> to vector<16x1xf32>
    %125 = tpu.reciprocal %124 {approx = true} : vector<16x1xf32> -> vector<16x1xf32>
    %126 = vector.broadcast %125 : vector<16x1xf32> to vector<16x16xf32>
    %127 = arith.mulf %122, %126 : vector<16x16xf32>
    %cst_69 = arith.constant dense<0.000000e+00> : vector<16x4xf32>
    %128 = tpu.matmul %127, %112, %cst_69 {dimension_numbers = #tpu.dot_dimension_numbers<[1], [0], [0], [1], [0, 0, 1, 1], [], []>} : vector<16x16xf32>, vector<16x4xf32>, vector<16x4xf32> -> vector<16x4xf32>
    %129 = vector.extract_strided_slice %90 {offsets = [0, 8], sizes = [16, 4], strides = [1, 1]} : vector<16x96xf32> to vector<16x4xf32>
    %130 = vector.extract_strided_slice %90 {offsets = [0, 40], sizes = [16, 4], strides = [1, 1]} : vector<16x96xf32> to vector<16x4xf32>
    %131 = vector.extract_strided_slice %90 {offsets = [0, 72], sizes = [16, 4], strides = [1, 1]} : vector<16x96xf32> to vector<16x4xf32>
    %cst_70 = arith.constant dense<0.000000e+00> : vector<16x16xf32>
    %132 = tpu.matmul %129, %130, %cst_70 {dimension_numbers = #tpu.dot_dimension_numbers<[1], [1], [0], [0], [0, 0, 1, 0], [], []>} : vector<16x4xf32>, vector<16x4xf32>, vector<16x16xf32> -> vector<16x16xf32>
    %cst_71 = arith.constant 5.000000e-01 : f32
    %133 = vector.broadcast %cst_71 : f32 to vector<16x16xf32>
    %134 = arith.mulf %132, %133 : vector<16x16xf32>
    %cst_72 = arith.constant -1.000000e+30 : f32
    %135 = vector.broadcast %cst_72 : f32 to vector<16x16xf32>
    %136 = arith.select %76, %134, %135 : vector<16x16xi1>, vector<16x16xf32>
    %cst_73 = arith.constant dense<0xFF800000> : vector<16xf32>
    %137 = vector.multi_reduction <maximumf>, %136, %cst_73 [1] : vector<16x16xf32> to vector<16xf32>
    %138 = vector.shape_cast %137 : vector<16xf32> to vector<16x1xf32>
    %139 = vector.broadcast %138 : vector<16x1xf32> to vector<16x16xf32>
    %140 = arith.subf %136, %139 : vector<16x16xf32>
    %141 = math.exp %140 : vector<16x16xf32>
    %cst_74 = arith.constant dense<0.000000e+00> : vector<16xf32>
    %142 = vector.multi_reduction <add>, %141, %cst_74 [1] : vector<16x16xf32> to vector<16xf32>
    %143 = vector.shape_cast %142 : vector<16xf32> to vector<16x1xf32>
    %144 = tpu.reciprocal %143 {approx = true} : vector<16x1xf32> -> vector<16x1xf32>
    %145 = vector.broadcast %144 : vector<16x1xf32> to vector<16x16xf32>
    %146 = arith.mulf %141, %145 : vector<16x16xf32>
    %cst_75 = arith.constant dense<0.000000e+00> : vector<16x4xf32>
    %147 = tpu.matmul %146, %131, %cst_75 {dimension_numbers = #tpu.dot_dimension_numbers<[1], [0], [0], [1], [0, 0, 1, 1], [], []>} : vector<16x16xf32>, vector<16x4xf32>, vector<16x4xf32> -> vector<16x4xf32>
    %148 = vector.extract_strided_slice %90 {offsets = [0, 12], sizes = [16, 4], strides = [1, 1]} : vector<16x96xf32> to vector<16x4xf32>
    %149 = vector.extract_strided_slice %90 {offsets = [0, 44], sizes = [16, 4], strides = [1, 1]} : vector<16x96xf32> to vector<16x4xf32>
    %150 = vector.extract_strided_slice %90 {offsets = [0, 76], sizes = [16, 4], strides = [1, 1]} : vector<16x96xf32> to vector<16x4xf32>
    %cst_76 = arith.constant dense<0.000000e+00> : vector<16x16xf32>
    %151 = tpu.matmul %148, %149, %cst_76 {dimension_numbers = #tpu.dot_dimension_numbers<[1], [1], [0], [0], [0, 0, 1, 0], [], []>} : vector<16x4xf32>, vector<16x4xf32>, vector<16x16xf32> -> vector<16x16xf32>
    %cst_77 = arith.constant 5.000000e-01 : f32
    %152 = vector.broadcast %cst_77 : f32 to vector<16x16xf32>
    %153 = arith.mulf %151, %152 : vector<16x16xf32>
    %cst_78 = arith.constant -1.000000e+30 : f32
    %154 = vector.broadcast %cst_78 : f32 to vector<16x16xf32>
    %155 = arith.select %76, %153, %154 : vector<16x16xi1>, vector<16x16xf32>
    %cst_79 = arith.constant dense<0xFF800000> : vector<16xf32>
    %156 = vector.multi_reduction <maximumf>, %155, %cst_79 [1] : vector<16x16xf32> to vector<16xf32>
    %157 = vector.shape_cast %156 : vector<16xf32> to vector<16x1xf32>
    %158 = vector.broadcast %157 : vector<16x1xf32> to vector<16x16xf32>
    %159 = arith.subf %155, %158 : vector<16x16xf32>
    %160 = math.exp %159 : vector<16x16xf32>
    %cst_80 = arith.constant dense<0.000000e+00> : vector<16xf32>
    %161 = vector.multi_reduction <add>, %160, %cst_80 [1] : vector<16x16xf32> to vector<16xf32>
    %162 = vector.shape_cast %161 : vector<16xf32> to vector<16x1xf32>
    %163 = tpu.reciprocal %162 {approx = true} : vector<16x1xf32> -> vector<16x1xf32>
    %164 = vector.broadcast %163 : vector<16x1xf32> to vector<16x16xf32>
    %165 = arith.mulf %160, %164 : vector<16x16xf32>
    %cst_81 = arith.constant dense<0.000000e+00> : vector<16x4xf32>
    %166 = tpu.matmul %165, %150, %cst_81 {dimension_numbers = #tpu.dot_dimension_numbers<[1], [0], [0], [1], [0, 0, 1, 1], [], []>} : vector<16x16xf32>, vector<16x4xf32>, vector<16x4xf32> -> vector<16x4xf32>
    %167 = vector.extract_strided_slice %90 {offsets = [0, 16], sizes = [16, 4], strides = [1, 1]} : vector<16x96xf32> to vector<16x4xf32>
    %168 = vector.extract_strided_slice %90 {offsets = [0, 48], sizes = [16, 4], strides = [1, 1]} : vector<16x96xf32> to vector<16x4xf32>
    %169 = vector.extract_strided_slice %90 {offsets = [0, 80], sizes = [16, 4], strides = [1, 1]} : vector<16x96xf32> to vector<16x4xf32>
    %cst_82 = arith.constant dense<0.000000e+00> : vector<16x16xf32>
    %170 = tpu.matmul %167, %168, %cst_82 {dimension_numbers = #tpu.dot_dimension_numbers<[1], [1], [0], [0], [0, 0, 1, 0], [], []>} : vector<16x4xf32>, vector<16x4xf32>, vector<16x16xf32> -> vector<16x16xf32>
    %cst_83 = arith.constant 5.000000e-01 : f32
    %171 = vector.broadcast %cst_83 : f32 to vector<16x16xf32>
    %172 = arith.mulf %170, %171 : vector<16x16xf32>
    %cst_84 = arith.constant -1.000000e+30 : f32
    %173 = vector.broadcast %cst_84 : f32 to vector<16x16xf32>
    %174 = arith.select %76, %172, %173 : vector<16x16xi1>, vector<16x16xf32>
    %cst_85 = arith.constant dense<0xFF800000> : vector<16xf32>
    %175 = vector.multi_reduction <maximumf>, %174, %cst_85 [1] : vector<16x16xf32> to vector<16xf32>
    %176 = vector.shape_cast %175 : vector<16xf32> to vector<16x1xf32>
    %177 = vector.broadcast %176 : vector<16x1xf32> to vector<16x16xf32>
    %178 = arith.subf %174, %177 : vector<16x16xf32>
    %179 = math.exp %178 : vector<16x16xf32>
    %cst_86 = arith.constant dense<0.000000e+00> : vector<16xf32>
    %180 = vector.multi_reduction <add>, %179, %cst_86 [1] : vector<16x16xf32> to vector<16xf32>
    %181 = vector.shape_cast %180 : vector<16xf32> to vector<16x1xf32>
    %182 = tpu.reciprocal %181 {approx = true} : vector<16x1xf32> -> vector<16x1xf32>
    %183 = vector.broadcast %182 : vector<16x1xf32> to vector<16x16xf32>
    %184 = arith.mulf %179, %183 : vector<16x16xf32>
    %cst_87 = arith.constant dense<0.000000e+00> : vector<16x4xf32>
    %185 = tpu.matmul %184, %169, %cst_87 {dimension_numbers = #tpu.dot_dimension_numbers<[1], [0], [0], [1], [0, 0, 1, 1], [], []>} : vector<16x16xf32>, vector<16x4xf32>, vector<16x4xf32> -> vector<16x4xf32>
    %186 = vector.extract_strided_slice %90 {offsets = [0, 20], sizes = [16, 4], strides = [1, 1]} : vector<16x96xf32> to vector<16x4xf32>
    %187 = vector.extract_strided_slice %90 {offsets = [0, 52], sizes = [16, 4], strides = [1, 1]} : vector<16x96xf32> to vector<16x4xf32>
    %188 = vector.extract_strided_slice %90 {offsets = [0, 84], sizes = [16, 4], strides = [1, 1]} : vector<16x96xf32> to vector<16x4xf32>
    %cst_88 = arith.constant dense<0.000000e+00> : vector<16x16xf32>
    %189 = tpu.matmul %186, %187, %cst_88 {dimension_numbers = #tpu.dot_dimension_numbers<[1], [1], [0], [0], [0, 0, 1, 0], [], []>} : vector<16x4xf32>, vector<16x4xf32>, vector<16x16xf32> -> vector<16x16xf32>
    %cst_89 = arith.constant 5.000000e-01 : f32
    %190 = vector.broadcast %cst_89 : f32 to vector<16x16xf32>
    %191 = arith.mulf %189, %190 : vector<16x16xf32>
    %cst_90 = arith.constant -1.000000e+30 : f32
    %192 = vector.broadcast %cst_90 : f32 to vector<16x16xf32>
    %193 = arith.select %76, %191, %192 : vector<16x16xi1>, vector<16x16xf32>
    %cst_91 = arith.constant dense<0xFF800000> : vector<16xf32>
    %194 = vector.multi_reduction <maximumf>, %193, %cst_91 [1] : vector<16x16xf32> to vector<16xf32>
    %195 = vector.shape_cast %194 : vector<16xf32> to vector<16x1xf32>
    %196 = vector.broadcast %195 : vector<16x1xf32> to vector<16x16xf32>
    %197 = arith.subf %193, %196 : vector<16x16xf32>
    %198 = math.exp %197 : vector<16x16xf32>
    %cst_92 = arith.constant dense<0.000000e+00> : vector<16xf32>
    %199 = vector.multi_reduction <add>, %198, %cst_92 [1] : vector<16x16xf32> to vector<16xf32>
    %200 = vector.shape_cast %199 : vector<16xf32> to vector<16x1xf32>
    %201 = tpu.reciprocal %200 {approx = true} : vector<16x1xf32> -> vector<16x1xf32>
    %202 = vector.broadcast %201 : vector<16x1xf32> to vector<16x16xf32>
    %203 = arith.mulf %198, %202 : vector<16x16xf32>
    %cst_93 = arith.constant dense<0.000000e+00> : vector<16x4xf32>
    %204 = tpu.matmul %203, %188, %cst_93 {dimension_numbers = #tpu.dot_dimension_numbers<[1], [0], [0], [1], [0, 0, 1, 1], [], []>} : vector<16x16xf32>, vector<16x4xf32>, vector<16x4xf32> -> vector<16x4xf32>
    %205 = vector.extract_strided_slice %90 {offsets = [0, 24], sizes = [16, 4], strides = [1, 1]} : vector<16x96xf32> to vector<16x4xf32>
    %206 = vector.extract_strided_slice %90 {offsets = [0, 56], sizes = [16, 4], strides = [1, 1]} : vector<16x96xf32> to vector<16x4xf32>
    %207 = vector.extract_strided_slice %90 {offsets = [0, 88], sizes = [16, 4], strides = [1, 1]} : vector<16x96xf32> to vector<16x4xf32>
    %cst_94 = arith.constant dense<0.000000e+00> : vector<16x16xf32>
    %208 = tpu.matmul %205, %206, %cst_94 {dimension_numbers = #tpu.dot_dimension_numbers<[1], [1], [0], [0], [0, 0, 1, 0], [], []>} : vector<16x4xf32>, vector<16x4xf32>, vector<16x16xf32> -> vector<16x16xf32>
    %cst_95 = arith.constant 5.000000e-01 : f32
    %209 = vector.broadcast %cst_95 : f32 to vector<16x16xf32>
    %210 = arith.mulf %208, %209 : vector<16x16xf32>
    %cst_96 = arith.constant -1.000000e+30 : f32
    %211 = vector.broadcast %cst_96 : f32 to vector<16x16xf32>
    %212 = arith.select %76, %210, %211 : vector<16x16xi1>, vector<16x16xf32>
    %cst_97 = arith.constant dense<0xFF800000> : vector<16xf32>
    %213 = vector.multi_reduction <maximumf>, %212, %cst_97 [1] : vector<16x16xf32> to vector<16xf32>
    %214 = vector.shape_cast %213 : vector<16xf32> to vector<16x1xf32>
    %215 = vector.broadcast %214 : vector<16x1xf32> to vector<16x16xf32>
    %216 = arith.subf %212, %215 : vector<16x16xf32>
    %217 = math.exp %216 : vector<16x16xf32>
    %cst_98 = arith.constant dense<0.000000e+00> : vector<16xf32>
    %218 = vector.multi_reduction <add>, %217, %cst_98 [1] : vector<16x16xf32> to vector<16xf32>
    %219 = vector.shape_cast %218 : vector<16xf32> to vector<16x1xf32>
    %220 = tpu.reciprocal %219 {approx = true} : vector<16x1xf32> -> vector<16x1xf32>
    %221 = vector.broadcast %220 : vector<16x1xf32> to vector<16x16xf32>
    %222 = arith.mulf %217, %221 : vector<16x16xf32>
    %cst_99 = arith.constant dense<0.000000e+00> : vector<16x4xf32>
    %223 = tpu.matmul %222, %207, %cst_99 {dimension_numbers = #tpu.dot_dimension_numbers<[1], [0], [0], [1], [0, 0, 1, 1], [], []>} : vector<16x16xf32>, vector<16x4xf32>, vector<16x4xf32> -> vector<16x4xf32>
    %224 = vector.extract_strided_slice %90 {offsets = [0, 28], sizes = [16, 4], strides = [1, 1]} : vector<16x96xf32> to vector<16x4xf32>
    %225 = vector.extract_strided_slice %90 {offsets = [0, 60], sizes = [16, 4], strides = [1, 1]} : vector<16x96xf32> to vector<16x4xf32>
    %226 = vector.extract_strided_slice %90 {offsets = [0, 92], sizes = [16, 4], strides = [1, 1]} : vector<16x96xf32> to vector<16x4xf32>
    %cst_100 = arith.constant dense<0.000000e+00> : vector<16x16xf32>
    %227 = tpu.matmul %224, %225, %cst_100 {dimension_numbers = #tpu.dot_dimension_numbers<[1], [1], [0], [0], [0, 0, 1, 0], [], []>} : vector<16x4xf32>, vector<16x4xf32>, vector<16x16xf32> -> vector<16x16xf32>
    %cst_101 = arith.constant 5.000000e-01 : f32
    %228 = vector.broadcast %cst_101 : f32 to vector<16x16xf32>
    %229 = arith.mulf %227, %228 : vector<16x16xf32>
    %cst_102 = arith.constant -1.000000e+30 : f32
    %230 = vector.broadcast %cst_102 : f32 to vector<16x16xf32>
    %231 = arith.select %76, %229, %230 : vector<16x16xi1>, vector<16x16xf32>
    %cst_103 = arith.constant dense<0xFF800000> : vector<16xf32>
    %232 = vector.multi_reduction <maximumf>, %231, %cst_103 [1] : vector<16x16xf32> to vector<16xf32>
    %233 = vector.shape_cast %232 : vector<16xf32> to vector<16x1xf32>
    %234 = vector.broadcast %233 : vector<16x1xf32> to vector<16x16xf32>
    %235 = arith.subf %231, %234 : vector<16x16xf32>
    %236 = math.exp %235 : vector<16x16xf32>
    %cst_104 = arith.constant dense<0.000000e+00> : vector<16xf32>
    %237 = vector.multi_reduction <add>, %236, %cst_104 [1] : vector<16x16xf32> to vector<16xf32>
    %238 = vector.shape_cast %237 : vector<16xf32> to vector<16x1xf32>
    %239 = tpu.reciprocal %238 {approx = true} : vector<16x1xf32> -> vector<16x1xf32>
    %240 = vector.broadcast %239 : vector<16x1xf32> to vector<16x16xf32>
    %241 = arith.mulf %236, %240 : vector<16x16xf32>
    %cst_105 = arith.constant dense<0.000000e+00> : vector<16x4xf32>
    %242 = tpu.matmul %241, %226, %cst_105 {dimension_numbers = #tpu.dot_dimension_numbers<[1], [0], [0], [1], [0, 0, 1, 1], [], []>} : vector<16x16xf32>, vector<16x4xf32>, vector<16x4xf32> -> vector<16x4xf32>
    %243 = tpu.concatenate %109, %128, %147, %166, %185, %204, %223, %242 in 1 : vector<16x4xf32>, vector<16x4xf32>, vector<16x4xf32>, vector<16x4xf32>, vector<16x4xf32>, vector<16x4xf32>, vector<16x4xf32>, vector<16x4xf32> -> vector<16x32xf32>
    %c0_106 = arith.constant 0 : index
    %c0_107 = arith.constant 0 : index
    %c0_108 = arith.constant 0 : index
    %244 = vector.load %arg10[%c0_106, %c0_107, %c0_108] : memref<4x32x32xf32, #tpu.memory_space<vmem>>, vector<1x32x32xf32>
    %245 = vector.shape_cast %244 : vector<1x32x32xf32> to vector<32x32xf32>
    %cst_109 = arith.constant dense<0.000000e+00> : vector<16x32xf32>
    %246 = tpu.matmul %243, %245, %cst_109 {dimension_numbers = #tpu.dot_dimension_numbers<[1], [0], [0], [1], [0, 0, 1, 1], [], []>} : vector<16x32xf32>, vector<32x32xf32>, vector<16x32xf32> -> vector<16x32xf32>
    %247 = vector.extract_strided_slice %78 {offsets = [0, 0], sizes = [1, 32], strides = [1, 1]} : vector<4x32xf32> to vector<1x32xf32>
    %248 = vector.broadcast %247 : vector<1x32xf32> to vector<16x32xf32>
    %249 = arith.addf %246, %248 : vector<16x32xf32>
    %250 = arith.addf %73, %249 : vector<16x32xf32>
    %251 = vector.extract_strided_slice %81 {offsets = [0, 0], sizes = [1, 32], strides = [1, 1]} : vector<4x32xf32> to vector<1x32xf32>
    %252 = vector.extract_strided_slice %82 {offsets = [0, 0], sizes = [1, 32], strides = [1, 1]} : vector<4x32xf32> to vector<1x32xf32>
    %cst_110 = arith.constant dense<0.000000e+00> : vector<16xf32>
    %253 = vector.multi_reduction <add>, %250, %cst_110 [1] : vector<16x32xf32> to vector<16xf32>
    %254 = vector.shape_cast %253 : vector<16xf32> to vector<16x1xf32>
    %cst_111 = arith.constant 3.200000e+01 : f32
    %255 = vector.broadcast %cst_111 : f32 to vector<16x1xf32>
    %256 = arith.divf %254, %255 : vector<16x1xf32>
    %257 = vector.broadcast %256 : vector<16x1xf32> to vector<16x32xf32>
    %258 = arith.subf %250, %257 : vector<16x32xf32>
    %259 = arith.mulf %258, %258 : vector<16x32xf32>
    %cst_112 = arith.constant dense<0.000000e+00> : vector<16xf32>
    %260 = vector.multi_reduction <add>, %259, %cst_112 [1] : vector<16x32xf32> to vector<16xf32>
    %261 = vector.shape_cast %260 : vector<16xf32> to vector<16x1xf32>
    %cst_113 = arith.constant 3.200000e+01 : f32
    %262 = vector.broadcast %cst_113 : f32 to vector<16x1xf32>
    %263 = arith.divf %261, %262 : vector<16x1xf32>
    %cst_114 = arith.constant 9.99999974E-6 : f32
    %264 = vector.broadcast %cst_114 : f32 to vector<16x1xf32>
    %265 = arith.addf %263, %264 : vector<16x1xf32>
    %266 = math.rsqrt %265 : vector<16x1xf32>
    %267 = vector.broadcast %266 : vector<16x1xf32> to vector<16x32xf32>
    %268 = arith.mulf %258, %267 : vector<16x32xf32>
    %269 = vector.broadcast %251 : vector<1x32xf32> to vector<16x32xf32>
    %270 = arith.mulf %268, %269 : vector<16x32xf32>
    %271 = vector.broadcast %252 : vector<1x32xf32> to vector<16x32xf32>
    %272 = arith.addf %270, %271 : vector<16x32xf32>
    %c0_115 = arith.constant 0 : index
    %c0_116 = arith.constant 0 : index
    %c0_117 = arith.constant 0 : index
    %273 = vector.load %arg12[%c0_115, %c0_116, %c0_117] : memref<4x32x32xf32, #tpu.memory_space<vmem>>, vector<1x32x32xf32>
    %274 = vector.shape_cast %273 : vector<1x32x32xf32> to vector<32x32xf32>
    %cst_118 = arith.constant dense<0.000000e+00> : vector<16x32xf32>
    %275 = tpu.matmul %272, %274, %cst_118 {dimension_numbers = #tpu.dot_dimension_numbers<[1], [0], [0], [1], [0, 0, 1, 1], [], []>} : vector<16x32xf32>, vector<32x32xf32>, vector<16x32xf32> -> vector<16x32xf32>
    %276 = vector.extract_strided_slice %79 {offsets = [0, 0], sizes = [1, 32], strides = [1, 1]} : vector<4x32xf32> to vector<1x32xf32>
    %277 = vector.broadcast %276 : vector<1x32xf32> to vector<16x32xf32>
    %278 = arith.addf %275, %277 : vector<16x32xf32>
    %cst_119 = arith.constant 0.000000e+00 : f32
    %279 = vector.broadcast %cst_119 : f32 to vector<16x32xf32>
    %280 = arith.maximumf %278, %279 : vector<16x32xf32>
    %c0_120 = arith.constant 0 : index
    %c0_121 = arith.constant 0 : index
    %c0_122 = arith.constant 0 : index
    %281 = vector.load %arg14[%c0_120, %c0_121, %c0_122] : memref<4x32x32xf32, #tpu.memory_space<vmem>>, vector<1x32x32xf32>
    %282 = vector.shape_cast %281 : vector<1x32x32xf32> to vector<32x32xf32>
    %cst_123 = arith.constant dense<0.000000e+00> : vector<16x32xf32>
    %283 = tpu.matmul %280, %282, %cst_123 {dimension_numbers = #tpu.dot_dimension_numbers<[1], [0], [0], [1], [0, 0, 1, 1], [], []>} : vector<16x32xf32>, vector<32x32xf32>, vector<16x32xf32> -> vector<16x32xf32>
    %284 = vector.extract_strided_slice %80 {offsets = [0, 0], sizes = [1, 32], strides = [1, 1]} : vector<4x32xf32> to vector<1x32xf32>
    %285 = vector.broadcast %284 : vector<1x32xf32> to vector<16x32xf32>
    %286 = arith.addf %283, %285 : vector<16x32xf32>
    %287 = arith.addf %272, %286 : vector<16x32xf32>
    %288 = vector.extract_strided_slice %83 {offsets = [0, 0], sizes = [1, 32], strides = [1, 1]} : vector<4x32xf32> to vector<1x32xf32>
    %289 = vector.extract_strided_slice %84 {offsets = [0, 0], sizes = [1, 32], strides = [1, 1]} : vector<4x32xf32> to vector<1x32xf32>
    %cst_124 = arith.constant dense<0.000000e+00> : vector<16xf32>
    %290 = vector.multi_reduction <add>, %287, %cst_124 [1] : vector<16x32xf32> to vector<16xf32>
    %291 = vector.shape_cast %290 : vector<16xf32> to vector<16x1xf32>
    %cst_125 = arith.constant 3.200000e+01 : f32
    %292 = vector.broadcast %cst_125 : f32 to vector<16x1xf32>
    %293 = arith.divf %291, %292 : vector<16x1xf32>
    %294 = vector.broadcast %293 : vector<16x1xf32> to vector<16x32xf32>
    %295 = arith.subf %287, %294 : vector<16x32xf32>
    %296 = arith.mulf %295, %295 : vector<16x32xf32>
    %cst_126 = arith.constant dense<0.000000e+00> : vector<16xf32>
    %297 = vector.multi_reduction <add>, %296, %cst_126 [1] : vector<16x32xf32> to vector<16xf32>
    %298 = vector.shape_cast %297 : vector<16xf32> to vector<16x1xf32>
    %cst_127 = arith.constant 3.200000e+01 : f32
    %299 = vector.broadcast %cst_127 : f32 to vector<16x1xf32>
    %300 = arith.divf %298, %299 : vector<16x1xf32>
    %cst_128 = arith.constant 9.99999974E-6 : f32
    %301 = vector.broadcast %cst_128 : f32 to vector<16x1xf32>
    %302 = arith.addf %300, %301 : vector<16x1xf32>
    %303 = math.rsqrt %302 : vector<16x1xf32>
    %304 = vector.broadcast %303 : vector<16x1xf32> to vector<16x32xf32>
    %305 = arith.mulf %295, %304 : vector<16x32xf32>
    %306 = vector.broadcast %288 : vector<1x32xf32> to vector<16x32xf32>
    %307 = arith.mulf %305, %306 : vector<16x32xf32>
    %308 = vector.broadcast %289 : vector<1x32xf32> to vector<16x32xf32>
    %309 = arith.addf %307, %308 : vector<16x32xf32>
    %c1 = arith.constant 1 : index
    %c0_129 = arith.constant 0 : index
    %c0_130 = arith.constant 0 : index
    %310 = vector.load %arg8[%c1, %c0_129, %c0_130] : memref<4x32x96xf32, #tpu.memory_space<vmem>>, vector<1x32x96xf32>
    %311 = vector.shape_cast %310 : vector<1x32x96xf32> to vector<32x96xf32>
    %cst_131 = arith.constant dense<0.000000e+00> : vector<16x96xf32>
    %312 = tpu.matmul %309, %311, %cst_131 {dimension_numbers = #tpu.dot_dimension_numbers<[1], [0], [0], [1], [0, 0, 1, 1], [], []>} : vector<16x32xf32>, vector<32x96xf32>, vector<16x96xf32> -> vector<16x96xf32>
    %313 = vector.extract_strided_slice %77 {offsets = [1, 0], sizes = [1, 96], strides = [1, 1]} : vector<4x96xf32> to vector<1x96xf32>
    %314 = vector.broadcast %313 : vector<1x96xf32> to vector<16x96xf32>
    %315 = arith.addf %312, %314 : vector<16x96xf32>
    %316 = vector.extract_strided_slice %315 {offsets = [0, 0], sizes = [16, 4], strides = [1, 1]} : vector<16x96xf32> to vector<16x4xf32>
    %317 = vector.extract_strided_slice %315 {offsets = [0, 32], sizes = [16, 4], strides = [1, 1]} : vector<16x96xf32> to vector<16x4xf32>
    %318 = vector.extract_strided_slice %315 {offsets = [0, 64], sizes = [16, 4], strides = [1, 1]} : vector<16x96xf32> to vector<16x4xf32>
    %cst_132 = arith.constant dense<0.000000e+00> : vector<16x16xf32>
    %319 = tpu.matmul %316, %317, %cst_132 {dimension_numbers = #tpu.dot_dimension_numbers<[1], [1], [0], [0], [0, 0, 1, 0], [], []>} : vector<16x4xf32>, vector<16x4xf32>, vector<16x16xf32> -> vector<16x16xf32>
    %cst_133 = arith.constant 5.000000e-01 : f32
    %320 = vector.broadcast %cst_133 : f32 to vector<16x16xf32>
    %321 = arith.mulf %319, %320 : vector<16x16xf32>
    %cst_134 = arith.constant -1.000000e+30 : f32
    %322 = vector.broadcast %cst_134 : f32 to vector<16x16xf32>
    %323 = arith.select %76, %321, %322 : vector<16x16xi1>, vector<16x16xf32>
    %cst_135 = arith.constant dense<0xFF800000> : vector<16xf32>
    %324 = vector.multi_reduction <maximumf>, %323, %cst_135 [1] : vector<16x16xf32> to vector<16xf32>
    %325 = vector.shape_cast %324 : vector<16xf32> to vector<16x1xf32>
    %326 = vector.broadcast %325 : vector<16x1xf32> to vector<16x16xf32>
    %327 = arith.subf %323, %326 : vector<16x16xf32>
    %328 = math.exp %327 : vector<16x16xf32>
    %cst_136 = arith.constant dense<0.000000e+00> : vector<16xf32>
    %329 = vector.multi_reduction <add>, %328, %cst_136 [1] : vector<16x16xf32> to vector<16xf32>
    %330 = vector.shape_cast %329 : vector<16xf32> to vector<16x1xf32>
    %331 = tpu.reciprocal %330 {approx = true} : vector<16x1xf32> -> vector<16x1xf32>
    %332 = vector.broadcast %331 : vector<16x1xf32> to vector<16x16xf32>
    %333 = arith.mulf %328, %332 : vector<16x16xf32>
    %cst_137 = arith.constant dense<0.000000e+00> : vector<16x4xf32>
    %334 = tpu.matmul %333, %318, %cst_137 {dimension_numbers = #tpu.dot_dimension_numbers<[1], [0], [0], [1], [0, 0, 1, 1], [], []>} : vector<16x16xf32>, vector<16x4xf32>, vector<16x4xf32> -> vector<16x4xf32>
    %335 = vector.extract_strided_slice %315 {offsets = [0, 4], sizes = [16, 4], strides = [1, 1]} : vector<16x96xf32> to vector<16x4xf32>
    %336 = vector.extract_strided_slice %315 {offsets = [0, 36], sizes = [16, 4], strides = [1, 1]} : vector<16x96xf32> to vector<16x4xf32>
    %337 = vector.extract_strided_slice %315 {offsets = [0, 68], sizes = [16, 4], strides = [1, 1]} : vector<16x96xf32> to vector<16x4xf32>
    %cst_138 = arith.constant dense<0.000000e+00> : vector<16x16xf32>
    %338 = tpu.matmul %335, %336, %cst_138 {dimension_numbers = #tpu.dot_dimension_numbers<[1], [1], [0], [0], [0, 0, 1, 0], [], []>} : vector<16x4xf32>, vector<16x4xf32>, vector<16x16xf32> -> vector<16x16xf32>
    %cst_139 = arith.constant 5.000000e-01 : f32
    %339 = vector.broadcast %cst_139 : f32 to vector<16x16xf32>
    %340 = arith.mulf %338, %339 : vector<16x16xf32>
    %cst_140 = arith.constant -1.000000e+30 : f32
    %341 = vector.broadcast %cst_140 : f32 to vector<16x16xf32>
    %342 = arith.select %76, %340, %341 : vector<16x16xi1>, vector<16x16xf32>
    %cst_141 = arith.constant dense<0xFF800000> : vector<16xf32>
    %343 = vector.multi_reduction <maximumf>, %342, %cst_141 [1] : vector<16x16xf32> to vector<16xf32>
    %344 = vector.shape_cast %343 : vector<16xf32> to vector<16x1xf32>
    %345 = vector.broadcast %344 : vector<16x1xf32> to vector<16x16xf32>
    %346 = arith.subf %342, %345 : vector<16x16xf32>
    %347 = math.exp %346 : vector<16x16xf32>
    %cst_142 = arith.constant dense<0.000000e+00> : vector<16xf32>
    %348 = vector.multi_reduction <add>, %347, %cst_142 [1] : vector<16x16xf32> to vector<16xf32>
    %349 = vector.shape_cast %348 : vector<16xf32> to vector<16x1xf32>
    %350 = tpu.reciprocal %349 {approx = true} : vector<16x1xf32> -> vector<16x1xf32>
    %351 = vector.broadcast %350 : vector<16x1xf32> to vector<16x16xf32>
    %352 = arith.mulf %347, %351 : vector<16x16xf32>
    %cst_143 = arith.constant dense<0.000000e+00> : vector<16x4xf32>
    %353 = tpu.matmul %352, %337, %cst_143 {dimension_numbers = #tpu.dot_dimension_numbers<[1], [0], [0], [1], [0, 0, 1, 1], [], []>} : vector<16x16xf32>, vector<16x4xf32>, vector<16x4xf32> -> vector<16x4xf32>
    %354 = vector.extract_strided_slice %315 {offsets = [0, 8], sizes = [16, 4], strides = [1, 1]} : vector<16x96xf32> to vector<16x4xf32>
    %355 = vector.extract_strided_slice %315 {offsets = [0, 40], sizes = [16, 4], strides = [1, 1]} : vector<16x96xf32> to vector<16x4xf32>
    %356 = vector.extract_strided_slice %315 {offsets = [0, 72], sizes = [16, 4], strides = [1, 1]} : vector<16x96xf32> to vector<16x4xf32>
    %cst_144 = arith.constant dense<0.000000e+00> : vector<16x16xf32>
    %357 = tpu.matmul %354, %355, %cst_144 {dimension_numbers = #tpu.dot_dimension_numbers<[1], [1], [0], [0], [0, 0, 1, 0], [], []>} : vector<16x4xf32>, vector<16x4xf32>, vector<16x16xf32> -> vector<16x16xf32>
    %cst_145 = arith.constant 5.000000e-01 : f32
    %358 = vector.broadcast %cst_145 : f32 to vector<16x16xf32>
    %359 = arith.mulf %357, %358 : vector<16x16xf32>
    %cst_146 = arith.constant -1.000000e+30 : f32
    %360 = vector.broadcast %cst_146 : f32 to vector<16x16xf32>
    %361 = arith.select %76, %359, %360 : vector<16x16xi1>, vector<16x16xf32>
    %cst_147 = arith.constant dense<0xFF800000> : vector<16xf32>
    %362 = vector.multi_reduction <maximumf>, %361, %cst_147 [1] : vector<16x16xf32> to vector<16xf32>
    %363 = vector.shape_cast %362 : vector<16xf32> to vector<16x1xf32>
    %364 = vector.broadcast %363 : vector<16x1xf32> to vector<16x16xf32>
    %365 = arith.subf %361, %364 : vector<16x16xf32>
    %366 = math.exp %365 : vector<16x16xf32>
    %cst_148 = arith.constant dense<0.000000e+00> : vector<16xf32>
    %367 = vector.multi_reduction <add>, %366, %cst_148 [1] : vector<16x16xf32> to vector<16xf32>
    %368 = vector.shape_cast %367 : vector<16xf32> to vector<16x1xf32>
    %369 = tpu.reciprocal %368 {approx = true} : vector<16x1xf32> -> vector<16x1xf32>
    %370 = vector.broadcast %369 : vector<16x1xf32> to vector<16x16xf32>
    %371 = arith.mulf %366, %370 : vector<16x16xf32>
    %cst_149 = arith.constant dense<0.000000e+00> : vector<16x4xf32>
    %372 = tpu.matmul %371, %356, %cst_149 {dimension_numbers = #tpu.dot_dimension_numbers<[1], [0], [0], [1], [0, 0, 1, 1], [], []>} : vector<16x16xf32>, vector<16x4xf32>, vector<16x4xf32> -> vector<16x4xf32>
    %373 = vector.extract_strided_slice %315 {offsets = [0, 12], sizes = [16, 4], strides = [1, 1]} : vector<16x96xf32> to vector<16x4xf32>
    %374 = vector.extract_strided_slice %315 {offsets = [0, 44], sizes = [16, 4], strides = [1, 1]} : vector<16x96xf32> to vector<16x4xf32>
    %375 = vector.extract_strided_slice %315 {offsets = [0, 76], sizes = [16, 4], strides = [1, 1]} : vector<16x96xf32> to vector<16x4xf32>
    %cst_150 = arith.constant dense<0.000000e+00> : vector<16x16xf32>
    %376 = tpu.matmul %373, %374, %cst_150 {dimension_numbers = #tpu.dot_dimension_numbers<[1], [1], [0], [0], [0, 0, 1, 0], [], []>} : vector<16x4xf32>, vector<16x4xf32>, vector<16x16xf32> -> vector<16x16xf32>
    %cst_151 = arith.constant 5.000000e-01 : f32
    %377 = vector.broadcast %cst_151 : f32 to vector<16x16xf32>
    %378 = arith.mulf %376, %377 : vector<16x16xf32>
    %cst_152 = arith.constant -1.000000e+30 : f32
    %379 = vector.broadcast %cst_152 : f32 to vector<16x16xf32>
    %380 = arith.select %76, %378, %379 : vector<16x16xi1>, vector<16x16xf32>
    %cst_153 = arith.constant dense<0xFF800000> : vector<16xf32>
    %381 = vector.multi_reduction <maximumf>, %380, %cst_153 [1] : vector<16x16xf32> to vector<16xf32>
    %382 = vector.shape_cast %381 : vector<16xf32> to vector<16x1xf32>
    %383 = vector.broadcast %382 : vector<16x1xf32> to vector<16x16xf32>
    %384 = arith.subf %380, %383 : vector<16x16xf32>
    %385 = math.exp %384 : vector<16x16xf32>
    %cst_154 = arith.constant dense<0.000000e+00> : vector<16xf32>
    %386 = vector.multi_reduction <add>, %385, %cst_154 [1] : vector<16x16xf32> to vector<16xf32>
    %387 = vector.shape_cast %386 : vector<16xf32> to vector<16x1xf32>
    %388 = tpu.reciprocal %387 {approx = true} : vector<16x1xf32> -> vector<16x1xf32>
    %389 = vector.broadcast %388 : vector<16x1xf32> to vector<16x16xf32>
    %390 = arith.mulf %385, %389 : vector<16x16xf32>
    %cst_155 = arith.constant dense<0.000000e+00> : vector<16x4xf32>
    %391 = tpu.matmul %390, %375, %cst_155 {dimension_numbers = #tpu.dot_dimension_numbers<[1], [0], [0], [1], [0, 0, 1, 1], [], []>} : vector<16x16xf32>, vector<16x4xf32>, vector<16x4xf32> -> vector<16x4xf32>
    %392 = vector.extract_strided_slice %315 {offsets = [0, 16], sizes = [16, 4], strides = [1, 1]} : vector<16x96xf32> to vector<16x4xf32>
    %393 = vector.extract_strided_slice %315 {offsets = [0, 48], sizes = [16, 4], strides = [1, 1]} : vector<16x96xf32> to vector<16x4xf32>
    %394 = vector.extract_strided_slice %315 {offsets = [0, 80], sizes = [16, 4], strides = [1, 1]} : vector<16x96xf32> to vector<16x4xf32>
    %cst_156 = arith.constant dense<0.000000e+00> : vector<16x16xf32>
    %395 = tpu.matmul %392, %393, %cst_156 {dimension_numbers = #tpu.dot_dimension_numbers<[1], [1], [0], [0], [0, 0, 1, 0], [], []>} : vector<16x4xf32>, vector<16x4xf32>, vector<16x16xf32> -> vector<16x16xf32>
    %cst_157 = arith.constant 5.000000e-01 : f32
    %396 = vector.broadcast %cst_157 : f32 to vector<16x16xf32>
    %397 = arith.mulf %395, %396 : vector<16x16xf32>
    %cst_158 = arith.constant -1.000000e+30 : f32
    %398 = vector.broadcast %cst_158 : f32 to vector<16x16xf32>
    %399 = arith.select %76, %397, %398 : vector<16x16xi1>, vector<16x16xf32>
    %cst_159 = arith.constant dense<0xFF800000> : vector<16xf32>
    %400 = vector.multi_reduction <maximumf>, %399, %cst_159 [1] : vector<16x16xf32> to vector<16xf32>
    %401 = vector.shape_cast %400 : vector<16xf32> to vector<16x1xf32>
    %402 = vector.broadcast %401 : vector<16x1xf32> to vector<16x16xf32>
    %403 = arith.subf %399, %402 : vector<16x16xf32>
    %404 = math.exp %403 : vector<16x16xf32>
    %cst_160 = arith.constant dense<0.000000e+00> : vector<16xf32>
    %405 = vector.multi_reduction <add>, %404, %cst_160 [1] : vector<16x16xf32> to vector<16xf32>
    %406 = vector.shape_cast %405 : vector<16xf32> to vector<16x1xf32>
    %407 = tpu.reciprocal %406 {approx = true} : vector<16x1xf32> -> vector<16x1xf32>
    %408 = vector.broadcast %407 : vector<16x1xf32> to vector<16x16xf32>
    %409 = arith.mulf %404, %408 : vector<16x16xf32>
    %cst_161 = arith.constant dense<0.000000e+00> : vector<16x4xf32>
    %410 = tpu.matmul %409, %394, %cst_161 {dimension_numbers = #tpu.dot_dimension_numbers<[1], [0], [0], [1], [0, 0, 1, 1], [], []>} : vector<16x16xf32>, vector<16x4xf32>, vector<16x4xf32> -> vector<16x4xf32>
    %411 = vector.extract_strided_slice %315 {offsets = [0, 20], sizes = [16, 4], strides = [1, 1]} : vector<16x96xf32> to vector<16x4xf32>
    %412 = vector.extract_strided_slice %315 {offsets = [0, 52], sizes = [16, 4], strides = [1, 1]} : vector<16x96xf32> to vector<16x4xf32>
    %413 = vector.extract_strided_slice %315 {offsets = [0, 84], sizes = [16, 4], strides = [1, 1]} : vector<16x96xf32> to vector<16x4xf32>
    %cst_162 = arith.constant dense<0.000000e+00> : vector<16x16xf32>
    %414 = tpu.matmul %411, %412, %cst_162 {dimension_numbers = #tpu.dot_dimension_numbers<[1], [1], [0], [0], [0, 0, 1, 0], [], []>} : vector<16x4xf32>, vector<16x4xf32>, vector<16x16xf32> -> vector<16x16xf32>
    %cst_163 = arith.constant 5.000000e-01 : f32
    %415 = vector.broadcast %cst_163 : f32 to vector<16x16xf32>
    %416 = arith.mulf %414, %415 : vector<16x16xf32>
    %cst_164 = arith.constant -1.000000e+30 : f32
    %417 = vector.broadcast %cst_164 : f32 to vector<16x16xf32>
    %418 = arith.select %76, %416, %417 : vector<16x16xi1>, vector<16x16xf32>
    %cst_165 = arith.constant dense<0xFF800000> : vector<16xf32>
    %419 = vector.multi_reduction <maximumf>, %418, %cst_165 [1] : vector<16x16xf32> to vector<16xf32>
    %420 = vector.shape_cast %419 : vector<16xf32> to vector<16x1xf32>
    %421 = vector.broadcast %420 : vector<16x1xf32> to vector<16x16xf32>
    %422 = arith.subf %418, %421 : vector<16x16xf32>
    %423 = math.exp %422 : vector<16x16xf32>
    %cst_166 = arith.constant dense<0.000000e+00> : vector<16xf32>
    %424 = vector.multi_reduction <add>, %423, %cst_166 [1] : vector<16x16xf32> to vector<16xf32>
    %425 = vector.shape_cast %424 : vector<16xf32> to vector<16x1xf32>
    %426 = tpu.reciprocal %425 {approx = true} : vector<16x1xf32> -> vector<16x1xf32>
    %427 = vector.broadcast %426 : vector<16x1xf32> to vector<16x16xf32>
    %428 = arith.mulf %423, %427 : vector<16x16xf32>
    %cst_167 = arith.constant dense<0.000000e+00> : vector<16x4xf32>
    %429 = tpu.matmul %428, %413, %cst_167 {dimension_numbers = #tpu.dot_dimension_numbers<[1], [0], [0], [1], [0, 0, 1, 1], [], []>} : vector<16x16xf32>, vector<16x4xf32>, vector<16x4xf32> -> vector<16x4xf32>
    %430 = vector.extract_strided_slice %315 {offsets = [0, 24], sizes = [16, 4], strides = [1, 1]} : vector<16x96xf32> to vector<16x4xf32>
    %431 = vector.extract_strided_slice %315 {offsets = [0, 56], sizes = [16, 4], strides = [1, 1]} : vector<16x96xf32> to vector<16x4xf32>
    %432 = vector.extract_strided_slice %315 {offsets = [0, 88], sizes = [16, 4], strides = [1, 1]} : vector<16x96xf32> to vector<16x4xf32>
    %cst_168 = arith.constant dense<0.000000e+00> : vector<16x16xf32>
    %433 = tpu.matmul %430, %431, %cst_168 {dimension_numbers = #tpu.dot_dimension_numbers<[1], [1], [0], [0], [0, 0, 1, 0], [], []>} : vector<16x4xf32>, vector<16x4xf32>, vector<16x16xf32> -> vector<16x16xf32>
    %cst_169 = arith.constant 5.000000e-01 : f32
    %434 = vector.broadcast %cst_169 : f32 to vector<16x16xf32>
    %435 = arith.mulf %433, %434 : vector<16x16xf32>
    %cst_170 = arith.constant -1.000000e+30 : f32
    %436 = vector.broadcast %cst_170 : f32 to vector<16x16xf32>
    %437 = arith.select %76, %435, %436 : vector<16x16xi1>, vector<16x16xf32>
    %cst_171 = arith.constant dense<0xFF800000> : vector<16xf32>
    %438 = vector.multi_reduction <maximumf>, %437, %cst_171 [1] : vector<16x16xf32> to vector<16xf32>
    %439 = vector.shape_cast %438 : vector<16xf32> to vector<16x1xf32>
    %440 = vector.broadcast %439 : vector<16x1xf32> to vector<16x16xf32>
    %441 = arith.subf %437, %440 : vector<16x16xf32>
    %442 = math.exp %441 : vector<16x16xf32>
    %cst_172 = arith.constant dense<0.000000e+00> : vector<16xf32>
    %443 = vector.multi_reduction <add>, %442, %cst_172 [1] : vector<16x16xf32> to vector<16xf32>
    %444 = vector.shape_cast %443 : vector<16xf32> to vector<16x1xf32>
    %445 = tpu.reciprocal %444 {approx = true} : vector<16x1xf32> -> vector<16x1xf32>
    %446 = vector.broadcast %445 : vector<16x1xf32> to vector<16x16xf32>
    %447 = arith.mulf %442, %446 : vector<16x16xf32>
    %cst_173 = arith.constant dense<0.000000e+00> : vector<16x4xf32>
    %448 = tpu.matmul %447, %432, %cst_173 {dimension_numbers = #tpu.dot_dimension_numbers<[1], [0], [0], [1], [0, 0, 1, 1], [], []>} : vector<16x16xf32>, vector<16x4xf32>, vector<16x4xf32> -> vector<16x4xf32>
    %449 = vector.extract_strided_slice %315 {offsets = [0, 28], sizes = [16, 4], strides = [1, 1]} : vector<16x96xf32> to vector<16x4xf32>
    %450 = vector.extract_strided_slice %315 {offsets = [0, 60], sizes = [16, 4], strides = [1, 1]} : vector<16x96xf32> to vector<16x4xf32>
    %451 = vector.extract_strided_slice %315 {offsets = [0, 92], sizes = [16, 4], strides = [1, 1]} : vector<16x96xf32> to vector<16x4xf32>
    %cst_174 = arith.constant dense<0.000000e+00> : vector<16x16xf32>
    %452 = tpu.matmul %449, %450, %cst_174 {dimension_numbers = #tpu.dot_dimension_numbers<[1], [1], [0], [0], [0, 0, 1, 0], [], []>} : vector<16x4xf32>, vector<16x4xf32>, vector<16x16xf32> -> vector<16x16xf32>
    %cst_175 = arith.constant 5.000000e-01 : f32
    %453 = vector.broadcast %cst_175 : f32 to vector<16x16xf32>
    %454 = arith.mulf %452, %453 : vector<16x16xf32>
    %cst_176 = arith.constant -1.000000e+30 : f32
    %455 = vector.broadcast %cst_176 : f32 to vector<16x16xf32>
    %456 = arith.select %76, %454, %455 : vector<16x16xi1>, vector<16x16xf32>
    %cst_177 = arith.constant dense<0xFF800000> : vector<16xf32>
    %457 = vector.multi_reduction <maximumf>, %456, %cst_177 [1] : vector<16x16xf32> to vector<16xf32>
    %458 = vector.shape_cast %457 : vector<16xf32> to vector<16x1xf32>
    %459 = vector.broadcast %458 : vector<16x1xf32> to vector<16x16xf32>
    %460 = arith.subf %456, %459 : vector<16x16xf32>
    %461 = math.exp %460 : vector<16x16xf32>
    %cst_178 = arith.constant dense<0.000000e+00> : vector<16xf32>
    %462 = vector.multi_reduction <add>, %461, %cst_178 [1] : vector<16x16xf32> to vector<16xf32>
    %463 = vector.shape_cast %462 : vector<16xf32> to vector<16x1xf32>
    %464 = tpu.reciprocal %463 {approx = true} : vector<16x1xf32> -> vector<16x1xf32>
    %465 = vector.broadcast %464 : vector<16x1xf32> to vector<16x16xf32>
    %466 = arith.mulf %461, %465 : vector<16x16xf32>
    %cst_179 = arith.constant dense<0.000000e+00> : vector<16x4xf32>
    %467 = tpu.matmul %466, %451, %cst_179 {dimension_numbers = #tpu.dot_dimension_numbers<[1], [0], [0], [1], [0, 0, 1, 1], [], []>} : vector<16x16xf32>, vector<16x4xf32>, vector<16x4xf32> -> vector<16x4xf32>
    %468 = tpu.concatenate %334, %353, %372, %391, %410, %429, %448, %467 in 1 : vector<16x4xf32>, vector<16x4xf32>, vector<16x4xf32>, vector<16x4xf32>, vector<16x4xf32>, vector<16x4xf32>, vector<16x4xf32>, vector<16x4xf32> -> vector<16x32xf32>
    %c1_180 = arith.constant 1 : index
    %c0_181 = arith.constant 0 : index
    %c0_182 = arith.constant 0 : index
    %469 = vector.load %arg10[%c1_180, %c0_181, %c0_182] : memref<4x32x32xf32, #tpu.memory_space<vmem>>, vector<1x32x32xf32>
    %470 = vector.shape_cast %469 : vector<1x32x32xf32> to vector<32x32xf32>
    %cst_183 = arith.constant dense<0.000000e+00> : vector<16x32xf32>
    %471 = tpu.matmul %468, %470, %cst_183 {dimension_numbers = #tpu.dot_dimension_numbers<[1], [0], [0], [1], [0, 0, 1, 1], [], []>} : vector<16x32xf32>, vector<32x32xf32>, vector<16x32xf32> -> vector<16x32xf32>
    %472 = vector.extract_strided_slice %78 {offsets = [1, 0], sizes = [1, 32], strides = [1, 1]} : vector<4x32xf32> to vector<1x32xf32>
    %473 = vector.broadcast %472 : vector<1x32xf32> to vector<16x32xf32>
    %474 = arith.addf %471, %473 : vector<16x32xf32>
    %475 = arith.addf %309, %474 : vector<16x32xf32>
    %476 = vector.extract_strided_slice %81 {offsets = [1, 0], sizes = [1, 32], strides = [1, 1]} : vector<4x32xf32> to vector<1x32xf32>
    %477 = vector.extract_strided_slice %82 {offsets = [1, 0], sizes = [1, 32], strides = [1, 1]} : vector<4x32xf32> to vector<1x32xf32>
    %cst_184 = arith.constant dense<0.000000e+00> : vector<16xf32>
    %478 = vector.multi_reduction <add>, %475, %cst_184 [1] : vector<16x32xf32> to vector<16xf32>
    %479 = vector.shape_cast %478 : vector<16xf32> to vector<16x1xf32>
    %cst_185 = arith.constant 3.200000e+01 : f32
    %480 = vector.broadcast %cst_185 : f32 to vector<16x1xf32>
    %481 = arith.divf %479, %480 : vector<16x1xf32>
    %482 = vector.broadcast %481 : vector<16x1xf32> to vector<16x32xf32>
    %483 = arith.subf %475, %482 : vector<16x32xf32>
    %484 = arith.mulf %483, %483 : vector<16x32xf32>
    %cst_186 = arith.constant dense<0.000000e+00> : vector<16xf32>
    %485 = vector.multi_reduction <add>, %484, %cst_186 [1] : vector<16x32xf32> to vector<16xf32>
    %486 = vector.shape_cast %485 : vector<16xf32> to vector<16x1xf32>
    %cst_187 = arith.constant 3.200000e+01 : f32
    %487 = vector.broadcast %cst_187 : f32 to vector<16x1xf32>
    %488 = arith.divf %486, %487 : vector<16x1xf32>
    %cst_188 = arith.constant 9.99999974E-6 : f32
    %489 = vector.broadcast %cst_188 : f32 to vector<16x1xf32>
    %490 = arith.addf %488, %489 : vector<16x1xf32>
    %491 = math.rsqrt %490 : vector<16x1xf32>
    %492 = vector.broadcast %491 : vector<16x1xf32> to vector<16x32xf32>
    %493 = arith.mulf %483, %492 : vector<16x32xf32>
    %494 = vector.broadcast %476 : vector<1x32xf32> to vector<16x32xf32>
    %495 = arith.mulf %493, %494 : vector<16x32xf32>
    %496 = vector.broadcast %477 : vector<1x32xf32> to vector<16x32xf32>
    %497 = arith.addf %495, %496 : vector<16x32xf32>
    %c1_189 = arith.constant 1 : index
    %c0_190 = arith.constant 0 : index
    %c0_191 = arith.constant 0 : index
    %498 = vector.load %arg12[%c1_189, %c0_190, %c0_191] : memref<4x32x32xf32, #tpu.memory_space<vmem>>, vector<1x32x32xf32>
    %499 = vector.shape_cast %498 : vector<1x32x32xf32> to vector<32x32xf32>
    %cst_192 = arith.constant dense<0.000000e+00> : vector<16x32xf32>
    %500 = tpu.matmul %497, %499, %cst_192 {dimension_numbers = #tpu.dot_dimension_numbers<[1], [0], [0], [1], [0, 0, 1, 1], [], []>} : vector<16x32xf32>, vector<32x32xf32>, vector<16x32xf32> -> vector<16x32xf32>
    %501 = vector.extract_strided_slice %79 {offsets = [1, 0], sizes = [1, 32], strides = [1, 1]} : vector<4x32xf32> to vector<1x32xf32>
    %502 = vector.broadcast %501 : vector<1x32xf32> to vector<16x32xf32>
    %503 = arith.addf %500, %502 : vector<16x32xf32>
    %cst_193 = arith.constant 0.000000e+00 : f32
    %504 = vector.broadcast %cst_193 : f32 to vector<16x32xf32>
    %505 = arith.maximumf %503, %504 : vector<16x32xf32>
    %c1_194 = arith.constant 1 : index
    %c0_195 = arith.constant 0 : index
    %c0_196 = arith.constant 0 : index
    %506 = vector.load %arg14[%c1_194, %c0_195, %c0_196] : memref<4x32x32xf32, #tpu.memory_space<vmem>>, vector<1x32x32xf32>
    %507 = vector.shape_cast %506 : vector<1x32x32xf32> to vector<32x32xf32>
    %cst_197 = arith.constant dense<0.000000e+00> : vector<16x32xf32>
    %508 = tpu.matmul %505, %507, %cst_197 {dimension_numbers = #tpu.dot_dimension_numbers<[1], [0], [0], [1], [0, 0, 1, 1], [], []>} : vector<16x32xf32>, vector<32x32xf32>, vector<16x32xf32> -> vector<16x32xf32>
    %509 = vector.extract_strided_slice %80 {offsets = [1, 0], sizes = [1, 32], strides = [1, 1]} : vector<4x32xf32> to vector<1x32xf32>
    %510 = vector.broadcast %509 : vector<1x32xf32> to vector<16x32xf32>
    %511 = arith.addf %508, %510 : vector<16x32xf32>
    %512 = arith.addf %497, %511 : vector<16x32xf32>
    %513 = vector.extract_strided_slice %83 {offsets = [1, 0], sizes = [1, 32], strides = [1, 1]} : vector<4x32xf32> to vector<1x32xf32>
    %514 = vector.extract_strided_slice %84 {offsets = [1, 0], sizes = [1, 32], strides = [1, 1]} : vector<4x32xf32> to vector<1x32xf32>
    %cst_198 = arith.constant dense<0.000000e+00> : vector<16xf32>
    %515 = vector.multi_reduction <add>, %512, %cst_198 [1] : vector<16x32xf32> to vector<16xf32>
    %516 = vector.shape_cast %515 : vector<16xf32> to vector<16x1xf32>
    %cst_199 = arith.constant 3.200000e+01 : f32
    %517 = vector.broadcast %cst_199 : f32 to vector<16x1xf32>
    %518 = arith.divf %516, %517 : vector<16x1xf32>
    %519 = vector.broadcast %518 : vector<16x1xf32> to vector<16x32xf32>
    %520 = arith.subf %512, %519 : vector<16x32xf32>
    %521 = arith.mulf %520, %520 : vector<16x32xf32>
    %cst_200 = arith.constant dense<0.000000e+00> : vector<16xf32>
    %522 = vector.multi_reduction <add>, %521, %cst_200 [1] : vector<16x32xf32> to vector<16xf32>
    %523 = vector.shape_cast %522 : vector<16xf32> to vector<16x1xf32>
    %cst_201 = arith.constant 3.200000e+01 : f32
    %524 = vector.broadcast %cst_201 : f32 to vector<16x1xf32>
    %525 = arith.divf %523, %524 : vector<16x1xf32>
    %cst_202 = arith.constant 9.99999974E-6 : f32
    %526 = vector.broadcast %cst_202 : f32 to vector<16x1xf32>
    %527 = arith.addf %525, %526 : vector<16x1xf32>
    %528 = math.rsqrt %527 : vector<16x1xf32>
    %529 = vector.broadcast %528 : vector<16x1xf32> to vector<16x32xf32>
    %530 = arith.mulf %520, %529 : vector<16x32xf32>
    %531 = vector.broadcast %513 : vector<1x32xf32> to vector<16x32xf32>
    %532 = arith.mulf %530, %531 : vector<16x32xf32>
    %533 = vector.broadcast %514 : vector<1x32xf32> to vector<16x32xf32>
    %534 = arith.addf %532, %533 : vector<16x32xf32>
    %c2 = arith.constant 2 : index
    %c0_203 = arith.constant 0 : index
    %c0_204 = arith.constant 0 : index
    %535 = vector.load %arg8[%c2, %c0_203, %c0_204] : memref<4x32x96xf32, #tpu.memory_space<vmem>>, vector<1x32x96xf32>
    %536 = vector.shape_cast %535 : vector<1x32x96xf32> to vector<32x96xf32>
    %cst_205 = arith.constant dense<0.000000e+00> : vector<16x96xf32>
    %537 = tpu.matmul %534, %536, %cst_205 {dimension_numbers = #tpu.dot_dimension_numbers<[1], [0], [0], [1], [0, 0, 1, 1], [], []>} : vector<16x32xf32>, vector<32x96xf32>, vector<16x96xf32> -> vector<16x96xf32>
    %538 = vector.extract_strided_slice %77 {offsets = [2, 0], sizes = [1, 96], strides = [1, 1]} : vector<4x96xf32> to vector<1x96xf32>
    %539 = vector.broadcast %538 : vector<1x96xf32> to vector<16x96xf32>
    %540 = arith.addf %537, %539 : vector<16x96xf32>
    %541 = vector.extract_strided_slice %540 {offsets = [0, 0], sizes = [16, 4], strides = [1, 1]} : vector<16x96xf32> to vector<16x4xf32>
    %542 = vector.extract_strided_slice %540 {offsets = [0, 32], sizes = [16, 4], strides = [1, 1]} : vector<16x96xf32> to vector<16x4xf32>
    %543 = vector.extract_strided_slice %540 {offsets = [0, 64], sizes = [16, 4], strides = [1, 1]} : vector<16x96xf32> to vector<16x4xf32>
    %cst_206 = arith.constant dense<0.000000e+00> : vector<16x16xf32>
    %544 = tpu.matmul %541, %542, %cst_206 {dimension_numbers = #tpu.dot_dimension_numbers<[1], [1], [0], [0], [0, 0, 1, 0], [], []>} : vector<16x4xf32>, vector<16x4xf32>, vector<16x16xf32> -> vector<16x16xf32>
    %cst_207 = arith.constant 5.000000e-01 : f32
    %545 = vector.broadcast %cst_207 : f32 to vector<16x16xf32>
    %546 = arith.mulf %544, %545 : vector<16x16xf32>
    %cst_208 = arith.constant -1.000000e+30 : f32
    %547 = vector.broadcast %cst_208 : f32 to vector<16x16xf32>
    %548 = arith.select %76, %546, %547 : vector<16x16xi1>, vector<16x16xf32>
    %cst_209 = arith.constant dense<0xFF800000> : vector<16xf32>
    %549 = vector.multi_reduction <maximumf>, %548, %cst_209 [1] : vector<16x16xf32> to vector<16xf32>
    %550 = vector.shape_cast %549 : vector<16xf32> to vector<16x1xf32>
    %551 = vector.broadcast %550 : vector<16x1xf32> to vector<16x16xf32>
    %552 = arith.subf %548, %551 : vector<16x16xf32>
    %553 = math.exp %552 : vector<16x16xf32>
    %cst_210 = arith.constant dense<0.000000e+00> : vector<16xf32>
    %554 = vector.multi_reduction <add>, %553, %cst_210 [1] : vector<16x16xf32> to vector<16xf32>
    %555 = vector.shape_cast %554 : vector<16xf32> to vector<16x1xf32>
    %556 = tpu.reciprocal %555 {approx = true} : vector<16x1xf32> -> vector<16x1xf32>
    %557 = vector.broadcast %556 : vector<16x1xf32> to vector<16x16xf32>
    %558 = arith.mulf %553, %557 : vector<16x16xf32>
    %cst_211 = arith.constant dense<0.000000e+00> : vector<16x4xf32>
    %559 = tpu.matmul %558, %543, %cst_211 {dimension_numbers = #tpu.dot_dimension_numbers<[1], [0], [0], [1], [0, 0, 1, 1], [], []>} : vector<16x16xf32>, vector<16x4xf32>, vector<16x4xf32> -> vector<16x4xf32>
    %560 = vector.extract_strided_slice %540 {offsets = [0, 4], sizes = [16, 4], strides = [1, 1]} : vector<16x96xf32> to vector<16x4xf32>
    %561 = vector.extract_strided_slice %540 {offsets = [0, 36], sizes = [16, 4], strides = [1, 1]} : vector<16x96xf32> to vector<16x4xf32>
    %562 = vector.extract_strided_slice %540 {offsets = [0, 68], sizes = [16, 4], strides = [1, 1]} : vector<16x96xf32> to vector<16x4xf32>
    %cst_212 = arith.constant dense<0.000000e+00> : vector<16x16xf32>
    %563 = tpu.matmul %560, %561, %cst_212 {dimension_numbers = #tpu.dot_dimension_numbers<[1], [1], [0], [0], [0, 0, 1, 0], [], []>} : vector<16x4xf32>, vector<16x4xf32>, vector<16x16xf32> -> vector<16x16xf32>
    %cst_213 = arith.constant 5.000000e-01 : f32
    %564 = vector.broadcast %cst_213 : f32 to vector<16x16xf32>
    %565 = arith.mulf %563, %564 : vector<16x16xf32>
    %cst_214 = arith.constant -1.000000e+30 : f32
    %566 = vector.broadcast %cst_214 : f32 to vector<16x16xf32>
    %567 = arith.select %76, %565, %566 : vector<16x16xi1>, vector<16x16xf32>
    %cst_215 = arith.constant dense<0xFF800000> : vector<16xf32>
    %568 = vector.multi_reduction <maximumf>, %567, %cst_215 [1] : vector<16x16xf32> to vector<16xf32>
    %569 = vector.shape_cast %568 : vector<16xf32> to vector<16x1xf32>
    %570 = vector.broadcast %569 : vector<16x1xf32> to vector<16x16xf32>
    %571 = arith.subf %567, %570 : vector<16x16xf32>
    %572 = math.exp %571 : vector<16x16xf32>
    %cst_216 = arith.constant dense<0.000000e+00> : vector<16xf32>
    %573 = vector.multi_reduction <add>, %572, %cst_216 [1] : vector<16x16xf32> to vector<16xf32>
    %574 = vector.shape_cast %573 : vector<16xf32> to vector<16x1xf32>
    %575 = tpu.reciprocal %574 {approx = true} : vector<16x1xf32> -> vector<16x1xf32>
    %576 = vector.broadcast %575 : vector<16x1xf32> to vector<16x16xf32>
    %577 = arith.mulf %572, %576 : vector<16x16xf32>
    %cst_217 = arith.constant dense<0.000000e+00> : vector<16x4xf32>
    %578 = tpu.matmul %577, %562, %cst_217 {dimension_numbers = #tpu.dot_dimension_numbers<[1], [0], [0], [1], [0, 0, 1, 1], [], []>} : vector<16x16xf32>, vector<16x4xf32>, vector<16x4xf32> -> vector<16x4xf32>
    %579 = vector.extract_strided_slice %540 {offsets = [0, 8], sizes = [16, 4], strides = [1, 1]} : vector<16x96xf32> to vector<16x4xf32>
    %580 = vector.extract_strided_slice %540 {offsets = [0, 40], sizes = [16, 4], strides = [1, 1]} : vector<16x96xf32> to vector<16x4xf32>
    %581 = vector.extract_strided_slice %540 {offsets = [0, 72], sizes = [16, 4], strides = [1, 1]} : vector<16x96xf32> to vector<16x4xf32>
    %cst_218 = arith.constant dense<0.000000e+00> : vector<16x16xf32>
    %582 = tpu.matmul %579, %580, %cst_218 {dimension_numbers = #tpu.dot_dimension_numbers<[1], [1], [0], [0], [0, 0, 1, 0], [], []>} : vector<16x4xf32>, vector<16x4xf32>, vector<16x16xf32> -> vector<16x16xf32>
    %cst_219 = arith.constant 5.000000e-01 : f32
    %583 = vector.broadcast %cst_219 : f32 to vector<16x16xf32>
    %584 = arith.mulf %582, %583 : vector<16x16xf32>
    %cst_220 = arith.constant -1.000000e+30 : f32
    %585 = vector.broadcast %cst_220 : f32 to vector<16x16xf32>
    %586 = arith.select %76, %584, %585 : vector<16x16xi1>, vector<16x16xf32>
    %cst_221 = arith.constant dense<0xFF800000> : vector<16xf32>
    %587 = vector.multi_reduction <maximumf>, %586, %cst_221 [1] : vector<16x16xf32> to vector<16xf32>
    %588 = vector.shape_cast %587 : vector<16xf32> to vector<16x1xf32>
    %589 = vector.broadcast %588 : vector<16x1xf32> to vector<16x16xf32>
    %590 = arith.subf %586, %589 : vector<16x16xf32>
    %591 = math.exp %590 : vector<16x16xf32>
    %cst_222 = arith.constant dense<0.000000e+00> : vector<16xf32>
    %592 = vector.multi_reduction <add>, %591, %cst_222 [1] : vector<16x16xf32> to vector<16xf32>
    %593 = vector.shape_cast %592 : vector<16xf32> to vector<16x1xf32>
    %594 = tpu.reciprocal %593 {approx = true} : vector<16x1xf32> -> vector<16x1xf32>
    %595 = vector.broadcast %594 : vector<16x1xf32> to vector<16x16xf32>
    %596 = arith.mulf %591, %595 : vector<16x16xf32>
    %cst_223 = arith.constant dense<0.000000e+00> : vector<16x4xf32>
    %597 = tpu.matmul %596, %581, %cst_223 {dimension_numbers = #tpu.dot_dimension_numbers<[1], [0], [0], [1], [0, 0, 1, 1], [], []>} : vector<16x16xf32>, vector<16x4xf32>, vector<16x4xf32> -> vector<16x4xf32>
    %598 = vector.extract_strided_slice %540 {offsets = [0, 12], sizes = [16, 4], strides = [1, 1]} : vector<16x96xf32> to vector<16x4xf32>
    %599 = vector.extract_strided_slice %540 {offsets = [0, 44], sizes = [16, 4], strides = [1, 1]} : vector<16x96xf32> to vector<16x4xf32>
    %600 = vector.extract_strided_slice %540 {offsets = [0, 76], sizes = [16, 4], strides = [1, 1]} : vector<16x96xf32> to vector<16x4xf32>
    %cst_224 = arith.constant dense<0.000000e+00> : vector<16x16xf32>
    %601 = tpu.matmul %598, %599, %cst_224 {dimension_numbers = #tpu.dot_dimension_numbers<[1], [1], [0], [0], [0, 0, 1, 0], [], []>} : vector<16x4xf32>, vector<16x4xf32>, vector<16x16xf32> -> vector<16x16xf32>
    %cst_225 = arith.constant 5.000000e-01 : f32
    %602 = vector.broadcast %cst_225 : f32 to vector<16x16xf32>
    %603 = arith.mulf %601, %602 : vector<16x16xf32>
    %cst_226 = arith.constant -1.000000e+30 : f32
    %604 = vector.broadcast %cst_226 : f32 to vector<16x16xf32>
    %605 = arith.select %76, %603, %604 : vector<16x16xi1>, vector<16x16xf32>
    %cst_227 = arith.constant dense<0xFF800000> : vector<16xf32>
    %606 = vector.multi_reduction <maximumf>, %605, %cst_227 [1] : vector<16x16xf32> to vector<16xf32>
    %607 = vector.shape_cast %606 : vector<16xf32> to vector<16x1xf32>
    %608 = vector.broadcast %607 : vector<16x1xf32> to vector<16x16xf32>
    %609 = arith.subf %605, %608 : vector<16x16xf32>
    %610 = math.exp %609 : vector<16x16xf32>
    %cst_228 = arith.constant dense<0.000000e+00> : vector<16xf32>
    %611 = vector.multi_reduction <add>, %610, %cst_228 [1] : vector<16x16xf32> to vector<16xf32>
    %612 = vector.shape_cast %611 : vector<16xf32> to vector<16x1xf32>
    %613 = tpu.reciprocal %612 {approx = true} : vector<16x1xf32> -> vector<16x1xf32>
    %614 = vector.broadcast %613 : vector<16x1xf32> to vector<16x16xf32>
    %615 = arith.mulf %610, %614 : vector<16x16xf32>
    %cst_229 = arith.constant dense<0.000000e+00> : vector<16x4xf32>
    %616 = tpu.matmul %615, %600, %cst_229 {dimension_numbers = #tpu.dot_dimension_numbers<[1], [0], [0], [1], [0, 0, 1, 1], [], []>} : vector<16x16xf32>, vector<16x4xf32>, vector<16x4xf32> -> vector<16x4xf32>
    %617 = vector.extract_strided_slice %540 {offsets = [0, 16], sizes = [16, 4], strides = [1, 1]} : vector<16x96xf32> to vector<16x4xf32>
    %618 = vector.extract_strided_slice %540 {offsets = [0, 48], sizes = [16, 4], strides = [1, 1]} : vector<16x96xf32> to vector<16x4xf32>
    %619 = vector.extract_strided_slice %540 {offsets = [0, 80], sizes = [16, 4], strides = [1, 1]} : vector<16x96xf32> to vector<16x4xf32>
    %cst_230 = arith.constant dense<0.000000e+00> : vector<16x16xf32>
    %620 = tpu.matmul %617, %618, %cst_230 {dimension_numbers = #tpu.dot_dimension_numbers<[1], [1], [0], [0], [0, 0, 1, 0], [], []>} : vector<16x4xf32>, vector<16x4xf32>, vector<16x16xf32> -> vector<16x16xf32>
    %cst_231 = arith.constant 5.000000e-01 : f32
    %621 = vector.broadcast %cst_231 : f32 to vector<16x16xf32>
    %622 = arith.mulf %620, %621 : vector<16x16xf32>
    %cst_232 = arith.constant -1.000000e+30 : f32
    %623 = vector.broadcast %cst_232 : f32 to vector<16x16xf32>
    %624 = arith.select %76, %622, %623 : vector<16x16xi1>, vector<16x16xf32>
    %cst_233 = arith.constant dense<0xFF800000> : vector<16xf32>
    %625 = vector.multi_reduction <maximumf>, %624, %cst_233 [1] : vector<16x16xf32> to vector<16xf32>
    %626 = vector.shape_cast %625 : vector<16xf32> to vector<16x1xf32>
    %627 = vector.broadcast %626 : vector<16x1xf32> to vector<16x16xf32>
    %628 = arith.subf %624, %627 : vector<16x16xf32>
    %629 = math.exp %628 : vector<16x16xf32>
    %cst_234 = arith.constant dense<0.000000e+00> : vector<16xf32>
    %630 = vector.multi_reduction <add>, %629, %cst_234 [1] : vector<16x16xf32> to vector<16xf32>
    %631 = vector.shape_cast %630 : vector<16xf32> to vector<16x1xf32>
    %632 = tpu.reciprocal %631 {approx = true} : vector<16x1xf32> -> vector<16x1xf32>
    %633 = vector.broadcast %632 : vector<16x1xf32> to vector<16x16xf32>
    %634 = arith.mulf %629, %633 : vector<16x16xf32>
    %cst_235 = arith.constant dense<0.000000e+00> : vector<16x4xf32>
    %635 = tpu.matmul %634, %619, %cst_235 {dimension_numbers = #tpu.dot_dimension_numbers<[1], [0], [0], [1], [0, 0, 1, 1], [], []>} : vector<16x16xf32>, vector<16x4xf32>, vector<16x4xf32> -> vector<16x4xf32>
    %636 = vector.extract_strided_slice %540 {offsets = [0, 20], sizes = [16, 4], strides = [1, 1]} : vector<16x96xf32> to vector<16x4xf32>
    %637 = vector.extract_strided_slice %540 {offsets = [0, 52], sizes = [16, 4], strides = [1, 1]} : vector<16x96xf32> to vector<16x4xf32>
    %638 = vector.extract_strided_slice %540 {offsets = [0, 84], sizes = [16, 4], strides = [1, 1]} : vector<16x96xf32> to vector<16x4xf32>
    %cst_236 = arith.constant dense<0.000000e+00> : vector<16x16xf32>
    %639 = tpu.matmul %636, %637, %cst_236 {dimension_numbers = #tpu.dot_dimension_numbers<[1], [1], [0], [0], [0, 0, 1, 0], [], []>} : vector<16x4xf32>, vector<16x4xf32>, vector<16x16xf32> -> vector<16x16xf32>
    %cst_237 = arith.constant 5.000000e-01 : f32
    %640 = vector.broadcast %cst_237 : f32 to vector<16x16xf32>
    %641 = arith.mulf %639, %640 : vector<16x16xf32>
    %cst_238 = arith.constant -1.000000e+30 : f32
    %642 = vector.broadcast %cst_238 : f32 to vector<16x16xf32>
    %643 = arith.select %76, %641, %642 : vector<16x16xi1>, vector<16x16xf32>
    %cst_239 = arith.constant dense<0xFF800000> : vector<16xf32>
    %644 = vector.multi_reduction <maximumf>, %643, %cst_239 [1] : vector<16x16xf32> to vector<16xf32>
    %645 = vector.shape_cast %644 : vector<16xf32> to vector<16x1xf32>
    %646 = vector.broadcast %645 : vector<16x1xf32> to vector<16x16xf32>
    %647 = arith.subf %643, %646 : vector<16x16xf32>
    %648 = math.exp %647 : vector<16x16xf32>
    %cst_240 = arith.constant dense<0.000000e+00> : vector<16xf32>
    %649 = vector.multi_reduction <add>, %648, %cst_240 [1] : vector<16x16xf32> to vector<16xf32>
    %650 = vector.shape_cast %649 : vector<16xf32> to vector<16x1xf32>
    %651 = tpu.reciprocal %650 {approx = true} : vector<16x1xf32> -> vector<16x1xf32>
    %652 = vector.broadcast %651 : vector<16x1xf32> to vector<16x16xf32>
    %653 = arith.mulf %648, %652 : vector<16x16xf32>
    %cst_241 = arith.constant dense<0.000000e+00> : vector<16x4xf32>
    %654 = tpu.matmul %653, %638, %cst_241 {dimension_numbers = #tpu.dot_dimension_numbers<[1], [0], [0], [1], [0, 0, 1, 1], [], []>} : vector<16x16xf32>, vector<16x4xf32>, vector<16x4xf32> -> vector<16x4xf32>
    %655 = vector.extract_strided_slice %540 {offsets = [0, 24], sizes = [16, 4], strides = [1, 1]} : vector<16x96xf32> to vector<16x4xf32>
    %656 = vector.extract_strided_slice %540 {offsets = [0, 56], sizes = [16, 4], strides = [1, 1]} : vector<16x96xf32> to vector<16x4xf32>
    %657 = vector.extract_strided_slice %540 {offsets = [0, 88], sizes = [16, 4], strides = [1, 1]} : vector<16x96xf32> to vector<16x4xf32>
    %cst_242 = arith.constant dense<0.000000e+00> : vector<16x16xf32>
    %658 = tpu.matmul %655, %656, %cst_242 {dimension_numbers = #tpu.dot_dimension_numbers<[1], [1], [0], [0], [0, 0, 1, 0], [], []>} : vector<16x4xf32>, vector<16x4xf32>, vector<16x16xf32> -> vector<16x16xf32>
    %cst_243 = arith.constant 5.000000e-01 : f32
    %659 = vector.broadcast %cst_243 : f32 to vector<16x16xf32>
    %660 = arith.mulf %658, %659 : vector<16x16xf32>
    %cst_244 = arith.constant -1.000000e+30 : f32
    %661 = vector.broadcast %cst_244 : f32 to vector<16x16xf32>
    %662 = arith.select %76, %660, %661 : vector<16x16xi1>, vector<16x16xf32>
    %cst_245 = arith.constant dense<0xFF800000> : vector<16xf32>
    %663 = vector.multi_reduction <maximumf>, %662, %cst_245 [1] : vector<16x16xf32> to vector<16xf32>
    %664 = vector.shape_cast %663 : vector<16xf32> to vector<16x1xf32>
    %665 = vector.broadcast %664 : vector<16x1xf32> to vector<16x16xf32>
    %666 = arith.subf %662, %665 : vector<16x16xf32>
    %667 = math.exp %666 : vector<16x16xf32>
    %cst_246 = arith.constant dense<0.000000e+00> : vector<16xf32>
    %668 = vector.multi_reduction <add>, %667, %cst_246 [1] : vector<16x16xf32> to vector<16xf32>
    %669 = vector.shape_cast %668 : vector<16xf32> to vector<16x1xf32>
    %670 = tpu.reciprocal %669 {approx = true} : vector<16x1xf32> -> vector<16x1xf32>
    %671 = vector.broadcast %670 : vector<16x1xf32> to vector<16x16xf32>
    %672 = arith.mulf %667, %671 : vector<16x16xf32>
    %cst_247 = arith.constant dense<0.000000e+00> : vector<16x4xf32>
    %673 = tpu.matmul %672, %657, %cst_247 {dimension_numbers = #tpu.dot_dimension_numbers<[1], [0], [0], [1], [0, 0, 1, 1], [], []>} : vector<16x16xf32>, vector<16x4xf32>, vector<16x4xf32> -> vector<16x4xf32>
    %674 = vector.extract_strided_slice %540 {offsets = [0, 28], sizes = [16, 4], strides = [1, 1]} : vector<16x96xf32> to vector<16x4xf32>
    %675 = vector.extract_strided_slice %540 {offsets = [0, 60], sizes = [16, 4], strides = [1, 1]} : vector<16x96xf32> to vector<16x4xf32>
    %676 = vector.extract_strided_slice %540 {offsets = [0, 92], sizes = [16, 4], strides = [1, 1]} : vector<16x96xf32> to vector<16x4xf32>
    %cst_248 = arith.constant dense<0.000000e+00> : vector<16x16xf32>
    %677 = tpu.matmul %674, %675, %cst_248 {dimension_numbers = #tpu.dot_dimension_numbers<[1], [1], [0], [0], [0, 0, 1, 0], [], []>} : vector<16x4xf32>, vector<16x4xf32>, vector<16x16xf32> -> vector<16x16xf32>
    %cst_249 = arith.constant 5.000000e-01 : f32
    %678 = vector.broadcast %cst_249 : f32 to vector<16x16xf32>
    %679 = arith.mulf %677, %678 : vector<16x16xf32>
    %cst_250 = arith.constant -1.000000e+30 : f32
    %680 = vector.broadcast %cst_250 : f32 to vector<16x16xf32>
    %681 = arith.select %76, %679, %680 : vector<16x16xi1>, vector<16x16xf32>
    %cst_251 = arith.constant dense<0xFF800000> : vector<16xf32>
    %682 = vector.multi_reduction <maximumf>, %681, %cst_251 [1] : vector<16x16xf32> to vector<16xf32>
    %683 = vector.shape_cast %682 : vector<16xf32> to vector<16x1xf32>
    %684 = vector.broadcast %683 : vector<16x1xf32> to vector<16x16xf32>
    %685 = arith.subf %681, %684 : vector<16x16xf32>
    %686 = math.exp %685 : vector<16x16xf32>
    %cst_252 = arith.constant dense<0.000000e+00> : vector<16xf32>
    %687 = vector.multi_reduction <add>, %686, %cst_252 [1] : vector<16x16xf32> to vector<16xf32>
    %688 = vector.shape_cast %687 : vector<16xf32> to vector<16x1xf32>
    %689 = tpu.reciprocal %688 {approx = true} : vector<16x1xf32> -> vector<16x1xf32>
    %690 = vector.broadcast %689 : vector<16x1xf32> to vector<16x16xf32>
    %691 = arith.mulf %686, %690 : vector<16x16xf32>
    %cst_253 = arith.constant dense<0.000000e+00> : vector<16x4xf32>
    %692 = tpu.matmul %691, %676, %cst_253 {dimension_numbers = #tpu.dot_dimension_numbers<[1], [0], [0], [1], [0, 0, 1, 1], [], []>} : vector<16x16xf32>, vector<16x4xf32>, vector<16x4xf32> -> vector<16x4xf32>
    %693 = tpu.concatenate %559, %578, %597, %616, %635, %654, %673, %692 in 1 : vector<16x4xf32>, vector<16x4xf32>, vector<16x4xf32>, vector<16x4xf32>, vector<16x4xf32>, vector<16x4xf32>, vector<16x4xf32>, vector<16x4xf32> -> vector<16x32xf32>
    %c2_254 = arith.constant 2 : index
    %c0_255 = arith.constant 0 : index
    %c0_256 = arith.constant 0 : index
    %694 = vector.load %arg10[%c2_254, %c0_255, %c0_256] : memref<4x32x32xf32, #tpu.memory_space<vmem>>, vector<1x32x32xf32>
    %695 = vector.shape_cast %694 : vector<1x32x32xf32> to vector<32x32xf32>
    %cst_257 = arith.constant dense<0.000000e+00> : vector<16x32xf32>
    %696 = tpu.matmul %693, %695, %cst_257 {dimension_numbers = #tpu.dot_dimension_numbers<[1], [0], [0], [1], [0, 0, 1, 1], [], []>} : vector<16x32xf32>, vector<32x32xf32>, vector<16x32xf32> -> vector<16x32xf32>
    %697 = vector.extract_strided_slice %78 {offsets = [2, 0], sizes = [1, 32], strides = [1, 1]} : vector<4x32xf32> to vector<1x32xf32>
    %698 = vector.broadcast %697 : vector<1x32xf32> to vector<16x32xf32>
    %699 = arith.addf %696, %698 : vector<16x32xf32>
    %700 = arith.addf %534, %699 : vector<16x32xf32>
    %701 = vector.extract_strided_slice %81 {offsets = [2, 0], sizes = [1, 32], strides = [1, 1]} : vector<4x32xf32> to vector<1x32xf32>
    %702 = vector.extract_strided_slice %82 {offsets = [2, 0], sizes = [1, 32], strides = [1, 1]} : vector<4x32xf32> to vector<1x32xf32>
    %cst_258 = arith.constant dense<0.000000e+00> : vector<16xf32>
    %703 = vector.multi_reduction <add>, %700, %cst_258 [1] : vector<16x32xf32> to vector<16xf32>
    %704 = vector.shape_cast %703 : vector<16xf32> to vector<16x1xf32>
    %cst_259 = arith.constant 3.200000e+01 : f32
    %705 = vector.broadcast %cst_259 : f32 to vector<16x1xf32>
    %706 = arith.divf %704, %705 : vector<16x1xf32>
    %707 = vector.broadcast %706 : vector<16x1xf32> to vector<16x32xf32>
    %708 = arith.subf %700, %707 : vector<16x32xf32>
    %709 = arith.mulf %708, %708 : vector<16x32xf32>
    %cst_260 = arith.constant dense<0.000000e+00> : vector<16xf32>
    %710 = vector.multi_reduction <add>, %709, %cst_260 [1] : vector<16x32xf32> to vector<16xf32>
    %711 = vector.shape_cast %710 : vector<16xf32> to vector<16x1xf32>
    %cst_261 = arith.constant 3.200000e+01 : f32
    %712 = vector.broadcast %cst_261 : f32 to vector<16x1xf32>
    %713 = arith.divf %711, %712 : vector<16x1xf32>
    %cst_262 = arith.constant 9.99999974E-6 : f32
    %714 = vector.broadcast %cst_262 : f32 to vector<16x1xf32>
    %715 = arith.addf %713, %714 : vector<16x1xf32>
    %716 = math.rsqrt %715 : vector<16x1xf32>
    %717 = vector.broadcast %716 : vector<16x1xf32> to vector<16x32xf32>
    %718 = arith.mulf %708, %717 : vector<16x32xf32>
    %719 = vector.broadcast %701 : vector<1x32xf32> to vector<16x32xf32>
    %720 = arith.mulf %718, %719 : vector<16x32xf32>
    %721 = vector.broadcast %702 : vector<1x32xf32> to vector<16x32xf32>
    %722 = arith.addf %720, %721 : vector<16x32xf32>
    %c2_263 = arith.constant 2 : index
    %c0_264 = arith.constant 0 : index
    %c0_265 = arith.constant 0 : index
    %723 = vector.load %arg12[%c2_263, %c0_264, %c0_265] : memref<4x32x32xf32, #tpu.memory_space<vmem>>, vector<1x32x32xf32>
    %724 = vector.shape_cast %723 : vector<1x32x32xf32> to vector<32x32xf32>
    %cst_266 = arith.constant dense<0.000000e+00> : vector<16x32xf32>
    %725 = tpu.matmul %722, %724, %cst_266 {dimension_numbers = #tpu.dot_dimension_numbers<[1], [0], [0], [1], [0, 0, 1, 1], [], []>} : vector<16x32xf32>, vector<32x32xf32>, vector<16x32xf32> -> vector<16x32xf32>
    %726 = vector.extract_strided_slice %79 {offsets = [2, 0], sizes = [1, 32], strides = [1, 1]} : vector<4x32xf32> to vector<1x32xf32>
    %727 = vector.broadcast %726 : vector<1x32xf32> to vector<16x32xf32>
    %728 = arith.addf %725, %727 : vector<16x32xf32>
    %cst_267 = arith.constant 0.000000e+00 : f32
    %729 = vector.broadcast %cst_267 : f32 to vector<16x32xf32>
    %730 = arith.maximumf %728, %729 : vector<16x32xf32>
    %c2_268 = arith.constant 2 : index
    %c0_269 = arith.constant 0 : index
    %c0_270 = arith.constant 0 : index
    %731 = vector.load %arg14[%c2_268, %c0_269, %c0_270] : memref<4x32x32xf32, #tpu.memory_space<vmem>>, vector<1x32x32xf32>
    %732 = vector.shape_cast %731 : vector<1x32x32xf32> to vector<32x32xf32>
    %cst_271 = arith.constant dense<0.000000e+00> : vector<16x32xf32>
    %733 = tpu.matmul %730, %732, %cst_271 {dimension_numbers = #tpu.dot_dimension_numbers<[1], [0], [0], [1], [0, 0, 1, 1], [], []>} : vector<16x32xf32>, vector<32x32xf32>, vector<16x32xf32> -> vector<16x32xf32>
    %734 = vector.extract_strided_slice %80 {offsets = [2, 0], sizes = [1, 32], strides = [1, 1]} : vector<4x32xf32> to vector<1x32xf32>
    %735 = vector.broadcast %734 : vector<1x32xf32> to vector<16x32xf32>
    %736 = arith.addf %733, %735 : vector<16x32xf32>
    %737 = arith.addf %722, %736 : vector<16x32xf32>
    %738 = vector.extract_strided_slice %83 {offsets = [2, 0], sizes = [1, 32], strides = [1, 1]} : vector<4x32xf32> to vector<1x32xf32>
    %739 = vector.extract_strided_slice %84 {offsets = [2, 0], sizes = [1, 32], strides = [1, 1]} : vector<4x32xf32> to vector<1x32xf32>
    %cst_272 = arith.constant dense<0.000000e+00> : vector<16xf32>
    %740 = vector.multi_reduction <add>, %737, %cst_272 [1] : vector<16x32xf32> to vector<16xf32>
    %741 = vector.shape_cast %740 : vector<16xf32> to vector<16x1xf32>
    %cst_273 = arith.constant 3.200000e+01 : f32
    %742 = vector.broadcast %cst_273 : f32 to vector<16x1xf32>
    %743 = arith.divf %741, %742 : vector<16x1xf32>
    %744 = vector.broadcast %743 : vector<16x1xf32> to vector<16x32xf32>
    %745 = arith.subf %737, %744 : vector<16x32xf32>
    %746 = arith.mulf %745, %745 : vector<16x32xf32>
    %cst_274 = arith.constant dense<0.000000e+00> : vector<16xf32>
    %747 = vector.multi_reduction <add>, %746, %cst_274 [1] : vector<16x32xf32> to vector<16xf32>
    %748 = vector.shape_cast %747 : vector<16xf32> to vector<16x1xf32>
    %cst_275 = arith.constant 3.200000e+01 : f32
    %749 = vector.broadcast %cst_275 : f32 to vector<16x1xf32>
    %750 = arith.divf %748, %749 : vector<16x1xf32>
    %cst_276 = arith.constant 9.99999974E-6 : f32
    %751 = vector.broadcast %cst_276 : f32 to vector<16x1xf32>
    %752 = arith.addf %750, %751 : vector<16x1xf32>
    %753 = math.rsqrt %752 : vector<16x1xf32>
    %754 = vector.broadcast %753 : vector<16x1xf32> to vector<16x32xf32>
    %755 = arith.mulf %745, %754 : vector<16x32xf32>
    %756 = vector.broadcast %738 : vector<1x32xf32> to vector<16x32xf32>
    %757 = arith.mulf %755, %756 : vector<16x32xf32>
    %758 = vector.broadcast %739 : vector<1x32xf32> to vector<16x32xf32>
    %759 = arith.addf %757, %758 : vector<16x32xf32>
    %c3 = arith.constant 3 : index
    %c0_277 = arith.constant 0 : index
    %c0_278 = arith.constant 0 : index
    %760 = vector.load %arg8[%c3, %c0_277, %c0_278] : memref<4x32x96xf32, #tpu.memory_space<vmem>>, vector<1x32x96xf32>
    %761 = vector.shape_cast %760 : vector<1x32x96xf32> to vector<32x96xf32>
    %cst_279 = arith.constant dense<0.000000e+00> : vector<16x96xf32>
    %762 = tpu.matmul %759, %761, %cst_279 {dimension_numbers = #tpu.dot_dimension_numbers<[1], [0], [0], [1], [0, 0, 1, 1], [], []>} : vector<16x32xf32>, vector<32x96xf32>, vector<16x96xf32> -> vector<16x96xf32>
    %763 = vector.extract_strided_slice %77 {offsets = [3, 0], sizes = [1, 96], strides = [1, 1]} : vector<4x96xf32> to vector<1x96xf32>
    %764 = vector.broadcast %763 : vector<1x96xf32> to vector<16x96xf32>
    %765 = arith.addf %762, %764 : vector<16x96xf32>
    %766 = vector.extract_strided_slice %765 {offsets = [0, 0], sizes = [16, 4], strides = [1, 1]} : vector<16x96xf32> to vector<16x4xf32>
    %767 = vector.extract_strided_slice %765 {offsets = [0, 32], sizes = [16, 4], strides = [1, 1]} : vector<16x96xf32> to vector<16x4xf32>
    %768 = vector.extract_strided_slice %765 {offsets = [0, 64], sizes = [16, 4], strides = [1, 1]} : vector<16x96xf32> to vector<16x4xf32>
    %cst_280 = arith.constant dense<0.000000e+00> : vector<16x16xf32>
    %769 = tpu.matmul %766, %767, %cst_280 {dimension_numbers = #tpu.dot_dimension_numbers<[1], [1], [0], [0], [0, 0, 1, 0], [], []>} : vector<16x4xf32>, vector<16x4xf32>, vector<16x16xf32> -> vector<16x16xf32>
    %cst_281 = arith.constant 5.000000e-01 : f32
    %770 = vector.broadcast %cst_281 : f32 to vector<16x16xf32>
    %771 = arith.mulf %769, %770 : vector<16x16xf32>
    %cst_282 = arith.constant -1.000000e+30 : f32
    %772 = vector.broadcast %cst_282 : f32 to vector<16x16xf32>
    %773 = arith.select %76, %771, %772 : vector<16x16xi1>, vector<16x16xf32>
    %cst_283 = arith.constant dense<0xFF800000> : vector<16xf32>
    %774 = vector.multi_reduction <maximumf>, %773, %cst_283 [1] : vector<16x16xf32> to vector<16xf32>
    %775 = vector.shape_cast %774 : vector<16xf32> to vector<16x1xf32>
    %776 = vector.broadcast %775 : vector<16x1xf32> to vector<16x16xf32>
    %777 = arith.subf %773, %776 : vector<16x16xf32>
    %778 = math.exp %777 : vector<16x16xf32>
    %cst_284 = arith.constant dense<0.000000e+00> : vector<16xf32>
    %779 = vector.multi_reduction <add>, %778, %cst_284 [1] : vector<16x16xf32> to vector<16xf32>
    %780 = vector.shape_cast %779 : vector<16xf32> to vector<16x1xf32>
    %781 = tpu.reciprocal %780 {approx = true} : vector<16x1xf32> -> vector<16x1xf32>
    %782 = vector.broadcast %781 : vector<16x1xf32> to vector<16x16xf32>
    %783 = arith.mulf %778, %782 : vector<16x16xf32>
    %cst_285 = arith.constant dense<0.000000e+00> : vector<16x4xf32>
    %784 = tpu.matmul %783, %768, %cst_285 {dimension_numbers = #tpu.dot_dimension_numbers<[1], [0], [0], [1], [0, 0, 1, 1], [], []>} : vector<16x16xf32>, vector<16x4xf32>, vector<16x4xf32> -> vector<16x4xf32>
    %785 = vector.extract_strided_slice %765 {offsets = [0, 4], sizes = [16, 4], strides = [1, 1]} : vector<16x96xf32> to vector<16x4xf32>
    %786 = vector.extract_strided_slice %765 {offsets = [0, 36], sizes = [16, 4], strides = [1, 1]} : vector<16x96xf32> to vector<16x4xf32>
    %787 = vector.extract_strided_slice %765 {offsets = [0, 68], sizes = [16, 4], strides = [1, 1]} : vector<16x96xf32> to vector<16x4xf32>
    %cst_286 = arith.constant dense<0.000000e+00> : vector<16x16xf32>
    %788 = tpu.matmul %785, %786, %cst_286 {dimension_numbers = #tpu.dot_dimension_numbers<[1], [1], [0], [0], [0, 0, 1, 0], [], []>} : vector<16x4xf32>, vector<16x4xf32>, vector<16x16xf32> -> vector<16x16xf32>
    %cst_287 = arith.constant 5.000000e-01 : f32
    %789 = vector.broadcast %cst_287 : f32 to vector<16x16xf32>
    %790 = arith.mulf %788, %789 : vector<16x16xf32>
    %cst_288 = arith.constant -1.000000e+30 : f32
    %791 = vector.broadcast %cst_288 : f32 to vector<16x16xf32>
    %792 = arith.select %76, %790, %791 : vector<16x16xi1>, vector<16x16xf32>
    %cst_289 = arith.constant dense<0xFF800000> : vector<16xf32>
    %793 = vector.multi_reduction <maximumf>, %792, %cst_289 [1] : vector<16x16xf32> to vector<16xf32>
    %794 = vector.shape_cast %793 : vector<16xf32> to vector<16x1xf32>
    %795 = vector.broadcast %794 : vector<16x1xf32> to vector<16x16xf32>
    %796 = arith.subf %792, %795 : vector<16x16xf32>
    %797 = math.exp %796 : vector<16x16xf32>
    %cst_290 = arith.constant dense<0.000000e+00> : vector<16xf32>
    %798 = vector.multi_reduction <add>, %797, %cst_290 [1] : vector<16x16xf32> to vector<16xf32>
    %799 = vector.shape_cast %798 : vector<16xf32> to vector<16x1xf32>
    %800 = tpu.reciprocal %799 {approx = true} : vector<16x1xf32> -> vector<16x1xf32>
    %801 = vector.broadcast %800 : vector<16x1xf32> to vector<16x16xf32>
    %802 = arith.mulf %797, %801 : vector<16x16xf32>
    %cst_291 = arith.constant dense<0.000000e+00> : vector<16x4xf32>
    %803 = tpu.matmul %802, %787, %cst_291 {dimension_numbers = #tpu.dot_dimension_numbers<[1], [0], [0], [1], [0, 0, 1, 1], [], []>} : vector<16x16xf32>, vector<16x4xf32>, vector<16x4xf32> -> vector<16x4xf32>
    %804 = vector.extract_strided_slice %765 {offsets = [0, 8], sizes = [16, 4], strides = [1, 1]} : vector<16x96xf32> to vector<16x4xf32>
    %805 = vector.extract_strided_slice %765 {offsets = [0, 40], sizes = [16, 4], strides = [1, 1]} : vector<16x96xf32> to vector<16x4xf32>
    %806 = vector.extract_strided_slice %765 {offsets = [0, 72], sizes = [16, 4], strides = [1, 1]} : vector<16x96xf32> to vector<16x4xf32>
    %cst_292 = arith.constant dense<0.000000e+00> : vector<16x16xf32>
    %807 = tpu.matmul %804, %805, %cst_292 {dimension_numbers = #tpu.dot_dimension_numbers<[1], [1], [0], [0], [0, 0, 1, 0], [], []>} : vector<16x4xf32>, vector<16x4xf32>, vector<16x16xf32> -> vector<16x16xf32>
    %cst_293 = arith.constant 5.000000e-01 : f32
    %808 = vector.broadcast %cst_293 : f32 to vector<16x16xf32>
    %809 = arith.mulf %807, %808 : vector<16x16xf32>
    %cst_294 = arith.constant -1.000000e+30 : f32
    %810 = vector.broadcast %cst_294 : f32 to vector<16x16xf32>
    %811 = arith.select %76, %809, %810 : vector<16x16xi1>, vector<16x16xf32>
    %cst_295 = arith.constant dense<0xFF800000> : vector<16xf32>
    %812 = vector.multi_reduction <maximumf>, %811, %cst_295 [1] : vector<16x16xf32> to vector<16xf32>
    %813 = vector.shape_cast %812 : vector<16xf32> to vector<16x1xf32>
    %814 = vector.broadcast %813 : vector<16x1xf32> to vector<16x16xf32>
    %815 = arith.subf %811, %814 : vector<16x16xf32>
    %816 = math.exp %815 : vector<16x16xf32>
    %cst_296 = arith.constant dense<0.000000e+00> : vector<16xf32>
    %817 = vector.multi_reduction <add>, %816, %cst_296 [1] : vector<16x16xf32> to vector<16xf32>
    %818 = vector.shape_cast %817 : vector<16xf32> to vector<16x1xf32>
    %819 = tpu.reciprocal %818 {approx = true} : vector<16x1xf32> -> vector<16x1xf32>
    %820 = vector.broadcast %819 : vector<16x1xf32> to vector<16x16xf32>
    %821 = arith.mulf %816, %820 : vector<16x16xf32>
    %cst_297 = arith.constant dense<0.000000e+00> : vector<16x4xf32>
    %822 = tpu.matmul %821, %806, %cst_297 {dimension_numbers = #tpu.dot_dimension_numbers<[1], [0], [0], [1], [0, 0, 1, 1], [], []>} : vector<16x16xf32>, vector<16x4xf32>, vector<16x4xf32> -> vector<16x4xf32>
    %823 = vector.extract_strided_slice %765 {offsets = [0, 12], sizes = [16, 4], strides = [1, 1]} : vector<16x96xf32> to vector<16x4xf32>
    %824 = vector.extract_strided_slice %765 {offsets = [0, 44], sizes = [16, 4], strides = [1, 1]} : vector<16x96xf32> to vector<16x4xf32>
    %825 = vector.extract_strided_slice %765 {offsets = [0, 76], sizes = [16, 4], strides = [1, 1]} : vector<16x96xf32> to vector<16x4xf32>
    %cst_298 = arith.constant dense<0.000000e+00> : vector<16x16xf32>
    %826 = tpu.matmul %823, %824, %cst_298 {dimension_numbers = #tpu.dot_dimension_numbers<[1], [1], [0], [0], [0, 0, 1, 0], [], []>} : vector<16x4xf32>, vector<16x4xf32>, vector<16x16xf32> -> vector<16x16xf32>
    %cst_299 = arith.constant 5.000000e-01 : f32
    %827 = vector.broadcast %cst_299 : f32 to vector<16x16xf32>
    %828 = arith.mulf %826, %827 : vector<16x16xf32>
    %cst_300 = arith.constant -1.000000e+30 : f32
    %829 = vector.broadcast %cst_300 : f32 to vector<16x16xf32>
    %830 = arith.select %76, %828, %829 : vector<16x16xi1>, vector<16x16xf32>
    %cst_301 = arith.constant dense<0xFF800000> : vector<16xf32>
    %831 = vector.multi_reduction <maximumf>, %830, %cst_301 [1] : vector<16x16xf32> to vector<16xf32>
    %832 = vector.shape_cast %831 : vector<16xf32> to vector<16x1xf32>
    %833 = vector.broadcast %832 : vector<16x1xf32> to vector<16x16xf32>
    %834 = arith.subf %830, %833 : vector<16x16xf32>
    %835 = math.exp %834 : vector<16x16xf32>
    %cst_302 = arith.constant dense<0.000000e+00> : vector<16xf32>
    %836 = vector.multi_reduction <add>, %835, %cst_302 [1] : vector<16x16xf32> to vector<16xf32>
    %837 = vector.shape_cast %836 : vector<16xf32> to vector<16x1xf32>
    %838 = tpu.reciprocal %837 {approx = true} : vector<16x1xf32> -> vector<16x1xf32>
    %839 = vector.broadcast %838 : vector<16x1xf32> to vector<16x16xf32>
    %840 = arith.mulf %835, %839 : vector<16x16xf32>
    %cst_303 = arith.constant dense<0.000000e+00> : vector<16x4xf32>
    %841 = tpu.matmul %840, %825, %cst_303 {dimension_numbers = #tpu.dot_dimension_numbers<[1], [0], [0], [1], [0, 0, 1, 1], [], []>} : vector<16x16xf32>, vector<16x4xf32>, vector<16x4xf32> -> vector<16x4xf32>
    %842 = vector.extract_strided_slice %765 {offsets = [0, 16], sizes = [16, 4], strides = [1, 1]} : vector<16x96xf32> to vector<16x4xf32>
    %843 = vector.extract_strided_slice %765 {offsets = [0, 48], sizes = [16, 4], strides = [1, 1]} : vector<16x96xf32> to vector<16x4xf32>
    %844 = vector.extract_strided_slice %765 {offsets = [0, 80], sizes = [16, 4], strides = [1, 1]} : vector<16x96xf32> to vector<16x4xf32>
    %cst_304 = arith.constant dense<0.000000e+00> : vector<16x16xf32>
    %845 = tpu.matmul %842, %843, %cst_304 {dimension_numbers = #tpu.dot_dimension_numbers<[1], [1], [0], [0], [0, 0, 1, 0], [], []>} : vector<16x4xf32>, vector<16x4xf32>, vector<16x16xf32> -> vector<16x16xf32>
    %cst_305 = arith.constant 5.000000e-01 : f32
    %846 = vector.broadcast %cst_305 : f32 to vector<16x16xf32>
    %847 = arith.mulf %845, %846 : vector<16x16xf32>
    %cst_306 = arith.constant -1.000000e+30 : f32
    %848 = vector.broadcast %cst_306 : f32 to vector<16x16xf32>
    %849 = arith.select %76, %847, %848 : vector<16x16xi1>, vector<16x16xf32>
    %cst_307 = arith.constant dense<0xFF800000> : vector<16xf32>
    %850 = vector.multi_reduction <maximumf>, %849, %cst_307 [1] : vector<16x16xf32> to vector<16xf32>
    %851 = vector.shape_cast %850 : vector<16xf32> to vector<16x1xf32>
    %852 = vector.broadcast %851 : vector<16x1xf32> to vector<16x16xf32>
    %853 = arith.subf %849, %852 : vector<16x16xf32>
    %854 = math.exp %853 : vector<16x16xf32>
    %cst_308 = arith.constant dense<0.000000e+00> : vector<16xf32>
    %855 = vector.multi_reduction <add>, %854, %cst_308 [1] : vector<16x16xf32> to vector<16xf32>
    %856 = vector.shape_cast %855 : vector<16xf32> to vector<16x1xf32>
    %857 = tpu.reciprocal %856 {approx = true} : vector<16x1xf32> -> vector<16x1xf32>
    %858 = vector.broadcast %857 : vector<16x1xf32> to vector<16x16xf32>
    %859 = arith.mulf %854, %858 : vector<16x16xf32>
    %cst_309 = arith.constant dense<0.000000e+00> : vector<16x4xf32>
    %860 = tpu.matmul %859, %844, %cst_309 {dimension_numbers = #tpu.dot_dimension_numbers<[1], [0], [0], [1], [0, 0, 1, 1], [], []>} : vector<16x16xf32>, vector<16x4xf32>, vector<16x4xf32> -> vector<16x4xf32>
    %861 = vector.extract_strided_slice %765 {offsets = [0, 20], sizes = [16, 4], strides = [1, 1]} : vector<16x96xf32> to vector<16x4xf32>
    %862 = vector.extract_strided_slice %765 {offsets = [0, 52], sizes = [16, 4], strides = [1, 1]} : vector<16x96xf32> to vector<16x4xf32>
    %863 = vector.extract_strided_slice %765 {offsets = [0, 84], sizes = [16, 4], strides = [1, 1]} : vector<16x96xf32> to vector<16x4xf32>
    %cst_310 = arith.constant dense<0.000000e+00> : vector<16x16xf32>
    %864 = tpu.matmul %861, %862, %cst_310 {dimension_numbers = #tpu.dot_dimension_numbers<[1], [1], [0], [0], [0, 0, 1, 0], [], []>} : vector<16x4xf32>, vector<16x4xf32>, vector<16x16xf32> -> vector<16x16xf32>
    %cst_311 = arith.constant 5.000000e-01 : f32
    %865 = vector.broadcast %cst_311 : f32 to vector<16x16xf32>
    %866 = arith.mulf %864, %865 : vector<16x16xf32>
    %cst_312 = arith.constant -1.000000e+30 : f32
    %867 = vector.broadcast %cst_312 : f32 to vector<16x16xf32>
    %868 = arith.select %76, %866, %867 : vector<16x16xi1>, vector<16x16xf32>
    %cst_313 = arith.constant dense<0xFF800000> : vector<16xf32>
    %869 = vector.multi_reduction <maximumf>, %868, %cst_313 [1] : vector<16x16xf32> to vector<16xf32>
    %870 = vector.shape_cast %869 : vector<16xf32> to vector<16x1xf32>
    %871 = vector.broadcast %870 : vector<16x1xf32> to vector<16x16xf32>
    %872 = arith.subf %868, %871 : vector<16x16xf32>
    %873 = math.exp %872 : vector<16x16xf32>
    %cst_314 = arith.constant dense<0.000000e+00> : vector<16xf32>
    %874 = vector.multi_reduction <add>, %873, %cst_314 [1] : vector<16x16xf32> to vector<16xf32>
    %875 = vector.shape_cast %874 : vector<16xf32> to vector<16x1xf32>
    %876 = tpu.reciprocal %875 {approx = true} : vector<16x1xf32> -> vector<16x1xf32>
    %877 = vector.broadcast %876 : vector<16x1xf32> to vector<16x16xf32>
    %878 = arith.mulf %873, %877 : vector<16x16xf32>
    %cst_315 = arith.constant dense<0.000000e+00> : vector<16x4xf32>
    %879 = tpu.matmul %878, %863, %cst_315 {dimension_numbers = #tpu.dot_dimension_numbers<[1], [0], [0], [1], [0, 0, 1, 1], [], []>} : vector<16x16xf32>, vector<16x4xf32>, vector<16x4xf32> -> vector<16x4xf32>
    %880 = vector.extract_strided_slice %765 {offsets = [0, 24], sizes = [16, 4], strides = [1, 1]} : vector<16x96xf32> to vector<16x4xf32>
    %881 = vector.extract_strided_slice %765 {offsets = [0, 56], sizes = [16, 4], strides = [1, 1]} : vector<16x96xf32> to vector<16x4xf32>
    %882 = vector.extract_strided_slice %765 {offsets = [0, 88], sizes = [16, 4], strides = [1, 1]} : vector<16x96xf32> to vector<16x4xf32>
    %cst_316 = arith.constant dense<0.000000e+00> : vector<16x16xf32>
    %883 = tpu.matmul %880, %881, %cst_316 {dimension_numbers = #tpu.dot_dimension_numbers<[1], [1], [0], [0], [0, 0, 1, 0], [], []>} : vector<16x4xf32>, vector<16x4xf32>, vector<16x16xf32> -> vector<16x16xf32>
    %cst_317 = arith.constant 5.000000e-01 : f32
    %884 = vector.broadcast %cst_317 : f32 to vector<16x16xf32>
    %885 = arith.mulf %883, %884 : vector<16x16xf32>
    %cst_318 = arith.constant -1.000000e+30 : f32
    %886 = vector.broadcast %cst_318 : f32 to vector<16x16xf32>
    %887 = arith.select %76, %885, %886 : vector<16x16xi1>, vector<16x16xf32>
    %cst_319 = arith.constant dense<0xFF800000> : vector<16xf32>
    %888 = vector.multi_reduction <maximumf>, %887, %cst_319 [1] : vector<16x16xf32> to vector<16xf32>
    %889 = vector.shape_cast %888 : vector<16xf32> to vector<16x1xf32>
    %890 = vector.broadcast %889 : vector<16x1xf32> to vector<16x16xf32>
    %891 = arith.subf %887, %890 : vector<16x16xf32>
    %892 = math.exp %891 : vector<16x16xf32>
    %cst_320 = arith.constant dense<0.000000e+00> : vector<16xf32>
    %893 = vector.multi_reduction <add>, %892, %cst_320 [1] : vector<16x16xf32> to vector<16xf32>
    %894 = vector.shape_cast %893 : vector<16xf32> to vector<16x1xf32>
    %895 = tpu.reciprocal %894 {approx = true} : vector<16x1xf32> -> vector<16x1xf32>
    %896 = vector.broadcast %895 : vector<16x1xf32> to vector<16x16xf32>
    %897 = arith.mulf %892, %896 : vector<16x16xf32>
    %cst_321 = arith.constant dense<0.000000e+00> : vector<16x4xf32>
    %898 = tpu.matmul %897, %882, %cst_321 {dimension_numbers = #tpu.dot_dimension_numbers<[1], [0], [0], [1], [0, 0, 1, 1], [], []>} : vector<16x16xf32>, vector<16x4xf32>, vector<16x4xf32> -> vector<16x4xf32>
    %899 = vector.extract_strided_slice %765 {offsets = [0, 28], sizes = [16, 4], strides = [1, 1]} : vector<16x96xf32> to vector<16x4xf32>
    %900 = vector.extract_strided_slice %765 {offsets = [0, 60], sizes = [16, 4], strides = [1, 1]} : vector<16x96xf32> to vector<16x4xf32>
    %901 = vector.extract_strided_slice %765 {offsets = [0, 92], sizes = [16, 4], strides = [1, 1]} : vector<16x96xf32> to vector<16x4xf32>
    %cst_322 = arith.constant dense<0.000000e+00> : vector<16x16xf32>
    %902 = tpu.matmul %899, %900, %cst_322 {dimension_numbers = #tpu.dot_dimension_numbers<[1], [1], [0], [0], [0, 0, 1, 0], [], []>} : vector<16x4xf32>, vector<16x4xf32>, vector<16x16xf32> -> vector<16x16xf32>
    %cst_323 = arith.constant 5.000000e-01 : f32
    %903 = vector.broadcast %cst_323 : f32 to vector<16x16xf32>
    %904 = arith.mulf %902, %903 : vector<16x16xf32>
    %cst_324 = arith.constant -1.000000e+30 : f32
    %905 = vector.broadcast %cst_324 : f32 to vector<16x16xf32>
    %906 = arith.select %76, %904, %905 : vector<16x16xi1>, vector<16x16xf32>
    %cst_325 = arith.constant dense<0xFF800000> : vector<16xf32>
    %907 = vector.multi_reduction <maximumf>, %906, %cst_325 [1] : vector<16x16xf32> to vector<16xf32>
    %908 = vector.shape_cast %907 : vector<16xf32> to vector<16x1xf32>
    %909 = vector.broadcast %908 : vector<16x1xf32> to vector<16x16xf32>
    %910 = arith.subf %906, %909 : vector<16x16xf32>
    %911 = math.exp %910 : vector<16x16xf32>
    %cst_326 = arith.constant dense<0.000000e+00> : vector<16xf32>
    %912 = vector.multi_reduction <add>, %911, %cst_326 [1] : vector<16x16xf32> to vector<16xf32>
    %913 = vector.shape_cast %912 : vector<16xf32> to vector<16x1xf32>
    %914 = tpu.reciprocal %913 {approx = true} : vector<16x1xf32> -> vector<16x1xf32>
    %915 = vector.broadcast %914 : vector<16x1xf32> to vector<16x16xf32>
    %916 = arith.mulf %911, %915 : vector<16x16xf32>
    %cst_327 = arith.constant dense<0.000000e+00> : vector<16x4xf32>
    %917 = tpu.matmul %916, %901, %cst_327 {dimension_numbers = #tpu.dot_dimension_numbers<[1], [0], [0], [1], [0, 0, 1, 1], [], []>} : vector<16x16xf32>, vector<16x4xf32>, vector<16x4xf32> -> vector<16x4xf32>
    %918 = tpu.concatenate %784, %803, %822, %841, %860, %879, %898, %917 in 1 : vector<16x4xf32>, vector<16x4xf32>, vector<16x4xf32>, vector<16x4xf32>, vector<16x4xf32>, vector<16x4xf32>, vector<16x4xf32>, vector<16x4xf32> -> vector<16x32xf32>
    %c3_328 = arith.constant 3 : index
    %c0_329 = arith.constant 0 : index
    %c0_330 = arith.constant 0 : index
    %919 = vector.load %arg10[%c3_328, %c0_329, %c0_330] : memref<4x32x32xf32, #tpu.memory_space<vmem>>, vector<1x32x32xf32>
    %920 = vector.shape_cast %919 : vector<1x32x32xf32> to vector<32x32xf32>
    %cst_331 = arith.constant dense<0.000000e+00> : vector<16x32xf32>
    %921 = tpu.matmul %918, %920, %cst_331 {dimension_numbers = #tpu.dot_dimension_numbers<[1], [0], [0], [1], [0, 0, 1, 1], [], []>} : vector<16x32xf32>, vector<32x32xf32>, vector<16x32xf32> -> vector<16x32xf32>
    %922 = vector.extract_strided_slice %78 {offsets = [3, 0], sizes = [1, 32], strides = [1, 1]} : vector<4x32xf32> to vector<1x32xf32>
    %923 = vector.broadcast %922 : vector<1x32xf32> to vector<16x32xf32>
    %924 = arith.addf %921, %923 : vector<16x32xf32>
    %925 = arith.addf %759, %924 : vector<16x32xf32>
    %926 = vector.extract_strided_slice %81 {offsets = [3, 0], sizes = [1, 32], strides = [1, 1]} : vector<4x32xf32> to vector<1x32xf32>
    %927 = vector.extract_strided_slice %82 {offsets = [3, 0], sizes = [1, 32], strides = [1, 1]} : vector<4x32xf32> to vector<1x32xf32>
    %cst_332 = arith.constant dense<0.000000e+00> : vector<16xf32>
    %928 = vector.multi_reduction <add>, %925, %cst_332 [1] : vector<16x32xf32> to vector<16xf32>
    %929 = vector.shape_cast %928 : vector<16xf32> to vector<16x1xf32>
    %cst_333 = arith.constant 3.200000e+01 : f32
    %930 = vector.broadcast %cst_333 : f32 to vector<16x1xf32>
    %931 = arith.divf %929, %930 : vector<16x1xf32>
    %932 = vector.broadcast %931 : vector<16x1xf32> to vector<16x32xf32>
    %933 = arith.subf %925, %932 : vector<16x32xf32>
    %934 = arith.mulf %933, %933 : vector<16x32xf32>
    %cst_334 = arith.constant dense<0.000000e+00> : vector<16xf32>
    %935 = vector.multi_reduction <add>, %934, %cst_334 [1] : vector<16x32xf32> to vector<16xf32>
    %936 = vector.shape_cast %935 : vector<16xf32> to vector<16x1xf32>
    %cst_335 = arith.constant 3.200000e+01 : f32
    %937 = vector.broadcast %cst_335 : f32 to vector<16x1xf32>
    %938 = arith.divf %936, %937 : vector<16x1xf32>
    %cst_336 = arith.constant 9.99999974E-6 : f32
    %939 = vector.broadcast %cst_336 : f32 to vector<16x1xf32>
    %940 = arith.addf %938, %939 : vector<16x1xf32>
    %941 = math.rsqrt %940 : vector<16x1xf32>
    %942 = vector.broadcast %941 : vector<16x1xf32> to vector<16x32xf32>
    %943 = arith.mulf %933, %942 : vector<16x32xf32>
    %944 = vector.broadcast %926 : vector<1x32xf32> to vector<16x32xf32>
    %945 = arith.mulf %943, %944 : vector<16x32xf32>
    %946 = vector.broadcast %927 : vector<1x32xf32> to vector<16x32xf32>
    %947 = arith.addf %945, %946 : vector<16x32xf32>
    %c3_337 = arith.constant 3 : index
    %c0_338 = arith.constant 0 : index
    %c0_339 = arith.constant 0 : index
    %948 = vector.load %arg12[%c3_337, %c0_338, %c0_339] : memref<4x32x32xf32, #tpu.memory_space<vmem>>, vector<1x32x32xf32>
    %949 = vector.shape_cast %948 : vector<1x32x32xf32> to vector<32x32xf32>
    %cst_340 = arith.constant dense<0.000000e+00> : vector<16x32xf32>
    %950 = tpu.matmul %947, %949, %cst_340 {dimension_numbers = #tpu.dot_dimension_numbers<[1], [0], [0], [1], [0, 0, 1, 1], [], []>} : vector<16x32xf32>, vector<32x32xf32>, vector<16x32xf32> -> vector<16x32xf32>
    %951 = vector.extract_strided_slice %79 {offsets = [3, 0], sizes = [1, 32], strides = [1, 1]} : vector<4x32xf32> to vector<1x32xf32>
    %952 = vector.broadcast %951 : vector<1x32xf32> to vector<16x32xf32>
    %953 = arith.addf %950, %952 : vector<16x32xf32>
    %cst_341 = arith.constant 0.000000e+00 : f32
    %954 = vector.broadcast %cst_341 : f32 to vector<16x32xf32>
    %955 = arith.maximumf %953, %954 : vector<16x32xf32>
    %c3_342 = arith.constant 3 : index
    %c0_343 = arith.constant 0 : index
    %c0_344 = arith.constant 0 : index
    %956 = vector.load %arg14[%c3_342, %c0_343, %c0_344] : memref<4x32x32xf32, #tpu.memory_space<vmem>>, vector<1x32x32xf32>
    %957 = vector.shape_cast %956 : vector<1x32x32xf32> to vector<32x32xf32>
    %cst_345 = arith.constant dense<0.000000e+00> : vector<16x32xf32>
    %958 = tpu.matmul %955, %957, %cst_345 {dimension_numbers = #tpu.dot_dimension_numbers<[1], [0], [0], [1], [0, 0, 1, 1], [], []>} : vector<16x32xf32>, vector<32x32xf32>, vector<16x32xf32> -> vector<16x32xf32>
    %959 = vector.extract_strided_slice %80 {offsets = [3, 0], sizes = [1, 32], strides = [1, 1]} : vector<4x32xf32> to vector<1x32xf32>
    %960 = vector.broadcast %959 : vector<1x32xf32> to vector<16x32xf32>
    %961 = arith.addf %958, %960 : vector<16x32xf32>
    %962 = arith.addf %947, %961 : vector<16x32xf32>
    %963 = vector.extract_strided_slice %83 {offsets = [3, 0], sizes = [1, 32], strides = [1, 1]} : vector<4x32xf32> to vector<1x32xf32>
    %964 = vector.extract_strided_slice %84 {offsets = [3, 0], sizes = [1, 32], strides = [1, 1]} : vector<4x32xf32> to vector<1x32xf32>
    %cst_346 = arith.constant dense<0.000000e+00> : vector<16xf32>
    %965 = vector.multi_reduction <add>, %962, %cst_346 [1] : vector<16x32xf32> to vector<16xf32>
    %966 = vector.shape_cast %965 : vector<16xf32> to vector<16x1xf32>
    %cst_347 = arith.constant 3.200000e+01 : f32
    %967 = vector.broadcast %cst_347 : f32 to vector<16x1xf32>
    %968 = arith.divf %966, %967 : vector<16x1xf32>
    %969 = vector.broadcast %968 : vector<16x1xf32> to vector<16x32xf32>
    %970 = arith.subf %962, %969 : vector<16x32xf32>
    %971 = arith.mulf %970, %970 : vector<16x32xf32>
    %cst_348 = arith.constant dense<0.000000e+00> : vector<16xf32>
    %972 = vector.multi_reduction <add>, %971, %cst_348 [1] : vector<16x32xf32> to vector<16xf32>
    %973 = vector.shape_cast %972 : vector<16xf32> to vector<16x1xf32>
    %cst_349 = arith.constant 3.200000e+01 : f32
    %974 = vector.broadcast %cst_349 : f32 to vector<16x1xf32>
    %975 = arith.divf %973, %974 : vector<16x1xf32>
    %cst_350 = arith.constant 9.99999974E-6 : f32
    %976 = vector.broadcast %cst_350 : f32 to vector<16x1xf32>
    %977 = arith.addf %975, %976 : vector<16x1xf32>
    %978 = math.rsqrt %977 : vector<16x1xf32>
    %979 = vector.broadcast %978 : vector<16x1xf32> to vector<16x32xf32>
    %980 = arith.mulf %970, %979 : vector<16x32xf32>
    %981 = vector.broadcast %963 : vector<1x32xf32> to vector<16x32xf32>
    %982 = arith.mulf %980, %981 : vector<16x32xf32>
    %983 = vector.broadcast %964 : vector<1x32xf32> to vector<16x32xf32>
    %984 = arith.addf %982, %983 : vector<16x32xf32>
    %c0_351 = arith.constant 0 : index
    %c0_352 = arith.constant 0 : index
    %985 = vector.load %arg20[%c0_351, %c0_352] : memref<1x32xf32, #tpu.memory_space<vmem>>, vector<1x32xf32>
    %c0_353 = arith.constant 0 : index
    %c0_354 = arith.constant 0 : index
    %986 = vector.load %arg21[%c0_353, %c0_354] : memref<1x32xf32, #tpu.memory_space<vmem>>, vector<1x32xf32>
    %cst_355 = arith.constant dense<0.000000e+00> : vector<16xf32>
    %987 = vector.multi_reduction <add>, %984, %cst_355 [1] : vector<16x32xf32> to vector<16xf32>
    %988 = vector.shape_cast %987 : vector<16xf32> to vector<16x1xf32>
    %cst_356 = arith.constant 3.200000e+01 : f32
    %989 = vector.broadcast %cst_356 : f32 to vector<16x1xf32>
    %990 = arith.divf %988, %989 : vector<16x1xf32>
    %991 = vector.broadcast %990 : vector<16x1xf32> to vector<16x32xf32>
    %992 = arith.subf %984, %991 : vector<16x32xf32>
    %993 = arith.mulf %992, %992 : vector<16x32xf32>
    %cst_357 = arith.constant dense<0.000000e+00> : vector<16xf32>
    %994 = vector.multi_reduction <add>, %993, %cst_357 [1] : vector<16x32xf32> to vector<16xf32>
    %995 = vector.shape_cast %994 : vector<16xf32> to vector<16x1xf32>
    %cst_358 = arith.constant 3.200000e+01 : f32
    %996 = vector.broadcast %cst_358 : f32 to vector<16x1xf32>
    %997 = arith.divf %995, %996 : vector<16x1xf32>
    %cst_359 = arith.constant 9.99999974E-6 : f32
    %998 = vector.broadcast %cst_359 : f32 to vector<16x1xf32>
    %999 = arith.addf %997, %998 : vector<16x1xf32>
    %1000 = math.rsqrt %999 : vector<16x1xf32>
    %1001 = vector.broadcast %1000 : vector<16x1xf32> to vector<16x32xf32>
    %1002 = arith.mulf %992, %1001 : vector<16x32xf32>
    %1003 = vector.broadcast %985 : vector<1x32xf32> to vector<16x32xf32>
    %1004 = arith.mulf %1002, %1003 : vector<16x32xf32>
    %1005 = vector.broadcast %986 : vector<1x32xf32> to vector<16x32xf32>
    %1006 = arith.addf %1004, %1005 : vector<16x32xf32>
    %1007 = vector.extract_strided_slice %1006 {offsets = [0, 0], sizes = [8, 32], strides = [1, 1]} : vector<16x32xf32> to vector<8x32xf32>
    %1008 = arith.mulf %1007, %1007 : vector<8x32xf32>
    %cst_360 = arith.constant dense<0.000000e+00> : vector<32xf32>
    %1009 = vector.multi_reduction <add>, %1008, %cst_360 [0] : vector<8x32xf32> to vector<32xf32>
    %1010 = vector.shape_cast %1009 : vector<32xf32> to vector<1x32xf32>
    %1011 = math.sqrt %1010 : vector<1x32xf32>
    %cst_361 = arith.constant 9.99999996E-13 : f32
    %1012 = vector.broadcast %cst_361 : f32 to vector<1x32xf32>
    %1013 = arith.maximumf %1011, %1012 : vector<1x32xf32>
    %1014 = tpu.reciprocal %1013 {approx = true} : vector<1x32xf32> -> vector<1x32xf32>
    %1015 = vector.broadcast %1014 : vector<1x32xf32> to vector<8x32xf32>
    %1016 = arith.mulf %1007, %1015 : vector<8x32xf32>
    %1017 = vector.extract_strided_slice %1006 {offsets = [8, 0], sizes = [8, 32], strides = [1, 1]} : vector<16x32xf32> to vector<8x32xf32>
    %1018 = arith.mulf %1017, %1017 : vector<8x32xf32>
    %cst_362 = arith.constant dense<0.000000e+00> : vector<32xf32>
    %1019 = vector.multi_reduction <add>, %1018, %cst_362 [0] : vector<8x32xf32> to vector<32xf32>
    %1020 = vector.shape_cast %1019 : vector<32xf32> to vector<1x32xf32>
    %1021 = math.sqrt %1020 : vector<1x32xf32>
    %cst_363 = arith.constant 9.99999996E-13 : f32
    %1022 = vector.broadcast %cst_363 : f32 to vector<1x32xf32>
    %1023 = arith.maximumf %1021, %1022 : vector<1x32xf32>
    %1024 = tpu.reciprocal %1023 {approx = true} : vector<1x32xf32> -> vector<1x32xf32>
    %1025 = vector.broadcast %1024 : vector<1x32xf32> to vector<8x32xf32>
    %1026 = arith.mulf %1017, %1025 : vector<8x32xf32>
    %1027 = vector.extract_strided_slice %1016 {offsets = [1, 0], sizes = [7, 32], strides = [1, 1]} : vector<8x32xf32> to vector<7x32xf32>
    %c0_364 = arith.constant 0 : index
    %c0_365 = arith.constant 0 : index
    %1028 = vector.load %arg22[%c0_364, %c0_365] : memref<32x32xf32, #tpu.memory_space<vmem>>, vector<32x32xf32>
    %cst_366 = arith.constant dense<0.000000e+00> : vector<7x32xf32>
    %1029 = tpu.matmul %1027, %1028, %cst_366 {dimension_numbers = #tpu.dot_dimension_numbers<[1], [0], [0], [1], [0, 0, 1, 1], [], []>} : vector<7x32xf32>, vector<32x32xf32>, vector<7x32xf32> -> vector<7x32xf32>
    %c0_367 = arith.constant 0 : index
    %c0_368 = arith.constant 0 : index
    %1030 = vector.load %arg23[%c0_367, %c0_368] : memref<1x32xf32, #tpu.memory_space<vmem>>, vector<1x32xf32>
    %1031 = vector.broadcast %1030 : vector<1x32xf32> to vector<7x32xf32>
    %1032 = arith.addf %1029, %1031 : vector<7x32xf32>
    %cst_369 = arith.constant 5.000000e-01 : f32
    %1033 = vector.broadcast %cst_369 : f32 to vector<7x32xf32>
    %1034 = arith.mulf %1033, %1032 : vector<7x32xf32>
    %cst_370 = arith.constant 0.707106769 : f32
    %1035 = vector.broadcast %cst_370 : f32 to vector<7x32xf32>
    %1036 = arith.mulf %1032, %1035 : vector<7x32xf32>
    %cst_371 = arith.constant 0.000000e+00 : f32
    %1037 = vector.broadcast %cst_371 : f32 to vector<7x32xf32>
    %1038 = arith.cmpf oge, %1036, %1037 : vector<7x32xf32>
    %cst_372 = arith.constant 1.000000e+00 : f32
    %cst_373 = arith.constant -1.000000e+00 : f32
    %1039 = vector.broadcast %cst_372 : f32 to vector<7x32xf32>
    %1040 = vector.broadcast %cst_373 : f32 to vector<7x32xf32>
    %1041 = arith.select %1038, %1039, %1040 : vector<7x32xi1>, vector<7x32xf32>
    %1042 = math.absf %1036 : vector<7x32xf32>
    %cst_374 = arith.constant 0.327591091 : f32
    %1043 = vector.broadcast %cst_374 : f32 to vector<7x32xf32>
    %1044 = arith.mulf %1043, %1042 : vector<7x32xf32>
    %cst_375 = arith.constant 1.000000e+00 : f32
    %1045 = vector.broadcast %cst_375 : f32 to vector<7x32xf32>
    %1046 = arith.addf %1045, %1044 : vector<7x32xf32>
    %cst_376 = arith.constant 1.000000e+00 : f32
    %1047 = vector.broadcast %cst_376 : f32 to vector<7x32xf32>
    %1048 = arith.divf %1047, %1046 : vector<7x32xf32>
    %cst_377 = arith.constant 1.06140542 : f32
    %1049 = vector.broadcast %cst_377 : f32 to vector<7x32xf32>
    %1050 = arith.mulf %1049, %1048 : vector<7x32xf32>
    %cst_378 = arith.constant -1.45315206 : f32
    %1051 = vector.broadcast %cst_378 : f32 to vector<7x32xf32>
    %1052 = arith.addf %1050, %1051 : vector<7x32xf32>
    %1053 = arith.mulf %1052, %1048 : vector<7x32xf32>
    %cst_379 = arith.constant 1.42141378 : f32
    %1054 = vector.broadcast %cst_379 : f32 to vector<7x32xf32>
    %1055 = arith.addf %1053, %1054 : vector<7x32xf32>
    %1056 = arith.mulf %1055, %1048 : vector<7x32xf32>
    %cst_380 = arith.constant -0.284496725 : f32
    %1057 = vector.broadcast %cst_380 : f32 to vector<7x32xf32>
    %1058 = arith.addf %1056, %1057 : vector<7x32xf32>
    %1059 = arith.mulf %1058, %1048 : vector<7x32xf32>
    %cst_381 = arith.constant 0.254829586 : f32
    %1060 = vector.broadcast %cst_381 : f32 to vector<7x32xf32>
    %1061 = arith.addf %1059, %1060 : vector<7x32xf32>
    %1062 = arith.mulf %1061, %1048 : vector<7x32xf32>
    %cst_382 = arith.constant 0.000000e+00 : f32
    %1063 = vector.broadcast %cst_382 : f32 to vector<7x32xf32>
    %1064 = arith.subf %1063, %1042 : vector<7x32xf32>
    %1065 = arith.mulf %1064, %1042 : vector<7x32xf32>
    %1066 = math.exp %1065 : vector<7x32xf32>
    %1067 = arith.mulf %1062, %1066 : vector<7x32xf32>
    %cst_383 = arith.constant 1.000000e+00 : f32
    %1068 = vector.broadcast %cst_383 : f32 to vector<7x32xf32>
    %1069 = arith.subf %1068, %1067 : vector<7x32xf32>
    %1070 = arith.mulf %1041, %1069 : vector<7x32xf32>
    %cst_384 = arith.constant 1.000000e+00 : f32
    %1071 = vector.broadcast %cst_384 : f32 to vector<7x32xf32>
    %1072 = arith.addf %1071, %1070 : vector<7x32xf32>
    %1073 = arith.mulf %1034, %1072 : vector<7x32xf32>
    %c0_385 = arith.constant 0 : index
    %c0_386 = arith.constant 0 : index
    %1074 = vector.load %arg24[%c0_385, %c0_386] : memref<32x1xf32, #tpu.memory_space<vmem>>, vector<32x1xf32>
    %cst_387 = arith.constant dense<0.000000e+00> : vector<7x1xf32>
    %1075 = tpu.matmul %1073, %1074, %cst_387 {dimension_numbers = #tpu.dot_dimension_numbers<[1], [0], [0], [1], [0, 0, 1, 1], [], []>} : vector<7x32xf32>, vector<32x1xf32>, vector<7x1xf32> -> vector<7x1xf32>
    %c0_388 = arith.constant 0 : index
    %c0_389 = arith.constant 0 : index
    %1076 = vector.load %arg25[%c0_388, %c0_389] : memref<1x1xf32, #tpu.memory_space<vmem>>, vector<1x1xf32>
    %1077 = vector.broadcast %1076 : vector<1x1xf32> to vector<7x1xf32>
    %1078 = arith.addf %1075, %1077 : vector<7x1xf32>
    %1079 = vector.extract_strided_slice %1026 {offsets = [1, 0], sizes = [7, 32], strides = [1, 1]} : vector<8x32xf32> to vector<7x32xf32>
    %c0_390 = arith.constant 0 : index
    %c0_391 = arith.constant 0 : index
    %1080 = vector.load %arg22[%c0_390, %c0_391] : memref<32x32xf32, #tpu.memory_space<vmem>>, vector<32x32xf32>
    %cst_392 = arith.constant dense<0.000000e+00> : vector<7x32xf32>
    %1081 = tpu.matmul %1079, %1080, %cst_392 {dimension_numbers = #tpu.dot_dimension_numbers<[1], [0], [0], [1], [0, 0, 1, 1], [], []>} : vector<7x32xf32>, vector<32x32xf32>, vector<7x32xf32> -> vector<7x32xf32>
    %c0_393 = arith.constant 0 : index
    %c0_394 = arith.constant 0 : index
    %1082 = vector.load %arg23[%c0_393, %c0_394] : memref<1x32xf32, #tpu.memory_space<vmem>>, vector<1x32xf32>
    %1083 = vector.broadcast %1082 : vector<1x32xf32> to vector<7x32xf32>
    %1084 = arith.addf %1081, %1083 : vector<7x32xf32>
    %cst_395 = arith.constant 5.000000e-01 : f32
    %1085 = vector.broadcast %cst_395 : f32 to vector<7x32xf32>
    %1086 = arith.mulf %1085, %1084 : vector<7x32xf32>
    %cst_396 = arith.constant 0.707106769 : f32
    %1087 = vector.broadcast %cst_396 : f32 to vector<7x32xf32>
    %1088 = arith.mulf %1084, %1087 : vector<7x32xf32>
    %cst_397 = arith.constant 0.000000e+00 : f32
    %1089 = vector.broadcast %cst_397 : f32 to vector<7x32xf32>
    %1090 = arith.cmpf oge, %1088, %1089 : vector<7x32xf32>
    %cst_398 = arith.constant 1.000000e+00 : f32
    %cst_399 = arith.constant -1.000000e+00 : f32
    %1091 = vector.broadcast %cst_398 : f32 to vector<7x32xf32>
    %1092 = vector.broadcast %cst_399 : f32 to vector<7x32xf32>
    %1093 = arith.select %1090, %1091, %1092 : vector<7x32xi1>, vector<7x32xf32>
    %1094 = math.absf %1088 : vector<7x32xf32>
    %cst_400 = arith.constant 0.327591091 : f32
    %1095 = vector.broadcast %cst_400 : f32 to vector<7x32xf32>
    %1096 = arith.mulf %1095, %1094 : vector<7x32xf32>
    %cst_401 = arith.constant 1.000000e+00 : f32
    %1097 = vector.broadcast %cst_401 : f32 to vector<7x32xf32>
    %1098 = arith.addf %1097, %1096 : vector<7x32xf32>
    %cst_402 = arith.constant 1.000000e+00 : f32
    %1099 = vector.broadcast %cst_402 : f32 to vector<7x32xf32>
    %1100 = arith.divf %1099, %1098 : vector<7x32xf32>
    %cst_403 = arith.constant 1.06140542 : f32
    %1101 = vector.broadcast %cst_403 : f32 to vector<7x32xf32>
    %1102 = arith.mulf %1101, %1100 : vector<7x32xf32>
    %cst_404 = arith.constant -1.45315206 : f32
    %1103 = vector.broadcast %cst_404 : f32 to vector<7x32xf32>
    %1104 = arith.addf %1102, %1103 : vector<7x32xf32>
    %1105 = arith.mulf %1104, %1100 : vector<7x32xf32>
    %cst_405 = arith.constant 1.42141378 : f32
    %1106 = vector.broadcast %cst_405 : f32 to vector<7x32xf32>
    %1107 = arith.addf %1105, %1106 : vector<7x32xf32>
    %1108 = arith.mulf %1107, %1100 : vector<7x32xf32>
    %cst_406 = arith.constant -0.284496725 : f32
    %1109 = vector.broadcast %cst_406 : f32 to vector<7x32xf32>
    %1110 = arith.addf %1108, %1109 : vector<7x32xf32>
    %1111 = arith.mulf %1110, %1100 : vector<7x32xf32>
    %cst_407 = arith.constant 0.254829586 : f32
    %1112 = vector.broadcast %cst_407 : f32 to vector<7x32xf32>
    %1113 = arith.addf %1111, %1112 : vector<7x32xf32>
    %1114 = arith.mulf %1113, %1100 : vector<7x32xf32>
    %cst_408 = arith.constant 0.000000e+00 : f32
    %1115 = vector.broadcast %cst_408 : f32 to vector<7x32xf32>
    %1116 = arith.subf %1115, %1094 : vector<7x32xf32>
    %1117 = arith.mulf %1116, %1094 : vector<7x32xf32>
    %1118 = math.exp %1117 : vector<7x32xf32>
    %1119 = arith.mulf %1114, %1118 : vector<7x32xf32>
    %cst_409 = arith.constant 1.000000e+00 : f32
    %1120 = vector.broadcast %cst_409 : f32 to vector<7x32xf32>
    %1121 = arith.subf %1120, %1119 : vector<7x32xf32>
    %1122 = arith.mulf %1093, %1121 : vector<7x32xf32>
    %cst_410 = arith.constant 1.000000e+00 : f32
    %1123 = vector.broadcast %cst_410 : f32 to vector<7x32xf32>
    %1124 = arith.addf %1123, %1122 : vector<7x32xf32>
    %1125 = arith.mulf %1086, %1124 : vector<7x32xf32>
    %c0_411 = arith.constant 0 : index
    %c0_412 = arith.constant 0 : index
    %1126 = vector.load %arg24[%c0_411, %c0_412] : memref<32x1xf32, #tpu.memory_space<vmem>>, vector<32x1xf32>
    %cst_413 = arith.constant dense<0.000000e+00> : vector<7x1xf32>
    %1127 = tpu.matmul %1125, %1126, %cst_413 {dimension_numbers = #tpu.dot_dimension_numbers<[1], [0], [0], [1], [0, 0, 1, 1], [], []>} : vector<7x32xf32>, vector<32x1xf32>, vector<7x1xf32> -> vector<7x1xf32>
    %c0_414 = arith.constant 0 : index
    %c0_415 = arith.constant 0 : index
    %1128 = vector.load %arg25[%c0_414, %c0_415] : memref<1x1xf32, #tpu.memory_space<vmem>>, vector<1x1xf32>
    %1129 = vector.broadcast %1128 : vector<1x1xf32> to vector<7x1xf32>
    %1130 = arith.addf %1127, %1129 : vector<7x1xf32>
    %1131 = tpu.concatenate %1078, %1130 in 1 : vector<7x1xf32>, vector<7x1xf32> -> vector<7x2xf32>
    %cst_416 = arith.constant dense<0xFF800000> : vector<7xf32>
    %1132 = vector.multi_reduction <maximumf>, %1131, %cst_416 [1] : vector<7x2xf32> to vector<7xf32>
    %1133 = vector.shape_cast %1132 : vector<7xf32> to vector<7x1xf32>
    %1134 = vector.broadcast %1133 : vector<7x1xf32> to vector<7x2xf32>
    %1135 = arith.subf %1131, %1134 : vector<7x2xf32>
    %1136 = math.exp %1135 : vector<7x2xf32>
    %cst_417 = arith.constant dense<0.000000e+00> : vector<7xf32>
    %1137 = vector.multi_reduction <add>, %1136, %cst_417 [1] : vector<7x2xf32> to vector<7xf32>
    %1138 = vector.shape_cast %1137 : vector<7xf32> to vector<7x1xf32>
    %1139 = tpu.reciprocal %1138 {approx = true} : vector<7x1xf32> -> vector<7x1xf32>
    %1140 = vector.broadcast %1139 : vector<7x1xf32> to vector<7x2xf32>
    %1141 = arith.mulf %1136, %1140 : vector<7x2xf32>
    %1142 = vector.extract_strided_slice %1016 {offsets = [1, 0], sizes = [7, 32], strides = [1, 1]} : vector<8x32xf32> to vector<7x32xf32>
    %c0_418 = arith.constant 0 : index
    %c0_419 = arith.constant 0 : index
    %1143 = vector.load %arg26[%c0_418, %c0_419] : memref<32x32xf32, #tpu.memory_space<vmem>>, vector<32x32xf32>
    %cst_420 = arith.constant dense<0.000000e+00> : vector<7x32xf32>
    %1144 = tpu.matmul %1142, %1143, %cst_420 {dimension_numbers = #tpu.dot_dimension_numbers<[1], [0], [0], [1], [0, 0, 1, 1], [], []>} : vector<7x32xf32>, vector<32x32xf32>, vector<7x32xf32> -> vector<7x32xf32>
    %c0_421 = arith.constant 0 : index
    %c0_422 = arith.constant 0 : index
    %1145 = vector.load %arg27[%c0_421, %c0_422] : memref<1x32xf32, #tpu.memory_space<vmem>>, vector<1x32xf32>
    %1146 = vector.broadcast %1145 : vector<1x32xf32> to vector<7x32xf32>
    %1147 = arith.addf %1144, %1146 : vector<7x32xf32>
    %1148 = vector.extract_strided_slice %1141 {offsets = [0, 0], sizes = [7, 1], strides = [1, 1]} : vector<7x2xf32> to vector<7x1xf32>
    %1149 = vector.broadcast %1148 : vector<7x1xf32> to vector<7x32xf32>
    %1150 = arith.mulf %1149, %1147 : vector<7x32xf32>
    %cst_423 = arith.constant dense<0.000000e+00> : vector<32xf32>
    %1151 = vector.multi_reduction <add>, %1150, %cst_423 [0] : vector<7x32xf32> to vector<32xf32>
    %1152 = vector.shape_cast %1151 : vector<32xf32> to vector<1x32xf32>
    %1153 = vector.extract_strided_slice %1016 {offsets = [0, 0], sizes = [1, 32], strides = [1, 1]} : vector<8x32xf32> to vector<1x32xf32>
    %1154 = arith.addf %1152, %1153 : vector<1x32xf32>
    %1155 = vector.extract_strided_slice %1026 {offsets = [1, 0], sizes = [7, 32], strides = [1, 1]} : vector<8x32xf32> to vector<7x32xf32>
    %c0_424 = arith.constant 0 : index
    %c0_425 = arith.constant 0 : index
    %1156 = vector.load %arg26[%c0_424, %c0_425] : memref<32x32xf32, #tpu.memory_space<vmem>>, vector<32x32xf32>
    %cst_426 = arith.constant dense<0.000000e+00> : vector<7x32xf32>
    %1157 = tpu.matmul %1155, %1156, %cst_426 {dimension_numbers = #tpu.dot_dimension_numbers<[1], [0], [0], [1], [0, 0, 1, 1], [], []>} : vector<7x32xf32>, vector<32x32xf32>, vector<7x32xf32> -> vector<7x32xf32>
    %c0_427 = arith.constant 0 : index
    %c0_428 = arith.constant 0 : index
    %1158 = vector.load %arg27[%c0_427, %c0_428] : memref<1x32xf32, #tpu.memory_space<vmem>>, vector<1x32xf32>
    %1159 = vector.broadcast %1158 : vector<1x32xf32> to vector<7x32xf32>
    %1160 = arith.addf %1157, %1159 : vector<7x32xf32>
    %1161 = vector.extract_strided_slice %1141 {offsets = [0, 1], sizes = [7, 1], strides = [1, 1]} : vector<7x2xf32> to vector<7x1xf32>
    %1162 = vector.broadcast %1161 : vector<7x1xf32> to vector<7x32xf32>
    %1163 = arith.mulf %1162, %1160 : vector<7x32xf32>
    %cst_429 = arith.constant dense<0.000000e+00> : vector<32xf32>
    %1164 = vector.multi_reduction <add>, %1163, %cst_429 [0] : vector<7x32xf32> to vector<32xf32>
    %1165 = vector.shape_cast %1164 : vector<32xf32> to vector<1x32xf32>
    %1166 = vector.extract_strided_slice %1026 {offsets = [0, 0], sizes = [1, 32], strides = [1, 1]} : vector<8x32xf32> to vector<1x32xf32>
    %1167 = arith.addf %1165, %1166 : vector<1x32xf32>
    %1168 = tpu.concatenate %1154, %1167 in 0 : vector<1x32xf32>, vector<1x32xf32> -> vector<2x32xf32>
    %c0_430 = arith.constant 0 : index
    %c0_431 = arith.constant 0 : index
    %1169 = vector.load %arg28[%c0_430, %c0_431] : memref<2x32xf32, #tpu.memory_space<vmem>>, vector<2x32xf32>
    tpu.vector_store %arg28[%c0_430, %c0_431], %1168 {strides = array<i32>} : memref<2x32xf32, #tpu.memory_space<vmem>>, vector<2x32xf32>,
    return
  }
}

</mosaic_0001>

<llo_original>
// kernel: classifier_forward.5
$region0: #{classifier_forward.5}
  #allocation0 [shape = 'u32[]', space=smem, size = 0x4, offset = 0x4, fixed_abs, tag = 'smem constant byte address 0x4 - core index']
  #allocation1 [shape = 'u32[72,128]{1,0:T(1,128)}', space=vmem, size = 0x9000, scoped, tag = 'internal scratch']
  %s0 = inlined_call_operand.vmem [shape: f32[2,32], index: 0, kind: input, shape index: {}]
  %s1 = inlined_call_operand.vmem [shape: f32[2,32], index: 1, kind: input, shape index: {}]
  %s2 = inlined_call_operand.vmem [shape: f32[2,2], index: 2, kind: input, shape index: {}]
  %s3 = inlined_call_operand.hbm [shape: f32[2,2], index: 3, kind: output, shape index: {0}]
  %s4 = inlined_call_operand.hbm [shape: f32[1,1], index: 4, kind: output, shape index: {1}]
  %5 = xla_tuple %s3, %s4
  %s6 = sld [smem:[#allocation0]]
  $region30: #{classifier_forward.5} parent=0
    _
  %s8 = ssub.s32 1, %s6
  %s9 = scalar_select 0, %s8, %s6
  $region1: #{classifier_forward.5} parent=0
    #allocation2 [shape = 'u8[1024]{0}', space=vmem, size = 0x400, scoped, tag = 'output window, operand 0, single buffered']
    #allocation3 [shape = 's32[1]{0}', space=sflag, size = 0x4, scoped, tag = 'scoped memory for classifier_forward.5']
    #allocation4 [shape = 'u8[512]{0}', space=vmem, size = 0x400, scoped, tag = 'output window, operand 1, single buffered']
    #allocation5 [shape = 's32[1]{0}', space=sflag, size = 0x4, scoped, tag = 'scoped memory for classifier_forward.5']
    %10 = vsyncpa [#allocation3], 0
    %11 = vsyncpa [#allocation5], 0
    // Predicated region
    $region2: #{classifier_forward.5} parent=1 // pred_check
      _
    $region3: #{classifier_forward.5} parent=1 // pred_check_branch
      %13 = sbr.rel (0) target = $region5
    $region4: #{classifier_forward.5} parent=1 // pred_region
      _
    $region5: #{classifier_forward.5} parent=1 // pred_fallthru
      _
    // Predicated region
    $region6: #{classifier_forward.5} parent=1 // pred_check
      _
    $region7: #{classifier_forward.5} parent=1 // pred_check_branch
      %15 = sbr.rel (0) target = $region9
    $region8: #{classifier_forward.5} parent=1 // pred_region
      _
    $region9: #{classifier_forward.5} parent=1 // pred_fallthru
      _
    // Predicated region
    $region10: #{classifier_forward.5} parent=1 // pred_check
      _
    $region11: #{classifier_forward.5} parent=1 // pred_check_branch
      %17 = sbr.rel (0) target = $region13
    $region12: #{classifier_forward.5} parent=1 // pred_region
      _
    $region13: #{classifier_forward.5} parent=1 // pred_fallthru
      _
    %v18 = vld [vmem:[%s0] sm:$0x3]
    %v19 = vld [vmem:[%s1] sm:$0x3]
    %v20 = vld [vmem:[%s2] sm:$0x3]
    %vm21 = vcmask 261120
    %v23 = vsel %vm21, %v18, 0
    %v26 = vsel %vm21, %v19, 0
    %28 = vmatpush.xpose.msra.mxu0 0.0
    %29 = vmatpush.xpose.msra.mxu0 0.0
    %30 = vmatpush.xpose.msra.mxu0 0.0
    %31 = vmatpush.xpose.msra.mxu0 0.0
    %32 = vmatpush.xpose.msra.mxu0 0.0
    %33 = vmatpush.xpose.msra.mxu0 0.0
    %34 = vmatpush.xpose.msra.mxu0 0.0
    %35 = vmatpush.xpose.msra.mxu0 0.0
    %36 = vmatpush.xpose.msra.mxu0 0.0
    %37 = vmatpush.xpose.msra.mxu0 0.0
    %38 = vmatpush.xpose.msra.mxu0 0.0
    %39 = vmatpush.xpose.msra.mxu0 0.0
    %40 = vmatpush.xpose.msra.mxu0 0.0
    %41 = vmatpush.xpose.msra.mxu0 0.0
    %42 = vmatpush.xpose.msra.mxu0 0.0
    %43 = vmatpush.xpose.msra.mxu0 %v26
    %44 = vmatmul.f32.gmra.mxu0 %v23
    %v45 = vpop.f32.mrf.mxu0
    %v46 = vadd.f32 0.0, %v45
    %47 = vdwg.mxu0
    %v48 = vmul.f32 %v18, %v18
    %vm49 = vcmask 254976
    %v50 = vsel %vm49, %v48, 0.0
    %51 = vadd.xlane.f32.xlu0 %v50
    %v52 = vpop.xlane.xlu0 %51
    %v53 = vrsqrt.pop %v52
    %v54 = vmul.f32 %v53, %v52
    %v55 = vmul.f32 %v54, %v53
    %v56 = vmul.f32 0.5, %v55
    %v57 = vsub.f32 1.5, %v56
    %v58 = vmul.f32 %v53, %v57
    %v59 = vmul.f32 %v52, %v58
    %vm60 = vcmp.eq.f32.partialorder %v52, inf
    %v61 = vsel %vm60, %v52, %v59
    %vm62 = vcmp.eq.f32.partialorder %v52, 0.0
    %v63 = vand.u32 %v52, 2147483648
    %v64 = vsel %vm62, %v63, %v61
    %v65 = vmul.f32 %v19, %v19
    %v67 = vsel %vm21, 1.0, 0
    %v70 = vsel %vm21, %v65, 0
    %72 = vmatpush.xpose.msra.mxu0 0.0
    %73 = vmatpush.xpose.msra.mxu0 0.0
    %74 = vmatpush.xpose.msra.mxu0 0.0
    %75 = vmatpush.xpose.msra.mxu0 0.0
    %76 = vmatpush.xpose.msra.mxu0 0.0
    %77 = vmatpush.xpose.msra.mxu0 0.0
    %78 = vmatpush.xpose.msra.mxu0 0.0
    %79 = vmatpush.xpose.msra.mxu0 0.0
    %80 = vmatpush.xpose.msra.mxu0 0.0
    %81 = vmatpush.xpose.msra.mxu0 0.0
    %82 = vmatpush.xpose.msra.mxu0 0.0
    %83 = vmatpush.xpose.msra.mxu0 0.0
    %84 = vmatpush.xpose.msra.mxu0 0.0
    %85 = vmatpush.xpose.msra.mxu0 0.0
    %86 = vmatpush.xpose.msra.mxu0 0.0
    %87 = vmatpush.xpose.msra.mxu0 %v70
    %88 = vmatmul.f32.gmra.mxu0 %v67
    %v89 = vpop.f32.mrf.mxu0
    %v90 = vadd.f32 0.0, %v89
    %91 = vdwg.mxu0
    %v92 = vrsqrt.pop %v90
    %v93 = vmul.f32 %v92, %v90
    %v94 = vmul.f32 %v93, %v92
    %v95 = vmul.f32 0.5, %v94
    %v96 = vsub.f32 1.5, %v95
    %v97 = vmul.f32 %v92, %v96
    %v98 = vmul.f32 %v90, %v97
    %vm99 = vcmp.eq.f32.partialorder %v90, inf
    %v100 = vsel %vm99, %v90, %v98
    %vm101 = vcmp.eq.f32.partialorder %v90, 0.0
    %v102 = vand.u32 %v90, 2147483648
    %v103 = vsel %vm101, %v102, %v100
    %v104 = vperm.slane %v103, 0
    %v105 = vmul.f32 %v64, %v104
    %v106 = vmax.f32 %v105, 1e-08
    %v107 = vrcp.pop %v106
    %v108 = vmul.f32 %v106, %v107
    %v109 = vsub.f32 1.0, %v108
    %v110 = vmul.f32 %v107, %v109
    %v111 = vadd.f32 %v107, %v110
    %vm112 = vweird.f32 %v106
    %vm113 = vweird.f32 %v107
    %vm114 = vmor %vm112, %vm113
    %v115 = vsel %vm114, %v107, %v111
    %v116 = vand.u32 2147483647, %v106
    %vm117 = vcmp.eq.f32.partialorder %v116, 8.507059e+37
    %v118 = vand.u32 %v106, 2147483648
    %v119 = vor.u32 1.1754944e-38, %v118
    %v120 = vsel %vm117, %v119, %v115
    %v121 = vmul.f32 %v46, %v120
    %vm122 = vcmask 9216
    %123 = vst.msk [vmem:[#allocation2] sm:$0x3] %vm122, %v121
    %v124 = vmul.f32 %v121, 20.0
    %v125 = vsel %vm122, %v124, -inf
    %126 = vmax.xlane.f32.xlu0 %v125
    %v127 = vpop.xlane.xlu0 %126
    %v128 = vsub.f32 %v124, %v127
    %v129 = vmul.f32 %v128, 1.442695
    %v130 = vpow.pop %v129
    %v131 = vmul.f32 %v130, %v20
    %v132 = vsel %vm122, %v131, 0.0
    %133 = vadd.xlane.f32.xlu0 %v132
    %v134 = vpop.xlane.xlu0 %133
    %v135 = vsel %vm122, %v130, 0.0
    %136 = vadd.xlane.f32.xlu0 %v135
    %v137 = vpop.xlane.xlu0 %136
    %v138 = vrcp.pop %v137
    %v139 = vmul.f32 %v137, %v138
    %v140 = vsub.f32 1.0, %v139
    %v141 = vmul.f32 %v138, %v140
    %v142 = vadd.f32 %v138, %v141
    %vm143 = vweird.f32 %v137
    %vm144 = vweird.f32 %v138
    %vm145 = vmor %vm143, %vm144
    %v146 = vsel %vm145, %v138, %v142
    %v147 = vand.u32 2147483647, %v137
    %vm148 = vcmp.eq.f32.partialorder %v147, 8.507059e+37
    %v149 = vand.u32 %v137, 2147483648
    %v150 = vor.u32 1.1754944e-38, %v149
    %v151 = vsel %vm148, %v150, %v146
    %v152 = vmul.f32 %v134, %v151
    %v153 = vlog2.pop %v152
    %v154 = vmul.f32 %v153, 0.6931472
    %vm155 = vcmask 1041408
    %v156 = vsel %vm155, %v154, 0.0
    %v157 = vrot.slane %v156, 4
    %v158 = vadd.f32 %v156, %v157
    %v159 = vrot.slane %v158, 2
    %v160 = vadd.f32 %v158, %v159
    %v161 = vrot.slane %v160, 1
    %v162 = vadd.f32 %v160, %v161
    %v163 = vsub.f32 0.0, %v162
    %v164 = vrot.slane %v125, 4
    %v165 = vmax.f32 %v125, %v164
    %v166 = vrot.slane %v165, 2
    %v167 = vmax.f32 %v165, %v166
    %v168 = vrot.slane %v167, 1
    %v169 = vmax.f32 %v167, %v168
    %v170 = vsub.f32 %v124, %v169
    %v171 = vmul.f32 %v170, 1.442695
    %v172 = vpow.pop %v171
    %v173 = vmul.f32 %v172, %v20
    %v174 = vsel %vm122, %v173, 0.0
    %v175 = vrot.slane %v174, 4
    %v176 = vadd.f32 %v174, %v175
    %v177 = vrot.slane %v176, 2
    %v178 = vadd.f32 %v176, %v177
    %v179 = vrot.slane %v178, 1
    %v180 = vadd.f32 %v178, %v179
    %v181 = vsel %vm122, %v172, 0.0
    %v182 = vrot.slane %v181, 4
    %v183 = vadd.f32 %v181, %v182
    %v184 = vrot.slane %v183, 2
    %v185 = vadd.f32 %v183, %v184
    %v186 = vrot.slane %v185, 1
    %v187 = vadd.f32 %v185, %v186
    %v188 = vrcp.pop %v187
    %v189 = vmul.f32 %v187, %v188
    %v190 = vsub.f32 1.0, %v189
    %v191 = vmul.f32 %v188, %v190
    %v192 = vadd.f32 %v188, %v191
    %vm193 = vweird.f32 %v187
    %vm194 = vweird.f32 %v188
    %vm195 = vmor %vm193, %vm194
    %v196 = vsel %vm195, %v188, %v192
    %v197 = vand.u32 2147483647, %v187
    %vm198 = vcmp.eq.f32.partialorder %v197, 8.507059e+37
    %v199 = vand.u32 %v187, 2147483648
    %v200 = vor.u32 1.1754944e-38, %v199
    %v201 = vsel %vm198, %v200, %v196
    %v202 = vmul.f32 %v180, %v201
    %v203 = vlog2.pop %v202
    %v204 = vmul.f32 %v203, 0.6931472
    %vm205 = vcmask 15360
    %v206 = vsel %vm205, %v204, 0.0
    %207 = vadd.xlane.f32.xlu0 %v206
    %v208 = vpop.xlane.xlu0 %207
    %v209 = vsub.f32 0.0, %v208
    %v210 = vadd.f32 %v163, %v209
    %vm211 = vcmask 0
    %212 = vst.msk [vmem:[#allocation4] sm:$0x1] %vm211, %v210
    // Predicated region
    $region14: #{classifier_forward.5} parent=1 // pred_check
      _
    $region15: #{classifier_forward.5} parent=1 // pred_check_branch
      %214 = sbr.rel (0) target = $region17
    $region16: #{classifier_forward.5} parent=1 // pred_region
      %216 = vsyncadd [#allocation3], 0
      %s218 = sshll.u32 [#allocation2], 4
      %s219 = int_to_ptr.vmem [resolvable:$true] %s218
      %s220 = sshll.u32 %s3, 4
      %s221 = int_to_ptr.hbm [resolvable:$true] %s220
      %223 = dma.vmem_to_hbm [thread:$0]  %s219, 32, %s221, [#allocation3]
    $region17: #{classifier_forward.5} parent=1 // pred_fallthru
      _
    // Predicated region
    $region18: #{classifier_forward.5} parent=1 // pred_check
      _
    $region19: #{classifier_forward.5} parent=1 // pred_check_branch
      %225 = sbr.rel (0) target = $region21
    $region20: #{classifier_forward.5} parent=1 // pred_region
      %227 = vsyncadd [#allocation5], 0
      %s229 = sshll.u32 [#allocation4], 4
      %s230 = int_to_ptr.vmem [resolvable:$true] %s229
      %s231 = sshll.u32 %s4, 4
      %s232 = int_to_ptr.hbm [resolvable:$true] %s231
      %234 = dma.vmem_to_hbm [thread:$0]  %s230, 16, %s232, [#allocation5]
    $region21: #{classifier_forward.5} parent=1 // pred_fallthru
      _
    // Predicated region
    $region22: #{classifier_forward.5} parent=1 // pred_check
      _
    $region23: #{classifier_forward.5} parent=1 // pred_check_branch
      %236 = sbr.rel (0) target = $region25
    $region24: #{classifier_forward.5} parent=1 // pred_region
      %238 = dma.done [#allocation3], 32
    $region25: #{classifier_forward.5} parent=1 // pred_fallthru
      _
    // Predicated region
    $region26: #{classifier_forward.5} parent=1 // pred_check
      _
    $region27: #{classifier_forward.5} parent=1 // pred_check_branch
      %240 = sbr.rel (0) target = $region29
    $region28: #{classifier_forward.5} parent=1 // pred_region
      %242 = dma.done [#allocation5], 16
    $region29: #{classifier_forward.5} parent=1 // pred_fallthru
      _
    %243 = vsyncpa [#allocation3], 1
    %244 = vsyncpa [#allocation5], 1

// kernel: classifier_forward.4
$region0: #{classifier_forward.4}
  #allocation0 [shape = 'u32[]', space=smem, size = 0x4, offset = 0x4, fixed_abs, tag = 'smem constant byte address 0x4 - core index']
  #allocation1 [shape = 'u32[72,128]{1,0:T(1,128)}', space=vmem, size = 0x9000, scoped, tag = 'internal scratch']
  #allocation2 [shape = 'f32[1,1]{1,0:T(1,128)S(1)}', space=vmem, size = 0x200, scoped, tag = 'scoped memory for classifier_forward.4']
  %s0 = inlined_call_operand.hbm [shape: f32[16,32], index: 0, kind: input, shape index: {}]
  %s1 = inlined_call_operand.vmem [shape: f32[1,32], index: 1, kind: input, shape index: {}]
  %s2 = inlined_call_operand.vmem [shape: f32[1,32], index: 2, kind: input, shape index: {}]
  %s3 = inlined_call_operand.vmem [shape: f32[32,32], index: 3, kind: input, shape index: {}]
  %s4 = inlined_call_operand.vmem [shape: f32[1,32], index: 4, kind: input, shape index: {}]
  %s5 = inlined_call_operand.hbm [shape: f32[32,32], index: 5, kind: input, shape index: {}]
  %s6 = inlined_call_operand.vmem [shape: f32[1,32], index: 6, kind: input, shape index: {}]
  %s7 = inlined_call_operand.hbm [shape: f32[1,32], index: 7, kind: input, shape index: {}]
  %s8 = inlined_call_operand.hbm [shape: f32[1,32], index: 8, kind: input, shape index: {}]
  %s9 = inlined_call_operand.hbm [shape: f32[32,32], index: 9, kind: input, shape index: {}]
  %s10 = inlined_call_operand.hbm [shape: f32[1,32], index: 10, kind: input, shape index: {}]
  %s11 = inlined_call_operand.vmem [shape: f32[32,1], index: 11, kind: input, shape index: {}]
  %s12 = inlined_call_operand.<no memory space> [shape: f32[1,1], index: 12, kind: input, shape index: {}]
  %s13 = inlined_call_operand.hbm [shape: f32[32,32], index: 13, kind: input, shape index: {}]
  %s14 = inlined_call_operand.hbm [shape: f32[1,32], index: 14, kind: input, shape index: {}]
  %s15 = inlined_call_operand.vmem [shape: f32[2,32], index: 15, kind: output, shape index: {}]
  %s16 = sld [smem:[#allocation0]]
  $region102: #{classifier_forward.4} parent=0
    _
  %s18 = ssub.s32 1, %s16
  %s19 = scalar_select 0, %s18, %s16
  %v20 = vstv %s12
  %21 = vst [vmem:[#allocation2] sm:$0x1] %v20
  $region1: #{classifier_forward.4} parent=0
    #allocation3 [shape = 'u8[8192]{0}', space=vmem, size = 0x2000, scoped, tag = 'input window, operand 0, single buffered']
    #allocation4 [shape = 's32[1]{0}', space=sflag, size = 0x4, scoped, tag = 'scoped memory for classifier_forward.4']
    #allocation5 [shape = 'u8[16384]{0}', space=vmem, size = 0x4000, scoped, tag = 'input window, operand 5, single buffered']
    #allocation6 [shape = 's32[1]{0}', space=sflag, size = 0x4, scoped, tag = 'scoped memory for classifier_forward.4']
    #allocation7 [shape = 'u8[512]{0}', space=vmem, size = 0x400, scoped, tag = 'input window, operand 7, single buffered']
    #allocation8 [shape = 'u8[512]{0}', space=vmem, size = 0x400, scoped, tag = 'input window, operand 8, single buffered']
    #allocation9 [shape = 's32[1]{0}', space=sflag, size = 0x4, scoped, tag = 'scoped memory for classifier_forward.4']
    #allocation10 [shape = 'u8[16384]{0}', space=vmem, size = 0x4000, scoped, tag = 'input window, operand 9, single buffered']
    #allocation11 [shape = 'u8[512]{0}', space=vmem, size = 0x400, scoped, tag = 'input window, operand 10, single buffered']
    #allocation12 [shape = 's32[1]{0}', space=sflag, size = 0x4, scoped, tag = 'scoped memory for classifier_forward.4']
    #allocation13 [shape = 'u8[16384]{0}', space=vmem, size = 0x4000, scoped, tag = 'input window, operand 13, single buffered']
    #allocation14 [shape = 'u8[512]{0}', space=vmem, size = 0x400, scoped, tag = 'input window, operand 14, single buffered']
    #allocation15 [shape = 's32[1]{0}', space=sflag, size = 0x4, scoped, tag = 'scoped memory for classifier_forward.4']
    %22 = vsyncpa [#allocation4], 0
    %23 = vsyncpa [#allocation6], 0
    %24 = vsyncpa [#allocation9], 0
    %25 = vsyncpa [#allocation12], 0
    %26 = vsyncpa [#allocation15], 0
    // Predicated region
    $region2: #{classifier_forward.4} parent=1 // pred_check
      _
    $region3: #{classifier_forward.4} parent=1 // pred_check_branch
      %28 = sbr.rel (0) target = $region5
    $region4: #{classifier_forward.4} parent=1 // pred_region
      %30 = vsyncadd [#allocation4], 0
      %s31 = sshll.u32 %s0, 4
      %s32 = int_to_ptr.hbm [resolvable:$true] %s31
      %s33 = sshll.u32 [#allocation3], 4
      %s34 = int_to_ptr.vmem [resolvable:$true] %s33
      %39 = dma.hbm_to_vmem [thread:$0]  %s32, 256, %s34, [#allocation4], 128, 128, 8
    $region5: #{classifier_forward.4} parent=1 // pred_fallthru
      _
    // Predicated region
    $region6: #{classifier_forward.4} parent=1 // pred_check
      _
    $region7: #{classifier_forward.4} parent=1 // pred_check_branch
      %41 = sbr.rel (0) target = $region9
    $region8: #{classifier_forward.4} parent=1 // pred_region
      _
    $region9: #{classifier_forward.4} parent=1 // pred_fallthru
      _
    // Predicated region
    $region10: #{classifier_forward.4} parent=1 // pred_check
      _
    $region11: #{classifier_forward.4} parent=1 // pred_check_branch
      %43 = sbr.rel (0) target = $region13
    $region12: #{classifier_forward.4} parent=1 // pred_region
      _
    $region13: #{classifier_forward.4} parent=1 // pred_fallthru
      _
    // Predicated region
    $region14: #{classifier_forward.4} parent=1 // pred_check
      _
    $region15: #{classifier_forward.4} parent=1 // pred_check_branch
      %45 = sbr.rel (0) target = $region17
    $region16: #{classifier_forward.4} parent=1 // pred_region
      _
    $region17: #{classifier_forward.4} parent=1 // pred_fallthru
      _
    // Predicated region
    $region18: #{classifier_forward.4} parent=1 // pred_check
      _
    $region19: #{classifier_forward.4} parent=1 // pred_check_branch
      %47 = sbr.rel (0) target = $region21
    $region20: #{classifier_forward.4} parent=1 // pred_region
      _
    $region21: #{classifier_forward.4} parent=1 // pred_fallthru
      _
    // Predicated region
    $region22: #{classifier_forward.4} parent=1 // pred_check
      _
    $region23: #{classifier_forward.4} parent=1 // pred_check_branch
      %49 = sbr.rel (0) target = $region25
    $region24: #{classifier_forward.4} parent=1 // pred_region
      %51 = vsyncadd [#allocation6], 0
      %s52 = sshll.u32 %s5, 4
      %s53 = int_to_ptr.hbm [resolvable:$true] %s52
      %s54 = sshll.u32 [#allocation5], 4
      %s55 = int_to_ptr.vmem [resolvable:$true] %s54
      %60 = dma.hbm_to_vmem [thread:$0]  %s53, 512, %s55, [#allocation6], 128, 128, 8
    $region25: #{classifier_forward.4} parent=1 // pred_fallthru
      _
    // Predicated region
    $region26: #{classifier_forward.4} parent=1 // pred_check
      _
    $region27: #{classifier_forward.4} parent=1 // pred_check_branch
      %62 = sbr.rel (0) target = $region29
    $region28: #{classifier_forward.4} parent=1 // pred_region
      _
    $region29: #{classifier_forward.4} parent=1 // pred_fallthru
      _
    // Predicated region
    $region30: #{classifier_forward.4} parent=1 // pred_check
      _
    $region31: #{classifier_forward.4} parent=1 // pred_check_branch
      %64 = sbr.rel (0) target = $region33
    $region32: #{classifier_forward.4} parent=1 // pred_region
      %66 = vsyncadd [#allocation6], 0
      %s68 = sshll.u32 %s7, 4
      %s69 = int_to_ptr.hbm [resolvable:$true] %s68
      %s70 = sshll.u32 [#allocation7], 4
      %s71 = int_to_ptr.vmem [resolvable:$true] %s70
      %73 = dma.hbm_to_vmem [thread:$0]  %s69, 16, %s71, [#allocation6]
    $region33: #{classifier_forward.4} parent=1 // pred_fallthru
      _
    // Predicated region
    $region34: #{classifier_forward.4} parent=1 // pred_check
      _
    $region35: #{classifier_forward.4} parent=1 // pred_check_branch
      %75 = sbr.rel (0) target = $region37
    $region36: #{classifier_forward.4} parent=1 // pred_region
      %77 = vsyncadd [#allocation9], 0
      %s79 = sshll.u32 %s8, 4
      %s80 = int_to_ptr.hbm [resolvable:$true] %s79
      %s81 = sshll.u32 [#allocation8], 4
      %s82 = int_to_ptr.vmem [resolvable:$true] %s81
      %84 = dma.hbm_to_vmem [thread:$0]  %s80, 16, %s82, [#allocation9]
    $region37: #{classifier_forward.4} parent=1 // pred_fallthru
      _
    // Predicated region
    $region38: #{classifier_forward.4} parent=1 // pred_check
      _
    $region39: #{classifier_forward.4} parent=1 // pred_check_branch
      %86 = sbr.rel (0) target = $region41
    $region40: #{classifier_forward.4} parent=1 // pred_region
      %88 = vsyncadd [#allocation9], 0
      %s89 = sshll.u32 %s9, 4
      %s90 = int_to_ptr.hbm [resolvable:$true] %s89
      %s91 = sshll.u32 [#allocation10], 4
      %s92 = int_to_ptr.vmem [resolvable:$true] %s91
      %97 = dma.hbm_to_vmem [thread:$0]  %s90, 512, %s92, [#allocation9], 128, 128, 8
    $region41: #{classifier_forward.4} parent=1 // pred_fallthru
      _
    // Predicated region
    $region42: #{classifier_forward.4} parent=1 // pred_check
      _
    $region43: #{classifier_forward.4} parent=1 // pred_check_branch
      %99 = sbr.rel (0) target = $region45
    $region44: #{classifier_forward.4} parent=1 // pred_region
      %101 = vsyncadd [#allocation12], 0
      %s103 = sshll.u32 %s10, 4
      %s104 = int_to_ptr.hbm [resolvable:$true] %s103
      %s105 = sshll.u32 [#allocation11], 4
      %s106 = int_to_ptr.vmem [resolvable:$true] %s105
      %108 = dma.hbm_to_vmem [thread:$0]  %s104, 16, %s106, [#allocation12]
    $region45: #{classifier_forward.4} parent=1 // pred_fallthru
      _
    // Predicated region
    $region46: #{classifier_forward.4} parent=1 // pred_check
      _
    $region47: #{classifier_forward.4} parent=1 // pred_check_branch
      %110 = sbr.rel (0) target = $region49
    $region48: #{classifier_forward.4} parent=1 // pred_region
      _
    $region49: #{classifier_forward.4} parent=1 // pred_fallthru
      _
    // Predicated region
    $region50: #{classifier_forward.4} parent=1 // pred_check
      _
    $region51: #{classifier_forward.4} parent=1 // pred_check_branch
      %112 = sbr.rel (0) target = $region53
    $region52: #{classifier_forward.4} parent=1 // pred_region
      _
    $region53: #{classifier_forward.4} parent=1 // pred_fallthru
      _
    // Predicated region
    $region54: #{classifier_forward.4} parent=1 // pred_check
      _
    $region55: #{classifier_forward.4} parent=1 // pred_check_branch
      %114 = sbr.rel (0) target = $region57
    $region56: #{classifier_forward.4} parent=1 // pred_region
      %116 = vsyncadd [#allocation12], 0
      %s117 = sshll.u32 %s13, 4
      %s118 = int_to_ptr.hbm [resolvable:$true] %s117
      %s119 = sshll.u32 [#allocation13], 4
      %s120 = int_to_ptr.vmem [resolvable:$true] %s119
      %125 = dma.hbm_to_vmem [thread:$0]  %s118, 512, %s120, [#allocation12], 128, 128, 8
    $region57: #{classifier_forward.4} parent=1 // pred_fallthru
      _
    // Predicated region
    $region58: #{classifier_forward.4} parent=1 // pred_check
      _
    $region59: #{classifier_forward.4} parent=1 // pred_check_branch
      %127 = sbr.rel (0) target = $region61
    $region60: #{classifier_forward.4} parent=1 // pred_region
      %129 = vsyncadd [#allocation15], 0
      %s131 = sshll.u32 %s14, 4
      %s132 = int_to_ptr.hbm [resolvable:$true] %s131
      %s133 = sshll.u32 [#allocation14], 4
      %s134 = int_to_ptr.vmem [resolvable:$true] %s133
      %136 = dma.hbm_to_vmem [thread:$0]  %s132, 16, %s134, [#allocation15]
    $region61: #{classifier_forward.4} parent=1 // pred_fallthru
      _
    // Predicated region
    $region62: #{classifier_forward.4} parent=1 // pred_check
      _
    $region63: #{classifier_forward.4} parent=1 // pred_check_branch
      %138 = sbr.rel (0) target = $region65
    $region64: #{classifier_forward.4} parent=1 // pred_region
      %140 = dma.done [#allocation4], 256
    $region65: #{classifier_forward.4} parent=1 // pred_fallthru
      _
    // Predicated region
    $region66: #{classifier_forward.4} parent=1 // pred_check
      _
    $region67: #{classifier_forward.4} parent=1 // pred_check_branch
      %142 = sbr.rel (0) target = $region69
    $region68: #{classifier_forward.4} parent=1 // pred_region
      %144 = dma.done [#allocation6], 512
    $region69: #{classifier_forward.4} parent=1 // pred_fallthru
      _
    // Predicated region
    $region70: #{classifier_forward.4} parent=1 // pred_check
      _
    $region71: #{classifier_forward.4} parent=1 // pred_check_branch
      %146 = sbr.rel (0) target = $region73
    $region72: #{classifier_forward.4} parent=1 // pred_region
      %148 = dma.done [#allocation6], 16
    $region73: #{classifier_forward.4} parent=1 // pred_fallthru
      _
    // Predicated region
    $region74: #{classifier_forward.4} parent=1 // pred_check
      _
    $region75: #{classifier_forward.4} parent=1 // pred_check_branch
      %150 = sbr.rel (0) target = $region77
    $region76: #{classifier_forward.4} parent=1 // pred_region
      %152 = dma.done [#allocation9], 16
    $region77: #{classifier_forward.4} parent=1 // pred_fallthru
      _
    // Predicated region
    $region78: #{classifier_forward.4} parent=1 // pred_check
      _
    $region79: #{classifier_forward.4} parent=1 // pred_check_branch
      %154 = sbr.rel (0) target = $region81
    $region80: #{classifier_forward.4} parent=1 // pred_region
      %156 = dma.done [#allocation9], 512
    $region81: #{classifier_forward.4} parent=1 // pred_fallthru
      _
    // Predicated region
    $region82: #{classifier_forward.4} parent=1 // pred_check
      _
    $region83: #{classifier_forward.4} parent=1 // pred_check_branch
      %158 = sbr.rel (0) target = $region85
    $region84: #{classifier_forward.4} parent=1 // pred_region
      %160 = dma.done [#allocation12], 16
    $region85: #{classifier_forward.4} parent=1 // pred_fallthru
      _
    // Predicated region
    $region86: #{classifier_forward.4} parent=1 // pred_check
      _
    $region87: #{classifier_forward.4} parent=1 // pred_check_branch
      %162 = sbr.rel (0) target = $region89
    $region88: #{classifier_forward.4} parent=1 // pred_region
      %164 = dma.done [#allocation12], 512
    $region89: #{classifier_forward.4} parent=1 // pred_fallthru
      _
    // Predicated region
    $region90: #{classifier_forward.4} parent=1 // pred_check
      _
    $region91: #{classifier_forward.4} parent=1 // pred_check_branch
      %166 = sbr.rel (0) target = $region93
    $region92: #{classifier_forward.4} parent=1 // pred_region
      %168 = dma.done [#allocation15], 16
    $region93: #{classifier_forward.4} parent=1 // pred_fallthru
      _
    %v169 = vld [vmem:[#allocation3] sm:$0xff]
    %v170 = vld [vmem:[#allocation3 + $0x8] sm:$0xff]
    %v171 = vld [vmem:[%s1] sm:$0x1]
    %v172 = vld [vmem:[%s2] sm:$0x1]
    %vm173 = vcmask 261120
    %v174 = vsel %vm173, %v169, 0.0
    %175 = vadd.xlane.f32.xlu0 %v174
    %v176 = vpop.xlane.xlu0 %175
    %v177 = vsel %vm173, %v170, 0.0
    %178 = vadd.xlane.f32.xlu0 %v177
    %v179 = vpop.xlane.xlu0 %178
    %v180 = vrcp.pop 32.0
    %v181 = vmul.f32 32.0, %v180
    %v182 = vsub.f32 1.0, %v181
    %v183 = vmul.f32 %v180, %v182
    %v184 = vadd.f32 %v180, %v183
    %vm185 = vweird.f32 %v180
    %v186 = vsel %vm185, %v180, %v184
    %v187 = vmul.f32 %v176, %v186
    %v188 = vmul.f32 %v179, %v186
    %v189 = vsub.f32 %v169, %v187
    %v190 = vsub.f32 %v170, %v188
    %v191 = vmul.f32 %v189, %v189
    %v192 = vmul.f32 %v190, %v190
    %v193 = vsel %vm173, %v191, 0.0
    %194 = vadd.xlane.f32.xlu0 %v193
    %v195 = vpop.xlane.xlu0 %194
    %v196 = vsel %vm173, %v192, 0.0
    %197 = vadd.xlane.f32.xlu0 %v196
    %v198 = vpop.xlane.xlu0 %197
    %v199 = vmul.f32 %v195, %v186
    %v200 = vmul.f32 %v198, %v186
    %v201 = vadd.f32 %v199, 1e-05
    %v202 = vadd.f32 %v200, 1e-05
    %v203 = vrsqrt.pop %v201
    %v204 = vmul.f32 %v203, %v201
    %v205 = vmul.f32 %v204, %v203
    %v206 = vmul.f32 0.5, %v205
    %v207 = vsub.f32 1.5, %v206
    %v208 = vmul.f32 %v203, %v207
    %vm209 = vweird.f32 %v201
    %vm210 = vweird.f32 %v203
    %vm211 = vmor %vm209, %vm210
    %v212 = vsel %vm211, %v203, %v208
    %v213 = vrsqrt.pop %v202
    %v214 = vmul.f32 %v213, %v202
    %v215 = vmul.f32 %v214, %v213
    %v216 = vmul.f32 0.5, %v215
    %v217 = vsub.f32 1.5, %v216
    %v218 = vmul.f32 %v213, %v217
    %vm219 = vweird.f32 %v202
    %vm220 = vweird.f32 %v213
    %vm221 = vmor %vm219, %vm220
    %v222 = vsel %vm221, %v213, %v218
    %v223 = vmul.f32 %v189, %v212
    %v224 = vmul.f32 %v190, %v222
    %v226 = vperm.slane %v171, 0
    %v228 = vmul.f32 %v223, %v226
    %v229 = vmul.f32 %v224, %v226
    %v231 = vperm.slane %v172, 0
    %v233 = vadd.f32 %v228, %v231
    %v234 = vadd.f32 %v229, %v231
    %v235 = vld [vmem:[%s3] sm:$0xff]
    %v236 = vld [vmem:[%s3 + $0x8] sm:$0xff]
    %v237 = vld [vmem:[%s3 + $0x10] sm:$0xff]
    %v238 = vld [vmem:[%s3 + $0x18] sm:$0xff]
    %v239 = vld [vmem:[%s4] sm:$0x1]
    %v241 = vperm.slane %v239, 0
    %v244 = vsel %vm173, %v233, 0
    %v247 = vsel %vm173, %v234, 0
    %249 = vmatpush.msra.mxu0 0.0
    %250 = vmatpush.msra.mxu0 0.0
    %251 = vmatpush.msra.mxu0 0.0
    %252 = vmatpush.msra.mxu0 0.0
    %253 = vmatpush.msra.mxu0 0.0
    %254 = vmatpush.msra.mxu0 0.0
    %255 = vmatpush.msra.mxu0 0.0
    %256 = vmatpush.msra.mxu0 0.0
    %257 = vmatpush.msra.mxu0 0.0
    %258 = vmatpush.msra.mxu0 0.0
    %259 = vmatpush.msra.mxu0 0.0
    %260 = vmatpush.msra.mxu0 0.0
    %261 = vmatpush.msra.mxu0 %v238
    %262 = vmatpush.msra.mxu0 %v237
    %263 = vmatpush.msra.mxu0 %v236
    %264 = vmatpush.msra.mxu0 %v235
    %265 = vmatmul.f32.gmra.mxu0 %v244
    %v266 = vpop.f32.mrf.mxu0
    %v267 = vadd.f32 %v241, %v266
    %268 = vmatmul.f32.gmra.mxu0 %v247
    %v269 = vpop.f32.mrf.mxu0
    %v270 = vadd.f32 %v241, %v269
    %271 = vdwg.mxu0
    %v272 = vmul.f32 %v267, 0.5
    %v273 = vmul.f32 %v270, 0.5
    %v274 = vmul.f32 %v267, 0.70710677
    %v275 = vmul.f32 %v270, 0.70710677
    %vm276 = vcmp.ge.f32.partialorder %v274, 0.0
    %vm277 = vcmp.ge.f32.partialorder %v275, 0.0
    %v278 = vsel %vm276, 1.0, -1.0
    %v279 = vsel %vm277, 1.0, -1.0
    %v280 = vand.u32 2147483647, %v274
    %v281 = vand.u32 2147483647, %v275
    %v282 = vmul.f32 %v280, 0.3275911
    %v283 = vmul.f32 %v281, 0.3275911
    %v284 = vadd.f32 %v282, 1.0
    %v285 = vadd.f32 %v283, 1.0
    %v286 = vrcp.pop %v284
    %v287 = vmul.f32 %v284, %v286
    %v288 = vsub.f32 1.0, %v287
    %v289 = vmul.f32 %v286, %v288
    %v290 = vadd.f32 %v286, %v289
    %vm291 = vweird.f32 %v284
    %vm292 = vweird.f32 %v286
    %vm293 = vmor %vm291, %vm292
    %v294 = vsel %vm293, %v286, %v290
    %v295 = vand.u32 2147483647, %v284
    %vm296 = vcmp.eq.f32.partialorder %v295, 8.507059e+37
    %v297 = vand.u32 %v284, 2147483648
    %v298 = vor.u32 1.1754944e-38, %v297
    %v299 = vsel %vm296, %v298, %v294
    %v300 = vmul.f32 1.0, %v299
    %v301 = vrcp.pop %v285
    %v302 = vmul.f32 %v285, %v301
    %v303 = vsub.f32 1.0, %v302
    %v304 = vmul.f32 %v301, %v303
    %v305 = vadd.f32 %v301, %v304
    %vm306 = vweird.f32 %v285
    %vm307 = vweird.f32 %v301
    %vm308 = vmor %vm306, %vm307
    %v309 = vsel %vm308, %v301, %v305
    %v310 = vand.u32 2147483647, %v285
    %vm311 = vcmp.eq.f32.partialorder %v310, 8.507059e+37
    %v312 = vand.u32 %v285, 2147483648
    %v313 = vor.u32 1.1754944e-38, %v312
    %v314 = vsel %vm311, %v313, %v309
    %v315 = vmul.f32 1.0, %v314
    %v316 = vmul.f32 %v300, 1.0614054
    %v317 = vmul.f32 %v315, 1.0614054
    %v318 = vadd.f32 %v316, -1.4531521
    %v319 = vadd.f32 %v317, -1.4531521
    %v320 = vmul.f32 %v318, %v300
    %v321 = vmul.f32 %v319, %v315
    %v322 = vadd.f32 %v320, 1.4214138
    %v323 = vadd.f32 %v321, 1.4214138
    %v324 = vmul.f32 %v322, %v300
    %v325 = vmul.f32 %v323, %v315
    %v326 = vadd.f32 %v324, -0.28449672
    %v327 = vadd.f32 %v325, -0.28449672
    %v328 = vmul.f32 %v326, %v300
    %v329 = vmul.f32 %v327, %v315
    %v330 = vadd.f32 %v328, 0.2548296
    %v331 = vadd.f32 %v329, 0.2548296
    %v332 = vmul.f32 %v330, %v300
    %v333 = vmul.f32 %v331, %v315
    %v334 = vsub.f32 0.0, %v280
    %v335 = vsub.f32 0.0, %v281
    %v336 = vmul.f32 %v334, %v280
    %v337 = vmul.f32 %v335, %v281
    %v338 = vmul.f32 %v336, 1.442695
    %v339 = vpow.pop %v338
    %v340 = vmul.f32 %v337, 1.442695
    %v341 = vpow.pop %v340
    %v342 = vmul.f32 %v332, %v339
    %v343 = vmul.f32 %v333, %v341
    %v344 = vsub.f32 1.0, %v342
    %v345 = vsub.f32 1.0, %v343
    %v346 = vmul.f32 %v278, %v344
    %v347 = vmul.f32 %v279, %v345
    %v348 = vadd.f32 %v346, 1.0
    %v349 = vadd.f32 %v347, 1.0
    %v350 = vmul.f32 %v272, %v348
    %v351 = vmul.f32 %v273, %v349
    %v352 = vld [vmem:[#allocation5] sm:$0xff]
    %v353 = vld [vmem:[#allocation5 + $0x8] sm:$0xff]
    %v354 = vld [vmem:[#allocation5 + $0x10] sm:$0xff]
    %v355 = vld [vmem:[#allocation5 + $0x18] sm:$0xff]
    %v356 = vld [vmem:[%s6] sm:$0x1]
    %v358 = vperm.slane %v356, 0
    %v361 = vsel %vm173, %v350, 0
    %v364 = vsel %vm173, %v351, 0
    %366 = vmatpush.msra.mxu0 0.0
    %367 = vmatpush.msra.mxu0 0.0
    %368 = vmatpush.msra.mxu0 0.0
    %369 = vmatpush.msra.mxu0 0.0
    %370 = vmatpush.msra.mxu0 0.0
    %371 = vmatpush.msra.mxu0 0.0
    %372 = vmatpush.msra.mxu0 0.0
    %373 = vmatpush.msra.mxu0 0.0
    %374 = vmatpush.msra.mxu0 0.0
    %375 = vmatpush.msra.mxu0 0.0
    %376 = vmatpush.msra.mxu0 0.0
    %377 = vmatpush.msra.mxu0 0.0
    %378 = vmatpush.msra.mxu0 %v355
    %379 = vmatpush.msra.mxu0 %v354
    %380 = vmatpush.msra.mxu0 %v353
    %381 = vmatpush.msra.mxu0 %v352
    %382 = vmatmul.f32.gmra.mxu0 %v361
    %v383 = vpop.f32.mrf.mxu0
    %v384 = vadd.f32 %v358, %v383
    %385 = vmatmul.f32.gmra.mxu0 %v364
    %v386 = vpop.f32.mrf.mxu0
    %v387 = vadd.f32 %v358, %v386
    %388 = vdwg.mxu0
    %v389 = vld [vmem:[#allocation7] sm:$0x1]
    %v390 = vld [vmem:[#allocation8] sm:$0x1]
    %v391 = vsel %vm173, %v384, 0.0
    %392 = vadd.xlane.f32.xlu0 %v391
    %v393 = vpop.xlane.xlu0 %392
    %v394 = vsel %vm173, %v387, 0.0
    %395 = vadd.xlane.f32.xlu0 %v394
    %v396 = vpop.xlane.xlu0 %395
    %v397 = vmul.f32 %v393, %v186
    %v398 = vmul.f32 %v396, %v186
    %v399 = vsub.f32 %v384, %v397
    %v400 = vsub.f32 %v387, %v398
    %v401 = vmul.f32 %v399, %v399
    %v402 = vmul.f32 %v400, %v400
    %v403 = vsel %vm173, %v401, 0.0
    %404 = vadd.xlane.f32.xlu0 %v403
    %v405 = vpop.xlane.xlu0 %404
    %v406 = vsel %vm173, %v402, 0.0
    %407 = vadd.xlane.f32.xlu0 %v406
    %v408 = vpop.xlane.xlu0 %407
    %v409 = vmul.f32 %v405, %v186
    %v410 = vmul.f32 %v408, %v186
    %v411 = vadd.f32 %v409, 1e-05
    %v412 = vadd.f32 %v410, 1e-05
    %v413 = vrsqrt.pop %v411
    %v414 = vmul.f32 %v413, %v411
    %v415 = vmul.f32 %v414, %v413
    %v416 = vmul.f32 0.5, %v415
    %v417 = vsub.f32 1.5, %v416
    %v418 = vmul.f32 %v413, %v417
    %vm419 = vweird.f32 %v411
    %vm420 = vweird.f32 %v413
    %vm421 = vmor %vm419, %vm420
    %v422 = vsel %vm421, %v413, %v418
    %v423 = vrsqrt.pop %v412
    %v424 = vmul.f32 %v423, %v412
    %v425 = vmul.f32 %v424, %v423
    %v426 = vmul.f32 0.5, %v425
    %v427 = vsub.f32 1.5, %v426
    %v428 = vmul.f32 %v423, %v427
    %vm429 = vweird.f32 %v412
    %vm430 = vweird.f32 %v423
    %vm431 = vmor %vm429, %vm430
    %v432 = vsel %vm431, %v423, %v428
    %v433 = vmul.f32 %v399, %v422
    %v434 = vmul.f32 %v400, %v432
    %v436 = vperm.slane %v389, 0
    %v438 = vmul.f32 %v433, %v436
    %v439 = vmul.f32 %v434, %v436
    %v441 = vperm.slane %v390, 0
    %v443 = vadd.f32 %v438, %v441
    %v444 = vadd.f32 %v439, %v441
    %v445 = vmul.f32 %v443, %v443
    %v446 = vsel %vm173, %v445, 0.0
    %v447 = vrot.slane %v446, 4
    %v448 = vadd.f32 %v446, %v447
    %v449 = vrot.slane %v448, 2
    %v450 = vadd.f32 %v448, %v449
    %v451 = vrot.slane %v450, 1
    %v452 = vadd.f32 %v450, %v451
    %v453 = vrsqrt.pop %v452
    %v454 = vmul.f32 %v453, %v452
    %v455 = vmul.f32 %v454, %v453
    %v456 = vmul.f32 0.5, %v455
    %v457 = vsub.f32 1.5, %v456
    %v458 = vmul.f32 %v453, %v457
    %v459 = vmul.f32 %v452, %v458
    %vm460 = vcmp.eq.f32.partialorder %v452, inf
    %v461 = vsel %vm460, %v452, %v459
    %vm462 = vcmp.eq.f32.partialorder %v452, 0.0
    %v463 = vand.u32 %v452, 2147483648
    %v464 = vsel %vm462, %v463, %v461
    %v465 = vmax.f32 %v464, 1e-12
    %v466 = vrcp.pop %v465
    %v467 = vmul.f32 %v443, %v466
    %v468 = vld [vmem:[#allocation10] sm:$0xff]
    %v469 = vld [vmem:[#allocation10 + $0x8] sm:$0xff]
    %v470 = vld [vmem:[#allocation10 + $0x10] sm:$0xff]
    %v471 = vld [vmem:[#allocation10 + $0x18] sm:$0xff]
    %v472 = vld [vmem:[#allocation11] sm:$0x1]
    %v474 = vperm.slane %v472, 0
    %v477 = vrot.slane %v467, 1
    %v478 = vsel %vm173, %v477, 0
    %480 = vmatpush.msra.mxu0 0.0
    %481 = vmatpush.msra.mxu0 0.0
    %482 = vmatpush.msra.mxu0 0.0
    %483 = vmatpush.msra.mxu0 0.0
    %484 = vmatpush.msra.mxu0 0.0
    %485 = vmatpush.msra.mxu0 0.0
    %486 = vmatpush.msra.mxu0 0.0
    %487 = vmatpush.msra.mxu0 0.0
    %488 = vmatpush.msra.mxu0 0.0
    %489 = vmatpush.msra.mxu0 0.0
    %490 = vmatpush.msra.mxu0 0.0
    %491 = vmatpush.msra.mxu0 0.0
    %492 = vmatpush.msra.mxu0 %v471
    %493 = vmatpush.msra.mxu0 %v470
    %494 = vmatpush.msra.mxu0 %v469
    %495 = vmatpush.msra.mxu0 %v468
    %496 = vmatmul.f32.gmra.mxu0 %v478
    %v497 = vpop.f32.mrf.mxu0
    %v498 = vadd.f32 %v474, %v497
    %499 = vdwg.mxu0
    %v500 = vmul.f32 %v498, 0.5
    %v501 = vmul.f32 %v498, 0.70710677
    %vm502 = vcmp.ge.f32.partialorder %v501, 0.0
    %v503 = vsel %vm502, 1.0, -1.0
    %v504 = vand.u32 2147483647, %v501
    %v505 = vmul.f32 %v504, 0.3275911
    %v506 = vadd.f32 %v505, 1.0
    %v507 = vrcp.pop %v506
    %v508 = vmul.f32 %v506, %v507
    %v509 = vsub.f32 1.0, %v508
    %v510 = vmul.f32 %v507, %v509
    %v511 = vadd.f32 %v507, %v510
    %vm512 = vweird.f32 %v506
    %vm513 = vweird.f32 %v507
    %vm514 = vmor %vm512, %vm513
    %v515 = vsel %vm514, %v507, %v511
    %v516 = vand.u32 2147483647, %v506
    %vm517 = vcmp.eq.f32.partialorder %v516, 8.507059e+37
    %v518 = vand.u32 %v506, 2147483648
    %v519 = vor.u32 1.1754944e-38, %v518
    %v520 = vsel %vm517, %v519, %v515
    %v521 = vmul.f32 1.0, %v520
    %v522 = vmul.f32 %v521, 1.0614054
    %v523 = vadd.f32 %v522, -1.4531521
    %v524 = vmul.f32 %v523, %v521
    %v525 = vadd.f32 %v524, 1.4214138
    %v526 = vmul.f32 %v525, %v521
    %v527 = vadd.f32 %v526, -0.28449672
    %v528 = vmul.f32 %v527, %v521
    %v529 = vadd.f32 %v528, 0.2548296
    %v530 = vmul.f32 %v529, %v521
    %v531 = vsub.f32 0.0, %v504
    %v532 = vmul.f32 %v531, %v504
    %v533 = vmul.f32 %v532, 1.442695
    %v534 = vpow.pop %v533
    %v535 = vmul.f32 %v530, %v534
    %v536 = vsub.f32 1.0, %v535
    %v537 = vmul.f32 %v503, %v536
    %v538 = vadd.f32 %v537, 1.0
    %v539 = vmul.f32 %v500, %v538
    %v540 = vld [vmem:[%s11] sm:$0xff]
    %v541 = vld [vmem:[%s11 + $0x8] sm:$0xff]
    %v542 = vld [vmem:[%s11 + $0x10] sm:$0xff]
    %v543 = vld [vmem:[%s11 + $0x18] sm:$0xff]
    %v544 = vld [vmem:[#allocation2] sm:$0x1]
    %v546 = vperm.slane %v544, 0
    %v549 = vsel %vm173, %v539, 0
    %551 = vmatpush.msra.mxu0 0.0
    %552 = vmatpush.msra.mxu0 0.0
    %553 = vmatpush.msra.mxu0 0.0
    %554 = vmatpush.msra.mxu0 0.0
    %555 = vmatpush.msra.mxu0 0.0
    %556 = vmatpush.msra.mxu0 0.0
    %557 = vmatpush.msra.mxu0 0.0
    %558 = vmatpush.msra.mxu0 0.0
    %559 = vmatpush.msra.mxu0 0.0
    %560 = vmatpush.msra.mxu0 0.0
    %561 = vmatpush.msra.mxu0 0.0
    %562 = vmatpush.msra.mxu0 0.0
    %563 = vmatpush.msra.mxu0 %v543
    %564 = vmatpush.msra.mxu0 %v542
    %565 = vmatpush.msra.mxu0 %v541
    %566 = vmatpush.msra.mxu0 %v540
    %567 = vmatmul.f32.gmra.mxu0 %v549
    %v568 = vpop.f32.mrf.mxu0
    %v569 = vadd.f32 %v546, %v568
    %570 = vdwg.mxu0
    %vm571 = vcmask 6144
    %v572 = vsel %vm571, %v569, -inf
    %v573 = vrot.slane %v572, 4
    %v574 = vmax.f32 %v572, %v573
    %v575 = vrot.slane %v574, 2
    %v576 = vmax.f32 %v574, %v575
    %v577 = vrot.slane %v576, 1
    %v578 = vmax.f32 %v576, %v577
    %v579 = vsub.f32 %v569, %v578
    %v580 = vmul.f32 %v579, 1.442695
    %v581 = vpow.pop %v580
    %v582 = vsel %vm571, %v581, 0.0
    %v583 = vrot.slane %v582, 4
    %v584 = vadd.f32 %v582, %v583
    %v585 = vrot.slane %v584, 2
    %v586 = vadd.f32 %v584, %v585
    %v587 = vrot.slane %v586, 1
    %v588 = vadd.f32 %v586, %v587
    %v589 = vrcp.pop %v588
    %v590 = vmul.f32 %v581, %v589
    %v591 = vld [vmem:[#allocation13] sm:$0xff]
    %v592 = vld [vmem:[#allocation13 + $0x8] sm:$0xff]
    %v593 = vld [vmem:[#allocation13 + $0x10] sm:$0xff]
    %v594 = vld [vmem:[#allocation13 + $0x18] sm:$0xff]
    %v595 = vld [vmem:[#allocation14] sm:$0x1]
    %v597 = vperm.slane %v595, 0
    %599 = vmatpush.msra.mxu0 0.0
    %600 = vmatpush.msra.mxu0 0.0
    %601 = vmatpush.msra.mxu0 0.0
    %602 = vmatpush.msra.mxu0 0.0
    %603 = vmatpush.msra.mxu0 0.0
    %604 = vmatpush.msra.mxu0 0.0
    %605 = vmatpush.msra.mxu0 0.0
    %606 = vmatpush.msra.mxu0 0.0
    %607 = vmatpush.msra.mxu0 0.0
    %608 = vmatpush.msra.mxu0 0.0
    %609 = vmatpush.msra.mxu0 0.0
    %610 = vmatpush.msra.mxu0 0.0
    %611 = vmatpush.msra.mxu0 %v594
    %612 = vmatpush.msra.mxu0 %v593
    %613 = vmatpush.msra.mxu0 %v592
    %614 = vmatpush.msra.mxu0 %v591
    %615 = vmatmul.f32.gmra.mxu0 %v478
    %v616 = vpop.f32.mrf.mxu0
    %v617 = vadd.f32 %v597, %v616
    %618 = vdwg.mxu0
    %620 = vset.pattern.permute.xlu0 0
    %621 = vperm.xlu0 %620, %v590
    %v622 = vpop.permute.xlu0 %621
    %v624 = vmul.f32 %v622, %v617
    %vm625 = vcmask 260096
    %v626 = vsel %vm625, %v624, 0.0
    %v627 = vrot.slane %v626, 4
    %v628 = vadd.f32 %v626, %v627
    %v629 = vrot.slane %v628, 2
    %v630 = vadd.f32 %v628, %v629
    %v631 = vrot.slane %v630, 1
    %v632 = vadd.f32 %v630, %v631
    %v633 = vadd.f32 %v632, %v467
    %v634 = vmul.f32 %v444, %v444
    %v635 = vsel %vm173, %v634, 0.0
    %v636 = vrot.slane %v635, 4
    %v637 = vadd.f32 %v635, %v636
    %v638 = vrot.slane %v637, 2
    %v639 = vadd.f32 %v637, %v638
    %v640 = vrot.slane %v639, 1
    %v641 = vadd.f32 %v639, %v640
    %v642 = vrsqrt.pop %v641
    %v643 = vmul.f32 %v642, %v641
    %v644 = vmul.f32 %v643, %v642
    %v645 = vmul.f32 0.5, %v644
    %v646 = vsub.f32 1.5, %v645
    %v647 = vmul.f32 %v642, %v646
    %v648 = vmul.f32 %v641, %v647
    %vm649 = vcmp.eq.f32.partialorder %v641, inf
    %v650 = vsel %vm649, %v641, %v648
    %vm651 = vcmp.eq.f32.partialorder %v641, 0.0
    %v652 = vand.u32 %v641, 2147483648
    %v653 = vsel %vm651, %v652, %v650
    %v654 = vmax.f32 %v653, 1e-12
    %v655 = vrcp.pop %v654
    %v656 = vmul.f32 %v444, %v655
    %v658 = vrot.slane %v656, 1
    %v659 = vsel %vm173, %v658, 0
    %661 = vmatpush.msra.mxu0 0.0
    %662 = vmatpush.msra.mxu0 0.0
    %663 = vmatpush.msra.mxu0 0.0
    %664 = vmatpush.msra.mxu0 0.0
    %665 = vmatpush.msra.mxu0 0.0
    %666 = vmatpush.msra.mxu0 0.0
    %667 = vmatpush.msra.mxu0 0.0
    %668 = vmatpush.msra.mxu0 0.0
    %669 = vmatpush.msra.mxu0 0.0
    %670 = vmatpush.msra.mxu0 0.0
    %671 = vmatpush.msra.mxu0 0.0
    %672 = vmatpush.msra.mxu0 0.0
    %673 = vmatpush.msra.mxu0 %v471
    %674 = vmatpush.msra.mxu0 %v470
    %675 = vmatpush.msra.mxu0 %v469
    %676 = vmatpush.msra.mxu0 %v468
    %677 = vmatmul.f32.gmra.mxu0 %v659
    %v678 = vpop.f32.mrf.mxu0
    %v679 = vadd.f32 %v474, %v678
    %680 = vdwg.mxu0
    %v681 = vmul.f32 %v679, 0.5
    %v682 = vmul.f32 %v679, 0.70710677
    %vm683 = vcmp.ge.f32.partialorder %v682, 0.0
    %v684 = vsel %vm683, 1.0, -1.0
    %v685 = vand.u32 2147483647, %v682
    %v686 = vmul.f32 %v685, 0.3275911
    %v687 = vadd.f32 %v686, 1.0
    %v688 = vrcp.pop %v687
    %v689 = vmul.f32 %v687, %v688
    %v690 = vsub.f32 1.0, %v689
    %v691 = vmul.f32 %v688, %v690
    %v692 = vadd.f32 %v688, %v691
    %vm693 = vweird.f32 %v687
    %vm694 = vweird.f32 %v688
    %vm695 = vmor %vm693, %vm694
    %v696 = vsel %vm695, %v688, %v692
    %v697 = vand.u32 2147483647, %v687
    %vm698 = vcmp.eq.f32.partialorder %v697, 8.507059e+37
    %v699 = vand.u32 %v687, 2147483648
    %v700 = vor.u32 1.1754944e-38, %v699
    %v701 = vsel %vm698, %v700, %v696
    %v702 = vmul.f32 1.0, %v701
    %v703 = vmul.f32 %v702, 1.0614054
    %v704 = vadd.f32 %v703, -1.4531521
    %v705 = vmul.f32 %v704, %v702
    %v706 = vadd.f32 %v705, 1.4214138
    %v707 = vmul.f32 %v706, %v702
    %v708 = vadd.f32 %v707, -0.28449672
    %v709 = vmul.f32 %v708, %v702
    %v710 = vadd.f32 %v709, 0.2548296
    %v711 = vmul.f32 %v710, %v702
    %v712 = vsub.f32 0.0, %v685
    %v713 = vmul.f32 %v712, %v685
    %v714 = vmul.f32 %v713, 1.442695
    %v715 = vpow.pop %v714
    %v716 = vmul.f32 %v711, %v715
    %v717 = vsub.f32 1.0, %v716
    %v718 = vmul.f32 %v684, %v717
    %v719 = vadd.f32 %v718, 1.0
    %v720 = vmul.f32 %v681, %v719
    %v722 = vsel %vm173, %v720, 0
    %724 = vmatpush.msra.mxu0 0.0
    %725 = vmatpush.msra.mxu0 0.0
    %726 = vmatpush.msra.mxu0 0.0
    %727 = vmatpush.msra.mxu0 0.0
    %728 = vmatpush.msra.mxu0 0.0
    %729 = vmatpush.msra.mxu0 0.0
    %730 = vmatpush.msra.mxu0 0.0
    %731 = vmatpush.msra.mxu0 0.0
    %732 = vmatpush.msra.mxu0 0.0
    %733 = vmatpush.msra.mxu0 0.0
    %734 = vmatpush.msra.mxu0 0.0
    %735 = vmatpush.msra.mxu0 0.0
    %736 = vmatpush.msra.mxu0 %v543
    %737 = vmatpush.msra.mxu0 %v542
    %738 = vmatpush.msra.mxu0 %v541
    %739 = vmatpush.msra.mxu0 %v540
    %740 = vmatmul.f32.gmra.mxu0 %v722
    %v741 = vpop.f32.mrf.mxu0
    %v742 = vadd.f32 %v546, %v741
    %743 = vdwg.mxu0
    %v744 = vsel %vm571, %v742, -inf
    %v745 = vrot.slane %v744, 4
    %v746 = vmax.f32 %v744, %v745
    %v747 = vrot.slane %v746, 2
    %v748 = vmax.f32 %v746, %v747
    %v749 = vrot.slane %v748, 1
    %v750 = vmax.f32 %v748, %v749
    %v751 = vsub.f32 %v742, %v750
    %v752 = vmul.f32 %v751, 1.442695
    %v753 = vpow.pop %v752
    %v754 = vsel %vm571, %v753, 0.0
    %v755 = vrot.slane %v754, 4
    %v756 = vadd.f32 %v754, %v755
    %v757 = vrot.slane %v756, 2
    %v758 = vadd.f32 %v756, %v757
    %v759 = vrot.slane %v758, 1
    %v760 = vadd.f32 %v758, %v759
    %v761 = vrcp.pop %v760
    %v762 = vmul.f32 %v753, %v761
    %763 = vmatpush.msra.mxu0 0.0
    %764 = vmatpush.msra.mxu0 0.0
    %765 = vmatpush.msra.mxu0 0.0
    %766 = vmatpush.msra.mxu0 0.0
    %767 = vmatpush.msra.mxu0 0.0
    %768 = vmatpush.msra.mxu0 0.0
    %769 = vmatpush.msra.mxu0 0.0
    %770 = vmatpush.msra.mxu0 0.0
    %771 = vmatpush.msra.mxu0 0.0
    %772 = vmatpush.msra.mxu0 0.0
    %773 = vmatpush.msra.mxu0 0.0
    %774 = vmatpush.msra.mxu0 0.0
    %775 = vmatpush.msra.mxu0 %v594
    %776 = vmatpush.msra.mxu0 %v593
    %777 = vmatpush.msra.mxu0 %v592
    %778 = vmatpush.msra.mxu0 %v591
    %779 = vmatmul.f32.gmra.mxu0 %v659
    %v780 = vpop.f32.mrf.mxu0
    %v781 = vadd.f32 %v597, %v780
    %782 = vdwg.mxu0
    %784 = vset.pattern.permute.xlu0 0
    %785 = vperm.xlu0 %784, %v762
    %v786 = vpop.permute.xlu0 %785
    %v788 = vmul.f32 %v786, %v781
    %v789 = vsel %vm625, %v788, 0.0
    %v790 = vrot.slane %v789, 4
    %v791 = vadd.f32 %v789, %v790
    %v792 = vrot.slane %v791, 2
    %v793 = vadd.f32 %v791, %v792
    %v794 = vrot.slane %v793, 1
    %v795 = vadd.f32 %v793, %v794
    %v796 = vadd.f32 %v795, %v656
    %v798 = vrot.slane %v796, 7
    %vm800 = vcmask 1040384
    %v801 = vsel %vm800, %v633, %v798
    %vm802 = vcmask 254976
    %803 = vst.msk [vmem:[%s15] sm:$0x3] %vm802, %v801
    // Predicated region
    $region94: #{classifier_forward.4} parent=1 // pred_check
      _
    $region95: #{classifier_forward.4} parent=1 // pred_check_branch
      %805 = sbr.rel (0) target = $region97
    $region96: #{classifier_forward.4} parent=1 // pred_region
      _
    $region97: #{classifier_forward.4} parent=1 // pred_fallthru
      _
    // Predicated region
    $region98: #{classifier_forward.4} parent=1 // pred_check
      _
    $region99: #{classifier_forward.4} parent=1 // pred_check_branch
      %807 = sbr.rel (0) target = $region101
    $region100: #{classifier_forward.4} parent=1 // pred_region
      _
    $region101: #{classifier_forward.4} parent=1 // pred_fallthru
      _
    %808 = vsyncpa [#allocation4], 1
    %809 = vsyncpa [#allocation6], 1
    %810 = vsyncpa [#allocation9], 1
    %811 = vsyncpa [#allocation12], 1
    %812 = vsyncpa [#allocation15], 1

// kernel: classifier_forward.3
$region0: #{classifier_forward.3}
  #allocation0 [shape = 'u32[]', space=smem, size = 0x4, offset = 0x4, fixed_abs, tag = 'smem constant byte address 0x4 - core index']
  #allocation1 [shape = 'u32[72,128]{1,0:T(1,128)}', space=vmem, size = 0x9000, scoped, tag = 'internal scratch']
  #allocation2 [shape = 'f32[1,1]{1,0:T(1,128)S(1)}', space=vmem, size = 0x200, scoped, tag = 'scoped memory for classifier_forward.3']
  %s0 = inlined_call_operand.vmem [shape: f32[16,32], index: 0, kind: input, shape index: {}]
  %s1 = inlined_call_operand.vmem [shape: f32[16,16], index: 1, kind: input, shape index: {}]
  %s2 = inlined_call_operand.vmem [shape: f32[1,32], index: 2, kind: input, shape index: {}]
  %s3 = inlined_call_operand.vmem [shape: f32[1,32], index: 3, kind: input, shape index: {}]
  %s4 = inlined_call_operand.vmem [shape: f32[32,32], index: 4, kind: input, shape index: {}]
  %s5 = inlined_call_operand.vmem [shape: f32[1,32], index: 5, kind: input, shape index: {}]
  %s6 = inlined_call_operand.vmem [shape: f32[32,32], index: 6, kind: input, shape index: {}]
  %s7 = inlined_call_operand.vmem [shape: f32[1,32], index: 7, kind: input, shape index: {}]
  %s8 = inlined_call_operand.hbm [shape: f32[4,32,96], index: 8, kind: input, shape index: {}]
  %s9 = inlined_call_operand.vmem [shape: f32[4,96], index: 9, kind: input, shape index: {}]
  %s10 = inlined_call_operand.hbm [shape: f32[4,32,32], index: 10, kind: input, shape index: {}]
  %s11 = inlined_call_operand.vmem [shape: f32[4,32], index: 11, kind: input, shape index: {}]
  %s12 = inlined_call_operand.hbm [shape: f32[4,32,32], index: 12, kind: input, shape index: {}]
  %s13 = inlined_call_operand.vmem [shape: f32[4,32], index: 13, kind: input, shape index: {}]
  %s14 = inlined_call_operand.hbm [shape: f32[4,32,32], index: 14, kind: input, shape index: {}]
  %s15 = inlined_call_operand.vmem [shape: f32[4,32], index: 15, kind: input, shape index: {}]
  %s16 = inlined_call_operand.vmem [shape: f32[4,32], index: 16, kind: input, shape index: {}]
  %s17 = inlined_call_operand.vmem [shape: f32[4,32], index: 17, kind: input, shape index: {}]
  %s18 = inlined_call_operand.vmem [shape: f32[4,32], index: 18, kind: input, shape index: {}]
  %s19 = inlined_call_operand.hbm [shape: f32[4,32], index: 19, kind: input, shape index: {}]
  %s20 = inlined_call_operand.hbm [shape: f32[1,32], index: 20, kind: input, shape index: {}]
  %s21 = inlined_call_operand.hbm [shape: f32[1,32], index: 21, kind: input, shape index: {}]
  %s22 = inlined_call_operand.vmem [shape: f32[32,32], index: 22, kind: input, shape index: {}]
  %s23 = inlined_call_operand.hbm [shape: f32[1,32], index: 23, kind: input, shape index: {}]
  %s24 = inlined_call_operand.vmem [shape: f32[32,1], index: 24, kind: input, shape index: {}]
  %s25 = inlined_call_operand.<no memory space> [shape: f32[1,1], index: 25, kind: input, shape index: {}]
  %s26 = inlined_call_operand.hbm [shape: f32[32,32], index: 26, kind: input, shape index: {}]
  %s27 = inlined_call_operand.hbm [shape: f32[1,32], index: 27, kind: input, shape index: {}]
  %s28 = inlined_call_operand.vmem [shape: f32[2,32], index: 28, kind: output, shape index: {}]
  %s29 = sld [smem:[#allocation0]]
  $region162: #{classifier_forward.3} parent=0
    _
  %s31 = ssub.s32 1, %s29
  %s32 = scalar_select 0, %s31, %s29
  %v33 = vstv %s25
  %34 = vst [vmem:[#allocation2] sm:$0x1] %v33
  $region1: #{classifier_forward.3} parent=0
    #allocation3 [shape = 'u8[65536]{0}', space=vmem, size = 0x10000, scoped, tag = 'input window, operand 8, single buffered']
    #allocation4 [shape = 's32[1]{0}', space=sflag, size = 0x4, scoped, tag = 'scoped memory for classifier_forward.3']
    #allocation5 [shape = 'u8[65536]{0}', space=vmem, size = 0x10000, scoped, tag = 'input window, operand 10, single buffered']
    #allocation6 [shape = 's32[1]{0}', space=sflag, size = 0x4, scoped, tag = 'scoped memory for classifier_forward.3']
    #allocation7 [shape = 'u8[65536]{0}', space=vmem, size = 0x10000, scoped, tag = 'input window, operand 12, single buffered']
    #allocation8 [shape = 'u8[65536]{0}', space=vmem, size = 0x10000, scoped, tag = 'input window, operand 14, single buffered']
    #allocation9 [shape = 's32[1]{0}', space=sflag, size = 0x4, scoped, tag = 'scoped memory for classifier_forward.3']
    #allocation10 [shape = 'u8[2048]{0}', space=vmem, size = 0x800, scoped, tag = 'input window, operand 19, single buffered']
    #allocation11 [shape = 'u8[512]{0}', space=vmem, size = 0x400, scoped, tag = 'input window, operand 20, single buffered']
    #allocation12 [shape = 's32[1]{0}', space=sflag, size = 0x4, scoped, tag = 'scoped memory for classifier_forward.3']
    #allocation13 [shape = 'u8[512]{0}', space=vmem, size = 0x400, scoped, tag = 'input window, operand 21, single buffered']
    #allocation14 [shape = 'u8[512]{0}', space=vmem, size = 0x400, scoped, tag = 'input window, operand 23, single buffered']
    #allocation15 [shape = 's32[1]{0}', space=sflag, size = 0x4, scoped, tag = 'scoped memory for classifier_forward.3']
    #allocation16 [shape = 'u8[16384]{0}', space=vmem, size = 0x4000, scoped, tag = 'input window, operand 26, single buffered']
    #allocation17 [shape = 'u8[512]{0}', space=vmem, size = 0x400, scoped, tag = 'input window, operand 27, single buffered']
    #allocation18 [shape = 's32[1]{0}', space=sflag, size = 0x4, scoped, tag = 'scoped memory for classifier_forward.3']
    %35 = vsyncpa [#allocation4], 0
    %36 = vsyncpa [#allocation6], 0
    %37 = vsyncpa [#allocation9], 0
    %38 = vsyncpa [#allocation12], 0
    %39 = vsyncpa [#allocation15], 0
    %40 = vsyncpa [#allocation18], 0
    // Predicated region
    $region2: #{classifier_forward.3} parent=1 // pred_check
      _
    $region3: #{classifier_forward.3} parent=1 // pred_check_branch
      %42 = sbr.rel (0) target = $region5
    $region4: #{classifier_forward.3} parent=1 // pred_region
      _
    $region5: #{classifier_forward.3} parent=1 // pred_fallthru
      _
    // Predicated region
    $region6: #{classifier_forward.3} parent=1 // pred_check
      _
    $region7: #{classifier_forward.3} parent=1 // pred_check_branch
      %44 = sbr.rel (0) target = $region9
    $region8: #{classifier_forward.3} parent=1 // pred_region
      _
    $region9: #{classifier_forward.3} parent=1 // pred_fallthru
      _
    // Predicated region
    $region10: #{classifier_forward.3} parent=1 // pred_check
      _
    $region11: #{classifier_forward.3} parent=1 // pred_check_branch
      %46 = sbr.rel (0) target = $region13
    $region12: #{classifier_forward.3} parent=1 // pred_region
      _
    $region13: #{classifier_forward.3} parent=1 // pred_fallthru
      _
    // Predicated region
    $region14: #{classifier_forward.3} parent=1 // pred_check
      _
    $region15: #{classifier_forward.3} parent=1 // pred_check_branch
      %48 = sbr.rel (0) target = $region17
    $region16: #{classifier_forward.3} parent=1 // pred_region
      _
    $region17: #{classifier_forward.3} parent=1 // pred_fallthru
      _
    // Predicated region
    $region18: #{classifier_forward.3} parent=1 // pred_check
      _
    $region19: #{classifier_forward.3} parent=1 // pred_check_branch
      %50 = sbr.rel (0) target = $region21
    $region20: #{classifier_forward.3} parent=1 // pred_region
      _
    $region21: #{classifier_forward.3} parent=1 // pred_fallthru
      _
    // Predicated region
    $region22: #{classifier_forward.3} parent=1 // pred_check
      _
    $region23: #{classifier_forward.3} parent=1 // pred_check_branch
      %52 = sbr.rel (0) target = $region25
    $region24: #{classifier_forward.3} parent=1 // pred_region
      _
    $region25: #{classifier_forward.3} parent=1 // pred_fallthru
      _
    // Predicated region
    $region26: #{classifier_forward.3} parent=1 // pred_check
      _
    $region27: #{classifier_forward.3} parent=1 // pred_check_branch
      %54 = sbr.rel (0) target = $region29
    $region28: #{classifier_forward.3} parent=1 // pred_region
      _
    $region29: #{classifier_forward.3} parent=1 // pred_fallthru
      _
    // Predicated region
    $region30: #{classifier_forward.3} parent=1 // pred_check
      _
    $region31: #{classifier_forward.3} parent=1 // pred_check_branch
      %56 = sbr.rel (0) target = $region33
    $region32: #{classifier_forward.3} parent=1 // pred_region
      _
    $region33: #{classifier_forward.3} parent=1 // pred_fallthru
      _
    // Predicated region
    $region34: #{classifier_forward.3} parent=1 // pred_check
      _
    $region35: #{classifier_forward.3} parent=1 // pred_check_branch
      %58 = sbr.rel (0) target = $region37
    $region36: #{classifier_forward.3} parent=1 // pred_region
      %60 = vsyncadd [#allocation4], 0
      %s61 = sshll.u32 %s8, 4
      %s62 = int_to_ptr.hbm [resolvable:$true] %s61
      %s63 = sshll.u32 [#allocation3], 4
      %s64 = int_to_ptr.vmem [resolvable:$true] %s63
      %69 = dma.hbm_to_vmem [thread:$0]  %s62, 2048, %s64, [#allocation4], 128, 128, 8
    $region37: #{classifier_forward.3} parent=1 // pred_fallthru
      _
    // Predicated region
    $region38: #{classifier_forward.3} parent=1 // pred_check
      _
    $region39: #{classifier_forward.3} parent=1 // pred_check_branch
      %71 = sbr.rel (0) target = $region41
    $region40: #{classifier_forward.3} parent=1 // pred_region
      _
    $region41: #{classifier_forward.3} parent=1 // pred_fallthru
      _
    // Predicated region
    $region42: #{classifier_forward.3} parent=1 // pred_check
      _
    $region43: #{classifier_forward.3} parent=1 // pred_check_branch
      %73 = sbr.rel (0) target = $region45
    $region44: #{classifier_forward.3} parent=1 // pred_region
      %75 = vsyncadd [#allocation6], 0
      %s76 = sshll.u32 %s10, 4
      %s77 = int_to_ptr.hbm [resolvable:$true] %s76
      %s78 = sshll.u32 [#allocation5], 4
      %s79 = int_to_ptr.vmem [resolvable:$true] %s78
      %84 = dma.hbm_to_vmem [thread:$0]  %s77, 2048, %s79, [#allocation6], 128, 128, 8
    $region45: #{classifier_forward.3} parent=1 // pred_fallthru
      _
    // Predicated region
    $region46: #{classifier_forward.3} parent=1 // pred_check
      _
    $region47: #{classifier_forward.3} parent=1 // pred_check_branch
      %86 = sbr.rel (0) target = $region49
    $region48: #{classifier_forward.3} parent=1 // pred_region
      _
    $region49: #{classifier_forward.3} parent=1 // pred_fallthru
      _
    // Predicated region
    $region50: #{classifier_forward.3} parent=1 // pred_check
      _
    $region51: #{classifier_forward.3} parent=1 // pred_check_branch
      %88 = sbr.rel (0) target = $region53
    $region52: #{classifier_forward.3} parent=1 // pred_region
      %90 = vsyncadd [#allocation6], 0
      %s91 = sshll.u32 %s12, 4
      %s92 = int_to_ptr.hbm [resolvable:$true] %s91
      %s93 = sshll.u32 [#allocation7], 4
      %s94 = int_to_ptr.vmem [resolvable:$true] %s93
      %99 = dma.hbm_to_vmem [thread:$0]  %s92, 2048, %s94, [#allocation6], 128, 128, 8
    $region53: #{classifier_forward.3} parent=1 // pred_fallthru
      _
    // Predicated region
    $region54: #{classifier_forward.3} parent=1 // pred_check
      _
    $region55: #{classifier_forward.3} parent=1 // pred_check_branch
      %101 = sbr.rel (0) target = $region57
    $region56: #{classifier_forward.3} parent=1 // pred_region
      _
    $region57: #{classifier_forward.3} parent=1 // pred_fallthru
      _
    // Predicated region
    $region58: #{classifier_forward.3} parent=1 // pred_check
      _
    $region59: #{classifier_forward.3} parent=1 // pred_check_branch
      %103 = sbr.rel (0) target = $region61
    $region60: #{classifier_forward.3} parent=1 // pred_region
      %105 = vsyncadd [#allocation9], 0
      %s106 = sshll.u32 %s14, 4
      %s107 = int_to_ptr.hbm [resolvable:$true] %s106
      %s108 = sshll.u32 [#allocation8], 4
      %s109 = int_to_ptr.vmem [resolvable:$true] %s108
      %114 = dma.hbm_to_vmem [thread:$0]  %s107, 2048, %s109, [#allocation9], 128, 128, 8
    $region61: #{classifier_forward.3} parent=1 // pred_fallthru
      _
    // Predicated region
    $region62: #{classifier_forward.3} parent=1 // pred_check
      _
    $region63: #{classifier_forward.3} parent=1 // pred_check_branch
      %116 = sbr.rel (0) target = $region65
    $region64: #{classifier_forward.3} parent=1 // pred_region
      _
    $region65: #{classifier_forward.3} parent=1 // pred_fallthru
      _
    // Predicated region
    $region66: #{classifier_forward.3} parent=1 // pred_check
      _
    $region67: #{classifier_forward.3} parent=1 // pred_check_branch
      %118 = sbr.rel (0) target = $region69
    $region68: #{classifier_forward.3} parent=1 // pred_region
      _
    $region69: #{classifier_forward.3} parent=1 // pred_fallthru
      _
    // Predicated region
    $region70: #{classifier_forward.3} parent=1 // pred_check
      _
    $region71: #{classifier_forward.3} parent=1 // pred_check_branch
      %120 = sbr.rel (0) target = $region73
    $region72: #{classifier_forward.3} parent=1 // pred_region
      _
    $region73: #{classifier_forward.3} parent=1 // pred_fallthru
      _
    // Predicated region
    $region74: #{classifier_forward.3} parent=1 // pred_check
      _
    $region75: #{classifier_forward.3} parent=1 // pred_check_branch
      %122 = sbr.rel (0) target = $region77
    $region76: #{classifier_forward.3} parent=1 // pred_region
      _
    $region77: #{classifier_forward.3} parent=1 // pred_fallthru
      _
    // Predicated region
    $region78: #{classifier_forward.3} parent=1 // pred_check
      _
    $region79: #{classifier_forward.3} parent=1 // pred_check_branch
      %124 = sbr.rel (0) target = $region81
    $region80: #{classifier_forward.3} parent=1 // pred_region
      %126 = vsyncadd [#allocation9], 0
      %s128 = sshll.u32 %s19, 4
      %s129 = int_to_ptr.hbm [resolvable:$true] %s128
      %s130 = sshll.u32 [#allocation10], 4
      %s131 = int_to_ptr.vmem [resolvable:$true] %s130
      %133 = dma.hbm_to_vmem [thread:$0]  %s129, 64, %s131, [#allocation9]
    $region81: #{classifier_forward.3} parent=1 // pred_fallthru
      _
    // Predicated region
    $region82: #{classifier_forward.3} parent=1 // pred_check
      _
    $region83: #{classifier_forward.3} parent=1 // pred_check_branch
      %135 = sbr.rel (0) target = $region85
    $region84: #{classifier_forward.3} parent=1 // pred_region
      %137 = vsyncadd [#allocation12], 0
      %s139 = sshll.u32 %s20, 4
      %s140 = int_to_ptr.hbm [resolvable:$true] %s139
      %s141 = sshll.u32 [#allocation11], 4
      %s142 = int_to_ptr.vmem [resolvable:$true] %s141
      %144 = dma.hbm_to_vmem [thread:$0]  %s140, 16, %s142, [#allocation12]
    $region85: #{classifier_forward.3} parent=1 // pred_fallthru
      _
    // Predicated region
    $region86: #{classifier_forward.3} parent=1 // pred_check
      _
    $region87: #{classifier_forward.3} parent=1 // pred_check_branch
      %146 = sbr.rel (0) target = $region89
    $region88: #{classifier_forward.3} parent=1 // pred_region
      %148 = vsyncadd [#allocation12], 0
      %s150 = sshll.u32 %s21, 4
      %s151 = int_to_ptr.hbm [resolvable:$true] %s150
      %s152 = sshll.u32 [#allocation13], 4
      %s153 = int_to_ptr.vmem [resolvable:$true] %s152
      %155 = dma.hbm_to_vmem [thread:$0]  %s151, 16, %s153, [#allocation12]
    $region89: #{classifier_forward.3} parent=1 // pred_fallthru
      _
    // Predicated region
    $region90: #{classifier_forward.3} parent=1 // pred_check
      _
    $region91: #{classifier_forward.3} parent=1 // pred_check_branch
      %157 = sbr.rel (0) target = $region93
    $region92: #{classifier_forward.3} parent=1 // pred_region
      _
    $region93: #{classifier_forward.3} parent=1 // pred_fallthru
      _
    // Predicated region
    $region94: #{classifier_forward.3} parent=1 // pred_check
      _
    $region95: #{classifier_forward.3} parent=1 // pred_check_branch
      %159 = sbr.rel (0) target = $region97
    $region96: #{classifier_forward.3} parent=1 // pred_region
      %161 = vsyncadd [#allocation15], 0
      %s163 = sshll.u32 %s23, 4
      %s164 = int_to_ptr.hbm [resolvable:$true] %s163
      %s165 = sshll.u32 [#allocation14], 4
      %s166 = int_to_ptr.vmem [resolvable:$true] %s165
      %168 = dma.hbm_to_vmem [thread:$0]  %s164, 16, %s166, [#allocation15]
    $region97: #{classifier_forward.3} parent=1 // pred_fallthru
      _
    // Predicated region
    $region98: #{classifier_forward.3} parent=1 // pred_check
      _
    $region99: #{classifier_forward.3} parent=1 // pred_check_branch
      %170 = sbr.rel (0) target = $region101
    $region100: #{classifier_forward.3} parent=1 // pred_region
      _
    $region101: #{classifier_forward.3} parent=1 // pred_fallthru
      _
    // Predicated region
    $region102: #{classifier_forward.3} parent=1 // pred_check
      _
    $region103: #{classifier_forward.3} parent=1 // pred_check_branch
      %172 = sbr.rel (0) target = $region105
    $region104: #{classifier_forward.3} parent=1 // pred_region
      _
    $region105: #{classifier_forward.3} parent=1 // pred_fallthru
      _
    // Predicated region
    $region106: #{classifier_forward.3} parent=1 // pred_check
      _
    $region107: #{classifier_forward.3} parent=1 // pred_check_branch
      %174 = sbr.rel (0) target = $region109
    $region108: #{classifier_forward.3} parent=1 // pred_region
      %176 = vsyncadd [#allocation15], 0
      %s177 = sshll.u32 %s26, 4
      %s178 = int_to_ptr.hbm [resolvable:$true] %s177
      %s179 = sshll.u32 [#allocation16], 4
      %s180 = int_to_ptr.vmem [resolvable:$true] %s179
      %185 = dma.hbm_to_vmem [thread:$0]  %s178, 512, %s180, [#allocation15], 128, 128, 8
    $region109: #{classifier_forward.3} parent=1 // pred_fallthru
      _
    // Predicated region
    $region110: #{classifier_forward.3} parent=1 // pred_check
      _
    $region111: #{classifier_forward.3} parent=1 // pred_check_branch
      %187 = sbr.rel (0) target = $region113
    $region112: #{classifier_forward.3} parent=1 // pred_region
      %189 = vsyncadd [#allocation18], 0
      %s191 = sshll.u32 %s27, 4
      %s192 = int_to_ptr.hbm [resolvable:$true] %s191
      %s193 = sshll.u32 [#allocation17], 4
      %s194 = int_to_ptr.vmem [resolvable:$true] %s193
      %196 = dma.hbm_to_vmem [thread:$0]  %s192, 16, %s194, [#allocation18]
    $region113: #{classifier_forward.3} parent=1 // pred_fallthru
      _
    // Predicated region
    $region114: #{classifier_forward.3} parent=1 // pred_check
      _
    $region115: #{classifier_forward.3} parent=1 // pred_check_branch
      %198 = sbr.rel (0) target = $region117
    $region116: #{classifier_forward.3} parent=1 // pred_region
      %200 = dma.done [#allocation4], 2048
    $region117: #{classifier_forward.3} parent=1 // pred_fallthru
      _
    // Predicated region
    $region118: #{classifier_forward.3} parent=1 // pred_check
      _
    $region119: #{classifier_forward.3} parent=1 // pred_check_branch
      %202 = sbr.rel (0) target = $region121
    $region120: #{classifier_forward.3} parent=1 // pred_region
      %204 = dma.done [#allocation6], 2048
    $region121: #{classifier_forward.3} parent=1 // pred_fallthru
      _
    // Predicated region
    $region122: #{classifier_forward.3} parent=1 // pred_check
      _
    $region123: #{classifier_forward.3} parent=1 // pred_check_branch
      %206 = sbr.rel (0) target = $region125
    $region124: #{classifier_forward.3} parent=1 // pred_region
      %208 = dma.done [#allocation6], 2048
    $region125: #{classifier_forward.3} parent=1 // pred_fallthru
      _
    // Predicated region
    $region126: #{classifier_forward.3} parent=1 // pred_check
      _
    $region127: #{classifier_forward.3} parent=1 // pred_check_branch
      %210 = sbr.rel (0) target = $region129
    $region128: #{classifier_forward.3} parent=1 // pred_region
      %212 = dma.done [#allocation9], 2048
    $region129: #{classifier_forward.3} parent=1 // pred_fallthru
      _
    // Predicated region
    $region130: #{classifier_forward.3} parent=1 // pred_check
      _
    $region131: #{classifier_forward.3} parent=1 // pred_check_branch
      %214 = sbr.rel (0) target = $region133
    $region132: #{classifier_forward.3} parent=1 // pred_region
      %216 = dma.done [#allocation9], 64
    $region133: #{classifier_forward.3} parent=1 // pred_fallthru
      _
    // Predicated region
    $region134: #{classifier_forward.3} parent=1 // pred_check
      _
    $region135: #{classifier_forward.3} parent=1 // pred_check_branch
      %218 = sbr.rel (0) target = $region137
    $region136: #{classifier_forward.3} parent=1 // pred_region
      %220 = dma.done [#allocation12], 16
    $region137: #{classifier_forward.3} parent=1 // pred_fallthru
      _
    // Predicated region
    $region138: #{classifier_forward.3} parent=1 // pred_check
      _
    $region139: #{classifier_forward.3} parent=1 // pred_check_branch
      %222 = sbr.rel (0) target = $region141
    $region140: #{classifier_forward.3} parent=1 // pred_region
      %224 = dma.done [#allocation12], 16
    $region141: #{classifier_forward.3} parent=1 // pred_fallthru
      _
    // Predicated region
    $region142: #{classifier_forward.3} parent=1 // pred_check
      _
    $region143: #{classifier_forward.3} parent=1 // pred_check_branch
      %226 = sbr.rel (0) target = $region145
    $region144: #{classifier_forward.3} parent=1 // pred_region
      %228 = dma.done [#allocation15], 16
    $region145: #{classifier_forward.3} parent=1 // pred_fallthru
      _
    // Predicated region
    $region146: #{classifier_forward.3} parent=1 // pred_check
      _
    $region147: #{classifier_forward.3} parent=1 // pred_check_branch
      %230 = sbr.rel (0) target = $region149
    $region148: #{classifier_forward.3} parent=1 // pred_region
      %232 = dma.done [#allocation15], 512
    $region149: #{classifier_forward.3} parent=1 // pred_fallthru
      _
    // Predicated region
    $region150: #{classifier_forward.3} parent=1 // pred_check
      _
    $region151: #{classifier_forward.3} parent=1 // pred_check_branch
      %234 = sbr.rel (0) target = $region153
    $region152: #{classifier_forward.3} parent=1 // pred_region
      %236 = dma.done [#allocation18], 16
    $region153: #{classifier_forward.3} parent=1 // pred_fallthru
      _
    %v237 = vld [vmem:[%s0] sm:$0xff]
    %v238 = vld [vmem:[%s0 + $0x8] sm:$0xff]
    %v239 = vld [vmem:[%s2] sm:$0x1]
    %v240 = vld [vmem:[%s3] sm:$0x1]
    %vm241 = vcmask 261120
    %v242 = vsel %vm241, %v237, 0.0
    %243 = vadd.xlane.f32.xlu0 %v242
    %v244 = vpop.xlane.xlu0 %243
    %v245 = vsel %vm241, %v238, 0.0
    %246 = vadd.xlane.f32.xlu0 %v245
    %v247 = vpop.xlane.xlu0 %246
    %v248 = vrcp.pop 32.0
    %v249 = vmul.f32 32.0, %v248
    %v250 = vsub.f32 1.0, %v249
    %v251 = vmul.f32 %v248, %v250
    %v252 = vadd.f32 %v248, %v251
    %vm253 = vweird.f32 %v248
    %v254 = vsel %vm253, %v248, %v252
    %v255 = vmul.f32 %v244, %v254
    %v256 = vmul.f32 %v247, %v254
    %v257 = vsub.f32 %v237, %v255
    %v258 = vsub.f32 %v238, %v256
    %v259 = vmul.f32 %v257, %v257
    %v260 = vmul.f32 %v258, %v258
    %v261 = vsel %vm241, %v259, 0.0
    %262 = vadd.xlane.f32.xlu0 %v261
    %v263 = vpop.xlane.xlu0 %262
    %v264 = vsel %vm241, %v260, 0.0
    %265 = vadd.xlane.f32.xlu0 %v264
    %v266 = vpop.xlane.xlu0 %265
    %v267 = vmul.f32 %v263, %v254
    %v268 = vmul.f32 %v266, %v254
    %v269 = vadd.f32 %v267, 1e-05
    %v270 = vadd.f32 %v268, 1e-05
    %v271 = vrsqrt.pop %v269
    %v272 = vmul.f32 %v271, %v269
    %v273 = vmul.f32 %v272, %v271
    %v274 = vmul.f32 0.5, %v273
    %v275 = vsub.f32 1.5, %v274
    %v276 = vmul.f32 %v271, %v275
    %vm277 = vweird.f32 %v269
    %vm278 = vweird.f32 %v271
    %vm279 = vmor %vm277, %vm278
    %v280 = vsel %vm279, %v271, %v276
    %v281 = vrsqrt.pop %v270
    %v282 = vmul.f32 %v281, %v270
    %v283 = vmul.f32 %v282, %v281
    %v284 = vmul.f32 0.5, %v283
    %v285 = vsub.f32 1.5, %v284
    %v286 = vmul.f32 %v281, %v285
    %vm287 = vweird.f32 %v270
    %vm288 = vweird.f32 %v281
    %vm289 = vmor %vm287, %vm288
    %v290 = vsel %vm289, %v281, %v286
    %v291 = vmul.f32 %v257, %v280
    %v292 = vmul.f32 %v258, %v290
    %v294 = vperm.slane %v239, 0
    %v296 = vmul.f32 %v291, %v294
    %v297 = vmul.f32 %v292, %v294
    %v299 = vperm.slane %v240, 0
    %v301 = vadd.f32 %v296, %v299
    %v302 = vadd.f32 %v297, %v299
    %v303 = vld [vmem:[%s4] sm:$0xff]
    %v304 = vld [vmem:[%s4 + $0x8] sm:$0xff]
    %v305 = vld [vmem:[%s4 + $0x10] sm:$0xff]
    %v306 = vld [vmem:[%s4 + $0x18] sm:$0xff]
    %v307 = vld [vmem:[%s5] sm:$0x1]
    %v309 = vperm.slane %v307, 0
    %v312 = vsel %vm241, %v301, 0
    %v315 = vsel %vm241, %v302, 0
    %317 = vmatpush.msra.mxu0 0.0
    %318 = vmatpush.msra.mxu0 0.0
    %319 = vmatpush.msra.mxu0 0.0
    %320 = vmatpush.msra.mxu0 0.0
    %321 = vmatpush.msra.mxu0 0.0
    %322 = vmatpush.msra.mxu0 0.0
    %323 = vmatpush.msra.mxu0 0.0
    %324 = vmatpush.msra.mxu0 0.0
    %325 = vmatpush.msra.mxu0 0.0
    %326 = vmatpush.msra.mxu0 0.0
    %327 = vmatpush.msra.mxu0 0.0
    %328 = vmatpush.msra.mxu0 0.0
    %329 = vmatpush.msra.mxu0 %v306
    %330 = vmatpush.msra.mxu0 %v305
    %331 = vmatpush.msra.mxu0 %v304
    %332 = vmatpush.msra.mxu0 %v303
    %333 = vmatmul.f32.gmra.mxu0 %v312
    %v334 = vpop.f32.mrf.mxu0
    %v335 = vadd.f32 %v309, %v334
    %336 = vmatmul.f32.gmra.mxu0 %v315
    %v337 = vpop.f32.mrf.mxu0
    %v338 = vadd.f32 %v309, %v337
    %339 = vdwg.mxu0
    %v340 = vmul.f32 %v335, 0.5
    %v341 = vmul.f32 %v338, 0.5
    %v342 = vmul.f32 %v335, 0.70710677
    %v343 = vmul.f32 %v338, 0.70710677
    %vm344 = vcmp.ge.f32.partialorder %v342, 0.0
    %vm345 = vcmp.ge.f32.partialorder %v343, 0.0
    %v346 = vsel %vm344, 1.0, -1.0
    %v347 = vsel %vm345, 1.0, -1.0
    %v348 = vand.u32 2147483647, %v342
    %v349 = vand.u32 2147483647, %v343
    %v350 = vmul.f32 %v348, 0.3275911
    %v351 = vmul.f32 %v349, 0.3275911
    %v352 = vadd.f32 %v350, 1.0
    %v353 = vadd.f32 %v351, 1.0
    %v354 = vrcp.pop %v352
    %v355 = vmul.f32 %v352, %v354
    %v356 = vsub.f32 1.0, %v355
    %v357 = vmul.f32 %v354, %v356
    %v358 = vadd.f32 %v354, %v357
    %vm359 = vweird.f32 %v352
    %vm360 = vweird.f32 %v354
    %vm361 = vmor %vm359, %vm360
    %v362 = vsel %vm361, %v354, %v358
    %v363 = vand.u32 2147483647, %v352
    %vm364 = vcmp.eq.f32.partialorder %v363, 8.507059e+37
    %v365 = vand.u32 %v352, 2147483648
    %v366 = vor.u32 1.1754944e-38, %v365
    %v367 = vsel %vm364, %v366, %v362
    %v368 = vmul.f32 1.0, %v367
    %v369 = vrcp.pop %v353
    %v370 = vmul.f32 %v353, %v369
    %v371 = vsub.f32 1.0, %v370
    %v372 = vmul.f32 %v369, %v371
    %v373 = vadd.f32 %v369, %v372
    %vm374 = vweird.f32 %v353
    %vm375 = vweird.f32 %v369
    %vm376 = vmor %vm374, %vm375
    %v377 = vsel %vm376, %v369, %v373
    %v378 = vand.u32 2147483647, %v353
    %vm379 = vcmp.eq.f32.partialorder %v378, 8.507059e+37
    %v380 = vand.u32 %v353, 2147483648
    %v381 = vor.u32 1.1754944e-38, %v380
    %v382 = vsel %vm379, %v381, %v377
    %v383 = vmul.f32 1.0, %v382
    %v384 = vmul.f32 %v368, 1.0614054
    %v385 = vmul.f32 %v383, 1.0614054
    %v386 = vadd.f32 %v384, -1.4531521
    %v387 = vadd.f32 %v385, -1.4531521
    %v388 = vmul.f32 %v386, %v368
    %v389 = vmul.f32 %v387, %v383
    %v390 = vadd.f32 %v388, 1.4214138
    %v391 = vadd.f32 %v389, 1.4214138
    %v392 = vmul.f32 %v390, %v368
    %v393 = vmul.f32 %v391, %v383
    %v394 = vadd.f32 %v392, -0.28449672
    %v395 = vadd.f32 %v393, -0.28449672
    %v396 = vmul.f32 %v394, %v368
    %v397 = vmul.f32 %v395, %v383
    %v398 = vadd.f32 %v396, 0.2548296
    %v399 = vadd.f32 %v397, 0.2548296
    %v400 = vmul.f32 %v398, %v368
    %v401 = vmul.f32 %v399, %v383
    %v402 = vsub.f32 0.0, %v348
    %v403 = vsub.f32 0.0, %v349
    %v404 = vmul.f32 %v402, %v348
    %v405 = vmul.f32 %v403, %v349
    %v406 = vmul.f32 %v404, 1.442695
    %v407 = vpow.pop %v406
    %v408 = vmul.f32 %v405, 1.442695
    %v409 = vpow.pop %v408
    %v410 = vmul.f32 %v400, %v407
    %v411 = vmul.f32 %v401, %v409
    %v412 = vsub.f32 1.0, %v410
    %v413 = vsub.f32 1.0, %v411
    %v414 = vmul.f32 %v346, %v412
    %v415 = vmul.f32 %v347, %v413
    %v416 = vadd.f32 %v414, 1.0
    %v417 = vadd.f32 %v415, 1.0
    %v418 = vmul.f32 %v340, %v416
    %v419 = vmul.f32 %v341, %v417
    %v420 = vld [vmem:[%s6] sm:$0xff]
    %v421 = vld [vmem:[%s6 + $0x8] sm:$0xff]
    %v422 = vld [vmem:[%s6 + $0x10] sm:$0xff]
    %v423 = vld [vmem:[%s6 + $0x18] sm:$0xff]
    %v424 = vld [vmem:[%s7] sm:$0x1]
    %v426 = vperm.slane %v424, 0
    %v429 = vsel %vm241, %v418, 0
    %v432 = vsel %vm241, %v419, 0
    %434 = vmatpush.msra.mxu0 0.0
    %435 = vmatpush.msra.mxu0 0.0
    %436 = vmatpush.msra.mxu0 0.0
    %437 = vmatpush.msra.mxu0 0.0
    %438 = vmatpush.msra.mxu0 0.0
    %439 = vmatpush.msra.mxu0 0.0
    %440 = vmatpush.msra.mxu0 0.0
    %441 = vmatpush.msra.mxu0 0.0
    %442 = vmatpush.msra.mxu0 0.0
    %443 = vmatpush.msra.mxu0 0.0
    %444 = vmatpush.msra.mxu0 0.0
    %445 = vmatpush.msra.mxu0 0.0
    %446 = vmatpush.msra.mxu0 %v423
    %447 = vmatpush.msra.mxu0 %v422
    %448 = vmatpush.msra.mxu0 %v421
    %449 = vmatpush.msra.mxu0 %v420
    %450 = vmatmul.f32.gmra.mxu0 %v429
    %v451 = vpop.f32.mrf.mxu0
    %v452 = vadd.f32 %v426, %v451
    %453 = vmatmul.f32.gmra.mxu0 %v432
    %v454 = vpop.f32.mrf.mxu0
    %v455 = vadd.f32 %v426, %v454
    %456 = vdwg.mxu0
    %v457 = vld [vmem:[%s1] sm:$0xff]
    %v458 = vld [vmem:[%s1 + $0x8] sm:$0xff]
    %vm459 = vcmp.gt.f32.partialorder %v457, 0.5
    %vm460 = vcmp.gt.f32.partialorder %v458, 0.5
    %v461 = vld [vmem:[%s9] sm:$0xf]
    %v462 = vld [vmem:[%s11] sm:$0xf]
    %v463 = vld [vmem:[%s13] sm:$0xf]
    %v464 = vld [vmem:[%s15] sm:$0xf]
    %v465 = vld [vmem:[%s16] sm:$0xf]
    %v466 = vld [vmem:[%s17] sm:$0xf]
    %v467 = vld [vmem:[%s18] sm:$0xf]
    %v468 = vld [vmem:[#allocation10] sm:$0xf]
    %v469 = vld [vmem:[#allocation3] sm:$0xff]
    %v470 = vld [vmem:[#allocation3 + $0x8] sm:$0xff]
    %v471 = vld [vmem:[#allocation3 + $0x10] sm:$0xff]
    %v472 = vld [vmem:[#allocation3 + $0x18] sm:$0xff]
    %v473 = vperm.slane %v461, 0
    %v475 = vsel %vm241, %v452, 0
    %v478 = vsel %vm241, %v455, 0
    %480 = vmatpush.msra.mxu0 0.0
    %481 = vmatpush.msra.mxu0 0.0
    %482 = vmatpush.msra.mxu0 0.0
    %483 = vmatpush.msra.mxu0 0.0
    %484 = vmatpush.msra.mxu0 0.0
    %485 = vmatpush.msra.mxu0 0.0
    %486 = vmatpush.msra.mxu0 0.0
    %487 = vmatpush.msra.mxu0 0.0
    %488 = vmatpush.msra.mxu0 0.0
    %489 = vmatpush.msra.mxu0 0.0
    %490 = vmatpush.msra.mxu0 0.0
    %491 = vmatpush.msra.mxu0 0.0
    %492 = vmatpush.msra.mxu0 %v472
    %493 = vmatpush.msra.mxu0 %v471
    %494 = vmatpush.msra.mxu0 %v470
    %495 = vmatpush.msra.mxu0 %v469
    %496 = vmatmul.f32.gmra.mxu0 %v475
    %v497 = vpop.f32.mrf.mxu0
    %v498 = vadd.f32 %v473, %v497
    %499 = vmatmul.f32.gmra.mxu0 %v478
    %v500 = vpop.f32.mrf.mxu0
    %v501 = vadd.f32 %v473, %v500
    %502 = vdwg.mxu0
    %505 = vrot.lane.b32.xlu0 %v498, 96
    %v506 = vpop.permute.xlu0 %505
    %507 = vrot.lane.b32.xlu0 %v501, 96
    %v508 = vpop.permute.xlu0 %507
    %vm509 = vcmask 31744
    %v510 = vsel %vm509, %v498, 0
    %v512 = vsel %vm509, %v501, 0
    %v514 = vsel %vm509, %v506, 0
    %v516 = vsel %vm509, %v508, 0
    %518 = vmatpush.xpose.msra.mxu0 0.0
    %519 = vmatpush.xpose.msra.mxu0 0.0
    %520 = vmatpush.xpose.msra.mxu0 0.0
    %521 = vmatpush.xpose.msra.mxu0 0.0
    %522 = vmatpush.xpose.msra.mxu0 0.0
    %523 = vmatpush.xpose.msra.mxu0 0.0
    %524 = vmatpush.xpose.msra.mxu0 0.0
    %525 = vmatpush.xpose.msra.mxu0 0.0
    %526 = vmatpush.xpose.msra.mxu0 0.0
    %527 = vmatpush.xpose.msra.mxu0 0.0
    %528 = vmatpush.xpose.msra.mxu0 0.0
    %529 = vmatpush.xpose.msra.mxu0 0.0
    %530 = vmatpush.xpose.msra.mxu0 0.0
    %531 = vmatpush.xpose.msra.mxu0 0.0
    %532 = vmatpush.xpose.msra.mxu0 %v516
    %533 = vmatpush.xpose.msra.mxu0 %v514
    %534 = vmatmul.f32.gmra.mxu0 %v510
    %v535 = vpop.f32.mrf.mxu0
    %v536 = vadd.f32 0.0, %v535
    %537 = vmatmul.f32.gmra.mxu0 %v512
    %v538 = vpop.f32.mrf.mxu0
    %v539 = vadd.f32 0.0, %v538
    %540 = vdwg.mxu0
    %v541 = vmul.f32 %v536, 0.5
    %v542 = vmul.f32 %v539, 0.5
    %v543 = vsel %vm459, %v541, -1e+30
    %v544 = vsel %vm460, %v542, -1e+30
    %vm545 = vcmask 130048
    %v546 = vsel %vm545, %v543, -inf
    %547 = vmax.xlane.f32.xlu0 %v546
    %v548 = vpop.xlane.xlu0 %547
    %v549 = vsel %vm545, %v544, -inf
    %550 = vmax.xlane.f32.xlu0 %v549
    %v551 = vpop.xlane.xlu0 %550
    %v552 = vsub.f32 %v543, %v548
    %v553 = vsub.f32 %v544, %v551
    %v554 = vmul.f32 %v552, 1.442695
    %v555 = vpow.pop %v554
    %v556 = vmul.f32 %v553, 1.442695
    %v557 = vpow.pop %v556
    %v558 = vsel %vm545, %v555, 0.0
    %559 = vadd.xlane.f32.xlu0 %v558
    %v560 = vpop.xlane.xlu0 %559
    %v561 = vsel %vm545, %v557, 0.0
    %562 = vadd.xlane.f32.xlu0 %v561
    %v563 = vpop.xlane.xlu0 %562
    %v564 = vrcp.pop %v560
    %v565 = vrcp.pop %v563
    %v566 = vmul.f32 %v555, %v564
    %v567 = vmul.f32 %v557, %v565
    %568 = vrot.lane.b32.xlu0 %v498, 64
    %v569 = vpop.permute.xlu0 %568
    %570 = vrot.lane.b32.xlu0 %v501, 64
    %v571 = vpop.permute.xlu0 %570
    %v575 = vsel %vm545, %v566, 0
    %v578 = vsel %vm545, %v567, 0
    %580 = vmatpush.msra.mxu0 0.0
    %581 = vmatpush.msra.mxu0 0.0
    %582 = vmatpush.msra.mxu0 0.0
    %583 = vmatpush.msra.mxu0 0.0
    %584 = vmatpush.msra.mxu0 0.0
    %585 = vmatpush.msra.mxu0 0.0
    %586 = vmatpush.msra.mxu0 0.0
    %587 = vmatpush.msra.mxu0 0.0
    %588 = vmatpush.msra.mxu0 0.0
    %589 = vmatpush.msra.mxu0 0.0
    %590 = vmatpush.msra.mxu0 0.0
    %591 = vmatpush.msra.mxu0 0.0
    %592 = vmatpush.msra.mxu0 0.0
    %593 = vmatpush.msra.mxu0 0.0
    %594 = vmatpush.msra.mxu0 %v571
    %595 = vmatpush.msra.mxu0 %v569
    %596 = vmatmul.f32.gmra.mxu0 %v575
    %v597 = vpop.f32.mrf.mxu0
    %v598 = vadd.f32 0.0, %v597
    %599 = vmatmul.f32.gmra.mxu0 %v578
    %v600 = vpop.f32.mrf.mxu0
    %v601 = vadd.f32 0.0, %v600
    %602 = vdwg.mxu0
    %603 = vrot.lane.b32.xlu0 %v498, 124
    %v604 = vpop.permute.xlu0 %603
    %605 = vrot.lane.b32.xlu0 %v501, 124
    %v606 = vpop.permute.xlu0 %605
    %607 = vrot.lane.b32.xlu0 %v498, 92
    %v608 = vpop.permute.xlu0 %607
    %609 = vrot.lane.b32.xlu0 %v501, 92
    %v610 = vpop.permute.xlu0 %609
    %v611 = vsel %vm509, %v604, 0
    %v613 = vsel %vm509, %v606, 0
    %v615 = vsel %vm509, %v608, 0
    %v617 = vsel %vm509, %v610, 0
    %619 = vmatpush.xpose.msra.mxu0 0.0
    %620 = vmatpush.xpose.msra.mxu0 0.0
    %621 = vmatpush.xpose.msra.mxu0 0.0
    %622 = vmatpush.xpose.msra.mxu0 0.0
    %623 = vmatpush.xpose.msra.mxu0 0.0
    %624 = vmatpush.xpose.msra.mxu0 0.0
    %625 = vmatpush.xpose.msra.mxu0 0.0
    %626 = vmatpush.xpose.msra.mxu0 0.0
    %627 = vmatpush.xpose.msra.mxu0 0.0
    %628 = vmatpush.xpose.msra.mxu0 0.0
    %629 = vmatpush.xpose.msra.mxu0 0.0
    %630 = vmatpush.xpose.msra.mxu0 0.0
    %631 = vmatpush.xpose.msra.mxu0 0.0
    %632 = vmatpush.xpose.msra.mxu0 0.0
    %633 = vmatpush.xpose.msra.mxu0 %v617
    %634 = vmatpush.xpose.msra.mxu0 %v615
    %635 = vmatmul.f32.gmra.mxu0 %v611
    %v636 = vpop.f32.mrf.mxu0
    %v637 = vadd.f32 0.0, %v636
    %638 = vmatmul.f32.gmra.mxu0 %v613
    %v639 = vpop.f32.mrf.mxu0
    %v640 = vadd.f32 0.0, %v639
    %641 = vdwg.mxu0
    %v642 = vmul.f32 %v637, 0.5
    %v643 = vmul.f32 %v640, 0.5
    %v644 = vsel %vm459, %v642, -1e+30
    %v645 = vsel %vm460, %v643, -1e+30
    %v646 = vsel %vm545, %v644, -inf
    %647 = vmax.xlane.f32.xlu0 %v646
    %v648 = vpop.xlane.xlu0 %647
    %v649 = vsel %vm545, %v645, -inf
    %650 = vmax.xlane.f32.xlu0 %v649
    %v651 = vpop.xlane.xlu0 %650
    %v652 = vsub.f32 %v644, %v648
    %v653 = vsub.f32 %v645, %v651
    %v654 = vmul.f32 %v652, 1.442695
    %v655 = vpow.pop %v654
    %v656 = vmul.f32 %v653, 1.442695
    %v657 = vpow.pop %v656
    %v658 = vsel %vm545, %v655, 0.0
    %659 = vadd.xlane.f32.xlu0 %v658
    %v660 = vpop.xlane.xlu0 %659
    %v661 = vsel %vm545, %v657, 0.0
    %662 = vadd.xlane.f32.xlu0 %v661
    %v663 = vpop.xlane.xlu0 %662
    %v664 = vrcp.pop %v660
    %v665 = vrcp.pop %v663
    %v666 = vmul.f32 %v655, %v664
    %v667 = vmul.f32 %v657, %v665
    %668 = vrot.lane.b32.xlu0 %v498, 60
    %v669 = vpop.permute.xlu0 %668
    %670 = vrot.lane.b32.xlu0 %v501, 60
    %v671 = vpop.permute.xlu0 %670
    %v675 = vsel %vm545, %v666, 0
    %v678 = vsel %vm545, %v667, 0
    %680 = vmatpush.msra.mxu0 0.0
    %681 = vmatpush.msra.mxu0 0.0
    %682 = vmatpush.msra.mxu0 0.0
    %683 = vmatpush.msra.mxu0 0.0
    %684 = vmatpush.msra.mxu0 0.0
    %685 = vmatpush.msra.mxu0 0.0
    %686 = vmatpush.msra.mxu0 0.0
    %687 = vmatpush.msra.mxu0 0.0
    %688 = vmatpush.msra.mxu0 0.0
    %689 = vmatpush.msra.mxu0 0.0
    %690 = vmatpush.msra.mxu0 0.0
    %691 = vmatpush.msra.mxu0 0.0
    %692 = vmatpush.msra.mxu0 0.0
    %693 = vmatpush.msra.mxu0 0.0
    %694 = vmatpush.msra.mxu0 %v671
    %695 = vmatpush.msra.mxu0 %v669
    %696 = vmatmul.f32.gmra.mxu0 %v675
    %v697 = vpop.f32.mrf.mxu0
    %v698 = vadd.f32 0.0, %v697
    %699 = vmatmul.f32.gmra.mxu0 %v678
    %v700 = vpop.f32.mrf.mxu0
    %v701 = vadd.f32 0.0, %v700
    %702 = vdwg.mxu0
    %703 = vrot.lane.b32.xlu0 %v498, 120
    %v704 = vpop.permute.xlu0 %703
    %705 = vrot.lane.b32.xlu0 %v501, 120
    %v706 = vpop.permute.xlu0 %705
    %707 = vrot.lane.b32.xlu0 %v498, 88
    %v708 = vpop.permute.xlu0 %707
    %709 = vrot.lane.b32.xlu0 %v501, 88
    %v710 = vpop.permute.xlu0 %709
    %v711 = vsel %vm509, %v704, 0
    %v713 = vsel %vm509, %v706, 0
    %v715 = vsel %vm509, %v708, 0
    %v717 = vsel %vm509, %v710, 0
    %719 = vmatpush.xpose.msra.mxu0 0.0
    %720 = vmatpush.xpose.msra.mxu0 0.0
    %721 = vmatpush.xpose.msra.mxu0 0.0
    %722 = vmatpush.xpose.msra.mxu0 0.0
    %723 = vmatpush.xpose.msra.mxu0 0.0
    %724 = vmatpush.xpose.msra.mxu0 0.0
    %725 = vmatpush.xpose.msra.mxu0 0.0
    %726 = vmatpush.xpose.msra.mxu0 0.0
    %727 = vmatpush.xpose.msra.mxu0 0.0
    %728 = vmatpush.xpose.msra.mxu0 0.0
    %729 = vmatpush.xpose.msra.mxu0 0.0
    %730 = vmatpush.xpose.msra.mxu0 0.0
    %731 = vmatpush.xpose.msra.mxu0 0.0
    %732 = vmatpush.xpose.msra.mxu0 0.0
    %733 = vmatpush.xpose.msra.mxu0 %v717
    %734 = vmatpush.xpose.msra.mxu0 %v715
    %735 = vmatmul.f32.gmra.mxu0 %v711
    %v736 = vpop.f32.mrf.mxu0
    %v737 = vadd.f32 0.0, %v736
    %738 = vmatmul.f32.gmra.mxu0 %v713
    %v739 = vpop.f32.mrf.mxu0
    %v740 = vadd.f32 0.0, %v739
    %741 = vdwg.mxu0
    %v742 = vmul.f32 %v737, 0.5
    %v743 = vmul.f32 %v740, 0.5
    %v744 = vsel %vm459, %v742, -1e+30
    %v745 = vsel %vm460, %v743, -1e+30
    %v746 = vsel %vm545, %v744, -inf
    %747 = vmax.xlane.f32.xlu0 %v746
    %v748 = vpop.xlane.xlu0 %747
    %v749 = vsel %vm545, %v745, -inf
    %750 = vmax.xlane.f32.xlu0 %v749
    %v751 = vpop.xlane.xlu0 %750
    %v752 = vsub.f32 %v744, %v748
    %v753 = vsub.f32 %v745, %v751
    %v754 = vmul.f32 %v752, 1.442695
    %v755 = vpow.pop %v754
    %v756 = vmul.f32 %v753, 1.442695
    %v757 = vpow.pop %v756
    %v758 = vsel %vm545, %v755, 0.0
    %759 = vadd.xlane.f32.xlu0 %v758
    %v760 = vpop.xlane.xlu0 %759
    %v761 = vsel %vm545, %v757, 0.0
    %762 = vadd.xlane.f32.xlu0 %v761
    %v763 = vpop.xlane.xlu0 %762
    %v764 = vrcp.pop %v760
    %v765 = vrcp.pop %v763
    %v766 = vmul.f32 %v755, %v764
    %v767 = vmul.f32 %v757, %v765
    %768 = vrot.lane.b32.xlu0 %v498, 56
    %v769 = vpop.permute.xlu0 %768
    %770 = vrot.lane.b32.xlu0 %v501, 56
    %v771 = vpop.permute.xlu0 %770
    %v775 = vsel %vm545, %v766, 0
    %v778 = vsel %vm545, %v767, 0
    %780 = vmatpush.msra.mxu0 0.0
    %781 = vmatpush.msra.mxu0 0.0
    %782 = vmatpush.msra.mxu0 0.0
    %783 = vmatpush.msra.mxu0 0.0
    %784 = vmatpush.msra.mxu0 0.0
    %785 = vmatpush.msra.mxu0 0.0
    %786 = vmatpush.msra.mxu0 0.0
    %787 = vmatpush.msra.mxu0 0.0
    %788 = vmatpush.msra.mxu0 0.0
    %789 = vmatpush.msra.mxu0 0.0
    %790 = vmatpush.msra.mxu0 0.0
    %791 = vmatpush.msra.mxu0 0.0
    %792 = vmatpush.msra.mxu0 0.0
    %793 = vmatpush.msra.mxu0 0.0
    %794 = vmatpush.msra.mxu0 %v771
    %795 = vmatpush.msra.mxu0 %v769
    %796 = vmatmul.f32.gmra.mxu0 %v775
    %v797 = vpop.f32.mrf.mxu0
    %v798 = vadd.f32 0.0, %v797
    %799 = vmatmul.f32.gmra.mxu0 %v778
    %v800 = vpop.f32.mrf.mxu0
    %v801 = vadd.f32 0.0, %v800
    %802 = vdwg.mxu0
    %803 = vrot.lane.b32.xlu0 %v498, 116
    %v804 = vpop.permute.xlu0 %803
    %805 = vrot.lane.b32.xlu0 %v501, 116
    %v806 = vpop.permute.xlu0 %805
    %807 = vrot.lane.b32.xlu0 %v498, 84
    %v808 = vpop.permute.xlu0 %807
    %809 = vrot.lane.b32.xlu0 %v501, 84
    %v810 = vpop.permute.xlu0 %809
    %v811 = vsel %vm509, %v804, 0
    %v813 = vsel %vm509, %v806, 0
    %v815 = vsel %vm509, %v808, 0
    %v817 = vsel %vm509, %v810, 0
    %819 = vmatpush.xpose.msra.mxu0 0.0
    %820 = vmatpush.xpose.msra.mxu0 0.0
    %821 = vmatpush.xpose.msra.mxu0 0.0
    %822 = vmatpush.xpose.msra.mxu0 0.0
    %823 = vmatpush.xpose.msra.mxu0 0.0
    %824 = vmatpush.xpose.msra.mxu0 0.0
    %825 = vmatpush.xpose.msra.mxu0 0.0
    %826 = vmatpush.xpose.msra.mxu0 0.0
    %827 = vmatpush.xpose.msra.mxu0 0.0
    %828 = vmatpush.xpose.msra.mxu0 0.0
    %829 = vmatpush.xpose.msra.mxu0 0.0
    %830 = vmatpush.xpose.msra.mxu0 0.0
    %831 = vmatpush.xpose.msra.mxu0 0.0
    %832 = vmatpush.xpose.msra.mxu0 0.0
    %833 = vmatpush.xpose.msra.mxu0 %v817
    %834 = vmatpush.xpose.msra.mxu0 %v815
    %835 = vmatmul.f32.gmra.mxu0 %v811
    %v836 = vpop.f32.mrf.mxu0
    %v837 = vadd.f32 0.0, %v836
    %838 = vmatmul.f32.gmra.mxu0 %v813
    %v839 = vpop.f32.mrf.mxu0
    %v840 = vadd.f32 0.0, %v839
    %841 = vdwg.mxu0
    %v842 = vmul.f32 %v837, 0.5
    %v843 = vmul.f32 %v840, 0.5
    %v844 = vsel %vm459, %v842, -1e+30
    %v845 = vsel %vm460, %v843, -1e+30
    %v846 = vsel %vm545, %v844, -inf
    %847 = vmax.xlane.f32.xlu0 %v846
    %v848 = vpop.xlane.xlu0 %847
    %v849 = vsel %vm545, %v845, -inf
    %850 = vmax.xlane.f32.xlu0 %v849
    %v851 = vpop.xlane.xlu0 %850
    %v852 = vsub.f32 %v844, %v848
    %v853 = vsub.f32 %v845, %v851
    %v854 = vmul.f32 %v852, 1.442695
    %v855 = vpow.pop %v854
    %v856 = vmul.f32 %v853, 1.442695
    %v857 = vpow.pop %v856
    %v858 = vsel %vm545, %v855, 0.0
    %859 = vadd.xlane.f32.xlu0 %v858
    %v860 = vpop.xlane.xlu0 %859
    %v861 = vsel %vm545, %v857, 0.0
    %862 = vadd.xlane.f32.xlu0 %v861
    %v863 = vpop.xlane.xlu0 %862
    %v864 = vrcp.pop %v860
    %v865 = vrcp.pop %v863
    %v866 = vmul.f32 %v855, %v864
    %v867 = vmul.f32 %v857, %v865
    %868 = vrot.lane.b32.xlu0 %v498, 52
    %v869 = vpop.permute.xlu0 %868
    %870 = vrot.lane.b32.xlu0 %v501, 52
    %v871 = vpop.permute.xlu0 %870
    %v875 = vsel %vm545, %v866, 0
    %v878 = vsel %vm545, %v867, 0
    %880 = vmatpush.msra.mxu0 0.0
    %881 = vmatpush.msra.mxu0 0.0
    %882 = vmatpush.msra.mxu0 0.0
    %883 = vmatpush.msra.mxu0 0.0
    %884 = vmatpush.msra.mxu0 0.0
    %885 = vmatpush.msra.mxu0 0.0
    %886 = vmatpush.msra.mxu0 0.0
    %887 = vmatpush.msra.mxu0 0.0
    %888 = vmatpush.msra.mxu0 0.0
    %889 = vmatpush.msra.mxu0 0.0
    %890 = vmatpush.msra.mxu0 0.0
    %891 = vmatpush.msra.mxu0 0.0
    %892 = vmatpush.msra.mxu0 0.0
    %893 = vmatpush.msra.mxu0 0.0
    %894 = vmatpush.msra.mxu0 %v871
    %895 = vmatpush.msra.mxu0 %v869
    %896 = vmatmul.f32.gmra.mxu0 %v875
    %v897 = vpop.f32.mrf.mxu0
    %v898 = vadd.f32 0.0, %v897
    %899 = vmatmul.f32.gmra.mxu0 %v878
    %v900 = vpop.f32.mrf.mxu0
    %v901 = vadd.f32 0.0, %v900
    %902 = vdwg.mxu0
    %903 = vrot.lane.b32.xlu0 %v498, 112
    %v904 = vpop.permute.xlu0 %903
    %905 = vrot.lane.b32.xlu0 %v501, 112
    %v906 = vpop.permute.xlu0 %905
    %907 = vrot.lane.b32.xlu0 %v498, 80
    %v908 = vpop.permute.xlu0 %907
    %909 = vrot.lane.b32.xlu0 %v501, 80
    %v910 = vpop.permute.xlu0 %909
    %v911 = vsel %vm509, %v904, 0
    %v913 = vsel %vm509, %v906, 0
    %v915 = vsel %vm509, %v908, 0
    %v917 = vsel %vm509, %v910, 0
    %919 = vmatpush.xpose.msra.mxu0 0.0
    %920 = vmatpush.xpose.msra.mxu0 0.0
    %921 = vmatpush.xpose.msra.mxu0 0.0
    %922 = vmatpush.xpose.msra.mxu0 0.0
    %923 = vmatpush.xpose.msra.mxu0 0.0
    %924 = vmatpush.xpose.msra.mxu0 0.0
    %925 = vmatpush.xpose.msra.mxu0 0.0
    %926 = vmatpush.xpose.msra.mxu0 0.0
    %927 = vmatpush.xpose.msra.mxu0 0.0
    %928 = vmatpush.xpose.msra.mxu0 0.0
    %929 = vmatpush.xpose.msra.mxu0 0.0
    %930 = vmatpush.xpose.msra.mxu0 0.0
    %931 = vmatpush.xpose.msra.mxu0 0.0
    %932 = vmatpush.xpose.msra.mxu0 0.0
    %933 = vmatpush.xpose.msra.mxu0 %v917
    %934 = vmatpush.xpose.msra.mxu0 %v915
    %935 = vmatmul.f32.gmra.mxu0 %v911
    %v936 = vpop.f32.mrf.mxu0
    %v937 = vadd.f32 0.0, %v936
    %938 = vmatmul.f32.gmra.mxu0 %v913
    %v939 = vpop.f32.mrf.mxu0
    %v940 = vadd.f32 0.0, %v939
    %941 = vdwg.mxu0
    %v942 = vmul.f32 %v937, 0.5
    %v943 = vmul.f32 %v940, 0.5
    %v944 = vsel %vm459, %v942, -1e+30
    %v945 = vsel %vm460, %v943, -1e+30
    %v946 = vsel %vm545, %v944, -inf
    %947 = vmax.xlane.f32.xlu0 %v946
    %v948 = vpop.xlane.xlu0 %947
    %v949 = vsel %vm545, %v945, -inf
    %950 = vmax.xlane.f32.xlu0 %v949
    %v951 = vpop.xlane.xlu0 %950
    %v952 = vsub.f32 %v944, %v948
    %v953 = vsub.f32 %v945, %v951
    %v954 = vmul.f32 %v952, 1.442695
    %v955 = vpow.pop %v954
    %v956 = vmul.f32 %v953, 1.442695
    %v957 = vpow.pop %v956
    %v958 = vsel %vm545, %v955, 0.0
    %959 = vadd.xlane.f32.xlu0 %v958
    %v960 = vpop.xlane.xlu0 %959
    %v961 = vsel %vm545, %v957, 0.0
    %962 = vadd.xlane.f32.xlu0 %v961
    %v963 = vpop.xlane.xlu0 %962
    %v964 = vrcp.pop %v960
    %v965 = vrcp.pop %v963
    %v966 = vmul.f32 %v955, %v964
    %v967 = vmul.f32 %v957, %v965
    %968 = vrot.lane.b32.xlu0 %v498, 48
    %v969 = vpop.permute.xlu0 %968
    %970 = vrot.lane.b32.xlu0 %v501, 48
    %v971 = vpop.permute.xlu0 %970
    %v975 = vsel %vm545, %v966, 0
    %v978 = vsel %vm545, %v967, 0
    %980 = vmatpush.msra.mxu0 0.0
    %981 = vmatpush.msra.mxu0 0.0
    %982 = vmatpush.msra.mxu0 0.0
    %983 = vmatpush.msra.mxu0 0.0
    %984 = vmatpush.msra.mxu0 0.0
    %985 = vmatpush.msra.mxu0 0.0
    %986 = vmatpush.msra.mxu0 0.0
    %987 = vmatpush.msra.mxu0 0.0
    %988 = vmatpush.msra.mxu0 0.0
    %989 = vmatpush.msra.mxu0 0.0
    %990 = vmatpush.msra.mxu0 0.0
    %991 = vmatpush.msra.mxu0 0.0
    %992 = vmatpush.msra.mxu0 0.0
    %993 = vmatpush.msra.mxu0 0.0
    %994 = vmatpush.msra.mxu0 %v971
    %995 = vmatpush.msra.mxu0 %v969
    %996 = vmatmul.f32.gmra.mxu0 %v975
    %v997 = vpop.f32.mrf.mxu0
    %v998 = vadd.f32 0.0, %v997
    %999 = vmatmul.f32.gmra.mxu0 %v978
    %v1000 = vpop.f32.mrf.mxu0
    %v1001 = vadd.f32 0.0, %v1000
    %1002 = vdwg.mxu0
    %1003 = vrot.lane.b32.xlu0 %v498, 108
    %v1004 = vpop.permute.xlu0 %1003
    %1005 = vrot.lane.b32.xlu0 %v501, 108
    %v1006 = vpop.permute.xlu0 %1005
    %1007 = vrot.lane.b32.xlu0 %v498, 76
    %v1008 = vpop.permute.xlu0 %1007
    %1009 = vrot.lane.b32.xlu0 %v501, 76
    %v1010 = vpop.permute.xlu0 %1009
    %v1011 = vsel %vm509, %v1004, 0
    %v1013 = vsel %vm509, %v1006, 0
    %v1015 = vsel %vm509, %v1008, 0
    %v1017 = vsel %vm509, %v1010, 0
    %1019 = vmatpush.xpose.msra.mxu0 0.0
    %1020 = vmatpush.xpose.msra.mxu0 0.0
    %1021 = vmatpush.xpose.msra.mxu0 0.0
    %1022 = vmatpush.xpose.msra.mxu0 0.0
    %1023 = vmatpush.xpose.msra.mxu0 0.0
    %1024 = vmatpush.xpose.msra.mxu0 0.0
    %1025 = vmatpush.xpose.msra.mxu0 0.0
    %1026 = vmatpush.xpose.msra.mxu0 0.0
    %1027 = vmatpush.xpose.msra.mxu0 0.0
    %1028 = vmatpush.xpose.msra.mxu0 0.0
    %1029 = vmatpush.xpose.msra.mxu0 0.0
    %1030 = vmatpush.xpose.msra.mxu0 0.0
    %1031 = vmatpush.xpose.msra.mxu0 0.0
    %1032 = vmatpush.xpose.msra.mxu0 0.0
    %1033 = vmatpush.xpose.msra.mxu0 %v1017
    %1034 = vmatpush.xpose.msra.mxu0 %v1015
    %1035 = vmatmul.f32.gmra.mxu0 %v1011
    %v1036 = vpop.f32.mrf.mxu0
    %v1037 = vadd.f32 0.0, %v1036
    %1038 = vmatmul.f32.gmra.mxu0 %v1013
    %v1039 = vpop.f32.mrf.mxu0
    %v1040 = vadd.f32 0.0, %v1039
    %1041 = vdwg.mxu0
    %v1042 = vmul.f32 %v1037, 0.5
    %v1043 = vmul.f32 %v1040, 0.5
    %v1044 = vsel %vm459, %v1042, -1e+30
    %v1045 = vsel %vm460, %v1043, -1e+30
    %v1046 = vsel %vm545, %v1044, -inf
    %1047 = vmax.xlane.f32.xlu0 %v1046
    %v1048 = vpop.xlane.xlu0 %1047
    %v1049 = vsel %vm545, %v1045, -inf
    %1050 = vmax.xlane.f32.xlu0 %v1049
    %v1051 = vpop.xlane.xlu0 %1050
    %v1052 = vsub.f32 %v1044, %v1048
    %v1053 = vsub.f32 %v1045, %v1051
    %v1054 = vmul.f32 %v1052, 1.442695
    %v1055 = vpow.pop %v1054
    %v1056 = vmul.f32 %v1053, 1.442695
    %v1057 = vpow.pop %v1056
    %v1058 = vsel %vm545, %v1055, 0.0
    %1059 = vadd.xlane.f32.xlu0 %v1058
    %v1060 = vpop.xlane.xlu0 %1059
    %v1061 = vsel %vm545, %v1057, 0.0
    %1062 = vadd.xlane.f32.xlu0 %v1061
    %v1063 = vpop.xlane.xlu0 %1062
    %v1064 = vrcp.pop %v1060
    %v1065 = vrcp.pop %v1063
    %v1066 = vmul.f32 %v1055, %v1064
    %v1067 = vmul.f32 %v1057, %v1065
    %1068 = vrot.lane.b32.xlu0 %v498, 44
    %v1069 = vpop.permute.xlu0 %1068
    %1070 = vrot.lane.b32.xlu0 %v501, 44
    %v1071 = vpop.permute.xlu0 %1070
    %v1075 = vsel %vm545, %v1066, 0
    %v1078 = vsel %vm545, %v1067, 0
    %1080 = vmatpush.msra.mxu0 0.0
    %1081 = vmatpush.msra.mxu0 0.0
    %1082 = vmatpush.msra.mxu0 0.0
    %1083 = vmatpush.msra.mxu0 0.0
    %1084 = vmatpush.msra.mxu0 0.0
    %1085 = vmatpush.msra.mxu0 0.0
    %1086 = vmatpush.msra.mxu0 0.0
    %1087 = vmatpush.msra.mxu0 0.0
    %1088 = vmatpush.msra.mxu0 0.0
    %1089 = vmatpush.msra.mxu0 0.0
    %1090 = vmatpush.msra.mxu0 0.0
    %1091 = vmatpush.msra.mxu0 0.0
    %1092 = vmatpush.msra.mxu0 0.0
    %1093 = vmatpush.msra.mxu0 0.0
    %1094 = vmatpush.msra.mxu0 %v1071
    %1095 = vmatpush.msra.mxu0 %v1069
    %1096 = vmatmul.f32.gmra.mxu0 %v1075
    %v1097 = vpop.f32.mrf.mxu0
    %v1098 = vadd.f32 0.0, %v1097
    %1099 = vmatmul.f32.gmra.mxu0 %v1078
    %v1100 = vpop.f32.mrf.mxu0
    %v1101 = vadd.f32 0.0, %v1100
    %1102 = vdwg.mxu0
    %1103 = vrot.lane.b32.xlu0 %v498, 104
    %v1104 = vpop.permute.xlu0 %1103
    %1105 = vrot.lane.b32.xlu0 %v501, 104
    %v1106 = vpop.permute.xlu0 %1105
    %1107 = vrot.lane.b32.xlu0 %v498, 72
    %v1108 = vpop.permute.xlu0 %1107
    %1109 = vrot.lane.b32.xlu0 %v501, 72
    %v1110 = vpop.permute.xlu0 %1109
    %v1111 = vsel %vm509, %v1104, 0
    %v1113 = vsel %vm509, %v1106, 0
    %v1115 = vsel %vm509, %v1108, 0
    %v1117 = vsel %vm509, %v1110, 0
    %1119 = vmatpush.xpose.msra.mxu0 0.0
    %1120 = vmatpush.xpose.msra.mxu0 0.0
    %1121 = vmatpush.xpose.msra.mxu0 0.0
    %1122 = vmatpush.xpose.msra.mxu0 0.0
    %1123 = vmatpush.xpose.msra.mxu0 0.0
    %1124 = vmatpush.xpose.msra.mxu0 0.0
    %1125 = vmatpush.xpose.msra.mxu0 0.0
    %1126 = vmatpush.xpose.msra.mxu0 0.0
    %1127 = vmatpush.xpose.msra.mxu0 0.0
    %1128 = vmatpush.xpose.msra.mxu0 0.0
    %1129 = vmatpush.xpose.msra.mxu0 0.0
    %1130 = vmatpush.xpose.msra.mxu0 0.0
    %1131 = vmatpush.xpose.msra.mxu0 0.0
    %1132 = vmatpush.xpose.msra.mxu0 0.0
    %1133 = vmatpush.xpose.msra.mxu0 %v1117
    %1134 = vmatpush.xpose.msra.mxu0 %v1115
    %1135 = vmatmul.f32.gmra.mxu0 %v1111
    %v1136 = vpop.f32.mrf.mxu0
    %v1137 = vadd.f32 0.0, %v1136
    %1138 = vmatmul.f32.gmra.mxu0 %v1113
    %v1139 = vpop.f32.mrf.mxu0
    %v1140 = vadd.f32 0.0, %v1139
    %1141 = vdwg.mxu0
    %v1142 = vmul.f32 %v1137, 0.5
    %v1143 = vmul.f32 %v1140, 0.5
    %v1144 = vsel %vm459, %v1142, -1e+30
    %v1145 = vsel %vm460, %v1143, -1e+30
    %v1146 = vsel %vm545, %v1144, -inf
    %1147 = vmax.xlane.f32.xlu0 %v1146
    %v1148 = vpop.xlane.xlu0 %1147
    %v1149 = vsel %vm545, %v1145, -inf
    %1150 = vmax.xlane.f32.xlu0 %v1149
    %v1151 = vpop.xlane.xlu0 %1150
    %v1152 = vsub.f32 %v1144, %v1148
    %v1153 = vsub.f32 %v1145, %v1151
    %v1154 = vmul.f32 %v1152, 1.442695
    %v1155 = vpow.pop %v1154
    %v1156 = vmul.f32 %v1153, 1.442695
    %v1157 = vpow.pop %v1156
    %v1158 = vsel %vm545, %v1155, 0.0
    %1159 = vadd.xlane.f32.xlu0 %v1158
    %v1160 = vpop.xlane.xlu0 %1159
    %v1161 = vsel %vm545, %v1157, 0.0
    %1162 = vadd.xlane.f32.xlu0 %v1161
    %v1163 = vpop.xlane.xlu0 %1162
    %v1164 = vrcp.pop %v1160
    %v1165 = vrcp.pop %v1163
    %v1166 = vmul.f32 %v1155, %v1164
    %v1167 = vmul.f32 %v1157, %v1165
    %1168 = vrot.lane.b32.xlu0 %v498, 40
    %v1169 = vpop.permute.xlu0 %1168
    %1170 = vrot.lane.b32.xlu0 %v501, 40
    %v1171 = vpop.permute.xlu0 %1170
    %v1175 = vsel %vm545, %v1166, 0
    %v1178 = vsel %vm545, %v1167, 0
    %1180 = vmatpush.msra.mxu0 0.0
    %1181 = vmatpush.msra.mxu0 0.0
    %1182 = vmatpush.msra.mxu0 0.0
    %1183 = vmatpush.msra.mxu0 0.0
    %1184 = vmatpush.msra.mxu0 0.0
    %1185 = vmatpush.msra.mxu0 0.0
    %1186 = vmatpush.msra.mxu0 0.0
    %1187 = vmatpush.msra.mxu0 0.0
    %1188 = vmatpush.msra.mxu0 0.0
    %1189 = vmatpush.msra.mxu0 0.0
    %1190 = vmatpush.msra.mxu0 0.0
    %1191 = vmatpush.msra.mxu0 0.0
    %1192 = vmatpush.msra.mxu0 0.0
    %1193 = vmatpush.msra.mxu0 0.0
    %1194 = vmatpush.msra.mxu0 %v1171
    %1195 = vmatpush.msra.mxu0 %v1169
    %1196 = vmatmul.f32.gmra.mxu0 %v1175
    %v1197 = vpop.f32.mrf.mxu0
    %v1198 = vadd.f32 0.0, %v1197
    %1199 = vmatmul.f32.gmra.mxu0 %v1178
    %v1200 = vpop.f32.mrf.mxu0
    %v1201 = vadd.f32 0.0, %v1200
    %1202 = vdwg.mxu0
    %1203 = vrot.lane.b32.xlu0 %v498, 100
    %v1204 = vpop.permute.xlu0 %1203
    %1205 = vrot.lane.b32.xlu0 %v501, 100
    %v1206 = vpop.permute.xlu0 %1205
    %1207 = vrot.lane.b32.xlu0 %v498, 68
    %v1208 = vpop.permute.xlu0 %1207
    %1209 = vrot.lane.b32.xlu0 %v501, 68
    %v1210 = vpop.permute.xlu0 %1209
    %v1211 = vsel %vm509, %v1204, 0
    %v1213 = vsel %vm509, %v1206, 0
    %v1215 = vsel %vm509, %v1208, 0
    %v1217 = vsel %vm509, %v1210, 0
    %1219 = vmatpush.xpose.msra.mxu0 0.0
    %1220 = vmatpush.xpose.msra.mxu0 0.0
    %1221 = vmatpush.xpose.msra.mxu0 0.0
    %1222 = vmatpush.xpose.msra.mxu0 0.0
    %1223 = vmatpush.xpose.msra.mxu0 0.0
    %1224 = vmatpush.xpose.msra.mxu0 0.0
    %1225 = vmatpush.xpose.msra.mxu0 0.0
    %1226 = vmatpush.xpose.msra.mxu0 0.0
    %1227 = vmatpush.xpose.msra.mxu0 0.0
    %1228 = vmatpush.xpose.msra.mxu0 0.0
    %1229 = vmatpush.xpose.msra.mxu0 0.0
    %1230 = vmatpush.xpose.msra.mxu0 0.0
    %1231 = vmatpush.xpose.msra.mxu0 0.0
    %1232 = vmatpush.xpose.msra.mxu0 0.0
    %1233 = vmatpush.xpose.msra.mxu0 %v1217
    %1234 = vmatpush.xpose.msra.mxu0 %v1215
    %1235 = vmatmul.f32.gmra.mxu0 %v1211
    %v1236 = vpop.f32.mrf.mxu0
    %v1237 = vadd.f32 0.0, %v1236
    %1238 = vmatmul.f32.gmra.mxu0 %v1213
    %v1239 = vpop.f32.mrf.mxu0
    %v1240 = vadd.f32 0.0, %v1239
    %1241 = vdwg.mxu0
    %v1242 = vmul.f32 %v1237, 0.5
    %v1243 = vmul.f32 %v1240, 0.5
    %v1244 = vsel %vm459, %v1242, -1e+30
    %v1245 = vsel %vm460, %v1243, -1e+30
    %v1246 = vsel %vm545, %v1244, -inf
    %1247 = vmax.xlane.f32.xlu0 %v1246
    %v1248 = vpop.xlane.xlu0 %1247
    %v1249 = vsel %vm545, %v1245, -inf
    %1250 = vmax.xlane.f32.xlu0 %v1249
    %v1251 = vpop.xlane.xlu0 %1250
    %v1252 = vsub.f32 %v1244, %v1248
    %v1253 = vsub.f32 %v1245, %v1251
    %v1254 = vmul.f32 %v1252, 1.442695
    %v1255 = vpow.pop %v1254
    %v1256 = vmul.f32 %v1253, 1.442695
    %v1257 = vpow.pop %v1256
    %v1258 = vsel %vm545, %v1255, 0.0
    %1259 = vadd.xlane.f32.xlu0 %v1258
    %v1260 = vpop.xlane.xlu0 %1259
    %v1261 = vsel %vm545, %v1257, 0.0
    %1262 = vadd.xlane.f32.xlu0 %v1261
    %v1263 = vpop.xlane.xlu0 %1262
    %v1264 = vrcp.pop %v1260
    %v1265 = vrcp.pop %v1263
    %v1266 = vmul.f32 %v1255, %v1264
    %v1267 = vmul.f32 %v1257, %v1265
    %1268 = vrot.lane.b32.xlu0 %v498, 36
    %v1269 = vpop.permute.xlu0 %1268
    %1270 = vrot.lane.b32.xlu0 %v501, 36
    %v1271 = vpop.permute.xlu0 %1270
    %v1275 = vsel %vm545, %v1266, 0
    %v1278 = vsel %vm545, %v1267, 0
    %1280 = vmatpush.msra.mxu0 0.0
    %1281 = vmatpush.msra.mxu0 0.0
    %1282 = vmatpush.msra.mxu0 0.0
    %1283 = vmatpush.msra.mxu0 0.0
    %1284 = vmatpush.msra.mxu0 0.0
    %1285 = vmatpush.msra.mxu0 0.0
    %1286 = vmatpush.msra.mxu0 0.0
    %1287 = vmatpush.msra.mxu0 0.0
    %1288 = vmatpush.msra.mxu0 0.0
    %1289 = vmatpush.msra.mxu0 0.0
    %1290 = vmatpush.msra.mxu0 0.0
    %1291 = vmatpush.msra.mxu0 0.0
    %1292 = vmatpush.msra.mxu0 0.0
    %1293 = vmatpush.msra.mxu0 0.0
    %1294 = vmatpush.msra.mxu0 %v1271
    %1295 = vmatpush.msra.mxu0 %v1269
    %1296 = vmatmul.f32.gmra.mxu0 %v1275
    %v1297 = vpop.f32.mrf.mxu0
    %v1298 = vadd.f32 0.0, %v1297
    %1299 = vmatmul.f32.gmra.mxu0 %v1278
    %v1300 = vpop.f32.mrf.mxu0
    %v1301 = vadd.f32 0.0, %v1300
    %1302 = vdwg.mxu0
    %1305 = vrot.lane.b32.xlu0 %v698, 4
    %v1306 = vpop.permute.xlu0 %1305
    %1307 = vrot.lane.b32.xlu0 %v701, 4
    %v1308 = vpop.permute.xlu0 %1307
    %1313 = vrot.lane.b32.xlu0 %v798, 8
    %v1314 = vpop.permute.xlu0 %1313
    %1315 = vrot.lane.b32.xlu0 %v801, 8
    %v1316 = vpop.permute.xlu0 %1315
    %1321 = vrot.lane.b32.xlu0 %v898, 12
    %v1322 = vpop.permute.xlu0 %1321
    %1323 = vrot.lane.b32.xlu0 %v901, 12
    %v1324 = vpop.permute.xlu0 %1323
    %1329 = vrot.lane.b32.xlu0 %v998, 16
    %v1330 = vpop.permute.xlu0 %1329
    %1331 = vrot.lane.b32.xlu0 %v1001, 16
    %v1332 = vpop.permute.xlu0 %1331
    %1337 = vrot.lane.b32.xlu0 %v1098, 20
    %v1338 = vpop.permute.xlu0 %1337
    %1339 = vrot.lane.b32.xlu0 %v1101, 20
    %v1340 = vpop.permute.xlu0 %1339
    %1345 = vrot.lane.b32.xlu0 %v1198, 24
    %v1346 = vpop.permute.xlu0 %1345
    %1347 = vrot.lane.b32.xlu0 %v1201, 24
    %v1348 = vpop.permute.xlu0 %1347
    %1353 = vrot.lane.b32.xlu0 %v1298, 28
    %v1354 = vpop.permute.xlu0 %1353
    %1355 = vrot.lane.b32.xlu0 %v1301, 28
    %v1356 = vpop.permute.xlu0 %1355
    %v1359 = vsel %vm509, %v598, %v1306
    %v1360 = vsel %vm509, %v601, %v1308
    %vm1361 = vcmask 64512
    %v1362 = vsel %vm1361, %v1359, %v1314
    %v1363 = vsel %vm1361, %v1360, %v1316
    %vm1364 = vcmask 97280
    %v1365 = vsel %vm1364, %v1362, %v1322
    %v1366 = vsel %vm1364, %v1363, %v1324
    %v1367 = vsel %vm545, %v1365, %v1330
    %v1368 = vsel %vm545, %v1366, %v1332
    %vm1369 = vcmask 162816
    %v1370 = vsel %vm1369, %v1367, %v1338
    %v1371 = vsel %vm1369, %v1368, %v1340
    %vm1372 = vcmask 195584
    %v1373 = vsel %vm1372, %v1370, %v1346
    %v1374 = vsel %vm1372, %v1371, %v1348
    %vm1375 = vcmask 228352
    %v1376 = vsel %vm1375, %v1373, %v1354
    %v1377 = vsel %vm1375, %v1374, %v1356
    %v1378 = vld [vmem:[#allocation5] sm:$0xff]
    %v1379 = vld [vmem:[#allocation5 + $0x8] sm:$0xff]
    %v1380 = vld [vmem:[#allocation5 + $0x10] sm:$0xff]
    %v1381 = vld [vmem:[#allocation5 + $0x18] sm:$0xff]
    %v1382 = vperm.slane %v462, 0
    %v1384 = vsel %vm241, %v1376, 0
    %v1387 = vsel %vm241, %v1377, 0
    %1389 = vmatpush.msra.mxu0 0.0
    %1390 = vmatpush.msra.mxu0 0.0
    %1391 = vmatpush.msra.mxu0 0.0
    %1392 = vmatpush.msra.mxu0 0.0
    %1393 = vmatpush.msra.mxu0 0.0
    %1394 = vmatpush.msra.mxu0 0.0
    %1395 = vmatpush.msra.mxu0 0.0
    %1396 = vmatpush.msra.mxu0 0.0
    %1397 = vmatpush.msra.mxu0 0.0
    %1398 = vmatpush.msra.mxu0 0.0
    %1399 = vmatpush.msra.mxu0 0.0
    %1400 = vmatpush.msra.mxu0 0.0
    %1401 = vmatpush.msra.mxu0 %v1381
    %1402 = vmatpush.msra.mxu0 %v1380
    %1403 = vmatpush.msra.mxu0 %v1379
    %1404 = vmatpush.msra.mxu0 %v1378
    %1405 = vmatmul.f32.gmra.mxu0 %v1384
    %v1406 = vpop.f32.mrf.mxu0
    %v1407 = vadd.f32 %v1382, %v1406
    %1408 = vmatmul.f32.gmra.mxu0 %v1387
    %v1409 = vpop.f32.mrf.mxu0
    %v1410 = vadd.f32 %v1382, %v1409
    %1411 = vdwg.mxu0
    %v1412 = vadd.f32 %v452, %v1407
    %v1413 = vadd.f32 %v455, %v1410
    %v1414 = vsel %vm241, %v1412, 0.0
    %1415 = vadd.xlane.f32.xlu0 %v1414
    %v1416 = vpop.xlane.xlu0 %1415
    %v1417 = vsel %vm241, %v1413, 0.0
    %1418 = vadd.xlane.f32.xlu0 %v1417
    %v1419 = vpop.xlane.xlu0 %1418
    %v1420 = vmul.f32 %v1416, %v254
    %v1421 = vmul.f32 %v1419, %v254
    %v1422 = vsub.f32 %v1412, %v1420
    %v1423 = vsub.f32 %v1413, %v1421
    %v1424 = vmul.f32 %v1422, %v1422
    %v1425 = vmul.f32 %v1423, %v1423
    %v1426 = vsel %vm241, %v1424, 0.0
    %1427 = vadd.xlane.f32.xlu0 %v1426
    %v1428 = vpop.xlane.xlu0 %1427
    %v1429 = vsel %vm241, %v1425, 0.0
    %1430 = vadd.xlane.f32.xlu0 %v1429
    %v1431 = vpop.xlane.xlu0 %1430
    %v1432 = vmul.f32 %v1428, %v254
    %v1433 = vmul.f32 %v1431, %v254
    %v1434 = vadd.f32 %v1432, 1e-05
    %v1435 = vadd.f32 %v1433, 1e-05
    %v1436 = vrsqrt.pop %v1434
    %v1437 = vmul.f32 %v1436, %v1434
    %v1438 = vmul.f32 %v1437, %v1436
    %v1439 = vmul.f32 0.5, %v1438
    %v1440 = vsub.f32 1.5, %v1439
    %v1441 = vmul.f32 %v1436, %v1440
    %vm1442 = vweird.f32 %v1434
    %vm1443 = vweird.f32 %v1436
    %vm1444 = vmor %vm1442, %vm1443
    %v1445 = vsel %vm1444, %v1436, %v1441
    %v1446 = vrsqrt.pop %v1435
    %v1447 = vmul.f32 %v1446, %v1435
    %v1448 = vmul.f32 %v1447, %v1446
    %v1449 = vmul.f32 0.5, %v1448
    %v1450 = vsub.f32 1.5, %v1449
    %v1451 = vmul.f32 %v1446, %v1450
    %vm1452 = vweird.f32 %v1435
    %vm1453 = vweird.f32 %v1446
    %vm1454 = vmor %vm1452, %vm1453
    %v1455 = vsel %vm1454, %v1446, %v1451
    %v1456 = vmul.f32 %v1422, %v1445
    %v1457 = vmul.f32 %v1423, %v1455
    %v1458 = vperm.slane %v465, 0
    %v1459 = vmul.f32 %v1456, %v1458
    %v1460 = vmul.f32 %v1457, %v1458
    %v1461 = vperm.slane %v466, 0
    %v1462 = vadd.f32 %v1459, %v1461
    %v1463 = vadd.f32 %v1460, %v1461
    %v1464 = vld [vmem:[#allocation7] sm:$0xff]
    %v1465 = vld [vmem:[#allocation7 + $0x8] sm:$0xff]
    %v1466 = vld [vmem:[#allocation7 + $0x10] sm:$0xff]
    %v1467 = vld [vmem:[#allocation7 + $0x18] sm:$0xff]
    %v1468 = vperm.slane %v463, 0
    %v1470 = vsel %vm241, %v1462, 0
    %v1473 = vsel %vm241, %v1463, 0
    %1475 = vmatpush.msra.mxu0 0.0
    %1476 = vmatpush.msra.mxu0 0.0
    %1477 = vmatpush.msra.mxu0 0.0
    %1478 = vmatpush.msra.mxu0 0.0
    %1479 = vmatpush.msra.mxu0 0.0
    %1480 = vmatpush.msra.mxu0 0.0
    %1481 = vmatpush.msra.mxu0 0.0
    %1482 = vmatpush.msra.mxu0 0.0
    %1483 = vmatpush.msra.mxu0 0.0
    %1484 = vmatpush.msra.mxu0 0.0
    %1485 = vmatpush.msra.mxu0 0.0
    %1486 = vmatpush.msra.mxu0 0.0
    %1487 = vmatpush.msra.mxu0 %v1467
    %1488 = vmatpush.msra.mxu0 %v1466
    %1489 = vmatpush.msra.mxu0 %v1465
    %1490 = vmatpush.msra.mxu0 %v1464
    %1491 = vmatmul.f32.gmra.mxu0 %v1470
    %v1492 = vpop.f32.mrf.mxu0
    %v1493 = vadd.f32 %v1468, %v1492
    %1494 = vmatmul.f32.gmra.mxu0 %v1473
    %v1495 = vpop.f32.mrf.mxu0
    %v1496 = vadd.f32 %v1468, %v1495
    %1497 = vdwg.mxu0
    %v1498 = vmax.f32 %v1493, 0.0
    %v1499 = vmax.f32 %v1496, 0.0
    %v1500 = vld [vmem:[#allocation8] sm:$0xff]
    %v1501 = vld [vmem:[#allocation8 + $0x8] sm:$0xff]
    %v1502 = vld [vmem:[#allocation8 + $0x10] sm:$0xff]
    %v1503 = vld [vmem:[#allocation8 + $0x18] sm:$0xff]
    %v1504 = vperm.slane %v464, 0
    %v1506 = vsel %vm241, %v1498, 0
    %v1509 = vsel %vm241, %v1499, 0
    %1511 = vmatpush.msra.mxu0 0.0
    %1512 = vmatpush.msra.mxu0 0.0
    %1513 = vmatpush.msra.mxu0 0.0
    %1514 = vmatpush.msra.mxu0 0.0
    %1515 = vmatpush.msra.mxu0 0.0
    %1516 = vmatpush.msra.mxu0 0.0
    %1517 = vmatpush.msra.mxu0 0.0
    %1518 = vmatpush.msra.mxu0 0.0
    %1519 = vmatpush.msra.mxu0 0.0
    %1520 = vmatpush.msra.mxu0 0.0
    %1521 = vmatpush.msra.mxu0 0.0
    %1522 = vmatpush.msra.mxu0 0.0
    %1523 = vmatpush.msra.mxu0 %v1503
    %1524 = vmatpush.msra.mxu0 %v1502
    %1525 = vmatpush.msra.mxu0 %v1501
    %1526 = vmatpush.msra.mxu0 %v1500
    %1527 = vmatmul.f32.gmra.mxu0 %v1506
    %v1528 = vpop.f32.mrf.mxu0
    %v1529 = vadd.f32 %v1504, %v1528
    %1530 = vmatmul.f32.gmra.mxu0 %v1509
    %v1531 = vpop.f32.mrf.mxu0
    %v1532 = vadd.f32 %v1504, %v1531
    %1533 = vdwg.mxu0
    %v1534 = vadd.f32 %v1462, %v1529
    %v1535 = vadd.f32 %v1463, %v1532
    %v1536 = vsel %vm241, %v1534, 0.0
    %1537 = vadd.xlane.f32.xlu0 %v1536
    %v1538 = vpop.xlane.xlu0 %1537
    %v1539 = vsel %vm241, %v1535, 0.0
    %1540 = vadd.xlane.f32.xlu0 %v1539
    %v1541 = vpop.xlane.xlu0 %1540
    %v1542 = vmul.f32 %v1538, %v254
    %v1543 = vmul.f32 %v1541, %v254
    %v1544 = vsub.f32 %v1534, %v1542
    %v1545 = vsub.f32 %v1535, %v1543
    %v1546 = vmul.f32 %v1544, %v1544
    %v1547 = vmul.f32 %v1545, %v1545
    %v1548 = vsel %vm241, %v1546, 0.0
    %1549 = vadd.xlane.f32.xlu0 %v1548
    %v1550 = vpop.xlane.xlu0 %1549
    %v1551 = vsel %vm241, %v1547, 0.0
    %1552 = vadd.xlane.f32.xlu0 %v1551
    %v1553 = vpop.xlane.xlu0 %1552
    %v1554 = vmul.f32 %v1550, %v254
    %v1555 = vmul.f32 %v1553, %v254
    %v1556 = vadd.f32 %v1554, 1e-05
    %v1557 = vadd.f32 %v1555, 1e-05
    %v1558 = vrsqrt.pop %v1556
    %v1559 = vmul.f32 %v1558, %v1556
    %v1560 = vmul.f32 %v1559, %v1558
    %v1561 = vmul.f32 0.5, %v1560
    %v1562 = vsub.f32 1.5, %v1561
    %v1563 = vmul.f32 %v1558, %v1562
    %vm1564 = vweird.f32 %v1556
    %vm1565 = vweird.f32 %v1558
    %vm1566 = vmor %vm1564, %vm1565
    %v1567 = vsel %vm1566, %v1558, %v1563
    %v1568 = vrsqrt.pop %v1557
    %v1569 = vmul.f32 %v1568, %v1557
    %v1570 = vmul.f32 %v1569, %v1568
    %v1571 = vmul.f32 0.5, %v1570
    %v1572 = vsub.f32 1.5, %v1571
    %v1573 = vmul.f32 %v1568, %v1572
    %vm1574 = vweird.f32 %v1557
    %vm1575 = vweird.f32 %v1568
    %vm1576 = vmor %vm1574, %vm1575
    %v1577 = vsel %vm1576, %v1568, %v1573
    %v1578 = vmul.f32 %v1544, %v1567
    %v1579 = vmul.f32 %v1545, %v1577
    %v1580 = vperm.slane %v467, 0
    %v1581 = vmul.f32 %v1578, %v1580
    %v1582 = vmul.f32 %v1579, %v1580
    %v1583 = vperm.slane %v468, 0
    %v1584 = vadd.f32 %v1581, %v1583
    %v1585 = vadd.f32 %v1582, %v1583
    %s1586 = scalar_lea.vmem [#allocation3], 32
    %v1587 = vld [vmem:[%s1586] sm:$0xff]
    %v1588 = vld [vmem:[%s1586 + $0x8] sm:$0xff]
    %v1589 = vld [vmem:[%s1586 + $0x10] sm:$0xff]
    %v1590 = vld [vmem:[%s1586 + $0x18] sm:$0xff]
    %v1591 = vperm.slane %v461, 1
    %v1593 = vsel %vm241, %v1584, 0
    %v1596 = vsel %vm241, %v1585, 0
    %1598 = vmatpush.msra.mxu0 0.0
    %1599 = vmatpush.msra.mxu0 0.0
    %1600 = vmatpush.msra.mxu0 0.0
    %1601 = vmatpush.msra.mxu0 0.0
    %1602 = vmatpush.msra.mxu0 0.0
    %1603 = vmatpush.msra.mxu0 0.0
    %1604 = vmatpush.msra.mxu0 0.0
    %1605 = vmatpush.msra.mxu0 0.0
    %1606 = vmatpush.msra.mxu0 0.0
    %1607 = vmatpush.msra.mxu0 0.0
    %1608 = vmatpush.msra.mxu0 0.0
    %1609 = vmatpush.msra.mxu0 0.0
    %1610 = vmatpush.msra.mxu0 %v1590
    %1611 = vmatpush.msra.mxu0 %v1589
    %1612 = vmatpush.msra.mxu0 %v1588
    %1613 = vmatpush.msra.mxu0 %v1587
    %1614 = vmatmul.f32.gmra.mxu0 %v1593
    %v1615 = vpop.f32.mrf.mxu0
    %v1616 = vadd.f32 %v1591, %v1615
    %1617 = vmatmul.f32.gmra.mxu0 %v1596
    %v1618 = vpop.f32.mrf.mxu0
    %v1619 = vadd.f32 %v1591, %v1618
    %1620 = vdwg.mxu0
    %1623 = vrot.lane.b32.xlu0 %v1616, 96
    %v1624 = vpop.permute.xlu0 %1623
    %1625 = vrot.lane.b32.xlu0 %v1619, 96
    %v1626 = vpop.permute.xlu0 %1625
    %v1627 = vsel %vm509, %v1616, 0
    %v1629 = vsel %vm509, %v1619, 0
    %v1631 = vsel %vm509, %v1624, 0
    %v1633 = vsel %vm509, %v1626, 0
    %1635 = vmatpush.xpose.msra.mxu0 0.0
    %1636 = vmatpush.xpose.msra.mxu0 0.0
    %1637 = vmatpush.xpose.msra.mxu0 0.0
    %1638 = vmatpush.xpose.msra.mxu0 0.0
    %1639 = vmatpush.xpose.msra.mxu0 0.0
    %1640 = vmatpush.xpose.msra.mxu0 0.0
    %1641 = vmatpush.xpose.msra.mxu0 0.0
    %1642 = vmatpush.xpose.msra.mxu0 0.0
    %1643 = vmatpush.xpose.msra.mxu0 0.0
    %1644 = vmatpush.xpose.msra.mxu0 0.0
    %1645 = vmatpush.xpose.msra.mxu0 0.0
    %1646 = vmatpush.xpose.msra.mxu0 0.0
    %1647 = vmatpush.xpose.msra.mxu0 0.0
    %1648 = vmatpush.xpose.msra.mxu0 0.0
    %1649 = vmatpush.xpose.msra.mxu0 %v1633
    %1650 = vmatpush.xpose.msra.mxu0 %v1631
    %1651 = vmatmul.f32.gmra.mxu0 %v1627
    %v1652 = vpop.f32.mrf.mxu0
    %v1653 = vadd.f32 0.0, %v1652
    %1654 = vmatmul.f32.gmra.mxu0 %v1629
    %v1655 = vpop.f32.mrf.mxu0
    %v1656 = vadd.f32 0.0, %v1655
    %1657 = vdwg.mxu0
    %v1658 = vmul.f32 %v1653, 0.5
    %v1659 = vmul.f32 %v1656, 0.5
    %v1660 = vsel %vm459, %v1658, -1e+30
    %v1661 = vsel %vm460, %v1659, -1e+30
    %v1662 = vsel %vm545, %v1660, -inf
    %1663 = vmax.xlane.f32.xlu0 %v1662
    %v1664 = vpop.xlane.xlu0 %1663
    %v1665 = vsel %vm545, %v1661, -inf
    %1666 = vmax.xlane.f32.xlu0 %v1665
    %v1667 = vpop.xlane.xlu0 %1666
    %v1668 = vsub.f32 %v1660, %v1664
    %v1669 = vsub.f32 %v1661, %v1667
    %v1670 = vmul.f32 %v1668, 1.442695
    %v1671 = vpow.pop %v1670
    %v1672 = vmul.f32 %v1669, 1.442695
    %v1673 = vpow.pop %v1672
    %v1674 = vsel %vm545, %v1671, 0.0
    %1675 = vadd.xlane.f32.xlu0 %v1674
    %v1676 = vpop.xlane.xlu0 %1675
    %v1677 = vsel %vm545, %v1673, 0.0
    %1678 = vadd.xlane.f32.xlu0 %v1677
    %v1679 = vpop.xlane.xlu0 %1678
    %v1680 = vrcp.pop %v1676
    %v1681 = vrcp.pop %v1679
    %v1682 = vmul.f32 %v1671, %v1680
    %v1683 = vmul.f32 %v1673, %v1681
    %1684 = vrot.lane.b32.xlu0 %v1616, 64
    %v1685 = vpop.permute.xlu0 %1684
    %1686 = vrot.lane.b32.xlu0 %v1619, 64
    %v1687 = vpop.permute.xlu0 %1686
    %v1691 = vsel %vm545, %v1682, 0
    %v1694 = vsel %vm545, %v1683, 0
    %1696 = vmatpush.msra.mxu0 0.0
    %1697 = vmatpush.msra.mxu0 0.0
    %1698 = vmatpush.msra.mxu0 0.0
    %1699 = vmatpush.msra.mxu0 0.0
    %1700 = vmatpush.msra.mxu0 0.0
    %1701 = vmatpush.msra.mxu0 0.0
    %1702 = vmatpush.msra.mxu0 0.0
    %1703 = vmatpush.msra.mxu0 0.0
    %1704 = vmatpush.msra.mxu0 0.0
    %1705 = vmatpush.msra.mxu0 0.0
    %1706 = vmatpush.msra.mxu0 0.0
    %1707 = vmatpush.msra.mxu0 0.0
    %1708 = vmatpush.msra.mxu0 0.0
    %1709 = vmatpush.msra.mxu0 0.0
    %1710 = vmatpush.msra.mxu0 %v1687
    %1711 = vmatpush.msra.mxu0 %v1685
    %1712 = vmatmul.f32.gmra.mxu0 %v1691
    %v1713 = vpop.f32.mrf.mxu0
    %v1714 = vadd.f32 0.0, %v1713
    %1715 = vmatmul.f32.gmra.mxu0 %v1694
    %v1716 = vpop.f32.mrf.mxu0
    %v1717 = vadd.f32 0.0, %v1716
    %1718 = vdwg.mxu0
    %1719 = vrot.lane.b32.xlu0 %v1616, 124
    %v1720 = vpop.permute.xlu0 %1719
    %1721 = vrot.lane.b32.xlu0 %v1619, 124
    %v1722 = vpop.permute.xlu0 %1721
    %1723 = vrot.lane.b32.xlu0 %v1616, 92
    %v1724 = vpop.permute.xlu0 %1723
    %1725 = vrot.lane.b32.xlu0 %v1619, 92
    %v1726 = vpop.permute.xlu0 %1725
    %v1727 = vsel %vm509, %v1720, 0
    %v1729 = vsel %vm509, %v1722, 0
    %v1731 = vsel %vm509, %v1724, 0
    %v1733 = vsel %vm509, %v1726, 0
    %1735 = vmatpush.xpose.msra.mxu0 0.0
    %1736 = vmatpush.xpose.msra.mxu0 0.0
    %1737 = vmatpush.xpose.msra.mxu0 0.0
    %1738 = vmatpush.xpose.msra.mxu0 0.0
    %1739 = vmatpush.xpose.msra.mxu0 0.0
    %1740 = vmatpush.xpose.msra.mxu0 0.0
    %1741 = vmatpush.xpose.msra.mxu0 0.0
    %1742 = vmatpush.xpose.msra.mxu0 0.0
    %1743 = vmatpush.xpose.msra.mxu0 0.0
    %1744 = vmatpush.xpose.msra.mxu0 0.0
    %1745 = vmatpush.xpose.msra.mxu0 0.0
    %1746 = vmatpush.xpose.msra.mxu0 0.0
    %1747 = vmatpush.xpose.msra.mxu0 0.0
    %1748 = vmatpush.xpose.msra.mxu0 0.0
    %1749 = vmatpush.xpose.msra.mxu0 %v1733
    %1750 = vmatpush.xpose.msra.mxu0 %v1731
    %1751 = vmatmul.f32.gmra.mxu0 %v1727
    %v1752 = vpop.f32.mrf.mxu0
    %v1753 = vadd.f32 0.0, %v1752
    %1754 = vmatmul.f32.gmra.mxu0 %v1729
    %v1755 = vpop.f32.mrf.mxu0
    %v1756 = vadd.f32 0.0, %v1755
    %1757 = vdwg.mxu0
    %v1758 = vmul.f32 %v1753, 0.5
    %v1759 = vmul.f32 %v1756, 0.5
    %v1760 = vsel %vm459, %v1758, -1e+30
    %v1761 = vsel %vm460, %v1759, -1e+30
    %v1762 = vsel %vm545, %v1760, -inf
    %1763 = vmax.xlane.f32.xlu0 %v1762
    %v1764 = vpop.xlane.xlu0 %1763
    %v1765 = vsel %vm545, %v1761, -inf
    %1766 = vmax.xlane.f32.xlu0 %v1765
    %v1767 = vpop.xlane.xlu0 %1766
    %v1768 = vsub.f32 %v1760, %v1764
    %v1769 = vsub.f32 %v1761, %v1767
    %v1770 = vmul.f32 %v1768, 1.442695
    %v1771 = vpow.pop %v1770
    %v1772 = vmul.f32 %v1769, 1.442695
    %v1773 = vpow.pop %v1772
    %v1774 = vsel %vm545, %v1771, 0.0
    %1775 = vadd.xlane.f32.xlu0 %v1774
    %v1776 = vpop.xlane.xlu0 %1775
    %v1777 = vsel %vm545, %v1773, 0.0
    %1778 = vadd.xlane.f32.xlu0 %v1777
    %v1779 = vpop.xlane.xlu0 %1778
    %v1780 = vrcp.pop %v1776
    %v1781 = vrcp.pop %v1779
    %v1782 = vmul.f32 %v1771, %v1780
    %v1783 = vmul.f32 %v1773, %v1781
    %1784 = vrot.lane.b32.xlu0 %v1616, 60
    %v1785 = vpop.permute.xlu0 %1784
    %1786 = vrot.lane.b32.xlu0 %v1619, 60
    %v1787 = vpop.permute.xlu0 %1786
    %v1791 = vsel %vm545, %v1782, 0
    %v1794 = vsel %vm545, %v1783, 0
    %1796 = vmatpush.msra.mxu0 0.0
    %1797 = vmatpush.msra.mxu0 0.0
    %1798 = vmatpush.msra.mxu0 0.0
    %1799 = vmatpush.msra.mxu0 0.0
    %1800 = vmatpush.msra.mxu0 0.0
    %1801 = vmatpush.msra.mxu0 0.0
    %1802 = vmatpush.msra.mxu0 0.0
    %1803 = vmatpush.msra.mxu0 0.0
    %1804 = vmatpush.msra.mxu0 0.0
    %1805 = vmatpush.msra.mxu0 0.0
    %1806 = vmatpush.msra.mxu0 0.0
    %1807 = vmatpush.msra.mxu0 0.0
    %1808 = vmatpush.msra.mxu0 0.0
    %1809 = vmatpush.msra.mxu0 0.0
    %1810 = vmatpush.msra.mxu0 %v1787
    %1811 = vmatpush.msra.mxu0 %v1785
    %1812 = vmatmul.f32.gmra.mxu0 %v1791
    %v1813 = vpop.f32.mrf.mxu0
    %v1814 = vadd.f32 0.0, %v1813
    %1815 = vmatmul.f32.gmra.mxu0 %v1794
    %v1816 = vpop.f32.mrf.mxu0
    %v1817 = vadd.f32 0.0, %v1816
    %1818 = vdwg.mxu0
    %1819 = vrot.lane.b32.xlu0 %v1616, 120
    %v1820 = vpop.permute.xlu0 %1819
    %1821 = vrot.lane.b32.xlu0 %v1619, 120
    %v1822 = vpop.permute.xlu0 %1821
    %1823 = vrot.lane.b32.xlu0 %v1616, 88
    %v1824 = vpop.permute.xlu0 %1823
    %1825 = vrot.lane.b32.xlu0 %v1619, 88
    %v1826 = vpop.permute.xlu0 %1825
    %v1827 = vsel %vm509, %v1820, 0
    %v1829 = vsel %vm509, %v1822, 0
    %v1831 = vsel %vm509, %v1824, 0
    %v1833 = vsel %vm509, %v1826, 0
    %1835 = vmatpush.xpose.msra.mxu0 0.0
    %1836 = vmatpush.xpose.msra.mxu0 0.0
    %1837 = vmatpush.xpose.msra.mxu0 0.0
    %1838 = vmatpush.xpose.msra.mxu0 0.0
    %1839 = vmatpush.xpose.msra.mxu0 0.0
    %1840 = vmatpush.xpose.msra.mxu0 0.0
    %1841 = vmatpush.xpose.msra.mxu0 0.0
    %1842 = vmatpush.xpose.msra.mxu0 0.0
    %1843 = vmatpush.xpose.msra.mxu0 0.0
    %1844 = vmatpush.xpose.msra.mxu0 0.0
    %1845 = vmatpush.xpose.msra.mxu0 0.0
    %1846 = vmatpush.xpose.msra.mxu0 0.0
    %1847 = vmatpush.xpose.msra.mxu0 0.0
    %1848 = vmatpush.xpose.msra.mxu0 0.0
    %1849 = vmatpush.xpose.msra.mxu0 %v1833
    %1850 = vmatpush.xpose.msra.mxu0 %v1831
    %1851 = vmatmul.f32.gmra.mxu0 %v1827
    %v1852 = vpop.f32.mrf.mxu0
    %v1853 = vadd.f32 0.0, %v1852
    %1854 = vmatmul.f32.gmra.mxu0 %v1829
    %v1855 = vpop.f32.mrf.mxu0
    %v1856 = vadd.f32 0.0, %v1855
    %1857 = vdwg.mxu0
    %v1858 = vmul.f32 %v1853, 0.5
    %v1859 = vmul.f32 %v1856, 0.5
    %v1860 = vsel %vm459, %v1858, -1e+30
    %v1861 = vsel %vm460, %v1859, -1e+30
    %v1862 = vsel %vm545, %v1860, -inf
    %1863 = vmax.xlane.f32.xlu0 %v1862
    %v1864 = vpop.xlane.xlu0 %1863
    %v1865 = vsel %vm545, %v1861, -inf
    %1866 = vmax.xlane.f32.xlu0 %v1865
    %v1867 = vpop.xlane.xlu0 %1866
    %v1868 = vsub.f32 %v1860, %v1864
    %v1869 = vsub.f32 %v1861, %v1867
    %v1870 = vmul.f32 %v1868, 1.442695
    %v1871 = vpow.pop %v1870
    %v1872 = vmul.f32 %v1869, 1.442695
    %v1873 = vpow.pop %v1872
    %v1874 = vsel %vm545, %v1871, 0.0
    %1875 = vadd.xlane.f32.xlu0 %v1874
    %v1876 = vpop.xlane.xlu0 %1875
    %v1877 = vsel %vm545, %v1873, 0.0
    %1878 = vadd.xlane.f32.xlu0 %v1877
    %v1879 = vpop.xlane.xlu0 %1878
    %v1880 = vrcp.pop %v1876
    %v1881 = vrcp.pop %v1879
    %v1882 = vmul.f32 %v1871, %v1880
    %v1883 = vmul.f32 %v1873, %v1881
    %1884 = vrot.lane.b32.xlu0 %v1616, 56
    %v1885 = vpop.permute.xlu0 %1884
    %1886 = vrot.lane.b32.xlu0 %v1619, 56
    %v1887 = vpop.permute.xlu0 %1886
    %v1891 = vsel %vm545, %v1882, 0
    %v1894 = vsel %vm545, %v1883, 0
    %1896 = vmatpush.msra.mxu0 0.0
    %1897 = vmatpush.msra.mxu0 0.0
    %1898 = vmatpush.msra.mxu0 0.0
    %1899 = vmatpush.msra.mxu0 0.0
    %1900 = vmatpush.msra.mxu0 0.0
    %1901 = vmatpush.msra.mxu0 0.0
    %1902 = vmatpush.msra.mxu0 0.0
    %1903 = vmatpush.msra.mxu0 0.0
    %1904 = vmatpush.msra.mxu0 0.0
    %1905 = vmatpush.msra.mxu0 0.0
    %1906 = vmatpush.msra.mxu0 0.0
    %1907 = vmatpush.msra.mxu0 0.0
    %1908 = vmatpush.msra.mxu0 0.0
    %1909 = vmatpush.msra.mxu0 0.0
    %1910 = vmatpush.msra.mxu0 %v1887
    %1911 = vmatpush.msra.mxu0 %v1885
    %1912 = vmatmul.f32.gmra.mxu0 %v1891
    %v1913 = vpop.f32.mrf.mxu0
    %v1914 = vadd.f32 0.0, %v1913
    %1915 = vmatmul.f32.gmra.mxu0 %v1894
    %v1916 = vpop.f32.mrf.mxu0
    %v1917 = vadd.f32 0.0, %v1916
    %1918 = vdwg.mxu0
    %1919 = vrot.lane.b32.xlu0 %v1616, 116
    %v1920 = vpop.permute.xlu0 %1919
    %1921 = vrot.lane.b32.xlu0 %v1619, 116
    %v1922 = vpop.permute.xlu0 %1921
    %1923 = vrot.lane.b32.xlu0 %v1616, 84
    %v1924 = vpop.permute.xlu0 %1923
    %1925 = vrot.lane.b32.xlu0 %v1619, 84
    %v1926 = vpop.permute.xlu0 %1925
    %v1927 = vsel %vm509, %v1920, 0
    %v1929 = vsel %vm509, %v1922, 0
    %v1931 = vsel %vm509, %v1924, 0
    %v1933 = vsel %vm509, %v1926, 0
    %1935 = vmatpush.xpose.msra.mxu0 0.0
    %1936 = vmatpush.xpose.msra.mxu0 0.0
    %1937 = vmatpush.xpose.msra.mxu0 0.0
    %1938 = vmatpush.xpose.msra.mxu0 0.0
    %1939 = vmatpush.xpose.msra.mxu0 0.0
    %1940 = vmatpush.xpose.msra.mxu0 0.0
    %1941 = vmatpush.xpose.msra.mxu0 0.0
    %1942 = vmatpush.xpose.msra.mxu0 0.0
    %1943 = vmatpush.xpose.msra.mxu0 0.0
    %1944 = vmatpush.xpose.msra.mxu0 0.0
    %1945 = vmatpush.xpose.msra.mxu0 0.0
    %1946 = vmatpush.xpose.msra.mxu0 0.0
    %1947 = vmatpush.xpose.msra.mxu0 0.0
    %1948 = vmatpush.xpose.msra.mxu0 0.0
    %1949 = vmatpush.xpose.msra.mxu0 %v1933
    %1950 = vmatpush.xpose.msra.mxu0 %v1931
    %1951 = vmatmul.f32.gmra.mxu0 %v1927
    %v1952 = vpop.f32.mrf.mxu0
    %v1953 = vadd.f32 0.0, %v1952
    %1954 = vmatmul.f32.gmra.mxu0 %v1929
    %v1955 = vpop.f32.mrf.mxu0
    %v1956 = vadd.f32 0.0, %v1955
    %1957 = vdwg.mxu0
    %v1958 = vmul.f32 %v1953, 0.5
    %v1959 = vmul.f32 %v1956, 0.5
    %v1960 = vsel %vm459, %v1958, -1e+30
    %v1961 = vsel %vm460, %v1959, -1e+30
    %v1962 = vsel %vm545, %v1960, -inf
    %1963 = vmax.xlane.f32.xlu0 %v1962
    %v1964 = vpop.xlane.xlu0 %1963
    %v1965 = vsel %vm545, %v1961, -inf
    %1966 = vmax.xlane.f32.xlu0 %v1965
    %v1967 = vpop.xlane.xlu0 %1966
    %v1968 = vsub.f32 %v1960, %v1964
    %v1969 = vsub.f32 %v1961, %v1967
    %v1970 = vmul.f32 %v1968, 1.442695
    %v1971 = vpow.pop %v1970
    %v1972 = vmul.f32 %v1969, 1.442695
    %v1973 = vpow.pop %v1972
    %v1974 = vsel %vm545, %v1971, 0.0
    %1975 = vadd.xlane.f32.xlu0 %v1974
    %v1976 = vpop.xlane.xlu0 %1975
    %v1977 = vsel %vm545, %v1973, 0.0
    %1978 = vadd.xlane.f32.xlu0 %v1977
    %v1979 = vpop.xlane.xlu0 %1978
    %v1980 = vrcp.pop %v1976
    %v1981 = vrcp.pop %v1979
    %v1982 = vmul.f32 %v1971, %v1980
    %v1983 = vmul.f32 %v1973, %v1981
    %1984 = vrot.lane.b32.xlu0 %v1616, 52
    %v1985 = vpop.permute.xlu0 %1984
    %1986 = vrot.lane.b32.xlu0 %v1619, 52
    %v1987 = vpop.permute.xlu0 %1986
    %v1991 = vsel %vm545, %v1982, 0
    %v1994 = vsel %vm545, %v1983, 0
    %1996 = vmatpush.msra.mxu0 0.0
    %1997 = vmatpush.msra.mxu0 0.0
    %1998 = vmatpush.msra.mxu0 0.0
    %1999 = vmatpush.msra.mxu0 0.0
    %2000 = vmatpush.msra.mxu0 0.0
    %2001 = vmatpush.msra.mxu0 0.0
    %2002 = vmatpush.msra.mxu0 0.0
    %2003 = vmatpush.msra.mxu0 0.0
    %2004 = vmatpush.msra.mxu0 0.0
    %2005 = vmatpush.msra.mxu0 0.0
    %2006 = vmatpush.msra.mxu0 0.0
    %2007 = vmatpush.msra.mxu0 0.0
    %2008 = vmatpush.msra.mxu0 0.0
    %2009 = vmatpush.msra.mxu0 0.0
    %2010 = vmatpush.msra.mxu0 %v1987
    %2011 = vmatpush.msra.mxu0 %v1985
    %2012 = vmatmul.f32.gmra.mxu0 %v1991
    %v2013 = vpop.f32.mrf.mxu0
    %v2014 = vadd.f32 0.0, %v2013
    %2015 = vmatmul.f32.gmra.mxu0 %v1994
    %v2016 = vpop.f32.mrf.mxu0
    %v2017 = vadd.f32 0.0, %v2016
    %2018 = vdwg.mxu0
    %2019 = vrot.lane.b32.xlu0 %v1616, 112
    %v2020 = vpop.permute.xlu0 %2019
    %2021 = vrot.lane.b32.xlu0 %v1619, 112
    %v2022 = vpop.permute.xlu0 %2021
    %2023 = vrot.lane.b32.xlu0 %v1616, 80
    %v2024 = vpop.permute.xlu0 %2023
    %2025 = vrot.lane.b32.xlu0 %v1619, 80
    %v2026 = vpop.permute.xlu0 %2025
    %v2027 = vsel %vm509, %v2020, 0
    %v2029 = vsel %vm509, %v2022, 0
    %v2031 = vsel %vm509, %v2024, 0
    %v2033 = vsel %vm509, %v2026, 0
    %2035 = vmatpush.xpose.msra.mxu0 0.0
    %2036 = vmatpush.xpose.msra.mxu0 0.0
    %2037 = vmatpush.xpose.msra.mxu0 0.0
    %2038 = vmatpush.xpose.msra.mxu0 0.0
    %2039 = vmatpush.xpose.msra.mxu0 0.0
    %2040 = vmatpush.xpose.msra.mxu0 0.0
    %2041 = vmatpush.xpose.msra.mxu0 0.0
    %2042 = vmatpush.xpose.msra.mxu0 0.0
    %2043 = vmatpush.xpose.msra.mxu0 0.0
    %2044 = vmatpush.xpose.msra.mxu0 0.0
    %2045 = vmatpush.xpose.msra.mxu0 0.0
    %2046 = vmatpush.xpose.msra.mxu0 0.0
    %2047 = vmatpush.xpose.msra.mxu0 0.0
    %2048 = vmatpush.xpose.msra.mxu0 0.0
    %2049 = vmatpush.xpose.msra.mxu0 %v2033
    %2050 = vmatpush.xpose.msra.mxu0 %v2031
    %2051 = vmatmul.f32.gmra.mxu0 %v2027
    %v2052 = vpop.f32.mrf.mxu0
    %v2053 = vadd.f32 0.0, %v2052
    %2054 = vmatmul.f32.gmra.mxu0 %v2029
    %v2055 = vpop.f32.mrf.mxu0
    %v2056 = vadd.f32 0.0, %v2055
    %2057 = vdwg.mxu0
    %v2058 = vmul.f32 %v2053, 0.5
    %v2059 = vmul.f32 %v2056, 0.5
    %v2060 = vsel %vm459, %v2058, -1e+30
    %v2061 = vsel %vm460, %v2059, -1e+30
    %v2062 = vsel %vm545, %v2060, -inf
    %2063 = vmax.xlane.f32.xlu0 %v2062
    %v2064 = vpop.xlane.xlu0 %2063
    %v2065 = vsel %vm545, %v2061, -inf
    %2066 = vmax.xlane.f32.xlu0 %v2065
    %v2067 = vpop.xlane.xlu0 %2066
    %v2068 = vsub.f32 %v2060, %v2064
    %v2069 = vsub.f32 %v2061, %v2067
    %v2070 = vmul.f32 %v2068, 1.442695
    %v2071 = vpow.pop %v2070
    %v2072 = vmul.f32 %v2069, 1.442695
    %v2073 = vpow.pop %v2072
    %v2074 = vsel %vm545, %v2071, 0.0
    %2075 = vadd.xlane.f32.xlu0 %v2074
    %v2076 = vpop.xlane.xlu0 %2075
    %v2077 = vsel %vm545, %v2073, 0.0
    %2078 = vadd.xlane.f32.xlu0 %v2077
    %v2079 = vpop.xlane.xlu0 %2078
    %v2080 = vrcp.pop %v2076
    %v2081 = vrcp.pop %v2079
    %v2082 = vmul.f32 %v2071, %v2080
    %v2083 = vmul.f32 %v2073, %v2081
    %2084 = vrot.lane.b32.xlu0 %v1616, 48
    %v2085 = vpop.permute.xlu0 %2084
    %2086 = vrot.lane.b32.xlu0 %v1619, 48
    %v2087 = vpop.permute.xlu0 %2086
    %v2091 = vsel %vm545, %v2082, 0
    %v2094 = vsel %vm545, %v2083, 0
    %2096 = vmatpush.msra.mxu0 0.0
    %2097 = vmatpush.msra.mxu0 0.0
    %2098 = vmatpush.msra.mxu0 0.0
    %2099 = vmatpush.msra.mxu0 0.0
    %2100 = vmatpush.msra.mxu0 0.0
    %2101 = vmatpush.msra.mxu0 0.0
    %2102 = vmatpush.msra.mxu0 0.0
    %2103 = vmatpush.msra.mxu0 0.0
    %2104 = vmatpush.msra.mxu0 0.0
    %2105 = vmatpush.msra.mxu0 0.0
    %2106 = vmatpush.msra.mxu0 0.0
    %2107 = vmatpush.msra.mxu0 0.0
    %2108 = vmatpush.msra.mxu0 0.0
    %2109 = vmatpush.msra.mxu0 0.0
    %2110 = vmatpush.msra.mxu0 %v2087
    %2111 = vmatpush.msra.mxu0 %v2085
    %2112 = vmatmul.f32.gmra.mxu0 %v2091
    %v2113 = vpop.f32.mrf.mxu0
    %v2114 = vadd.f32 0.0, %v2113
    %2115 = vmatmul.f32.gmra.mxu0 %v2094
    %v2116 = vpop.f32.mrf.mxu0
    %v2117 = vadd.f32 0.0, %v2116
    %2118 = vdwg.mxu0
    %2119 = vrot.lane.b32.xlu0 %v1616, 108
    %v2120 = vpop.permute.xlu0 %2119
    %2121 = vrot.lane.b32.xlu0 %v1619, 108
    %v2122 = vpop.permute.xlu0 %2121
    %2123 = vrot.lane.b32.xlu0 %v1616, 76
    %v2124 = vpop.permute.xlu0 %2123
    %2125 = vrot.lane.b32.xlu0 %v1619, 76
    %v2126 = vpop.permute.xlu0 %2125
    %v2127 = vsel %vm509, %v2120, 0
    %v2129 = vsel %vm509, %v2122, 0
    %v2131 = vsel %vm509, %v2124, 0
    %v2133 = vsel %vm509, %v2126, 0
    %2135 = vmatpush.xpose.msra.mxu0 0.0
    %2136 = vmatpush.xpose.msra.mxu0 0.0
    %2137 = vmatpush.xpose.msra.mxu0 0.0
    %2138 = vmatpush.xpose.msra.mxu0 0.0
    %2139 = vmatpush.xpose.msra.mxu0 0.0
    %2140 = vmatpush.xpose.msra.mxu0 0.0
    %2141 = vmatpush.xpose.msra.mxu0 0.0
    %2142 = vmatpush.xpose.msra.mxu0 0.0
    %2143 = vmatpush.xpose.msra.mxu0 0.0
    %2144 = vmatpush.xpose.msra.mxu0 0.0
    %2145 = vmatpush.xpose.msra.mxu0 0.0
    %2146 = vmatpush.xpose.msra.mxu0 0.0
    %2147 = vmatpush.xpose.msra.mxu0 0.0
    %2148 = vmatpush.xpose.msra.mxu0 0.0
    %2149 = vmatpush.xpose.msra.mxu0 %v2133
    %2150 = vmatpush.xpose.msra.mxu0 %v2131
    %2151 = vmatmul.f32.gmra.mxu0 %v2127
    %v2152 = vpop.f32.mrf.mxu0
    %v2153 = vadd.f32 0.0, %v2152
    %2154 = vmatmul.f32.gmra.mxu0 %v2129
    %v2155 = vpop.f32.mrf.mxu0
    %v2156 = vadd.f32 0.0, %v2155
    %2157 = vdwg.mxu0
    %v2158 = vmul.f32 %v2153, 0.5
    %v2159 = vmul.f32 %v2156, 0.5
    %v2160 = vsel %vm459, %v2158, -1e+30
    %v2161 = vsel %vm460, %v2159, -1e+30
    %v2162 = vsel %vm545, %v2160, -inf
    %2163 = vmax.xlane.f32.xlu0 %v2162
    %v2164 = vpop.xlane.xlu0 %2163
    %v2165 = vsel %vm545, %v2161, -inf
    %2166 = vmax.xlane.f32.xlu0 %v2165
    %v2167 = vpop.xlane.xlu0 %2166
    %v2168 = vsub.f32 %v2160, %v2164
    %v2169 = vsub.f32 %v2161, %v2167
    %v2170 = vmul.f32 %v2168, 1.442695
    %v2171 = vpow.pop %v2170
    %v2172 = vmul.f32 %v2169, 1.442695
    %v2173 = vpow.pop %v2172
    %v2174 = vsel %vm545, %v2171, 0.0
    %2175 = vadd.xlane.f32.xlu0 %v2174
    %v2176 = vpop.xlane.xlu0 %2175
    %v2177 = vsel %vm545, %v2173, 0.0
    %2178 = vadd.xlane.f32.xlu0 %v2177
    %v2179 = vpop.xlane.xlu0 %2178
    %v2180 = vrcp.pop %v2176
    %v2181 = vrcp.pop %v2179
    %v2182 = vmul.f32 %v2171, %v2180
    %v2183 = vmul.f32 %v2173, %v2181
    %2184 = vrot.lane.b32.xlu0 %v1616, 44
    %v2185 = vpop.permute.xlu0 %2184
    %2186 = vrot.lane.b32.xlu0 %v1619, 44
    %v2187 = vpop.permute.xlu0 %2186
    %v2191 = vsel %vm545, %v2182, 0
    %v2194 = vsel %vm545, %v2183, 0
    %2196 = vmatpush.msra.mxu0 0.0
    %2197 = vmatpush.msra.mxu0 0.0
    %2198 = vmatpush.msra.mxu0 0.0
    %2199 = vmatpush.msra.mxu0 0.0
    %2200 = vmatpush.msra.mxu0 0.0
    %2201 = vmatpush.msra.mxu0 0.0
    %2202 = vmatpush.msra.mxu0 0.0
    %2203 = vmatpush.msra.mxu0 0.0
    %2204 = vmatpush.msra.mxu0 0.0
    %2205 = vmatpush.msra.mxu0 0.0
    %2206 = vmatpush.msra.mxu0 0.0
    %2207 = vmatpush.msra.mxu0 0.0
    %2208 = vmatpush.msra.mxu0 0.0
    %2209 = vmatpush.msra.mxu0 0.0
    %2210 = vmatpush.msra.mxu0 %v2187
    %2211 = vmatpush.msra.mxu0 %v2185
    %2212 = vmatmul.f32.gmra.mxu0 %v2191
    %v2213 = vpop.f32.mrf.mxu0
    %v2214 = vadd.f32 0.0, %v2213
    %2215 = vmatmul.f32.gmra.mxu0 %v2194
    %v2216 = vpop.f32.mrf.mxu0
    %v2217 = vadd.f32 0.0, %v2216
    %2218 = vdwg.mxu0
    %2219 = vrot.lane.b32.xlu0 %v1616, 104
    %v2220 = vpop.permute.xlu0 %2219
    %2221 = vrot.lane.b32.xlu0 %v1619, 104
    %v2222 = vpop.permute.xlu0 %2221
    %2223 = vrot.lane.b32.xlu0 %v1616, 72
    %v2224 = vpop.permute.xlu0 %2223
    %2225 = vrot.lane.b32.xlu0 %v1619, 72
    %v2226 = vpop.permute.xlu0 %2225
    %v2227 = vsel %vm509, %v2220, 0
    %v2229 = vsel %vm509, %v2222, 0
    %v2231 = vsel %vm509, %v2224, 0
    %v2233 = vsel %vm509, %v2226, 0
    %2235 = vmatpush.xpose.msra.mxu0 0.0
    %2236 = vmatpush.xpose.msra.mxu0 0.0
    %2237 = vmatpush.xpose.msra.mxu0 0.0
    %2238 = vmatpush.xpose.msra.mxu0 0.0
    %2239 = vmatpush.xpose.msra.mxu0 0.0
    %2240 = vmatpush.xpose.msra.mxu0 0.0
    %2241 = vmatpush.xpose.msra.mxu0 0.0
    %2242 = vmatpush.xpose.msra.mxu0 0.0
    %2243 = vmatpush.xpose.msra.mxu0 0.0
    %2244 = vmatpush.xpose.msra.mxu0 0.0
    %2245 = vmatpush.xpose.msra.mxu0 0.0
    %2246 = vmatpush.xpose.msra.mxu0 0.0
    %2247 = vmatpush.xpose.msra.mxu0 0.0
    %2248 = vmatpush.xpose.msra.mxu0 0.0
    %2249 = vmatpush.xpose.msra.mxu0 %v2233
    %2250 = vmatpush.xpose.msra.mxu0 %v2231
    %2251 = vmatmul.f32.gmra.mxu0 %v2227
    %v2252 = vpop.f32.mrf.mxu0
    %v2253 = vadd.f32 0.0, %v2252
    %2254 = vmatmul.f32.gmra.mxu0 %v2229
    %v2255 = vpop.f32.mrf.mxu0
    %v2256 = vadd.f32 0.0, %v2255
    %2257 = vdwg.mxu0
    %v2258 = vmul.f32 %v2253, 0.5
    %v2259 = vmul.f32 %v2256, 0.5
    %v2260 = vsel %vm459, %v2258, -1e+30
    %v2261 = vsel %vm460, %v2259, -1e+30
    %v2262 = vsel %vm545, %v2260, -inf
    %2263 = vmax.xlane.f32.xlu0 %v2262
    %v2264 = vpop.xlane.xlu0 %2263
    %v2265 = vsel %vm545, %v2261, -inf
    %2266 = vmax.xlane.f32.xlu0 %v2265
    %v2267 = vpop.xlane.xlu0 %2266
    %v2268 = vsub.f32 %v2260, %v2264
    %v2269 = vsub.f32 %v2261, %v2267
    %v2270 = vmul.f32 %v2268, 1.442695
    %v2271 = vpow.pop %v2270
    %v2272 = vmul.f32 %v2269, 1.442695
    %v2273 = vpow.pop %v2272
    %v2274 = vsel %vm545, %v2271, 0.0
    %2275 = vadd.xlane.f32.xlu0 %v2274
    %v2276 = vpop.xlane.xlu0 %2275
    %v2277 = vsel %vm545, %v2273, 0.0
    %2278 = vadd.xlane.f32.xlu0 %v2277
    %v2279 = vpop.xlane.xlu0 %2278
    %v2280 = vrcp.pop %v2276
    %v2281 = vrcp.pop %v2279
    %v2282 = vmul.f32 %v2271, %v2280
    %v2283 = vmul.f32 %v2273, %v2281
    %2284 = vrot.lane.b32.xlu0 %v1616, 40
    %v2285 = vpop.permute.xlu0 %2284
    %2286 = vrot.lane.b32.xlu0 %v1619, 40
    %v2287 = vpop.permute.xlu0 %2286
    %v2291 = vsel %vm545, %v2282, 0
    %v2294 = vsel %vm545, %v2283, 0
    %2296 = vmatpush.msra.mxu0 0.0
    %2297 = vmatpush.msra.mxu0 0.0
    %2298 = vmatpush.msra.mxu0 0.0
    %2299 = vmatpush.msra.mxu0 0.0
    %2300 = vmatpush.msra.mxu0 0.0
    %2301 = vmatpush.msra.mxu0 0.0
    %2302 = vmatpush.msra.mxu0 0.0
    %2303 = vmatpush.msra.mxu0 0.0
    %2304 = vmatpush.msra.mxu0 0.0
    %2305 = vmatpush.msra.mxu0 0.0
    %2306 = vmatpush.msra.mxu0 0.0
    %2307 = vmatpush.msra.mxu0 0.0
    %2308 = vmatpush.msra.mxu0 0.0
    %2309 = vmatpush.msra.mxu0 0.0
    %2310 = vmatpush.msra.mxu0 %v2287
    %2311 = vmatpush.msra.mxu0 %v2285
    %2312 = vmatmul.f32.gmra.mxu0 %v2291
    %v2313 = vpop.f32.mrf.mxu0
    %v2314 = vadd.f32 0.0, %v2313
    %2315 = vmatmul.f32.gmra.mxu0 %v2294
    %v2316 = vpop.f32.mrf.mxu0
    %v2317 = vadd.f32 0.0, %v2316
    %2318 = vdwg.mxu0
    %2319 = vrot.lane.b32.xlu0 %v1616, 100
    %v2320 = vpop.permute.xlu0 %2319
    %2321 = vrot.lane.b32.xlu0 %v1619, 100
    %v2322 = vpop.permute.xlu0 %2321
    %2323 = vrot.lane.b32.xlu0 %v1616, 68
    %v2324 = vpop.permute.xlu0 %2323
    %2325 = vrot.lane.b32.xlu0 %v1619, 68
    %v2326 = vpop.permute.xlu0 %2325
    %v2327 = vsel %vm509, %v2320, 0
    %v2329 = vsel %vm509, %v2322, 0
    %v2331 = vsel %vm509, %v2324, 0
    %v2333 = vsel %vm509, %v2326, 0
    %2335 = vmatpush.xpose.msra.mxu0 0.0
    %2336 = vmatpush.xpose.msra.mxu0 0.0
    %2337 = vmatpush.xpose.msra.mxu0 0.0
    %2338 = vmatpush.xpose.msra.mxu0 0.0
    %2339 = vmatpush.xpose.msra.mxu0 0.0
    %2340 = vmatpush.xpose.msra.mxu0 0.0
    %2341 = vmatpush.xpose.msra.mxu0 0.0
    %2342 = vmatpush.xpose.msra.mxu0 0.0
    %2343 = vmatpush.xpose.msra.mxu0 0.0
    %2344 = vmatpush.xpose.msra.mxu0 0.0
    %2345 = vmatpush.xpose.msra.mxu0 0.0
    %2346 = vmatpush.xpose.msra.mxu0 0.0
    %2347 = vmatpush.xpose.msra.mxu0 0.0
    %2348 = vmatpush.xpose.msra.mxu0 0.0
    %2349 = vmatpush.xpose.msra.mxu0 %v2333
    %2350 = vmatpush.xpose.msra.mxu0 %v2331
    %2351 = vmatmul.f32.gmra.mxu0 %v2327
    %v2352 = vpop.f32.mrf.mxu0
    %v2353 = vadd.f32 0.0, %v2352
    %2354 = vmatmul.f32.gmra.mxu0 %v2329
    %v2355 = vpop.f32.mrf.mxu0
    %v2356 = vadd.f32 0.0, %v2355
    %2357 = vdwg.mxu0
    %v2358 = vmul.f32 %v2353, 0.5
    %v2359 = vmul.f32 %v2356, 0.5
    %v2360 = vsel %vm459, %v2358, -1e+30
    %v2361 = vsel %vm460, %v2359, -1e+30
    %v2362 = vsel %vm545, %v2360, -inf
    %2363 = vmax.xlane.f32.xlu0 %v2362
    %v2364 = vpop.xlane.xlu0 %2363
    %v2365 = vsel %vm545, %v2361, -inf
    %2366 = vmax.xlane.f32.xlu0 %v2365
    %v2367 = vpop.xlane.xlu0 %2366
    %v2368 = vsub.f32 %v2360, %v2364
    %v2369 = vsub.f32 %v2361, %v2367
    %v2370 = vmul.f32 %v2368, 1.442695
    %v2371 = vpow.pop %v2370
    %v2372 = vmul.f32 %v2369, 1.442695
    %v2373 = vpow.pop %v2372
    %v2374 = vsel %vm545, %v2371, 0.0
    %2375 = vadd.xlane.f32.xlu0 %v2374
    %v2376 = vpop.xlane.xlu0 %2375
    %v2377 = vsel %vm545, %v2373, 0.0
    %2378 = vadd.xlane.f32.xlu0 %v2377
    %v2379 = vpop.xlane.xlu0 %2378
    %v2380 = vrcp.pop %v2376
    %v2381 = vrcp.pop %v2379
    %v2382 = vmul.f32 %v2371, %v2380
    %v2383 = vmul.f32 %v2373, %v2381
    %2384 = vrot.lane.b32.xlu0 %v1616, 36
    %v2385 = vpop.permute.xlu0 %2384
    %2386 = vrot.lane.b32.xlu0 %v1619, 36
    %v2387 = vpop.permute.xlu0 %2386
    %v2391 = vsel %vm545, %v2382, 0
    %v2394 = vsel %vm545, %v2383, 0
    %2396 = vmatpush.msra.mxu0 0.0
    %2397 = vmatpush.msra.mxu0 0.0
    %2398 = vmatpush.msra.mxu0 0.0
    %2399 = vmatpush.msra.mxu0 0.0
    %2400 = vmatpush.msra.mxu0 0.0
    %2401 = vmatpush.msra.mxu0 0.0
    %2402 = vmatpush.msra.mxu0 0.0
    %2403 = vmatpush.msra.mxu0 0.0
    %2404 = vmatpush.msra.mxu0 0.0
    %2405 = vmatpush.msra.mxu0 0.0
    %2406 = vmatpush.msra.mxu0 0.0
    %2407 = vmatpush.msra.mxu0 0.0
    %2408 = vmatpush.msra.mxu0 0.0
    %2409 = vmatpush.msra.mxu0 0.0
    %2410 = vmatpush.msra.mxu0 %v2387
    %2411 = vmatpush.msra.mxu0 %v2385
    %2412 = vmatmul.f32.gmra.mxu0 %v2391
    %v2413 = vpop.f32.mrf.mxu0
    %v2414 = vadd.f32 0.0, %v2413
    %2415 = vmatmul.f32.gmra.mxu0 %v2394
    %v2416 = vpop.f32.mrf.mxu0
    %v2417 = vadd.f32 0.0, %v2416
    %2418 = vdwg.mxu0
    %2421 = vrot.lane.b32.xlu0 %v1814, 4
    %v2422 = vpop.permute.xlu0 %2421
    %2423 = vrot.lane.b32.xlu0 %v1817, 4
    %v2424 = vpop.permute.xlu0 %2423
    %2429 = vrot.lane.b32.xlu0 %v1914, 8
    %v2430 = vpop.permute.xlu0 %2429
    %2431 = vrot.lane.b32.xlu0 %v1917, 8
    %v2432 = vpop.permute.xlu0 %2431
    %2437 = vrot.lane.b32.xlu0 %v2014, 12
    %v2438 = vpop.permute.xlu0 %2437
    %2439 = vrot.lane.b32.xlu0 %v2017, 12
    %v2440 = vpop.permute.xlu0 %2439
    %2445 = vrot.lane.b32.xlu0 %v2114, 16
    %v2446 = vpop.permute.xlu0 %2445
    %2447 = vrot.lane.b32.xlu0 %v2117, 16
    %v2448 = vpop.permute.xlu0 %2447
    %2453 = vrot.lane.b32.xlu0 %v2214, 20
    %v2454 = vpop.permute.xlu0 %2453
    %2455 = vrot.lane.b32.xlu0 %v2217, 20
    %v2456 = vpop.permute.xlu0 %2455
    %2461 = vrot.lane.b32.xlu0 %v2314, 24
    %v2462 = vpop.permute.xlu0 %2461
    %2463 = vrot.lane.b32.xlu0 %v2317, 24
    %v2464 = vpop.permute.xlu0 %2463
    %2469 = vrot.lane.b32.xlu0 %v2414, 28
    %v2470 = vpop.permute.xlu0 %2469
    %2471 = vrot.lane.b32.xlu0 %v2417, 28
    %v2472 = vpop.permute.xlu0 %2471
    %v2475 = vsel %vm509, %v1714, %v2422
    %v2476 = vsel %vm509, %v1717, %v2424
    %v2477 = vsel %vm1361, %v2475, %v2430
    %v2478 = vsel %vm1361, %v2476, %v2432
    %v2479 = vsel %vm1364, %v2477, %v2438
    %v2480 = vsel %vm1364, %v2478, %v2440
    %v2481 = vsel %vm545, %v2479, %v2446
    %v2482 = vsel %vm545, %v2480, %v2448
    %v2483 = vsel %vm1369, %v2481, %v2454
    %v2484 = vsel %vm1369, %v2482, %v2456
    %v2485 = vsel %vm1372, %v2483, %v2462
    %v2486 = vsel %vm1372, %v2484, %v2464
    %v2487 = vsel %vm1375, %v2485, %v2470
    %v2488 = vsel %vm1375, %v2486, %v2472
    %s2489 = scalar_lea.vmem [#allocation5], 32
    %v2490 = vld [vmem:[%s2489] sm:$0xff]
    %v2491 = vld [vmem:[%s2489 + $0x8] sm:$0xff]
    %v2492 = vld [vmem:[%s2489 + $0x10] sm:$0xff]
    %v2493 = vld [vmem:[%s2489 + $0x18] sm:$0xff]
    %v2494 = vperm.slane %v462, 1
    %v2496 = vsel %vm241, %v2487, 0
    %v2499 = vsel %vm241, %v2488, 0
    %2501 = vmatpush.msra.mxu0 0.0
    %2502 = vmatpush.msra.mxu0 0.0
    %2503 = vmatpush.msra.mxu0 0.0
    %2504 = vmatpush.msra.mxu0 0.0
    %2505 = vmatpush.msra.mxu0 0.0
    %2506 = vmatpush.msra.mxu0 0.0
    %2507 = vmatpush.msra.mxu0 0.0
    %2508 = vmatpush.msra.mxu0 0.0
    %2509 = vmatpush.msra.mxu0 0.0
    %2510 = vmatpush.msra.mxu0 0.0
    %2511 = vmatpush.msra.mxu0 0.0
    %2512 = vmatpush.msra.mxu0 0.0
    %2513 = vmatpush.msra.mxu0 %v2493
    %2514 = vmatpush.msra.mxu0 %v2492
    %2515 = vmatpush.msra.mxu0 %v2491
    %2516 = vmatpush.msra.mxu0 %v2490
    %2517 = vmatmul.f32.gmra.mxu0 %v2496
    %v2518 = vpop.f32.mrf.mxu0
    %v2519 = vadd.f32 %v2494, %v2518
    %2520 = vmatmul.f32.gmra.mxu0 %v2499
    %v2521 = vpop.f32.mrf.mxu0
    %v2522 = vadd.f32 %v2494, %v2521
    %2523 = vdwg.mxu0
    %v2524 = vadd.f32 %v1584, %v2519
    %v2525 = vadd.f32 %v1585, %v2522
    %v2526 = vsel %vm241, %v2524, 0.0
    %2527 = vadd.xlane.f32.xlu0 %v2526
    %v2528 = vpop.xlane.xlu0 %2527
    %v2529 = vsel %vm241, %v2525, 0.0
    %2530 = vadd.xlane.f32.xlu0 %v2529
    %v2531 = vpop.xlane.xlu0 %2530
    %v2532 = vmul.f32 %v2528, %v254
    %v2533 = vmul.f32 %v2531, %v254
    %v2534 = vsub.f32 %v2524, %v2532
    %v2535 = vsub.f32 %v2525, %v2533
    %v2536 = vmul.f32 %v2534, %v2534
    %v2537 = vmul.f32 %v2535, %v2535
    %v2538 = vsel %vm241, %v2536, 0.0
    %2539 = vadd.xlane.f32.xlu0 %v2538
    %v2540 = vpop.xlane.xlu0 %2539
    %v2541 = vsel %vm241, %v2537, 0.0
    %2542 = vadd.xlane.f32.xlu0 %v2541
    %v2543 = vpop.xlane.xlu0 %2542
    %v2544 = vmul.f32 %v2540, %v254
    %v2545 = vmul.f32 %v2543, %v254
    %v2546 = vadd.f32 %v2544, 1e-05
    %v2547 = vadd.f32 %v2545, 1e-05
    %v2548 = vrsqrt.pop %v2546
    %v2549 = vmul.f32 %v2548, %v2546
    %v2550 = vmul.f32 %v2549, %v2548
    %v2551 = vmul.f32 0.5, %v2550
    %v2552 = vsub.f32 1.5, %v2551
    %v2553 = vmul.f32 %v2548, %v2552
    %vm2554 = vweird.f32 %v2546
    %vm2555 = vweird.f32 %v2548
    %vm2556 = vmor %vm2554, %vm2555
    %v2557 = vsel %vm2556, %v2548, %v2553
    %v2558 = vrsqrt.pop %v2547
    %v2559 = vmul.f32 %v2558, %v2547
    %v2560 = vmul.f32 %v2559, %v2558
    %v2561 = vmul.f32 0.5, %v2560
    %v2562 = vsub.f32 1.5, %v2561
    %v2563 = vmul.f32 %v2558, %v2562
    %vm2564 = vweird.f32 %v2547
    %vm2565 = vweird.f32 %v2558
    %vm2566 = vmor %vm2564, %vm2565
    %v2567 = vsel %vm2566, %v2558, %v2563
    %v2568 = vmul.f32 %v2534, %v2557
    %v2569 = vmul.f32 %v2535, %v2567
    %v2570 = vperm.slane %v465, 1
    %v2571 = vmul.f32 %v2568, %v2570
    %v2572 = vmul.f32 %v2569, %v2570
    %v2573 = vperm.slane %v466, 1
    %v2574 = vadd.f32 %v2571, %v2573
    %v2575 = vadd.f32 %v2572, %v2573
    %s2576 = scalar_lea.vmem [#allocation7], 32
    %v2577 = vld [vmem:[%s2576] sm:$0xff]
    %v2578 = vld [vmem:[%s2576 + $0x8] sm:$0xff]
    %v2579 = vld [vmem:[%s2576 + $0x10] sm:$0xff]
    %v2580 = vld [vmem:[%s2576 + $0x18] sm:$0xff]
    %v2581 = vperm.slane %v463, 1
    %v2583 = vsel %vm241, %v2574, 0
    %v2586 = vsel %vm241, %v2575, 0
    %2588 = vmatpush.msra.mxu0 0.0
    %2589 = vmatpush.msra.mxu0 0.0
    %2590 = vmatpush.msra.mxu0 0.0
    %2591 = vmatpush.msra.mxu0 0.0
    %2592 = vmatpush.msra.mxu0 0.0
    %2593 = vmatpush.msra.mxu0 0.0
    %2594 = vmatpush.msra.mxu0 0.0
    %2595 = vmatpush.msra.mxu0 0.0
    %2596 = vmatpush.msra.mxu0 0.0
    %2597 = vmatpush.msra.mxu0 0.0
    %2598 = vmatpush.msra.mxu0 0.0
    %2599 = vmatpush.msra.mxu0 0.0
    %2600 = vmatpush.msra.mxu0 %v2580
    %2601 = vmatpush.msra.mxu0 %v2579
    %2602 = vmatpush.msra.mxu0 %v2578
    %2603 = vmatpush.msra.mxu0 %v2577
    %2604 = vmatmul.f32.gmra.mxu0 %v2583
    %v2605 = vpop.f32.mrf.mxu0
    %v2606 = vadd.f32 %v2581, %v2605
    %2607 = vmatmul.f32.gmra.mxu0 %v2586
    %v2608 = vpop.f32.mrf.mxu0
    %v2609 = vadd.f32 %v2581, %v2608
    %2610 = vdwg.mxu0
    %v2611 = vmax.f32 %v2606, 0.0
    %v2612 = vmax.f32 %v2609, 0.0
    %s2613 = scalar_lea.vmem [#allocation8], 32
    %v2614 = vld [vmem:[%s2613] sm:$0xff]
    %v2615 = vld [vmem:[%s2613 + $0x8] sm:$0xff]
    %v2616 = vld [vmem:[%s2613 + $0x10] sm:$0xff]
    %v2617 = vld [vmem:[%s2613 + $0x18] sm:$0xff]
    %v2618 = vperm.slane %v464, 1
    %v2620 = vsel %vm241, %v2611, 0
    %v2623 = vsel %vm241, %v2612, 0
    %2625 = vmatpush.msra.mxu0 0.0
    %2626 = vmatpush.msra.mxu0 0.0
    %2627 = vmatpush.msra.mxu0 0.0
    %2628 = vmatpush.msra.mxu0 0.0
    %2629 = vmatpush.msra.mxu0 0.0
    %2630 = vmatpush.msra.mxu0 0.0
    %2631 = vmatpush.msra.mxu0 0.0
    %2632 = vmatpush.msra.mxu0 0.0
    %2633 = vmatpush.msra.mxu0 0.0
    %2634 = vmatpush.msra.mxu0 0.0
    %2635 = vmatpush.msra.mxu0 0.0
    %2636 = vmatpush.msra.mxu0 0.0
    %2637 = vmatpush.msra.mxu0 %v2617
    %2638 = vmatpush.msra.mxu0 %v2616
    %2639 = vmatpush.msra.mxu0 %v2615
    %2640 = vmatpush.msra.mxu0 %v2614
    %2641 = vmatmul.f32.gmra.mxu0 %v2620
    %v2642 = vpop.f32.mrf.mxu0
    %v2643 = vadd.f32 %v2618, %v2642
    %2644 = vmatmul.f32.gmra.mxu0 %v2623
    %v2645 = vpop.f32.mrf.mxu0
    %v2646 = vadd.f32 %v2618, %v2645
    %2647 = vdwg.mxu0
    %v2648 = vadd.f32 %v2574, %v2643
    %v2649 = vadd.f32 %v2575, %v2646
    %v2650 = vsel %vm241, %v2648, 0.0
    %2651 = vadd.xlane.f32.xlu0 %v2650
    %v2652 = vpop.xlane.xlu0 %2651
    %v2653 = vsel %vm241, %v2649, 0.0
    %2654 = vadd.xlane.f32.xlu0 %v2653
    %v2655 = vpop.xlane.xlu0 %2654
    %v2656 = vmul.f32 %v2652, %v254
    %v2657 = vmul.f32 %v2655, %v254
    %v2658 = vsub.f32 %v2648, %v2656
    %v2659 = vsub.f32 %v2649, %v2657
    %v2660 = vmul.f32 %v2658, %v2658
    %v2661 = vmul.f32 %v2659, %v2659
    %v2662 = vsel %vm241, %v2660, 0.0
    %2663 = vadd.xlane.f32.xlu0 %v2662
    %v2664 = vpop.xlane.xlu0 %2663
    %v2665 = vsel %vm241, %v2661, 0.0
    %2666 = vadd.xlane.f32.xlu0 %v2665
    %v2667 = vpop.xlane.xlu0 %2666
    %v2668 = vmul.f32 %v2664, %v254
    %v2669 = vmul.f32 %v2667, %v254
    %v2670 = vadd.f32 %v2668, 1e-05
    %v2671 = vadd.f32 %v2669, 1e-05
    %v2672 = vrsqrt.pop %v2670
    %v2673 = vmul.f32 %v2672, %v2670
    %v2674 = vmul.f32 %v2673, %v2672
    %v2675 = vmul.f32 0.5, %v2674
    %v2676 = vsub.f32 1.5, %v2675
    %v2677 = vmul.f32 %v2672, %v2676
    %vm2678 = vweird.f32 %v2670
    %vm2679 = vweird.f32 %v2672
    %vm2680 = vmor %vm2678, %vm2679
    %v2681 = vsel %vm2680, %v2672, %v2677
    %v2682 = vrsqrt.pop %v2671
    %v2683 = vmul.f32 %v2682, %v2671
    %v2684 = vmul.f32 %v2683, %v2682
    %v2685 = vmul.f32 0.5, %v2684
    %v2686 = vsub.f32 1.5, %v2685
    %v2687 = vmul.f32 %v2682, %v2686
    %vm2688 = vweird.f32 %v2671
    %vm2689 = vweird.f32 %v2682
    %vm2690 = vmor %vm2688, %vm2689
    %v2691 = vsel %vm2690, %v2682, %v2687
    %v2692 = vmul.f32 %v2658, %v2681
    %v2693 = vmul.f32 %v2659, %v2691
    %v2694 = vperm.slane %v467, 1
    %v2695 = vmul.f32 %v2692, %v2694
    %v2696 = vmul.f32 %v2693, %v2694
    %v2697 = vperm.slane %v468, 1
    %v2698 = vadd.f32 %v2695, %v2697
    %v2699 = vadd.f32 %v2696, %v2697
    %s2700 = scalar_lea.vmem [#allocation3], 64
    %v2701 = vld [vmem:[%s2700] sm:$0xff]
    %v2702 = vld [vmem:[%s2700 + $0x8] sm:$0xff]
    %v2703 = vld [vmem:[%s2700 + $0x10] sm:$0xff]
    %v2704 = vld [vmem:[%s2700 + $0x18] sm:$0xff]
    %v2705 = vperm.slane %v461, 2
    %v2707 = vsel %vm241, %v2698, 0
    %v2710 = vsel %vm241, %v2699, 0
    %2712 = vmatpush.msra.mxu0 0.0
    %2713 = vmatpush.msra.mxu0 0.0
    %2714 = vmatpush.msra.mxu0 0.0
    %2715 = vmatpush.msra.mxu0 0.0
    %2716 = vmatpush.msra.mxu0 0.0
    %2717 = vmatpush.msra.mxu0 0.0
    %2718 = vmatpush.msra.mxu0 0.0
    %2719 = vmatpush.msra.mxu0 0.0
    %2720 = vmatpush.msra.mxu0 0.0
    %2721 = vmatpush.msra.mxu0 0.0
    %2722 = vmatpush.msra.mxu0 0.0
    %2723 = vmatpush.msra.mxu0 0.0
    %2724 = vmatpush.msra.mxu0 %v2704
    %2725 = vmatpush.msra.mxu0 %v2703
    %2726 = vmatpush.msra.mxu0 %v2702
    %2727 = vmatpush.msra.mxu0 %v2701
    %2728 = vmatmul.f32.gmra.mxu0 %v2707
    %v2729 = vpop.f32.mrf.mxu0
    %v2730 = vadd.f32 %v2705, %v2729
    %2731 = vmatmul.f32.gmra.mxu0 %v2710
    %v2732 = vpop.f32.mrf.mxu0
    %v2733 = vadd.f32 %v2705, %v2732
    %2734 = vdwg.mxu0
    %2737 = vrot.lane.b32.xlu0 %v2730, 96
    %v2738 = vpop.permute.xlu0 %2737
    %2739 = vrot.lane.b32.xlu0 %v2733, 96
    %v2740 = vpop.permute.xlu0 %2739
    %v2741 = vsel %vm509, %v2730, 0
    %v2743 = vsel %vm509, %v2733, 0
    %v2745 = vsel %vm509, %v2738, 0
    %v2747 = vsel %vm509, %v2740, 0
    %2749 = vmatpush.xpose.msra.mxu0 0.0
    %2750 = vmatpush.xpose.msra.mxu0 0.0
    %2751 = vmatpush.xpose.msra.mxu0 0.0
    %2752 = vmatpush.xpose.msra.mxu0 0.0
    %2753 = vmatpush.xpose.msra.mxu0 0.0
    %2754 = vmatpush.xpose.msra.mxu0 0.0
    %2755 = vmatpush.xpose.msra.mxu0 0.0
    %2756 = vmatpush.xpose.msra.mxu0 0.0
    %2757 = vmatpush.xpose.msra.mxu0 0.0
    %2758 = vmatpush.xpose.msra.mxu0 0.0
    %2759 = vmatpush.xpose.msra.mxu0 0.0
    %2760 = vmatpush.xpose.msra.mxu0 0.0
    %2761 = vmatpush.xpose.msra.mxu0 0.0
    %2762 = vmatpush.xpose.msra.mxu0 0.0
    %2763 = vmatpush.xpose.msra.mxu0 %v2747
    %2764 = vmatpush.xpose.msra.mxu0 %v2745
    %2765 = vmatmul.f32.gmra.mxu0 %v2741
    %v2766 = vpop.f32.mrf.mxu0
    %v2767 = vadd.f32 0.0, %v2766
    %2768 = vmatmul.f32.gmra.mxu0 %v2743
    %v2769 = vpop.f32.mrf.mxu0
    %v2770 = vadd.f32 0.0, %v2769
    %2771 = vdwg.mxu0
    %v2772 = vmul.f32 %v2767, 0.5
    %v2773 = vmul.f32 %v2770, 0.5
    %v2774 = vsel %vm459, %v2772, -1e+30
    %v2775 = vsel %vm460, %v2773, -1e+30
    %v2776 = vsel %vm545, %v2774, -inf
    %2777 = vmax.xlane.f32.xlu0 %v2776
    %v2778 = vpop.xlane.xlu0 %2777
    %v2779 = vsel %vm545, %v2775, -inf
    %2780 = vmax.xlane.f32.xlu0 %v2779
    %v2781 = vpop.xlane.xlu0 %2780
    %v2782 = vsub.f32 %v2774, %v2778
    %v2783 = vsub.f32 %v2775, %v2781
    %v2784 = vmul.f32 %v2782, 1.442695
    %v2785 = vpow.pop %v2784
    %v2786 = vmul.f32 %v2783, 1.442695
    %v2787 = vpow.pop %v2786
    %v2788 = vsel %vm545, %v2785, 0.0
    %2789 = vadd.xlane.f32.xlu0 %v2788
    %v2790 = vpop.xlane.xlu0 %2789
    %v2791 = vsel %vm545, %v2787, 0.0
    %2792 = vadd.xlane.f32.xlu0 %v2791
    %v2793 = vpop.xlane.xlu0 %2792
    %v2794 = vrcp.pop %v2790
    %v2795 = vrcp.pop %v2793
    %v2796 = vmul.f32 %v2785, %v2794
    %v2797 = vmul.f32 %v2787, %v2795
    %2798 = vrot.lane.b32.xlu0 %v2730, 64
    %v2799 = vpop.permute.xlu0 %2798
    %2800 = vrot.lane.b32.xlu0 %v2733, 64
    %v2801 = vpop.permute.xlu0 %2800
    %v2805 = vsel %vm545, %v2796, 0
    %v2808 = vsel %vm545, %v2797, 0
    %2810 = vmatpush.msra.mxu0 0.0
    %2811 = vmatpush.msra.mxu0 0.0
    %2812 = vmatpush.msra.mxu0 0.0
    %2813 = vmatpush.msra.mxu0 0.0
    %2814 = vmatpush.msra.mxu0 0.0
    %2815 = vmatpush.msra.mxu0 0.0
    %2816 = vmatpush.msra.mxu0 0.0
    %2817 = vmatpush.msra.mxu0 0.0
    %2818 = vmatpush.msra.mxu0 0.0
    %2819 = vmatpush.msra.mxu0 0.0
    %2820 = vmatpush.msra.mxu0 0.0
    %2821 = vmatpush.msra.mxu0 0.0
    %2822 = vmatpush.msra.mxu0 0.0
    %2823 = vmatpush.msra.mxu0 0.0
    %2824 = vmatpush.msra.mxu0 %v2801
    %2825 = vmatpush.msra.mxu0 %v2799
    %2826 = vmatmul.f32.gmra.mxu0 %v2805
    %v2827 = vpop.f32.mrf.mxu0
    %v2828 = vadd.f32 0.0, %v2827
    %2829 = vmatmul.f32.gmra.mxu0 %v2808
    %v2830 = vpop.f32.mrf.mxu0
    %v2831 = vadd.f32 0.0, %v2830
    %2832 = vdwg.mxu0
    %2833 = vrot.lane.b32.xlu0 %v2730, 124
    %v2834 = vpop.permute.xlu0 %2833
    %2835 = vrot.lane.b32.xlu0 %v2733, 124
    %v2836 = vpop.permute.xlu0 %2835
    %2837 = vrot.lane.b32.xlu0 %v2730, 92
    %v2838 = vpop.permute.xlu0 %2837
    %2839 = vrot.lane.b32.xlu0 %v2733, 92
    %v2840 = vpop.permute.xlu0 %2839
    %v2841 = vsel %vm509, %v2834, 0
    %v2843 = vsel %vm509, %v2836, 0
    %v2845 = vsel %vm509, %v2838, 0
    %v2847 = vsel %vm509, %v2840, 0
    %2849 = vmatpush.xpose.msra.mxu0 0.0
    %2850 = vmatpush.xpose.msra.mxu0 0.0
    %2851 = vmatpush.xpose.msra.mxu0 0.0
    %2852 = vmatpush.xpose.msra.mxu0 0.0
    %2853 = vmatpush.xpose.msra.mxu0 0.0
    %2854 = vmatpush.xpose.msra.mxu0 0.0
    %2855 = vmatpush.xpose.msra.mxu0 0.0
    %2856 = vmatpush.xpose.msra.mxu0 0.0
    %2857 = vmatpush.xpose.msra.mxu0 0.0
    %2858 = vmatpush.xpose.msra.mxu0 0.0
    %2859 = vmatpush.xpose.msra.mxu0 0.0
    %2860 = vmatpush.xpose.msra.mxu0 0.0
    %2861 = vmatpush.xpose.msra.mxu0 0.0
    %2862 = vmatpush.xpose.msra.mxu0 0.0
    %2863 = vmatpush.xpose.msra.mxu0 %v2847
    %2864 = vmatpush.xpose.msra.mxu0 %v2845
    %2865 = vmatmul.f32.gmra.mxu0 %v2841
    %v2866 = vpop.f32.mrf.mxu0
    %v2867 = vadd.f32 0.0, %v2866
    %2868 = vmatmul.f32.gmra.mxu0 %v2843
    %v2869 = vpop.f32.mrf.mxu0
    %v2870 = vadd.f32 0.0, %v2869
    %2871 = vdwg.mxu0
    %v2872 = vmul.f32 %v2867, 0.5
    %v2873 = vmul.f32 %v2870, 0.5
    %v2874 = vsel %vm459, %v2872, -1e+30
    %v2875 = vsel %vm460, %v2873, -1e+30
    %v2876 = vsel %vm545, %v2874, -inf
    %2877 = vmax.xlane.f32.xlu0 %v2876
    %v2878 = vpop.xlane.xlu0 %2877
    %v2879 = vsel %vm545, %v2875, -inf
    %2880 = vmax.xlane.f32.xlu0 %v2879
    %v2881 = vpop.xlane.xlu0 %2880
    %v2882 = vsub.f32 %v2874, %v2878
    %v2883 = vsub.f32 %v2875, %v2881
    %v2884 = vmul.f32 %v2882, 1.442695
    %v2885 = vpow.pop %v2884
    %v2886 = vmul.f32 %v2883, 1.442695
    %v2887 = vpow.pop %v2886
    %v2888 = vsel %vm545, %v2885, 0.0
    %2889 = vadd.xlane.f32.xlu0 %v2888
    %v2890 = vpop.xlane.xlu0 %2889
    %v2891 = vsel %vm545, %v2887, 0.0
    %2892 = vadd.xlane.f32.xlu0 %v2891
    %v2893 = vpop.xlane.xlu0 %2892
    %v2894 = vrcp.pop %v2890
    %v2895 = vrcp.pop %v2893
    %v2896 = vmul.f32 %v2885, %v2894
    %v2897 = vmul.f32 %v2887, %v2895
    %2898 = vrot.lane.b32.xlu0 %v2730, 60
    %v2899 = vpop.permute.xlu0 %2898
    %2900 = vrot.lane.b32.xlu0 %v2733, 60
    %v2901 = vpop.permute.xlu0 %2900
    %v2905 = vsel %vm545, %v2896, 0
    %v2908 = vsel %vm545, %v2897, 0
    %2910 = vmatpush.msra.mxu0 0.0
    %2911 = vmatpush.msra.mxu0 0.0
    %2912 = vmatpush.msra.mxu0 0.0
    %2913 = vmatpush.msra.mxu0 0.0
    %2914 = vmatpush.msra.mxu0 0.0
    %2915 = vmatpush.msra.mxu0 0.0
    %2916 = vmatpush.msra.mxu0 0.0
    %2917 = vmatpush.msra.mxu0 0.0
    %2918 = vmatpush.msra.mxu0 0.0
    %2919 = vmatpush.msra.mxu0 0.0
    %2920 = vmatpush.msra.mxu0 0.0
    %2921 = vmatpush.msra.mxu0 0.0
    %2922 = vmatpush.msra.mxu0 0.0
    %2923 = vmatpush.msra.mxu0 0.0
    %2924 = vmatpush.msra.mxu0 %v2901
    %2925 = vmatpush.msra.mxu0 %v2899
    %2926 = vmatmul.f32.gmra.mxu0 %v2905
    %v2927 = vpop.f32.mrf.mxu0
    %v2928 = vadd.f32 0.0, %v2927
    %2929 = vmatmul.f32.gmra.mxu0 %v2908
    %v2930 = vpop.f32.mrf.mxu0
    %v2931 = vadd.f32 0.0, %v2930
    %2932 = vdwg.mxu0
    %2933 = vrot.lane.b32.xlu0 %v2730, 120
    %v2934 = vpop.permute.xlu0 %2933
    %2935 = vrot.lane.b32.xlu0 %v2733, 120
    %v2936 = vpop.permute.xlu0 %2935
    %2937 = vrot.lane.b32.xlu0 %v2730, 88
    %v2938 = vpop.permute.xlu0 %2937
    %2939 = vrot.lane.b32.xlu0 %v2733, 88
    %v2940 = vpop.permute.xlu0 %2939
    %v2941 = vsel %vm509, %v2934, 0
    %v2943 = vsel %vm509, %v2936, 0
    %v2945 = vsel %vm509, %v2938, 0
    %v2947 = vsel %vm509, %v2940, 0
    %2949 = vmatpush.xpose.msra.mxu0 0.0
    %2950 = vmatpush.xpose.msra.mxu0 0.0
    %2951 = vmatpush.xpose.msra.mxu0 0.0
    %2952 = vmatpush.xpose.msra.mxu0 0.0
    %2953 = vmatpush.xpose.msra.mxu0 0.0
    %2954 = vmatpush.xpose.msra.mxu0 0.0
    %2955 = vmatpush.xpose.msra.mxu0 0.0
    %2956 = vmatpush.xpose.msra.mxu0 0.0
    %2957 = vmatpush.xpose.msra.mxu0 0.0
    %2958 = vmatpush.xpose.msra.mxu0 0.0
    %2959 = vmatpush.xpose.msra.mxu0 0.0
    %2960 = vmatpush.xpose.msra.mxu0 0.0
    %2961 = vmatpush.xpose.msra.mxu0 0.0
    %2962 = vmatpush.xpose.msra.mxu0 0.0
    %2963 = vmatpush.xpose.msra.mxu0 %v2947
    %2964 = vmatpush.xpose.msra.mxu0 %v2945
    %2965 = vmatmul.f32.gmra.mxu0 %v2941
    %v2966 = vpop.f32.mrf.mxu0
    %v2967 = vadd.f32 0.0, %v2966
    %2968 = vmatmul.f32.gmra.mxu0 %v2943
    %v2969 = vpop.f32.mrf.mxu0
    %v2970 = vadd.f32 0.0, %v2969
    %2971 = vdwg.mxu0
    %v2972 = vmul.f32 %v2967, 0.5
    %v2973 = vmul.f32 %v2970, 0.5
    %v2974 = vsel %vm459, %v2972, -1e+30
    %v2975 = vsel %vm460, %v2973, -1e+30
    %v2976 = vsel %vm545, %v2974, -inf
    %2977 = vmax.xlane.f32.xlu0 %v2976
    %v2978 = vpop.xlane.xlu0 %2977
    %v2979 = vsel %vm545, %v2975, -inf
    %2980 = vmax.xlane.f32.xlu0 %v2979
    %v2981 = vpop.xlane.xlu0 %2980
    %v2982 = vsub.f32 %v2974, %v2978
    %v2983 = vsub.f32 %v2975, %v2981
    %v2984 = vmul.f32 %v2982, 1.442695
    %v2985 = vpow.pop %v2984
    %v2986 = vmul.f32 %v2983, 1.442695
    %v2987 = vpow.pop %v2986
    %v2988 = vsel %vm545, %v2985, 0.0
    %2989 = vadd.xlane.f32.xlu0 %v2988
    %v2990 = vpop.xlane.xlu0 %2989
    %v2991 = vsel %vm545, %v2987, 0.0
    %2992 = vadd.xlane.f32.xlu0 %v2991
    %v2993 = vpop.xlane.xlu0 %2992
    %v2994 = vrcp.pop %v2990
    %v2995 = vrcp.pop %v2993
    %v2996 = vmul.f32 %v2985, %v2994
    %v2997 = vmul.f32 %v2987, %v2995
    %2998 = vrot.lane.b32.xlu0 %v2730, 56
    %v2999 = vpop.permute.xlu0 %2998
    %3000 = vrot.lane.b32.xlu0 %v2733, 56
    %v3001 = vpop.permute.xlu0 %3000
    %v3005 = vsel %vm545, %v2996, 0
    %v3008 = vsel %vm545, %v2997, 0
    %3010 = vmatpush.msra.mxu0 0.0
    %3011 = vmatpush.msra.mxu0 0.0
    %3012 = vmatpush.msra.mxu0 0.0
    %3013 = vmatpush.msra.mxu0 0.0
    %3014 = vmatpush.msra.mxu0 0.0
    %3015 = vmatpush.msra.mxu0 0.0
    %3016 = vmatpush.msra.mxu0 0.0
    %3017 = vmatpush.msra.mxu0 0.0
    %3018 = vmatpush.msra.mxu0 0.0
    %3019 = vmatpush.msra.mxu0 0.0
    %3020 = vmatpush.msra.mxu0 0.0
    %3021 = vmatpush.msra.mxu0 0.0
    %3022 = vmatpush.msra.mxu0 0.0
    %3023 = vmatpush.msra.mxu0 0.0
    %3024 = vmatpush.msra.mxu0 %v3001
    %3025 = vmatpush.msra.mxu0 %v2999
    %3026 = vmatmul.f32.gmra.mxu0 %v3005
    %v3027 = vpop.f32.mrf.mxu0
    %v3028 = vadd.f32 0.0, %v3027
    %3029 = vmatmul.f32.gmra.mxu0 %v3008
    %v3030 = vpop.f32.mrf.mxu0
    %v3031 = vadd.f32 0.0, %v3030
    %3032 = vdwg.mxu0
    %3033 = vrot.lane.b32.xlu0 %v2730, 116
    %v3034 = vpop.permute.xlu0 %3033
    %3035 = vrot.lane.b32.xlu0 %v2733, 116
    %v3036 = vpop.permute.xlu0 %3035
    %3037 = vrot.lane.b32.xlu0 %v2730, 84
    %v3038 = vpop.permute.xlu0 %3037
    %3039 = vrot.lane.b32.xlu0 %v2733, 84
    %v3040 = vpop.permute.xlu0 %3039
    %v3041 = vsel %vm509, %v3034, 0
    %v3043 = vsel %vm509, %v3036, 0
    %v3045 = vsel %vm509, %v3038, 0
    %v3047 = vsel %vm509, %v3040, 0
    %3049 = vmatpush.xpose.msra.mxu0 0.0
    %3050 = vmatpush.xpose.msra.mxu0 0.0
    %3051 = vmatpush.xpose.msra.mxu0 0.0
    %3052 = vmatpush.xpose.msra.mxu0 0.0
    %3053 = vmatpush.xpose.msra.mxu0 0.0
    %3054 = vmatpush.xpose.msra.mxu0 0.0
    %3055 = vmatpush.xpose.msra.mxu0 0.0
    %3056 = vmatpush.xpose.msra.mxu0 0.0
    %3057 = vmatpush.xpose.msra.mxu0 0.0
    %3058 = vmatpush.xpose.msra.mxu0 0.0
    %3059 = vmatpush.xpose.msra.mxu0 0.0
    %3060 = vmatpush.xpose.msra.mxu0 0.0
    %3061 = vmatpush.xpose.msra.mxu0 0.0
    %3062 = vmatpush.xpose.msra.mxu0 0.0
    %3063 = vmatpush.xpose.msra.mxu0 %v3047
    %3064 = vmatpush.xpose.msra.mxu0 %v3045
    %3065 = vmatmul.f32.gmra.mxu0 %v3041
    %v3066 = vpop.f32.mrf.mxu0
    %v3067 = vadd.f32 0.0, %v3066
    %3068 = vmatmul.f32.gmra.mxu0 %v3043
    %v3069 = vpop.f32.mrf.mxu0
    %v3070 = vadd.f32 0.0, %v3069
    %3071 = vdwg.mxu0
    %v3072 = vmul.f32 %v3067, 0.5
    %v3073 = vmul.f32 %v3070, 0.5
    %v3074 = vsel %vm459, %v3072, -1e+30
    %v3075 = vsel %vm460, %v3073, -1e+30
    %v3076 = vsel %vm545, %v3074, -inf
    %3077 = vmax.xlane.f32.xlu0 %v3076
    %v3078 = vpop.xlane.xlu0 %3077
    %v3079 = vsel %vm545, %v3075, -inf
    %3080 = vmax.xlane.f32.xlu0 %v3079
    %v3081 = vpop.xlane.xlu0 %3080
    %v3082 = vsub.f32 %v3074, %v3078
    %v3083 = vsub.f32 %v3075, %v3081
    %v3084 = vmul.f32 %v3082, 1.442695
    %v3085 = vpow.pop %v3084
    %v3086 = vmul.f32 %v3083, 1.442695
    %v3087 = vpow.pop %v3086
    %v3088 = vsel %vm545, %v3085, 0.0
    %3089 = vadd.xlane.f32.xlu0 %v3088
    %v3090 = vpop.xlane.xlu0 %3089
    %v3091 = vsel %vm545, %v3087, 0.0
    %3092 = vadd.xlane.f32.xlu0 %v3091
    %v3093 = vpop.xlane.xlu0 %3092
    %v3094 = vrcp.pop %v3090
    %v3095 = vrcp.pop %v3093
    %v3096 = vmul.f32 %v3085, %v3094
    %v3097 = vmul.f32 %v3087, %v3095
    %3098 = vrot.lane.b32.xlu0 %v2730, 52
    %v3099 = vpop.permute.xlu0 %3098
    %3100 = vrot.lane.b32.xlu0 %v2733, 52
    %v3101 = vpop.permute.xlu0 %3100
    %v3105 = vsel %vm545, %v3096, 0
    %v3108 = vsel %vm545, %v3097, 0
    %3110 = vmatpush.msra.mxu0 0.0
    %3111 = vmatpush.msra.mxu0 0.0
    %3112 = vmatpush.msra.mxu0 0.0
    %3113 = vmatpush.msra.mxu0 0.0
    %3114 = vmatpush.msra.mxu0 0.0
    %3115 = vmatpush.msra.mxu0 0.0
    %3116 = vmatpush.msra.mxu0 0.0
    %3117 = vmatpush.msra.mxu0 0.0
    %3118 = vmatpush.msra.mxu0 0.0
    %3119 = vmatpush.msra.mxu0 0.0
    %3120 = vmatpush.msra.mxu0 0.0
    %3121 = vmatpush.msra.mxu0 0.0
    %3122 = vmatpush.msra.mxu0 0.0
    %3123 = vmatpush.msra.mxu0 0.0
    %3124 = vmatpush.msra.mxu0 %v3101
    %3125 = vmatpush.msra.mxu0 %v3099
    %3126 = vmatmul.f32.gmra.mxu0 %v3105
    %v3127 = vpop.f32.mrf.mxu0
    %v3128 = vadd.f32 0.0, %v3127
    %3129 = vmatmul.f32.gmra.mxu0 %v3108
    %v3130 = vpop.f32.mrf.mxu0
    %v3131 = vadd.f32 0.0, %v3130
    %3132 = vdwg.mxu0
    %3133 = vrot.lane.b32.xlu0 %v2730, 112
    %v3134 = vpop.permute.xlu0 %3133
    %3135 = vrot.lane.b32.xlu0 %v2733, 112
    %v3136 = vpop.permute.xlu0 %3135
    %3137 = vrot.lane.b32.xlu0 %v2730, 80
    %v3138 = vpop.permute.xlu0 %3137
    %3139 = vrot.lane.b32.xlu0 %v2733, 80
    %v3140 = vpop.permute.xlu0 %3139
    %v3141 = vsel %vm509, %v3134, 0
    %v3143 = vsel %vm509, %v3136, 0
    %v3145 = vsel %vm509, %v3138, 0
    %v3147 = vsel %vm509, %v3140, 0
    %3149 = vmatpush.xpose.msra.mxu0 0.0
    %3150 = vmatpush.xpose.msra.mxu0 0.0
    %3151 = vmatpush.xpose.msra.mxu0 0.0
    %3152 = vmatpush.xpose.msra.mxu0 0.0
    %3153 = vmatpush.xpose.msra.mxu0 0.0
    %3154 = vmatpush.xpose.msra.mxu0 0.0
    %3155 = vmatpush.xpose.msra.mxu0 0.0
    %3156 = vmatpush.xpose.msra.mxu0 0.0
    %3157 = vmatpush.xpose.msra.mxu0 0.0
    %3158 = vmatpush.xpose.msra.mxu0 0.0
    %3159 = vmatpush.xpose.msra.mxu0 0.0
    %3160 = vmatpush.xpose.msra.mxu0 0.0
    %3161 = vmatpush.xpose.msra.mxu0 0.0
    %3162 = vmatpush.xpose.msra.mxu0 0.0
    %3163 = vmatpush.xpose.msra.mxu0 %v3147
    %3164 = vmatpush.xpose.msra.mxu0 %v3145
    %3165 = vmatmul.f32.gmra.mxu0 %v3141
    %v3166 = vpop.f32.mrf.mxu0
    %v3167 = vadd.f32 0.0, %v3166
    %3168 = vmatmul.f32.gmra.mxu0 %v3143
    %v3169 = vpop.f32.mrf.mxu0
    %v3170 = vadd.f32 0.0, %v3169
    %3171 = vdwg.mxu0
    %v3172 = vmul.f32 %v3167, 0.5
    %v3173 = vmul.f32 %v3170, 0.5
    %v3174 = vsel %vm459, %v3172, -1e+30
    %v3175 = vsel %vm460, %v3173, -1e+30
    %v3176 = vsel %vm545, %v3174, -inf
    %3177 = vmax.xlane.f32.xlu0 %v3176
    %v3178 = vpop.xlane.xlu0 %3177
    %v3179 = vsel %vm545, %v3175, -inf
    %3180 = vmax.xlane.f32.xlu0 %v3179
    %v3181 = vpop.xlane.xlu0 %3180
    %v3182 = vsub.f32 %v3174, %v3178
    %v3183 = vsub.f32 %v3175, %v3181
    %v3184 = vmul.f32 %v3182, 1.442695
    %v3185 = vpow.pop %v3184
    %v3186 = vmul.f32 %v3183, 1.442695
    %v3187 = vpow.pop %v3186
    %v3188 = vsel %vm545, %v3185, 0.0
    %3189 = vadd.xlane.f32.xlu0 %v3188
    %v3190 = vpop.xlane.xlu0 %3189
    %v3191 = vsel %vm545, %v3187, 0.0
    %3192 = vadd.xlane.f32.xlu0 %v3191
    %v3193 = vpop.xlane.xlu0 %3192
    %v3194 = vrcp.pop %v3190
    %v3195 = vrcp.pop %v3193
    %v3196 = vmul.f32 %v3185, %v3194
    %v3197 = vmul.f32 %v3187, %v3195
    %3198 = vrot.lane.b32.xlu0 %v2730, 48
    %v3199 = vpop.permute.xlu0 %3198
    %3200 = vrot.lane.b32.xlu0 %v2733, 48
    %v3201 = vpop.permute.xlu0 %3200
    %v3205 = vsel %vm545, %v3196, 0
    %v3208 = vsel %vm545, %v3197, 0
    %3210 = vmatpush.msra.mxu0 0.0
    %3211 = vmatpush.msra.mxu0 0.0
    %3212 = vmatpush.msra.mxu0 0.0
    %3213 = vmatpush.msra.mxu0 0.0
    %3214 = vmatpush.msra.mxu0 0.0
    %3215 = vmatpush.msra.mxu0 0.0
    %3216 = vmatpush.msra.mxu0 0.0
    %3217 = vmatpush.msra.mxu0 0.0
    %3218 = vmatpush.msra.mxu0 0.0
    %3219 = vmatpush.msra.mxu0 0.0
    %3220 = vmatpush.msra.mxu0 0.0
    %3221 = vmatpush.msra.mxu0 0.0
    %3222 = vmatpush.msra.mxu0 0.0
    %3223 = vmatpush.msra.mxu0 0.0
    %3224 = vmatpush.msra.mxu0 %v3201
    %3225 = vmatpush.msra.mxu0 %v3199
    %3226 = vmatmul.f32.gmra.mxu0 %v3205
    %v3227 = vpop.f32.mrf.mxu0
    %v3228 = vadd.f32 0.0, %v3227
    %3229 = vmatmul.f32.gmra.mxu0 %v3208
    %v3230 = vpop.f32.mrf.mxu0
    %v3231 = vadd.f32 0.0, %v3230
    %3232 = vdwg.mxu0
    %3233 = vrot.lane.b32.xlu0 %v2730, 108
    %v3234 = vpop.permute.xlu0 %3233
    %3235 = vrot.lane.b32.xlu0 %v2733, 108
    %v3236 = vpop.permute.xlu0 %3235
    %3237 = vrot.lane.b32.xlu0 %v2730, 76
    %v3238 = vpop.permute.xlu0 %3237
    %3239 = vrot.lane.b32.xlu0 %v2733, 76
    %v3240 = vpop.permute.xlu0 %3239
    %v3241 = vsel %vm509, %v3234, 0
    %v3243 = vsel %vm509, %v3236, 0
    %v3245 = vsel %vm509, %v3238, 0
    %v3247 = vsel %vm509, %v3240, 0
    %3249 = vmatpush.xpose.msra.mxu0 0.0
    %3250 = vmatpush.xpose.msra.mxu0 0.0
    %3251 = vmatpush.xpose.msra.mxu0 0.0
    %3252 = vmatpush.xpose.msra.mxu0 0.0
    %3253 = vmatpush.xpose.msra.mxu0 0.0
    %3254 = vmatpush.xpose.msra.mxu0 0.0
    %3255 = vmatpush.xpose.msra.mxu0 0.0
    %3256 = vmatpush.xpose.msra.mxu0 0.0
    %3257 = vmatpush.xpose.msra.mxu0 0.0
    %3258 = vmatpush.xpose.msra.mxu0 0.0
    %3259 = vmatpush.xpose.msra.mxu0 0.0
    %3260 = vmatpush.xpose.msra.mxu0 0.0
    %3261 = vmatpush.xpose.msra.mxu0 0.0
    %3262 = vmatpush.xpose.msra.mxu0 0.0
    %3263 = vmatpush.xpose.msra.mxu0 %v3247
    %3264 = vmatpush.xpose.msra.mxu0 %v3245
    %3265 = vmatmul.f32.gmra.mxu0 %v3241
    %v3266 = vpop.f32.mrf.mxu0
    %v3267 = vadd.f32 0.0, %v3266
    %3268 = vmatmul.f32.gmra.mxu0 %v3243
    %v3269 = vpop.f32.mrf.mxu0
    %v3270 = vadd.f32 0.0, %v3269
    %3271 = vdwg.mxu0
    %v3272 = vmul.f32 %v3267, 0.5
    %v3273 = vmul.f32 %v3270, 0.5
    %v3274 = vsel %vm459, %v3272, -1e+30
    %v3275 = vsel %vm460, %v3273, -1e+30
    %v3276 = vsel %vm545, %v3274, -inf
    %3277 = vmax.xlane.f32.xlu0 %v3276
    %v3278 = vpop.xlane.xlu0 %3277
    %v3279 = vsel %vm545, %v3275, -inf
    %3280 = vmax.xlane.f32.xlu0 %v3279
    %v3281 = vpop.xlane.xlu0 %3280
    %v3282 = vsub.f32 %v3274, %v3278
    %v3283 = vsub.f32 %v3275, %v3281
    %v3284 = vmul.f32 %v3282, 1.442695
    %v3285 = vpow.pop %v3284
    %v3286 = vmul.f32 %v3283, 1.442695
    %v3287 = vpow.pop %v3286
    %v3288 = vsel %vm545, %v3285, 0.0
    %3289 = vadd.xlane.f32.xlu0 %v3288
    %v3290 = vpop.xlane.xlu0 %3289
    %v3291 = vsel %vm545, %v3287, 0.0
    %3292 = vadd.xlane.f32.xlu0 %v3291
    %v3293 = vpop.xlane.xlu0 %3292
    %v3294 = vrcp.pop %v3290
    %v3295 = vrcp.pop %v3293
    %v3296 = vmul.f32 %v3285, %v3294
    %v3297 = vmul.f32 %v3287, %v3295
    %3298 = vrot.lane.b32.xlu0 %v2730, 44
    %v3299 = vpop.permute.xlu0 %3298
    %3300 = vrot.lane.b32.xlu0 %v2733, 44
    %v3301 = vpop.permute.xlu0 %3300
    %v3305 = vsel %vm545, %v3296, 0
    %v3308 = vsel %vm545, %v3297, 0
    %3310 = vmatpush.msra.mxu0 0.0
    %3311 = vmatpush.msra.mxu0 0.0
    %3312 = vmatpush.msra.mxu0 0.0
    %3313 = vmatpush.msra.mxu0 0.0
    %3314 = vmatpush.msra.mxu0 0.0
    %3315 = vmatpush.msra.mxu0 0.0
    %3316 = vmatpush.msra.mxu0 0.0
    %3317 = vmatpush.msra.mxu0 0.0
    %3318 = vmatpush.msra.mxu0 0.0
    %3319 = vmatpush.msra.mxu0 0.0
    %3320 = vmatpush.msra.mxu0 0.0
    %3321 = vmatpush.msra.mxu0 0.0
    %3322 = vmatpush.msra.mxu0 0.0
    %3323 = vmatpush.msra.mxu0 0.0
    %3324 = vmatpush.msra.mxu0 %v3301
    %3325 = vmatpush.msra.mxu0 %v3299
    %3326 = vmatmul.f32.gmra.mxu0 %v3305
    %v3327 = vpop.f32.mrf.mxu0
    %v3328 = vadd.f32 0.0, %v3327
    %3329 = vmatmul.f32.gmra.mxu0 %v3308
    %v3330 = vpop.f32.mrf.mxu0
    %v3331 = vadd.f32 0.0, %v3330
    %3332 = vdwg.mxu0
    %3333 = vrot.lane.b32.xlu0 %v2730, 104
    %v3334 = vpop.permute.xlu0 %3333
    %3335 = vrot.lane.b32.xlu0 %v2733, 104
    %v3336 = vpop.permute.xlu0 %3335
    %3337 = vrot.lane.b32.xlu0 %v2730, 72
    %v3338 = vpop.permute.xlu0 %3337
    %3339 = vrot.lane.b32.xlu0 %v2733, 72
    %v3340 = vpop.permute.xlu0 %3339
    %v3341 = vsel %vm509, %v3334, 0
    %v3343 = vsel %vm509, %v3336, 0
    %v3345 = vsel %vm509, %v3338, 0
    %v3347 = vsel %vm509, %v3340, 0
    %3349 = vmatpush.xpose.msra.mxu0 0.0
    %3350 = vmatpush.xpose.msra.mxu0 0.0
    %3351 = vmatpush.xpose.msra.mxu0 0.0
    %3352 = vmatpush.xpose.msra.mxu0 0.0
    %3353 = vmatpush.xpose.msra.mxu0 0.0
    %3354 = vmatpush.xpose.msra.mxu0 0.0
    %3355 = vmatpush.xpose.msra.mxu0 0.0
    %3356 = vmatpush.xpose.msra.mxu0 0.0
    %3357 = vmatpush.xpose.msra.mxu0 0.0
    %3358 = vmatpush.xpose.msra.mxu0 0.0
    %3359 = vmatpush.xpose.msra.mxu0 0.0
    %3360 = vmatpush.xpose.msra.mxu0 0.0
    %3361 = vmatpush.xpose.msra.mxu0 0.0
    %3362 = vmatpush.xpose.msra.mxu0 0.0
    %3363 = vmatpush.xpose.msra.mxu0 %v3347
    %3364 = vmatpush.xpose.msra.mxu0 %v3345
    %3365 = vmatmul.f32.gmra.mxu0 %v3341
    %v3366 = vpop.f32.mrf.mxu0
    %v3367 = vadd.f32 0.0, %v3366
    %3368 = vmatmul.f32.gmra.mxu0 %v3343
    %v3369 = vpop.f32.mrf.mxu0
    %v3370 = vadd.f32 0.0, %v3369
    %3371 = vdwg.mxu0
    %v3372 = vmul.f32 %v3367, 0.5
    %v3373 = vmul.f32 %v3370, 0.5
    %v3374 = vsel %vm459, %v3372, -1e+30
    %v3375 = vsel %vm460, %v3373, -1e+30
    %v3376 = vsel %vm545, %v3374, -inf
    %3377 = vmax.xlane.f32.xlu0 %v3376
    %v3378 = vpop.xlane.xlu0 %3377
    %v3379 = vsel %vm545, %v3375, -inf
    %3380 = vmax.xlane.f32.xlu0 %v3379
    %v3381 = vpop.xlane.xlu0 %3380
    %v3382 = vsub.f32 %v3374, %v3378
    %v3383 = vsub.f32 %v3375, %v3381
    %v3384 = vmul.f32 %v3382, 1.442695
    %v3385 = vpow.pop %v3384
    %v3386 = vmul.f32 %v3383, 1.442695
    %v3387 = vpow.pop %v3386
    %v3388 = vsel %vm545, %v3385, 0.0
    %3389 = vadd.xlane.f32.xlu0 %v3388
    %v3390 = vpop.xlane.xlu0 %3389
    %v3391 = vsel %vm545, %v3387, 0.0
    %3392 = vadd.xlane.f32.xlu0 %v3391
    %v3393 = vpop.xlane.xlu0 %3392
    %v3394 = vrcp.pop %v3390
    %v3395 = vrcp.pop %v3393
    %v3396 = vmul.f32 %v3385, %v3394
    %v3397 = vmul.f32 %v3387, %v3395
    %3398 = vrot.lane.b32.xlu0 %v2730, 40
    %v3399 = vpop.permute.xlu0 %3398
    %3400 = vrot.lane.b32.xlu0 %v2733, 40
    %v3401 = vpop.permute.xlu0 %3400
    %v3405 = vsel %vm545, %v3396, 0
    %v3408 = vsel %vm545, %v3397, 0
    %3410 = vmatpush.msra.mxu0 0.0
    %3411 = vmatpush.msra.mxu0 0.0
    %3412 = vmatpush.msra.mxu0 0.0
    %3413 = vmatpush.msra.mxu0 0.0
    %3414 = vmatpush.msra.mxu0 0.0
    %3415 = vmatpush.msra.mxu0 0.0
    %3416 = vmatpush.msra.mxu0 0.0
    %3417 = vmatpush.msra.mxu0 0.0
    %3418 = vmatpush.msra.mxu0 0.0
    %3419 = vmatpush.msra.mxu0 0.0
    %3420 = vmatpush.msra.mxu0 0.0
    %3421 = vmatpush.msra.mxu0 0.0
    %3422 = vmatpush.msra.mxu0 0.0
    %3423 = vmatpush.msra.mxu0 0.0
    %3424 = vmatpush.msra.mxu0 %v3401
    %3425 = vmatpush.msra.mxu0 %v3399
    %3426 = vmatmul.f32.gmra.mxu0 %v3405
    %v3427 = vpop.f32.mrf.mxu0
    %v3428 = vadd.f32 0.0, %v3427
    %3429 = vmatmul.f32.gmra.mxu0 %v3408
    %v3430 = vpop.f32.mrf.mxu0
    %v3431 = vadd.f32 0.0, %v3430
    %3432 = vdwg.mxu0
    %3433 = vrot.lane.b32.xlu0 %v2730, 100
    %v3434 = vpop.permute.xlu0 %3433
    %3435 = vrot.lane.b32.xlu0 %v2733, 100
    %v3436 = vpop.permute.xlu0 %3435
    %3437 = vrot.lane.b32.xlu0 %v2730, 68
    %v3438 = vpop.permute.xlu0 %3437
    %3439 = vrot.lane.b32.xlu0 %v2733, 68
    %v3440 = vpop.permute.xlu0 %3439
    %v3441 = vsel %vm509, %v3434, 0
    %v3443 = vsel %vm509, %v3436, 0
    %v3445 = vsel %vm509, %v3438, 0
    %v3447 = vsel %vm509, %v3440, 0
    %3449 = vmatpush.xpose.msra.mxu0 0.0
    %3450 = vmatpush.xpose.msra.mxu0 0.0
    %3451 = vmatpush.xpose.msra.mxu0 0.0
    %3452 = vmatpush.xpose.msra.mxu0 0.0
    %3453 = vmatpush.xpose.msra.mxu0 0.0
    %3454 = vmatpush.xpose.msra.mxu0 0.0
    %3455 = vmatpush.xpose.msra.mxu0 0.0
    %3456 = vmatpush.xpose.msra.mxu0 0.0
    %3457 = vmatpush.xpose.msra.mxu0 0.0
    %3458 = vmatpush.xpose.msra.mxu0 0.0
    %3459 = vmatpush.xpose.msra.mxu0 0.0
    %3460 = vmatpush.xpose.msra.mxu0 0.0
    %3461 = vmatpush.xpose.msra.mxu0 0.0
    %3462 = vmatpush.xpose.msra.mxu0 0.0
    %3463 = vmatpush.xpose.msra.mxu0 %v3447
    %3464 = vmatpush.xpose.msra.mxu0 %v3445
    %3465 = vmatmul.f32.gmra.mxu0 %v3441
    %v3466 = vpop.f32.mrf.mxu0
    %v3467 = vadd.f32 0.0, %v3466
    %3468 = vmatmul.f32.gmra.mxu0 %v3443
    %v3469 = vpop.f32.mrf.mxu0
    %v3470 = vadd.f32 0.0, %v3469
    %3471 = vdwg.mxu0
    %v3472 = vmul.f32 %v3467, 0.5
    %v3473 = vmul.f32 %v3470, 0.5
    %v3474 = vsel %vm459, %v3472, -1e+30
    %v3475 = vsel %vm460, %v3473, -1e+30
    %v3476 = vsel %vm545, %v3474, -inf
    %3477 = vmax.xlane.f32.xlu0 %v3476
    %v3478 = vpop.xlane.xlu0 %3477
    %v3479 = vsel %vm545, %v3475, -inf
    %3480 = vmax.xlane.f32.xlu0 %v3479
    %v3481 = vpop.xlane.xlu0 %3480
    %v3482 = vsub.f32 %v3474, %v3478
    %v3483 = vsub.f32 %v3475, %v3481
    %v3484 = vmul.f32 %v3482, 1.442695
    %v3485 = vpow.pop %v3484
    %v3486 = vmul.f32 %v3483, 1.442695
    %v3487 = vpow.pop %v3486
    %v3488 = vsel %vm545, %v3485, 0.0
    %3489 = vadd.xlane.f32.xlu0 %v3488
    %v3490 = vpop.xlane.xlu0 %3489
    %v3491 = vsel %vm545, %v3487, 0.0
    %3492 = vadd.xlane.f32.xlu0 %v3491
    %v3493 = vpop.xlane.xlu0 %3492
    %v3494 = vrcp.pop %v3490
    %v3495 = vrcp.pop %v3493
    %v3496 = vmul.f32 %v3485, %v3494
    %v3497 = vmul.f32 %v3487, %v3495
    %3498 = vrot.lane.b32.xlu0 %v2730, 36
    %v3499 = vpop.permute.xlu0 %3498
    %3500 = vrot.lane.b32.xlu0 %v2733, 36
    %v3501 = vpop.permute.xlu0 %3500
    %v3505 = vsel %vm545, %v3496, 0
    %v3508 = vsel %vm545, %v3497, 0
    %3510 = vmatpush.msra.mxu0 0.0
    %3511 = vmatpush.msra.mxu0 0.0
    %3512 = vmatpush.msra.mxu0 0.0
    %3513 = vmatpush.msra.mxu0 0.0
    %3514 = vmatpush.msra.mxu0 0.0
    %3515 = vmatpush.msra.mxu0 0.0
    %3516 = vmatpush.msra.mxu0 0.0
    %3517 = vmatpush.msra.mxu0 0.0
    %3518 = vmatpush.msra.mxu0 0.0
    %3519 = vmatpush.msra.mxu0 0.0
    %3520 = vmatpush.msra.mxu0 0.0
    %3521 = vmatpush.msra.mxu0 0.0
    %3522 = vmatpush.msra.mxu0 0.0
    %3523 = vmatpush.msra.mxu0 0.0
    %3524 = vmatpush.msra.mxu0 %v3501
    %3525 = vmatpush.msra.mxu0 %v3499
    %3526 = vmatmul.f32.gmra.mxu0 %v3505
    %v3527 = vpop.f32.mrf.mxu0
    %v3528 = vadd.f32 0.0, %v3527
    %3529 = vmatmul.f32.gmra.mxu0 %v3508
    %v3530 = vpop.f32.mrf.mxu0
    %v3531 = vadd.f32 0.0, %v3530
    %3532 = vdwg.mxu0
    %3535 = vrot.lane.b32.xlu0 %v2928, 4
    %v3536 = vpop.permute.xlu0 %3535
    %3537 = vrot.lane.b32.xlu0 %v2931, 4
    %v3538 = vpop.permute.xlu0 %3537
    %3543 = vrot.lane.b32.xlu0 %v3028, 8
    %v3544 = vpop.permute.xlu0 %3543
    %3545 = vrot.lane.b32.xlu0 %v3031, 8
    %v3546 = vpop.permute.xlu0 %3545
    %3551 = vrot.lane.b32.xlu0 %v3128, 12
    %v3552 = vpop.permute.xlu0 %3551
    %3553 = vrot.lane.b32.xlu0 %v3131, 12
    %v3554 = vpop.permute.xlu0 %3553
    %3559 = vrot.lane.b32.xlu0 %v3228, 16
    %v3560 = vpop.permute.xlu0 %3559
    %3561 = vrot.lane.b32.xlu0 %v3231, 16
    %v3562 = vpop.permute.xlu0 %3561
    %3567 = vrot.lane.b32.xlu0 %v3328, 20
    %v3568 = vpop.permute.xlu0 %3567
    %3569 = vrot.lane.b32.xlu0 %v3331, 20
    %v3570 = vpop.permute.xlu0 %3569
    %3575 = vrot.lane.b32.xlu0 %v3428, 24
    %v3576 = vpop.permute.xlu0 %3575
    %3577 = vrot.lane.b32.xlu0 %v3431, 24
    %v3578 = vpop.permute.xlu0 %3577
    %3583 = vrot.lane.b32.xlu0 %v3528, 28
    %v3584 = vpop.permute.xlu0 %3583
    %3585 = vrot.lane.b32.xlu0 %v3531, 28
    %v3586 = vpop.permute.xlu0 %3585
    %v3589 = vsel %vm509, %v2828, %v3536
    %v3590 = vsel %vm509, %v2831, %v3538
    %v3591 = vsel %vm1361, %v3589, %v3544
    %v3592 = vsel %vm1361, %v3590, %v3546
    %v3593 = vsel %vm1364, %v3591, %v3552
    %v3594 = vsel %vm1364, %v3592, %v3554
    %v3595 = vsel %vm545, %v3593, %v3560
    %v3596 = vsel %vm545, %v3594, %v3562
    %v3597 = vsel %vm1369, %v3595, %v3568
    %v3598 = vsel %vm1369, %v3596, %v3570
    %v3599 = vsel %vm1372, %v3597, %v3576
    %v3600 = vsel %vm1372, %v3598, %v3578
    %v3601 = vsel %vm1375, %v3599, %v3584
    %v3602 = vsel %vm1375, %v3600, %v3586
    %s3603 = scalar_lea.vmem [#allocation5], 64
    %v3604 = vld [vmem:[%s3603] sm:$0xff]
    %v3605 = vld [vmem:[%s3603 + $0x8] sm:$0xff]
    %v3606 = vld [vmem:[%s3603 + $0x10] sm:$0xff]
    %v3607 = vld [vmem:[%s3603 + $0x18] sm:$0xff]
    %v3608 = vperm.slane %v462, 2
    %v3610 = vsel %vm241, %v3601, 0
    %v3613 = vsel %vm241, %v3602, 0
    %3615 = vmatpush.msra.mxu0 0.0
    %3616 = vmatpush.msra.mxu0 0.0
    %3617 = vmatpush.msra.mxu0 0.0
    %3618 = vmatpush.msra.mxu0 0.0
    %3619 = vmatpush.msra.mxu0 0.0
    %3620 = vmatpush.msra.mxu0 0.0
    %3621 = vmatpush.msra.mxu0 0.0
    %3622 = vmatpush.msra.mxu0 0.0
    %3623 = vmatpush.msra.mxu0 0.0
    %3624 = vmatpush.msra.mxu0 0.0
    %3625 = vmatpush.msra.mxu0 0.0
    %3626 = vmatpush.msra.mxu0 0.0
    %3627 = vmatpush.msra.mxu0 %v3607
    %3628 = vmatpush.msra.mxu0 %v3606
    %3629 = vmatpush.msra.mxu0 %v3605
    %3630 = vmatpush.msra.mxu0 %v3604
    %3631 = vmatmul.f32.gmra.mxu0 %v3610
    %v3632 = vpop.f32.mrf.mxu0
    %v3633 = vadd.f32 %v3608, %v3632
    %3634 = vmatmul.f32.gmra.mxu0 %v3613
    %v3635 = vpop.f32.mrf.mxu0
    %v3636 = vadd.f32 %v3608, %v3635
    %3637 = vdwg.mxu0
    %v3638 = vadd.f32 %v2698, %v3633
    %v3639 = vadd.f32 %v2699, %v3636
    %v3640 = vsel %vm241, %v3638, 0.0
    %3641 = vadd.xlane.f32.xlu0 %v3640
    %v3642 = vpop.xlane.xlu0 %3641
    %v3643 = vsel %vm241, %v3639, 0.0
    %3644 = vadd.xlane.f32.xlu0 %v3643
    %v3645 = vpop.xlane.xlu0 %3644
    %v3646 = vmul.f32 %v3642, %v254
    %v3647 = vmul.f32 %v3645, %v254
    %v3648 = vsub.f32 %v3638, %v3646
    %v3649 = vsub.f32 %v3639, %v3647
    %v3650 = vmul.f32 %v3648, %v3648
    %v3651 = vmul.f32 %v3649, %v3649
    %v3652 = vsel %vm241, %v3650, 0.0
    %3653 = vadd.xlane.f32.xlu0 %v3652
    %v3654 = vpop.xlane.xlu0 %3653
    %v3655 = vsel %vm241, %v3651, 0.0
    %3656 = vadd.xlane.f32.xlu0 %v3655
    %v3657 = vpop.xlane.xlu0 %3656
    %v3658 = vmul.f32 %v3654, %v254
    %v3659 = vmul.f32 %v3657, %v254
    %v3660 = vadd.f32 %v3658, 1e-05
    %v3661 = vadd.f32 %v3659, 1e-05
    %v3662 = vrsqrt.pop %v3660
    %v3663 = vmul.f32 %v3662, %v3660
    %v3664 = vmul.f32 %v3663, %v3662
    %v3665 = vmul.f32 0.5, %v3664
    %v3666 = vsub.f32 1.5, %v3665
    %v3667 = vmul.f32 %v3662, %v3666
    %vm3668 = vweird.f32 %v3660
    %vm3669 = vweird.f32 %v3662
    %vm3670 = vmor %vm3668, %vm3669
    %v3671 = vsel %vm3670, %v3662, %v3667
    %v3672 = vrsqrt.pop %v3661
    %v3673 = vmul.f32 %v3672, %v3661
    %v3674 = vmul.f32 %v3673, %v3672
    %v3675 = vmul.f32 0.5, %v3674
    %v3676 = vsub.f32 1.5, %v3675
    %v3677 = vmul.f32 %v3672, %v3676
    %vm3678 = vweird.f32 %v3661
    %vm3679 = vweird.f32 %v3672
    %vm3680 = vmor %vm3678, %vm3679
    %v3681 = vsel %vm3680, %v3672, %v3677
    %v3682 = vmul.f32 %v3648, %v3671
    %v3683 = vmul.f32 %v3649, %v3681
    %v3684 = vperm.slane %v465, 2
    %v3685 = vmul.f32 %v3682, %v3684
    %v3686 = vmul.f32 %v3683, %v3684
    %v3687 = vperm.slane %v466, 2
    %v3688 = vadd.f32 %v3685, %v3687
    %v3689 = vadd.f32 %v3686, %v3687
    %s3690 = scalar_lea.vmem [#allocation7], 64
    %v3691 = vld [vmem:[%s3690] sm:$0xff]
    %v3692 = vld [vmem:[%s3690 + $0x8] sm:$0xff]
    %v3693 = vld [vmem:[%s3690 + $0x10] sm:$0xff]
    %v3694 = vld [vmem:[%s3690 + $0x18] sm:$0xff]
    %v3695 = vperm.slane %v463, 2
    %v3697 = vsel %vm241, %v3688, 0
    %v3700 = vsel %vm241, %v3689, 0
    %3702 = vmatpush.msra.mxu0 0.0
    %3703 = vmatpush.msra.mxu0 0.0
    %3704 = vmatpush.msra.mxu0 0.0
    %3705 = vmatpush.msra.mxu0 0.0
    %3706 = vmatpush.msra.mxu0 0.0
    %3707 = vmatpush.msra.mxu0 0.0
    %3708 = vmatpush.msra.mxu0 0.0
    %3709 = vmatpush.msra.mxu0 0.0
    %3710 = vmatpush.msra.mxu0 0.0
    %3711 = vmatpush.msra.mxu0 0.0
    %3712 = vmatpush.msra.mxu0 0.0
    %3713 = vmatpush.msra.mxu0 0.0
    %3714 = vmatpush.msra.mxu0 %v3694
    %3715 = vmatpush.msra.mxu0 %v3693
    %3716 = vmatpush.msra.mxu0 %v3692
    %3717 = vmatpush.msra.mxu0 %v3691
    %3718 = vmatmul.f32.gmra.mxu0 %v3697
    %v3719 = vpop.f32.mrf.mxu0
    %v3720 = vadd.f32 %v3695, %v3719
    %3721 = vmatmul.f32.gmra.mxu0 %v3700
    %v3722 = vpop.f32.mrf.mxu0
    %v3723 = vadd.f32 %v3695, %v3722
    %3724 = vdwg.mxu0
    %v3725 = vmax.f32 %v3720, 0.0
    %v3726 = vmax.f32 %v3723, 0.0
    %s3727 = scalar_lea.vmem [#allocation8], 64
    %v3728 = vld [vmem:[%s3727] sm:$0xff]
    %v3729 = vld [vmem:[%s3727 + $0x8] sm:$0xff]
    %v3730 = vld [vmem:[%s3727 + $0x10] sm:$0xff]
    %v3731 = vld [vmem:[%s3727 + $0x18] sm:$0xff]
    %v3732 = vperm.slane %v464, 2
    %v3734 = vsel %vm241, %v3725, 0
    %v3737 = vsel %vm241, %v3726, 0
    %3739 = vmatpush.msra.mxu0 0.0
    %3740 = vmatpush.msra.mxu0 0.0
    %3741 = vmatpush.msra.mxu0 0.0
    %3742 = vmatpush.msra.mxu0 0.0
    %3743 = vmatpush.msra.mxu0 0.0
    %3744 = vmatpush.msra.mxu0 0.0
    %3745 = vmatpush.msra.mxu0 0.0
    %3746 = vmatpush.msra.mxu0 0.0
    %3747 = vmatpush.msra.mxu0 0.0
    %3748 = vmatpush.msra.mxu0 0.0
    %3749 = vmatpush.msra.mxu0 0.0
    %3750 = vmatpush.msra.mxu0 0.0
    %3751 = vmatpush.msra.mxu0 %v3731
    %3752 = vmatpush.msra.mxu0 %v3730
    %3753 = vmatpush.msra.mxu0 %v3729
    %3754 = vmatpush.msra.mxu0 %v3728
    %3755 = vmatmul.f32.gmra.mxu0 %v3734
    %v3756 = vpop.f32.mrf.mxu0
    %v3757 = vadd.f32 %v3732, %v3756
    %3758 = vmatmul.f32.gmra.mxu0 %v3737
    %v3759 = vpop.f32.mrf.mxu0
    %v3760 = vadd.f32 %v3732, %v3759
    %3761 = vdwg.mxu0
    %v3762 = vadd.f32 %v3688, %v3757
    %v3763 = vadd.f32 %v3689, %v3760
    %v3764 = vsel %vm241, %v3762, 0.0
    %3765 = vadd.xlane.f32.xlu0 %v3764
    %v3766 = vpop.xlane.xlu0 %3765
    %v3767 = vsel %vm241, %v3763, 0.0
    %3768 = vadd.xlane.f32.xlu0 %v3767
    %v3769 = vpop.xlane.xlu0 %3768
    %v3770 = vmul.f32 %v3766, %v254
    %v3771 = vmul.f32 %v3769, %v254
    %v3772 = vsub.f32 %v3762, %v3770
    %v3773 = vsub.f32 %v3763, %v3771
    %v3774 = vmul.f32 %v3772, %v3772
    %v3775 = vmul.f32 %v3773, %v3773
    %v3776 = vsel %vm241, %v3774, 0.0
    %3777 = vadd.xlane.f32.xlu0 %v3776
    %v3778 = vpop.xlane.xlu0 %3777
    %v3779 = vsel %vm241, %v3775, 0.0
    %3780 = vadd.xlane.f32.xlu0 %v3779
    %v3781 = vpop.xlane.xlu0 %3780
    %v3782 = vmul.f32 %v3778, %v254
    %v3783 = vmul.f32 %v3781, %v254
    %v3784 = vadd.f32 %v3782, 1e-05
    %v3785 = vadd.f32 %v3783, 1e-05
    %v3786 = vrsqrt.pop %v3784
    %v3787 = vmul.f32 %v3786, %v3784
    %v3788 = vmul.f32 %v3787, %v3786
    %v3789 = vmul.f32 0.5, %v3788
    %v3790 = vsub.f32 1.5, %v3789
    %v3791 = vmul.f32 %v3786, %v3790
    %vm3792 = vweird.f32 %v3784
    %vm3793 = vweird.f32 %v3786
    %vm3794 = vmor %vm3792, %vm3793
    %v3795 = vsel %vm3794, %v3786, %v3791
    %v3796 = vrsqrt.pop %v3785
    %v3797 = vmul.f32 %v3796, %v3785
    %v3798 = vmul.f32 %v3797, %v3796
    %v3799 = vmul.f32 0.5, %v3798
    %v3800 = vsub.f32 1.5, %v3799
    %v3801 = vmul.f32 %v3796, %v3800
    %vm3802 = vweird.f32 %v3785
    %vm3803 = vweird.f32 %v3796
    %vm3804 = vmor %vm3802, %vm3803
    %v3805 = vsel %vm3804, %v3796, %v3801
    %v3806 = vmul.f32 %v3772, %v3795
    %v3807 = vmul.f32 %v3773, %v3805
    %v3808 = vperm.slane %v467, 2
    %v3809 = vmul.f32 %v3806, %v3808
    %v3810 = vmul.f32 %v3807, %v3808
    %v3811 = vperm.slane %v468, 2
    %v3812 = vadd.f32 %v3809, %v3811
    %v3813 = vadd.f32 %v3810, %v3811
    %s3814 = scalar_lea.vmem [#allocation3], 96
    %v3815 = vld [vmem:[%s3814] sm:$0xff]
    %v3816 = vld [vmem:[%s3814 + $0x8] sm:$0xff]
    %v3817 = vld [vmem:[%s3814 + $0x10] sm:$0xff]
    %v3818 = vld [vmem:[%s3814 + $0x18] sm:$0xff]
    %v3819 = vperm.slane %v461, 3
    %v3821 = vsel %vm241, %v3812, 0
    %v3824 = vsel %vm241, %v3813, 0
    %3826 = vmatpush.msra.mxu0 0.0
    %3827 = vmatpush.msra.mxu0 0.0
    %3828 = vmatpush.msra.mxu0 0.0
    %3829 = vmatpush.msra.mxu0 0.0
    %3830 = vmatpush.msra.mxu0 0.0
    %3831 = vmatpush.msra.mxu0 0.0
    %3832 = vmatpush.msra.mxu0 0.0
    %3833 = vmatpush.msra.mxu0 0.0
    %3834 = vmatpush.msra.mxu0 0.0
    %3835 = vmatpush.msra.mxu0 0.0
    %3836 = vmatpush.msra.mxu0 0.0
    %3837 = vmatpush.msra.mxu0 0.0
    %3838 = vmatpush.msra.mxu0 %v3818
    %3839 = vmatpush.msra.mxu0 %v3817
    %3840 = vmatpush.msra.mxu0 %v3816
    %3841 = vmatpush.msra.mxu0 %v3815
    %3842 = vmatmul.f32.gmra.mxu0 %v3821
    %v3843 = vpop.f32.mrf.mxu0
    %v3844 = vadd.f32 %v3819, %v3843
    %3845 = vmatmul.f32.gmra.mxu0 %v3824
    %v3846 = vpop.f32.mrf.mxu0
    %v3847 = vadd.f32 %v3819, %v3846
    %3848 = vdwg.mxu0
    %3851 = vrot.lane.b32.xlu0 %v3844, 96
    %v3852 = vpop.permute.xlu0 %3851
    %3853 = vrot.lane.b32.xlu0 %v3847, 96
    %v3854 = vpop.permute.xlu0 %3853
    %v3855 = vsel %vm509, %v3844, 0
    %v3857 = vsel %vm509, %v3847, 0
    %v3859 = vsel %vm509, %v3852, 0
    %v3861 = vsel %vm509, %v3854, 0
    %3863 = vmatpush.xpose.msra.mxu0 0.0
    %3864 = vmatpush.xpose.msra.mxu0 0.0
    %3865 = vmatpush.xpose.msra.mxu0 0.0
    %3866 = vmatpush.xpose.msra.mxu0 0.0
    %3867 = vmatpush.xpose.msra.mxu0 0.0
    %3868 = vmatpush.xpose.msra.mxu0 0.0
    %3869 = vmatpush.xpose.msra.mxu0 0.0
    %3870 = vmatpush.xpose.msra.mxu0 0.0
    %3871 = vmatpush.xpose.msra.mxu0 0.0
    %3872 = vmatpush.xpose.msra.mxu0 0.0
    %3873 = vmatpush.xpose.msra.mxu0 0.0
    %3874 = vmatpush.xpose.msra.mxu0 0.0
    %3875 = vmatpush.xpose.msra.mxu0 0.0
    %3876 = vmatpush.xpose.msra.mxu0 0.0
    %3877 = vmatpush.xpose.msra.mxu0 %v3861
    %3878 = vmatpush.xpose.msra.mxu0 %v3859
    %3879 = vmatmul.f32.gmra.mxu0 %v3855
    %v3880 = vpop.f32.mrf.mxu0
    %v3881 = vadd.f32 0.0, %v3880
    %3882 = vmatmul.f32.gmra.mxu0 %v3857
    %v3883 = vpop.f32.mrf.mxu0
    %v3884 = vadd.f32 0.0, %v3883
    %3885 = vdwg.mxu0
    %v3886 = vmul.f32 %v3881, 0.5
    %v3887 = vmul.f32 %v3884, 0.5
    %v3888 = vsel %vm459, %v3886, -1e+30
    %v3889 = vsel %vm460, %v3887, -1e+30
    %v3890 = vsel %vm545, %v3888, -inf
    %3891 = vmax.xlane.f32.xlu0 %v3890
    %v3892 = vpop.xlane.xlu0 %3891
    %v3893 = vsel %vm545, %v3889, -inf
    %3894 = vmax.xlane.f32.xlu0 %v3893
    %v3895 = vpop.xlane.xlu0 %3894
    %v3896 = vsub.f32 %v3888, %v3892
    %v3897 = vsub.f32 %v3889, %v3895
    %v3898 = vmul.f32 %v3896, 1.442695
    %v3899 = vpow.pop %v3898
    %v3900 = vmul.f32 %v3897, 1.442695
    %v3901 = vpow.pop %v3900
    %v3902 = vsel %vm545, %v3899, 0.0
    %3903 = vadd.xlane.f32.xlu0 %v3902
    %v3904 = vpop.xlane.xlu0 %3903
    %v3905 = vsel %vm545, %v3901, 0.0
    %3906 = vadd.xlane.f32.xlu0 %v3905
    %v3907 = vpop.xlane.xlu0 %3906
    %v3908 = vrcp.pop %v3904
    %v3909 = vrcp.pop %v3907
    %v3910 = vmul.f32 %v3899, %v3908
    %v3911 = vmul.f32 %v3901, %v3909
    %3912 = vrot.lane.b32.xlu0 %v3844, 64
    %v3913 = vpop.permute.xlu0 %3912
    %3914 = vrot.lane.b32.xlu0 %v3847, 64
    %v3915 = vpop.permute.xlu0 %3914
    %v3919 = vsel %vm545, %v3910, 0
    %v3922 = vsel %vm545, %v3911, 0
    %3924 = vmatpush.msra.mxu0 0.0
    %3925 = vmatpush.msra.mxu0 0.0
    %3926 = vmatpush.msra.mxu0 0.0
    %3927 = vmatpush.msra.mxu0 0.0
    %3928 = vmatpush.msra.mxu0 0.0
    %3929 = vmatpush.msra.mxu0 0.0
    %3930 = vmatpush.msra.mxu0 0.0
    %3931 = vmatpush.msra.mxu0 0.0
    %3932 = vmatpush.msra.mxu0 0.0
    %3933 = vmatpush.msra.mxu0 0.0
    %3934 = vmatpush.msra.mxu0 0.0
    %3935 = vmatpush.msra.mxu0 0.0
    %3936 = vmatpush.msra.mxu0 0.0
    %3937 = vmatpush.msra.mxu0 0.0
    %3938 = vmatpush.msra.mxu0 %v3915
    %3939 = vmatpush.msra.mxu0 %v3913
    %3940 = vmatmul.f32.gmra.mxu0 %v3919
    %v3941 = vpop.f32.mrf.mxu0
    %v3942 = vadd.f32 0.0, %v3941
    %3943 = vmatmul.f32.gmra.mxu0 %v3922
    %v3944 = vpop.f32.mrf.mxu0
    %v3945 = vadd.f32 0.0, %v3944
    %3946 = vdwg.mxu0
    %3947 = vrot.lane.b32.xlu0 %v3844, 124
    %v3948 = vpop.permute.xlu0 %3947
    %3949 = vrot.lane.b32.xlu0 %v3847, 124
    %v3950 = vpop.permute.xlu0 %3949
    %3951 = vrot.lane.b32.xlu0 %v3844, 92
    %v3952 = vpop.permute.xlu0 %3951
    %3953 = vrot.lane.b32.xlu0 %v3847, 92
    %v3954 = vpop.permute.xlu0 %3953
    %v3955 = vsel %vm509, %v3948, 0
    %v3957 = vsel %vm509, %v3950, 0
    %v3959 = vsel %vm509, %v3952, 0
    %v3961 = vsel %vm509, %v3954, 0
    %3963 = vmatpush.xpose.msra.mxu0 0.0
    %3964 = vmatpush.xpose.msra.mxu0 0.0
    %3965 = vmatpush.xpose.msra.mxu0 0.0
    %3966 = vmatpush.xpose.msra.mxu0 0.0
    %3967 = vmatpush.xpose.msra.mxu0 0.0
    %3968 = vmatpush.xpose.msra.mxu0 0.0
    %3969 = vmatpush.xpose.msra.mxu0 0.0
    %3970 = vmatpush.xpose.msra.mxu0 0.0
    %3971 = vmatpush.xpose.msra.mxu0 0.0
    %3972 = vmatpush.xpose.msra.mxu0 0.0
    %3973 = vmatpush.xpose.msra.mxu0 0.0
    %3974 = vmatpush.xpose.msra.mxu0 0.0
    %3975 = vmatpush.xpose.msra.mxu0 0.0
    %3976 = vmatpush.xpose.msra.mxu0 0.0
    %3977 = vmatpush.xpose.msra.mxu0 %v3961
    %3978 = vmatpush.xpose.msra.mxu0 %v3959
    %3979 = vmatmul.f32.gmra.mxu0 %v3955
    %v3980 = vpop.f32.mrf.mxu0
    %v3981 = vadd.f32 0.0, %v3980
    %3982 = vmatmul.f32.gmra.mxu0 %v3957
    %v3983 = vpop.f32.mrf.mxu0
    %v3984 = vadd.f32 0.0, %v3983
    %3985 = vdwg.mxu0
    %v3986 = vmul.f32 %v3981, 0.5
    %v3987 = vmul.f32 %v3984, 0.5
    %v3988 = vsel %vm459, %v3986, -1e+30
    %v3989 = vsel %vm460, %v3987, -1e+30
    %v3990 = vsel %vm545, %v3988, -inf
    %3991 = vmax.xlane.f32.xlu0 %v3990
    %v3992 = vpop.xlane.xlu0 %3991
    %v3993 = vsel %vm545, %v3989, -inf
    %3994 = vmax.xlane.f32.xlu0 %v3993
    %v3995 = vpop.xlane.xlu0 %3994
    %v3996 = vsub.f32 %v3988, %v3992
    %v3997 = vsub.f32 %v3989, %v3995
    %v3998 = vmul.f32 %v3996, 1.442695
    %v3999 = vpow.pop %v3998
    %v4000 = vmul.f32 %v3997, 1.442695
    %v4001 = vpow.pop %v4000
    %v4002 = vsel %vm545, %v3999, 0.0
    %4003 = vadd.xlane.f32.xlu0 %v4002
    %v4004 = vpop.xlane.xlu0 %4003
    %v4005 = vsel %vm545, %v4001, 0.0
    %4006 = vadd.xlane.f32.xlu0 %v4005
    %v4007 = vpop.xlane.xlu0 %4006
    %v4008 = vrcp.pop %v4004
    %v4009 = vrcp.pop %v4007
    %v4010 = vmul.f32 %v3999, %v4008
    %v4011 = vmul.f32 %v4001, %v4009
    %4012 = vrot.lane.b32.xlu0 %v3844, 60
    %v4013 = vpop.permute.xlu0 %4012
    %4014 = vrot.lane.b32.xlu0 %v3847, 60
    %v4015 = vpop.permute.xlu0 %4014
    %v4019 = vsel %vm545, %v4010, 0
    %v4022 = vsel %vm545, %v4011, 0
    %4024 = vmatpush.msra.mxu0 0.0
    %4025 = vmatpush.msra.mxu0 0.0
    %4026 = vmatpush.msra.mxu0 0.0
    %4027 = vmatpush.msra.mxu0 0.0
    %4028 = vmatpush.msra.mxu0 0.0
    %4029 = vmatpush.msra.mxu0 0.0
    %4030 = vmatpush.msra.mxu0 0.0
    %4031 = vmatpush.msra.mxu0 0.0
    %4032 = vmatpush.msra.mxu0 0.0
    %4033 = vmatpush.msra.mxu0 0.0
    %4034 = vmatpush.msra.mxu0 0.0
    %4035 = vmatpush.msra.mxu0 0.0
    %4036 = vmatpush.msra.mxu0 0.0
    %4037 = vmatpush.msra.mxu0 0.0
    %4038 = vmatpush.msra.mxu0 %v4015
    %4039 = vmatpush.msra.mxu0 %v4013
    %4040 = vmatmul.f32.gmra.mxu0 %v4019
    %v4041 = vpop.f32.mrf.mxu0
    %v4042 = vadd.f32 0.0, %v4041
    %4043 = vmatmul.f32.gmra.mxu0 %v4022
    %v4044 = vpop.f32.mrf.mxu0
    %v4045 = vadd.f32 0.0, %v4044
    %4046 = vdwg.mxu0
    %4047 = vrot.lane.b32.xlu0 %v3844, 120
    %v4048 = vpop.permute.xlu0 %4047
    %4049 = vrot.lane.b32.xlu0 %v3847, 120
    %v4050 = vpop.permute.xlu0 %4049
    %4051 = vrot.lane.b32.xlu0 %v3844, 88
    %v4052 = vpop.permute.xlu0 %4051
    %4053 = vrot.lane.b32.xlu0 %v3847, 88
    %v4054 = vpop.permute.xlu0 %4053
    %v4055 = vsel %vm509, %v4048, 0
    %v4057 = vsel %vm509, %v4050, 0
    %v4059 = vsel %vm509, %v4052, 0
    %v4061 = vsel %vm509, %v4054, 0
    %4063 = vmatpush.xpose.msra.mxu0 0.0
    %4064 = vmatpush.xpose.msra.mxu0 0.0
    %4065 = vmatpush.xpose.msra.mxu0 0.0
    %4066 = vmatpush.xpose.msra.mxu0 0.0
    %4067 = vmatpush.xpose.msra.mxu0 0.0
    %4068 = vmatpush.xpose.msra.mxu0 0.0
    %4069 = vmatpush.xpose.msra.mxu0 0.0
    %4070 = vmatpush.xpose.msra.mxu0 0.0
    %4071 = vmatpush.xpose.msra.mxu0 0.0
    %4072 = vmatpush.xpose.msra.mxu0 0.0
    %4073 = vmatpush.xpose.msra.mxu0 0.0
    %4074 = vmatpush.xpose.msra.mxu0 0.0
    %4075 = vmatpush.xpose.msra.mxu0 0.0
    %4076 = vmatpush.xpose.msra.mxu0 0.0
    %4077 = vmatpush.xpose.msra.mxu0 %v4061
    %4078 = vmatpush.xpose.msra.mxu0 %v4059
    %4079 = vmatmul.f32.gmra.mxu0 %v4055
    %v4080 = vpop.f32.mrf.mxu0
    %v4081 = vadd.f32 0.0, %v4080
    %4082 = vmatmul.f32.gmra.mxu0 %v4057
    %v4083 = vpop.f32.mrf.mxu0
    %v4084 = vadd.f32 0.0, %v4083
    %4085 = vdwg.mxu0
    %v4086 = vmul.f32 %v4081, 0.5
    %v4087 = vmul.f32 %v4084, 0.5
    %v4088 = vsel %vm459, %v4086, -1e+30
    %v4089 = vsel %vm460, %v4087, -1e+30
    %v4090 = vsel %vm545, %v4088, -inf
    %4091 = vmax.xlane.f32.xlu0 %v4090
    %v4092 = vpop.xlane.xlu0 %4091
    %v4093 = vsel %vm545, %v4089, -inf
    %4094 = vmax.xlane.f32.xlu0 %v4093
    %v4095 = vpop.xlane.xlu0 %4094
    %v4096 = vsub.f32 %v4088, %v4092
    %v4097 = vsub.f32 %v4089, %v4095
    %v4098 = vmul.f32 %v4096, 1.442695
    %v4099 = vpow.pop %v4098
    %v4100 = vmul.f32 %v4097, 1.442695
    %v4101 = vpow.pop %v4100
    %v4102 = vsel %vm545, %v4099, 0.0
    %4103 = vadd.xlane.f32.xlu0 %v4102
    %v4104 = vpop.xlane.xlu0 %4103
    %v4105 = vsel %vm545, %v4101, 0.0
    %4106 = vadd.xlane.f32.xlu0 %v4105
    %v4107 = vpop.xlane.xlu0 %4106
    %v4108 = vrcp.pop %v4104
    %v4109 = vrcp.pop %v4107
    %v4110 = vmul.f32 %v4099, %v4108
    %v4111 = vmul.f32 %v4101, %v4109
    %4112 = vrot.lane.b32.xlu0 %v3844, 56
    %v4113 = vpop.permute.xlu0 %4112
    %4114 = vrot.lane.b32.xlu0 %v3847, 56
    %v4115 = vpop.permute.xlu0 %4114
    %v4119 = vsel %vm545, %v4110, 0
    %v4122 = vsel %vm545, %v4111, 0
    %4124 = vmatpush.msra.mxu0 0.0
    %4125 = vmatpush.msra.mxu0 0.0
    %4126 = vmatpush.msra.mxu0 0.0
    %4127 = vmatpush.msra.mxu0 0.0
    %4128 = vmatpush.msra.mxu0 0.0
    %4129 = vmatpush.msra.mxu0 0.0
    %4130 = vmatpush.msra.mxu0 0.0
    %4131 = vmatpush.msra.mxu0 0.0
    %4132 = vmatpush.msra.mxu0 0.0
    %4133 = vmatpush.msra.mxu0 0.0
    %4134 = vmatpush.msra.mxu0 0.0
    %4135 = vmatpush.msra.mxu0 0.0
    %4136 = vmatpush.msra.mxu0 0.0
    %4137 = vmatpush.msra.mxu0 0.0
    %4138 = vmatpush.msra.mxu0 %v4115
    %4139 = vmatpush.msra.mxu0 %v4113
    %4140 = vmatmul.f32.gmra.mxu0 %v4119
    %v4141 = vpop.f32.mrf.mxu0
    %v4142 = vadd.f32 0.0, %v4141
    %4143 = vmatmul.f32.gmra.mxu0 %v4122
    %v4144 = vpop.f32.mrf.mxu0
    %v4145 = vadd.f32 0.0, %v4144
    %4146 = vdwg.mxu0
    %4147 = vrot.lane.b32.xlu0 %v3844, 116
    %v4148 = vpop.permute.xlu0 %4147
    %4149 = vrot.lane.b32.xlu0 %v3847, 116
    %v4150 = vpop.permute.xlu0 %4149
    %4151 = vrot.lane.b32.xlu0 %v3844, 84
    %v4152 = vpop.permute.xlu0 %4151
    %4153 = vrot.lane.b32.xlu0 %v3847, 84
    %v4154 = vpop.permute.xlu0 %4153
    %v4155 = vsel %vm509, %v4148, 0
    %v4157 = vsel %vm509, %v4150, 0
    %v4159 = vsel %vm509, %v4152, 0
    %v4161 = vsel %vm509, %v4154, 0
    %4163 = vmatpush.xpose.msra.mxu0 0.0
    %4164 = vmatpush.xpose.msra.mxu0 0.0
    %4165 = vmatpush.xpose.msra.mxu0 0.0
    %4166 = vmatpush.xpose.msra.mxu0 0.0
    %4167 = vmatpush.xpose.msra.mxu0 0.0
    %4168 = vmatpush.xpose.msra.mxu0 0.0
    %4169 = vmatpush.xpose.msra.mxu0 0.0
    %4170 = vmatpush.xpose.msra.mxu0 0.0
    %4171 = vmatpush.xpose.msra.mxu0 0.0
    %4172 = vmatpush.xpose.msra.mxu0 0.0
    %4173 = vmatpush.xpose.msra.mxu0 0.0
    %4174 = vmatpush.xpose.msra.mxu0 0.0
    %4175 = vmatpush.xpose.msra.mxu0 0.0
    %4176 = vmatpush.xpose.msra.mxu0 0.0
    %4177 = vmatpush.xpose.msra.mxu0 %v4161
    %4178 = vmatpush.xpose.msra.mxu0 %v4159
    %4179 = vmatmul.f32.gmra.mxu0 %v4155
    %v4180 = vpop.f32.mrf.mxu0
    %v4181 = vadd.f32 0.0, %v4180
    %4182 = vmatmul.f32.gmra.mxu0 %v4157
    %v4183 = vpop.f32.mrf.mxu0
    %v4184 = vadd.f32 0.0, %v4183
    %4185 = vdwg.mxu0
    %v4186 = vmul.f32 %v4181, 0.5
    %v4187 = vmul.f32 %v4184, 0.5
    %v4188 = vsel %vm459, %v4186, -1e+30
    %v4189 = vsel %vm460, %v4187, -1e+30
    %v4190 = vsel %vm545, %v4188, -inf
    %4191 = vmax.xlane.f32.xlu0 %v4190
    %v4192 = vpop.xlane.xlu0 %4191
    %v4193 = vsel %vm545, %v4189, -inf
    %4194 = vmax.xlane.f32.xlu0 %v4193
    %v4195 = vpop.xlane.xlu0 %4194
    %v4196 = vsub.f32 %v4188, %v4192
    %v4197 = vsub.f32 %v4189, %v4195
    %v4198 = vmul.f32 %v4196, 1.442695
    %v4199 = vpow.pop %v4198
    %v4200 = vmul.f32 %v4197, 1.442695
    %v4201 = vpow.pop %v4200
    %v4202 = vsel %vm545, %v4199, 0.0
    %4203 = vadd.xlane.f32.xlu0 %v4202
    %v4204 = vpop.xlane.xlu0 %4203
    %v4205 = vsel %vm545, %v4201, 0.0
    %4206 = vadd.xlane.f32.xlu0 %v4205
    %v4207 = vpop.xlane.xlu0 %4206
    %v4208 = vrcp.pop %v4204
    %v4209 = vrcp.pop %v4207
    %v4210 = vmul.f32 %v4199, %v4208
    %v4211 = vmul.f32 %v4201, %v4209
    %4212 = vrot.lane.b32.xlu0 %v3844, 52
    %v4213 = vpop.permute.xlu0 %4212
    %4214 = vrot.lane.b32.xlu0 %v3847, 52
    %v4215 = vpop.permute.xlu0 %4214
    %v4219 = vsel %vm545, %v4210, 0
    %v4222 = vsel %vm545, %v4211, 0
    %4224 = vmatpush.msra.mxu0 0.0
    %4225 = vmatpush.msra.mxu0 0.0
    %4226 = vmatpush.msra.mxu0 0.0
    %4227 = vmatpush.msra.mxu0 0.0
    %4228 = vmatpush.msra.mxu0 0.0
    %4229 = vmatpush.msra.mxu0 0.0
    %4230 = vmatpush.msra.mxu0 0.0
    %4231 = vmatpush.msra.mxu0 0.0
    %4232 = vmatpush.msra.mxu0 0.0
    %4233 = vmatpush.msra.mxu0 0.0
    %4234 = vmatpush.msra.mxu0 0.0
    %4235 = vmatpush.msra.mxu0 0.0
    %4236 = vmatpush.msra.mxu0 0.0
    %4237 = vmatpush.msra.mxu0 0.0
    %4238 = vmatpush.msra.mxu0 %v4215
    %4239 = vmatpush.msra.mxu0 %v4213
    %4240 = vmatmul.f32.gmra.mxu0 %v4219
    %v4241 = vpop.f32.mrf.mxu0
    %v4242 = vadd.f32 0.0, %v4241
    %4243 = vmatmul.f32.gmra.mxu0 %v4222
    %v4244 = vpop.f32.mrf.mxu0
    %v4245 = vadd.f32 0.0, %v4244
    %4246 = vdwg.mxu0
    %4247 = vrot.lane.b32.xlu0 %v3844, 112
    %v4248 = vpop.permute.xlu0 %4247
    %4249 = vrot.lane.b32.xlu0 %v3847, 112
    %v4250 = vpop.permute.xlu0 %4249
    %4251 = vrot.lane.b32.xlu0 %v3844, 80
    %v4252 = vpop.permute.xlu0 %4251
    %4253 = vrot.lane.b32.xlu0 %v3847, 80
    %v4254 = vpop.permute.xlu0 %4253
    %v4255 = vsel %vm509, %v4248, 0
    %v4257 = vsel %vm509, %v4250, 0
    %v4259 = vsel %vm509, %v4252, 0
    %v4261 = vsel %vm509, %v4254, 0
    %4263 = vmatpush.xpose.msra.mxu0 0.0
    %4264 = vmatpush.xpose.msra.mxu0 0.0
    %4265 = vmatpush.xpose.msra.mxu0 0.0
    %4266 = vmatpush.xpose.msra.mxu0 0.0
    %4267 = vmatpush.xpose.msra.mxu0 0.0
    %4268 = vmatpush.xpose.msra.mxu0 0.0
    %4269 = vmatpush.xpose.msra.mxu0 0.0
    %4270 = vmatpush.xpose.msra.mxu0 0.0
    %4271 = vmatpush.xpose.msra.mxu0 0.0
    %4272 = vmatpush.xpose.msra.mxu0 0.0
    %4273 = vmatpush.xpose.msra.mxu0 0.0
    %4274 = vmatpush.xpose.msra.mxu0 0.0
    %4275 = vmatpush.xpose.msra.mxu0 0.0
    %4276 = vmatpush.xpose.msra.mxu0 0.0
    %4277 = vmatpush.xpose.msra.mxu0 %v4261
    %4278 = vmatpush.xpose.msra.mxu0 %v4259
    %4279 = vmatmul.f32.gmra.mxu0 %v4255
    %v4280 = vpop.f32.mrf.mxu0
    %v4281 = vadd.f32 0.0, %v4280
    %4282 = vmatmul.f32.gmra.mxu0 %v4257
    %v4283 = vpop.f32.mrf.mxu0
    %v4284 = vadd.f32 0.0, %v4283
    %4285 = vdwg.mxu0
    %v4286 = vmul.f32 %v4281, 0.5
    %v4287 = vmul.f32 %v4284, 0.5
    %v4288 = vsel %vm459, %v4286, -1e+30
    %v4289 = vsel %vm460, %v4287, -1e+30
    %v4290 = vsel %vm545, %v4288, -inf
    %4291 = vmax.xlane.f32.xlu0 %v4290
    %v4292 = vpop.xlane.xlu0 %4291
    %v4293 = vsel %vm545, %v4289, -inf
    %4294 = vmax.xlane.f32.xlu0 %v4293
    %v4295 = vpop.xlane.xlu0 %4294
    %v4296 = vsub.f32 %v4288, %v4292
    %v4297 = vsub.f32 %v4289, %v4295
    %v4298 = vmul.f32 %v4296, 1.442695
    %v4299 = vpow.pop %v4298
    %v4300 = vmul.f32 %v4297, 1.442695
    %v4301 = vpow.pop %v4300
    %v4302 = vsel %vm545, %v4299, 0.0
    %4303 = vadd.xlane.f32.xlu0 %v4302
    %v4304 = vpop.xlane.xlu0 %4303
    %v4305 = vsel %vm545, %v4301, 0.0
    %4306 = vadd.xlane.f32.xlu0 %v4305
    %v4307 = vpop.xlane.xlu0 %4306
    %v4308 = vrcp.pop %v4304
    %v4309 = vrcp.pop %v4307
    %v4310 = vmul.f32 %v4299, %v4308
    %v4311 = vmul.f32 %v4301, %v4309
    %4312 = vrot.lane.b32.xlu0 %v3844, 48
    %v4313 = vpop.permute.xlu0 %4312
    %4314 = vrot.lane.b32.xlu0 %v3847, 48
    %v4315 = vpop.permute.xlu0 %4314
    %v4319 = vsel %vm545, %v4310, 0
    %v4322 = vsel %vm545, %v4311, 0
    %4324 = vmatpush.msra.mxu0 0.0
    %4325 = vmatpush.msra.mxu0 0.0
    %4326 = vmatpush.msra.mxu0 0.0
    %4327 = vmatpush.msra.mxu0 0.0
    %4328 = vmatpush.msra.mxu0 0.0
    %4329 = vmatpush.msra.mxu0 0.0
    %4330 = vmatpush.msra.mxu0 0.0
    %4331 = vmatpush.msra.mxu0 0.0
    %4332 = vmatpush.msra.mxu0 0.0
    %4333 = vmatpush.msra.mxu0 0.0
    %4334 = vmatpush.msra.mxu0 0.0
    %4335 = vmatpush.msra.mxu0 0.0
    %4336 = vmatpush.msra.mxu0 0.0
    %4337 = vmatpush.msra.mxu0 0.0
    %4338 = vmatpush.msra.mxu0 %v4315
    %4339 = vmatpush.msra.mxu0 %v4313
    %4340 = vmatmul.f32.gmra.mxu0 %v4319
    %v4341 = vpop.f32.mrf.mxu0
    %v4342 = vadd.f32 0.0, %v4341
    %4343 = vmatmul.f32.gmra.mxu0 %v4322
    %v4344 = vpop.f32.mrf.mxu0
    %v4345 = vadd.f32 0.0, %v4344
    %4346 = vdwg.mxu0
    %4347 = vrot.lane.b32.xlu0 %v3844, 108
    %v4348 = vpop.permute.xlu0 %4347
    %4349 = vrot.lane.b32.xlu0 %v3847, 108
    %v4350 = vpop.permute.xlu0 %4349
    %4351 = vrot.lane.b32.xlu0 %v3844, 76
    %v4352 = vpop.permute.xlu0 %4351
    %4353 = vrot.lane.b32.xlu0 %v3847, 76
    %v4354 = vpop.permute.xlu0 %4353
    %v4355 = vsel %vm509, %v4348, 0
    %v4357 = vsel %vm509, %v4350, 0
    %v4359 = vsel %vm509, %v4352, 0
    %v4361 = vsel %vm509, %v4354, 0
    %4363 = vmatpush.xpose.msra.mxu0 0.0
    %4364 = vmatpush.xpose.msra.mxu0 0.0
    %4365 = vmatpush.xpose.msra.mxu0 0.0
    %4366 = vmatpush.xpose.msra.mxu0 0.0
    %4367 = vmatpush.xpose.msra.mxu0 0.0
    %4368 = vmatpush.xpose.msra.mxu0 0.0
    %4369 = vmatpush.xpose.msra.mxu0 0.0
    %4370 = vmatpush.xpose.msra.mxu0 0.0
    %4371 = vmatpush.xpose.msra.mxu0 0.0
    %4372 = vmatpush.xpose.msra.mxu0 0.0
    %4373 = vmatpush.xpose.msra.mxu0 0.0
    %4374 = vmatpush.xpose.msra.mxu0 0.0
    %4375 = vmatpush.xpose.msra.mxu0 0.0
    %4376 = vmatpush.xpose.msra.mxu0 0.0
    %4377 = vmatpush.xpose.msra.mxu0 %v4361
    %4378 = vmatpush.xpose.msra.mxu0 %v4359
    %4379 = vmatmul.f32.gmra.mxu0 %v4355
    %v4380 = vpop.f32.mrf.mxu0
    %v4381 = vadd.f32 0.0, %v4380
    %4382 = vmatmul.f32.gmra.mxu0 %v4357
    %v4383 = vpop.f32.mrf.mxu0
    %v4384 = vadd.f32 0.0, %v4383
    %4385 = vdwg.mxu0
    %v4386 = vmul.f32 %v4381, 0.5
    %v4387 = vmul.f32 %v4384, 0.5
    %v4388 = vsel %vm459, %v4386, -1e+30
    %v4389 = vsel %vm460, %v4387, -1e+30
    %v4390 = vsel %vm545, %v4388, -inf
    %4391 = vmax.xlane.f32.xlu0 %v4390
    %v4392 = vpop.xlane.xlu0 %4391
    %v4393 = vsel %vm545, %v4389, -inf
    %4394 = vmax.xlane.f32.xlu0 %v4393
    %v4395 = vpop.xlane.xlu0 %4394
    %v4396 = vsub.f32 %v4388, %v4392
    %v4397 = vsub.f32 %v4389, %v4395
    %v4398 = vmul.f32 %v4396, 1.442695
    %v4399 = vpow.pop %v4398
    %v4400 = vmul.f32 %v4397, 1.442695
    %v4401 = vpow.pop %v4400
    %v4402 = vsel %vm545, %v4399, 0.0
    %4403 = vadd.xlane.f32.xlu0 %v4402
    %v4404 = vpop.xlane.xlu0 %4403
    %v4405 = vsel %vm545, %v4401, 0.0
    %4406 = vadd.xlane.f32.xlu0 %v4405
    %v4407 = vpop.xlane.xlu0 %4406
    %v4408 = vrcp.pop %v4404
    %v4409 = vrcp.pop %v4407
    %v4410 = vmul.f32 %v4399, %v4408
    %v4411 = vmul.f32 %v4401, %v4409
    %4412 = vrot.lane.b32.xlu0 %v3844, 44
    %v4413 = vpop.permute.xlu0 %4412
    %4414 = vrot.lane.b32.xlu0 %v3847, 44
    %v4415 = vpop.permute.xlu0 %4414
    %v4419 = vsel %vm545, %v4410, 0
    %v4422 = vsel %vm545, %v4411, 0
    %4424 = vmatpush.msra.mxu0 0.0
    %4425 = vmatpush.msra.mxu0 0.0
    %4426 = vmatpush.msra.mxu0 0.0
    %4427 = vmatpush.msra.mxu0 0.0
    %4428 = vmatpush.msra.mxu0 0.0
    %4429 = vmatpush.msra.mxu0 0.0
    %4430 = vmatpush.msra.mxu0 0.0
    %4431 = vmatpush.msra.mxu0 0.0
    %4432 = vmatpush.msra.mxu0 0.0
    %4433 = vmatpush.msra.mxu0 0.0
    %4434 = vmatpush.msra.mxu0 0.0
    %4435 = vmatpush.msra.mxu0 0.0
    %4436 = vmatpush.msra.mxu0 0.0
    %4437 = vmatpush.msra.mxu0 0.0
    %4438 = vmatpush.msra.mxu0 %v4415
    %4439 = vmatpush.msra.mxu0 %v4413
    %4440 = vmatmul.f32.gmra.mxu0 %v4419
    %v4441 = vpop.f32.mrf.mxu0
    %v4442 = vadd.f32 0.0, %v4441
    %4443 = vmatmul.f32.gmra.mxu0 %v4422
    %v4444 = vpop.f32.mrf.mxu0
    %v4445 = vadd.f32 0.0, %v4444
    %4446 = vdwg.mxu0
    %4447 = vrot.lane.b32.xlu0 %v3844, 104
    %v4448 = vpop.permute.xlu0 %4447
    %4449 = vrot.lane.b32.xlu0 %v3847, 104
    %v4450 = vpop.permute.xlu0 %4449
    %4451 = vrot.lane.b32.xlu0 %v3844, 72
    %v4452 = vpop.permute.xlu0 %4451
    %4453 = vrot.lane.b32.xlu0 %v3847, 72
    %v4454 = vpop.permute.xlu0 %4453
    %v4455 = vsel %vm509, %v4448, 0
    %v4457 = vsel %vm509, %v4450, 0
    %v4459 = vsel %vm509, %v4452, 0
    %v4461 = vsel %vm509, %v4454, 0
    %4463 = vmatpush.xpose.msra.mxu0 0.0
    %4464 = vmatpush.xpose.msra.mxu0 0.0
    %4465 = vmatpush.xpose.msra.mxu0 0.0
    %4466 = vmatpush.xpose.msra.mxu0 0.0
    %4467 = vmatpush.xpose.msra.mxu0 0.0
    %4468 = vmatpush.xpose.msra.mxu0 0.0
    %4469 = vmatpush.xpose.msra.mxu0 0.0
    %4470 = vmatpush.xpose.msra.mxu0 0.0
    %4471 = vmatpush.xpose.msra.mxu0 0.0
    %4472 = vmatpush.xpose.msra.mxu0 0.0
    %4473 = vmatpush.xpose.msra.mxu0 0.0
    %4474 = vmatpush.xpose.msra.mxu0 0.0
    %4475 = vmatpush.xpose.msra.mxu0 0.0
    %4476 = vmatpush.xpose.msra.mxu0 0.0
    %4477 = vmatpush.xpose.msra.mxu0 %v4461
    %4478 = vmatpush.xpose.msra.mxu0 %v4459
    %4479 = vmatmul.f32.gmra.mxu0 %v4455
    %v4480 = vpop.f32.mrf.mxu0
    %v4481 = vadd.f32 0.0, %v4480
    %4482 = vmatmul.f32.gmra.mxu0 %v4457
    %v4483 = vpop.f32.mrf.mxu0
    %v4484 = vadd.f32 0.0, %v4483
    %4485 = vdwg.mxu0
    %v4486 = vmul.f32 %v4481, 0.5
    %v4487 = vmul.f32 %v4484, 0.5
    %v4488 = vsel %vm459, %v4486, -1e+30
    %v4489 = vsel %vm460, %v4487, -1e+30
    %v4490 = vsel %vm545, %v4488, -inf
    %4491 = vmax.xlane.f32.xlu0 %v4490
    %v4492 = vpop.xlane.xlu0 %4491
    %v4493 = vsel %vm545, %v4489, -inf
    %4494 = vmax.xlane.f32.xlu0 %v4493
    %v4495 = vpop.xlane.xlu0 %4494
    %v4496 = vsub.f32 %v4488, %v4492
    %v4497 = vsub.f32 %v4489, %v4495
    %v4498 = vmul.f32 %v4496, 1.442695
    %v4499 = vpow.pop %v4498
    %v4500 = vmul.f32 %v4497, 1.442695
    %v4501 = vpow.pop %v4500
    %v4502 = vsel %vm545, %v4499, 0.0
    %4503 = vadd.xlane.f32.xlu0 %v4502
    %v4504 = vpop.xlane.xlu0 %4503
    %v4505 = vsel %vm545, %v4501, 0.0
    %4506 = vadd.xlane.f32.xlu0 %v4505
    %v4507 = vpop.xlane.xlu0 %4506
    %v4508 = vrcp.pop %v4504
    %v4509 = vrcp.pop %v4507
    %v4510 = vmul.f32 %v4499, %v4508
    %v4511 = vmul.f32 %v4501, %v4509
    %4512 = vrot.lane.b32.xlu0 %v3844, 40
    %v4513 = vpop.permute.xlu0 %4512
    %4514 = vrot.lane.b32.xlu0 %v3847, 40
    %v4515 = vpop.permute.xlu0 %4514
    %v4519 = vsel %vm545, %v4510, 0
    %v4522 = vsel %vm545, %v4511, 0
    %4524 = vmatpush.msra.mxu0 0.0
    %4525 = vmatpush.msra.mxu0 0.0
    %4526 = vmatpush.msra.mxu0 0.0
    %4527 = vmatpush.msra.mxu0 0.0
    %4528 = vmatpush.msra.mxu0 0.0
    %4529 = vmatpush.msra.mxu0 0.0
    %4530 = vmatpush.msra.mxu0 0.0
    %4531 = vmatpush.msra.mxu0 0.0
    %4532 = vmatpush.msra.mxu0 0.0
    %4533 = vmatpush.msra.mxu0 0.0
    %4534 = vmatpush.msra.mxu0 0.0
    %4535 = vmatpush.msra.mxu0 0.0
    %4536 = vmatpush.msra.mxu0 0.0
    %4537 = vmatpush.msra.mxu0 0.0
    %4538 = vmatpush.msra.mxu0 %v4515
    %4539 = vmatpush.msra.mxu0 %v4513
    %4540 = vmatmul.f32.gmra.mxu0 %v4519
    %v4541 = vpop.f32.mrf.mxu0
    %v4542 = vadd.f32 0.0, %v4541
    %4543 = vmatmul.f32.gmra.mxu0 %v4522
    %v4544 = vpop.f32.mrf.mxu0
    %v4545 = vadd.f32 0.0, %v4544
    %4546 = vdwg.mxu0
    %4547 = vrot.lane.b32.xlu0 %v3844, 100
    %v4548 = vpop.permute.xlu0 %4547
    %4549 = vrot.lane.b32.xlu0 %v3847, 100
    %v4550 = vpop.permute.xlu0 %4549
    %4551 = vrot.lane.b32.xlu0 %v3844, 68
    %v4552 = vpop.permute.xlu0 %4551
    %4553 = vrot.lane.b32.xlu0 %v3847, 68
    %v4554 = vpop.permute.xlu0 %4553
    %v4555 = vsel %vm509, %v4548, 0
    %v4557 = vsel %vm509, %v4550, 0
    %v4559 = vsel %vm509, %v4552, 0
    %v4561 = vsel %vm509, %v4554, 0
    %4563 = vmatpush.xpose.msra.mxu0 0.0
    %4564 = vmatpush.xpose.msra.mxu0 0.0
    %4565 = vmatpush.xpose.msra.mxu0 0.0
    %4566 = vmatpush.xpose.msra.mxu0 0.0
    %4567 = vmatpush.xpose.msra.mxu0 0.0
    %4568 = vmatpush.xpose.msra.mxu0 0.0
    %4569 = vmatpush.xpose.msra.mxu0 0.0
    %4570 = vmatpush.xpose.msra.mxu0 0.0
    %4571 = vmatpush.xpose.msra.mxu0 0.0
    %4572 = vmatpush.xpose.msra.mxu0 0.0
    %4573 = vmatpush.xpose.msra.mxu0 0.0
    %4574 = vmatpush.xpose.msra.mxu0 0.0
    %4575 = vmatpush.xpose.msra.mxu0 0.0
    %4576 = vmatpush.xpose.msra.mxu0 0.0
    %4577 = vmatpush.xpose.msra.mxu0 %v4561
    %4578 = vmatpush.xpose.msra.mxu0 %v4559
    %4579 = vmatmul.f32.gmra.mxu0 %v4555
    %v4580 = vpop.f32.mrf.mxu0
    %v4581 = vadd.f32 0.0, %v4580
    %4582 = vmatmul.f32.gmra.mxu0 %v4557
    %v4583 = vpop.f32.mrf.mxu0
    %v4584 = vadd.f32 0.0, %v4583
    %4585 = vdwg.mxu0
    %v4586 = vmul.f32 %v4581, 0.5
    %v4587 = vmul.f32 %v4584, 0.5
    %v4588 = vsel %vm459, %v4586, -1e+30
    %v4589 = vsel %vm460, %v4587, -1e+30
    %v4590 = vsel %vm545, %v4588, -inf
    %4591 = vmax.xlane.f32.xlu0 %v4590
    %v4592 = vpop.xlane.xlu0 %4591
    %v4593 = vsel %vm545, %v4589, -inf
    %4594 = vmax.xlane.f32.xlu0 %v4593
    %v4595 = vpop.xlane.xlu0 %4594
    %v4596 = vsub.f32 %v4588, %v4592
    %v4597 = vsub.f32 %v4589, %v4595
    %v4598 = vmul.f32 %v4596, 1.442695
    %v4599 = vpow.pop %v4598
    %v4600 = vmul.f32 %v4597, 1.442695
    %v4601 = vpow.pop %v4600
    %v4602 = vsel %vm545, %v4599, 0.0
    %4603 = vadd.xlane.f32.xlu0 %v4602
    %v4604 = vpop.xlane.xlu0 %4603
    %v4605 = vsel %vm545, %v4601, 0.0
    %4606 = vadd.xlane.f32.xlu0 %v4605
    %v4607 = vpop.xlane.xlu0 %4606
    %v4608 = vrcp.pop %v4604
    %v4609 = vrcp.pop %v4607
    %v4610 = vmul.f32 %v4599, %v4608
    %v4611 = vmul.f32 %v4601, %v4609
    %4612 = vrot.lane.b32.xlu0 %v3844, 36
    %v4613 = vpop.permute.xlu0 %4612
    %4614 = vrot.lane.b32.xlu0 %v3847, 36
    %v4615 = vpop.permute.xlu0 %4614
    %v4619 = vsel %vm545, %v4610, 0
    %v4622 = vsel %vm545, %v4611, 0
    %4624 = vmatpush.msra.mxu0 0.0
    %4625 = vmatpush.msra.mxu0 0.0
    %4626 = vmatpush.msra.mxu0 0.0
    %4627 = vmatpush.msra.mxu0 0.0
    %4628 = vmatpush.msra.mxu0 0.0
    %4629 = vmatpush.msra.mxu0 0.0
    %4630 = vmatpush.msra.mxu0 0.0
    %4631 = vmatpush.msra.mxu0 0.0
    %4632 = vmatpush.msra.mxu0 0.0
    %4633 = vmatpush.msra.mxu0 0.0
    %4634 = vmatpush.msra.mxu0 0.0
    %4635 = vmatpush.msra.mxu0 0.0
    %4636 = vmatpush.msra.mxu0 0.0
    %4637 = vmatpush.msra.mxu0 0.0
    %4638 = vmatpush.msra.mxu0 %v4615
    %4639 = vmatpush.msra.mxu0 %v4613
    %4640 = vmatmul.f32.gmra.mxu0 %v4619
    %v4641 = vpop.f32.mrf.mxu0
    %v4642 = vadd.f32 0.0, %v4641
    %4643 = vmatmul.f32.gmra.mxu0 %v4622
    %v4644 = vpop.f32.mrf.mxu0
    %v4645 = vadd.f32 0.0, %v4644
    %4646 = vdwg.mxu0
    %4649 = vrot.lane.b32.xlu0 %v4042, 4
    %v4650 = vpop.permute.xlu0 %4649
    %4651 = vrot.lane.b32.xlu0 %v4045, 4
    %v4652 = vpop.permute.xlu0 %4651
    %4657 = vrot.lane.b32.xlu0 %v4142, 8
    %v4658 = vpop.permute.xlu0 %4657
    %4659 = vrot.lane.b32.xlu0 %v4145, 8
    %v4660 = vpop.permute.xlu0 %4659
    %4665 = vrot.lane.b32.xlu0 %v4242, 12
    %v4666 = vpop.permute.xlu0 %4665
    %4667 = vrot.lane.b32.xlu0 %v4245, 12
    %v4668 = vpop.permute.xlu0 %4667
    %4673 = vrot.lane.b32.xlu0 %v4342, 16
    %v4674 = vpop.permute.xlu0 %4673
    %4675 = vrot.lane.b32.xlu0 %v4345, 16
    %v4676 = vpop.permute.xlu0 %4675
    %4681 = vrot.lane.b32.xlu0 %v4442, 20
    %v4682 = vpop.permute.xlu0 %4681
    %4683 = vrot.lane.b32.xlu0 %v4445, 20
    %v4684 = vpop.permute.xlu0 %4683
    %4689 = vrot.lane.b32.xlu0 %v4542, 24
    %v4690 = vpop.permute.xlu0 %4689
    %4691 = vrot.lane.b32.xlu0 %v4545, 24
    %v4692 = vpop.permute.xlu0 %4691
    %4697 = vrot.lane.b32.xlu0 %v4642, 28
    %v4698 = vpop.permute.xlu0 %4697
    %4699 = vrot.lane.b32.xlu0 %v4645, 28
    %v4700 = vpop.permute.xlu0 %4699
    %v4703 = vsel %vm509, %v3942, %v4650
    %v4704 = vsel %vm509, %v3945, %v4652
    %v4705 = vsel %vm1361, %v4703, %v4658
    %v4706 = vsel %vm1361, %v4704, %v4660
    %v4707 = vsel %vm1364, %v4705, %v4666
    %v4708 = vsel %vm1364, %v4706, %v4668
    %v4709 = vsel %vm545, %v4707, %v4674
    %v4710 = vsel %vm545, %v4708, %v4676
    %v4711 = vsel %vm1369, %v4709, %v4682
    %v4712 = vsel %vm1369, %v4710, %v4684
    %v4713 = vsel %vm1372, %v4711, %v4690
    %v4714 = vsel %vm1372, %v4712, %v4692
    %v4715 = vsel %vm1375, %v4713, %v4698
    %v4716 = vsel %vm1375, %v4714, %v4700
    %s4717 = scalar_lea.vmem [#allocation5], 96
    %v4718 = vld [vmem:[%s4717] sm:$0xff]
    %v4719 = vld [vmem:[%s4717 + $0x8] sm:$0xff]
    %v4720 = vld [vmem:[%s4717 + $0x10] sm:$0xff]
    %v4721 = vld [vmem:[%s4717 + $0x18] sm:$0xff]
    %v4722 = vperm.slane %v462, 3
    %v4724 = vsel %vm241, %v4715, 0
    %v4727 = vsel %vm241, %v4716, 0
    %4729 = vmatpush.msra.mxu0 0.0
    %4730 = vmatpush.msra.mxu0 0.0
    %4731 = vmatpush.msra.mxu0 0.0
    %4732 = vmatpush.msra.mxu0 0.0
    %4733 = vmatpush.msra.mxu0 0.0
    %4734 = vmatpush.msra.mxu0 0.0
    %4735 = vmatpush.msra.mxu0 0.0
    %4736 = vmatpush.msra.mxu0 0.0
    %4737 = vmatpush.msra.mxu0 0.0
    %4738 = vmatpush.msra.mxu0 0.0
    %4739 = vmatpush.msra.mxu0 0.0
    %4740 = vmatpush.msra.mxu0 0.0
    %4741 = vmatpush.msra.mxu0 %v4721
    %4742 = vmatpush.msra.mxu0 %v4720
    %4743 = vmatpush.msra.mxu0 %v4719
    %4744 = vmatpush.msra.mxu0 %v4718
    %4745 = vmatmul.f32.gmra.mxu0 %v4724
    %v4746 = vpop.f32.mrf.mxu0
    %v4747 = vadd.f32 %v4722, %v4746
    %4748 = vmatmul.f32.gmra.mxu0 %v4727
    %v4749 = vpop.f32.mrf.mxu0
    %v4750 = vadd.f32 %v4722, %v4749
    %4751 = vdwg.mxu0
    %v4752 = vadd.f32 %v3812, %v4747
    %v4753 = vadd.f32 %v3813, %v4750
    %v4754 = vsel %vm241, %v4752, 0.0
    %4755 = vadd.xlane.f32.xlu0 %v4754
    %v4756 = vpop.xlane.xlu0 %4755
    %v4757 = vsel %vm241, %v4753, 0.0
    %4758 = vadd.xlane.f32.xlu0 %v4757
    %v4759 = vpop.xlane.xlu0 %4758
    %v4760 = vmul.f32 %v4756, %v254
    %v4761 = vmul.f32 %v4759, %v254
    %v4762 = vsub.f32 %v4752, %v4760
    %v4763 = vsub.f32 %v4753, %v4761
    %v4764 = vmul.f32 %v4762, %v4762
    %v4765 = vmul.f32 %v4763, %v4763
    %v4766 = vsel %vm241, %v4764, 0.0
    %4767 = vadd.xlane.f32.xlu0 %v4766
    %v4768 = vpop.xlane.xlu0 %4767
    %v4769 = vsel %vm241, %v4765, 0.0
    %4770 = vadd.xlane.f32.xlu0 %v4769
    %v4771 = vpop.xlane.xlu0 %4770
    %v4772 = vmul.f32 %v4768, %v254
    %v4773 = vmul.f32 %v4771, %v254
    %v4774 = vadd.f32 %v4772, 1e-05
    %v4775 = vadd.f32 %v4773, 1e-05
    %v4776 = vrsqrt.pop %v4774
    %v4777 = vmul.f32 %v4776, %v4774
    %v4778 = vmul.f32 %v4777, %v4776
    %v4779 = vmul.f32 0.5, %v4778
    %v4780 = vsub.f32 1.5, %v4779
    %v4781 = vmul.f32 %v4776, %v4780
    %vm4782 = vweird.f32 %v4774
    %vm4783 = vweird.f32 %v4776
    %vm4784 = vmor %vm4782, %vm4783
    %v4785 = vsel %vm4784, %v4776, %v4781
    %v4786 = vrsqrt.pop %v4775
    %v4787 = vmul.f32 %v4786, %v4775
    %v4788 = vmul.f32 %v4787, %v4786
    %v4789 = vmul.f32 0.5, %v4788
    %v4790 = vsub.f32 1.5, %v4789
    %v4791 = vmul.f32 %v4786, %v4790
    %vm4792 = vweird.f32 %v4775
    %vm4793 = vweird.f32 %v4786
    %vm4794 = vmor %vm4792, %vm4793
    %v4795 = vsel %vm4794, %v4786, %v4791
    %v4796 = vmul.f32 %v4762, %v4785
    %v4797 = vmul.f32 %v4763, %v4795
    %v4798 = vperm.slane %v465, 3
    %v4799 = vmul.f32 %v4796, %v4798
    %v4800 = vmul.f32 %v4797, %v4798
    %v4801 = vperm.slane %v466, 3
    %v4802 = vadd.f32 %v4799, %v4801
    %v4803 = vadd.f32 %v4800, %v4801
    %s4804 = scalar_lea.vmem [#allocation7], 96
    %v4805 = vld [vmem:[%s4804] sm:$0xff]
    %v4806 = vld [vmem:[%s4804 + $0x8] sm:$0xff]
    %v4807 = vld [vmem:[%s4804 + $0x10] sm:$0xff]
    %v4808 = vld [vmem:[%s4804 + $0x18] sm:$0xff]
    %v4809 = vperm.slane %v463, 3
    %v4811 = vsel %vm241, %v4802, 0
    %v4814 = vsel %vm241, %v4803, 0
    %4816 = vmatpush.msra.mxu0 0.0
    %4817 = vmatpush.msra.mxu0 0.0
    %4818 = vmatpush.msra.mxu0 0.0
    %4819 = vmatpush.msra.mxu0 0.0
    %4820 = vmatpush.msra.mxu0 0.0
    %4821 = vmatpush.msra.mxu0 0.0
    %4822 = vmatpush.msra.mxu0 0.0
    %4823 = vmatpush.msra.mxu0 0.0
    %4824 = vmatpush.msra.mxu0 0.0
    %4825 = vmatpush.msra.mxu0 0.0
    %4826 = vmatpush.msra.mxu0 0.0
    %4827 = vmatpush.msra.mxu0 0.0
    %4828 = vmatpush.msra.mxu0 %v4808
    %4829 = vmatpush.msra.mxu0 %v4807
    %4830 = vmatpush.msra.mxu0 %v4806
    %4831 = vmatpush.msra.mxu0 %v4805
    %4832 = vmatmul.f32.gmra.mxu0 %v4811
    %v4833 = vpop.f32.mrf.mxu0
    %v4834 = vadd.f32 %v4809, %v4833
    %4835 = vmatmul.f32.gmra.mxu0 %v4814
    %v4836 = vpop.f32.mrf.mxu0
    %v4837 = vadd.f32 %v4809, %v4836
    %4838 = vdwg.mxu0
    %v4839 = vmax.f32 %v4834, 0.0
    %v4840 = vmax.f32 %v4837, 0.0
    %s4841 = scalar_lea.vmem [#allocation8], 96
    %v4842 = vld [vmem:[%s4841] sm:$0xff]
    %v4843 = vld [vmem:[%s4841 + $0x8] sm:$0xff]
    %v4844 = vld [vmem:[%s4841 + $0x10] sm:$0xff]
    %v4845 = vld [vmem:[%s4841 + $0x18] sm:$0xff]
    %v4846 = vperm.slane %v464, 3
    %v4848 = vsel %vm241, %v4839, 0
    %v4851 = vsel %vm241, %v4840, 0
    %4853 = vmatpush.msra.mxu0 0.0
    %4854 = vmatpush.msra.mxu0 0.0
    %4855 = vmatpush.msra.mxu0 0.0
    %4856 = vmatpush.msra.mxu0 0.0
    %4857 = vmatpush.msra.mxu0 0.0
    %4858 = vmatpush.msra.mxu0 0.0
    %4859 = vmatpush.msra.mxu0 0.0
    %4860 = vmatpush.msra.mxu0 0.0
    %4861 = vmatpush.msra.mxu0 0.0
    %4862 = vmatpush.msra.mxu0 0.0
    %4863 = vmatpush.msra.mxu0 0.0
    %4864 = vmatpush.msra.mxu0 0.0
    %4865 = vmatpush.msra.mxu0 %v4845
    %4866 = vmatpush.msra.mxu0 %v4844
    %4867 = vmatpush.msra.mxu0 %v4843
    %4868 = vmatpush.msra.mxu0 %v4842
    %4869 = vmatmul.f32.gmra.mxu0 %v4848
    %v4870 = vpop.f32.mrf.mxu0
    %v4871 = vadd.f32 %v4846, %v4870
    %4872 = vmatmul.f32.gmra.mxu0 %v4851
    %v4873 = vpop.f32.mrf.mxu0
    %v4874 = vadd.f32 %v4846, %v4873
    %4875 = vdwg.mxu0
    %v4876 = vadd.f32 %v4802, %v4871
    %v4877 = vadd.f32 %v4803, %v4874
    %v4878 = vsel %vm241, %v4876, 0.0
    %4879 = vadd.xlane.f32.xlu0 %v4878
    %v4880 = vpop.xlane.xlu0 %4879
    %v4881 = vsel %vm241, %v4877, 0.0
    %4882 = vadd.xlane.f32.xlu0 %v4881
    %v4883 = vpop.xlane.xlu0 %4882
    %v4884 = vmul.f32 %v4880, %v254
    %v4885 = vmul.f32 %v4883, %v254
    %v4886 = vsub.f32 %v4876, %v4884
    %v4887 = vsub.f32 %v4877, %v4885
    %v4888 = vmul.f32 %v4886, %v4886
    %v4889 = vmul.f32 %v4887, %v4887
    %v4890 = vsel %vm241, %v4888, 0.0
    %4891 = vadd.xlane.f32.xlu0 %v4890
    %v4892 = vpop.xlane.xlu0 %4891
    %v4893 = vsel %vm241, %v4889, 0.0
    %4894 = vadd.xlane.f32.xlu0 %v4893
    %v4895 = vpop.xlane.xlu0 %4894
    %v4896 = vmul.f32 %v4892, %v254
    %v4897 = vmul.f32 %v4895, %v254
    %v4898 = vadd.f32 %v4896, 1e-05
    %v4899 = vadd.f32 %v4897, 1e-05
    %v4900 = vrsqrt.pop %v4898
    %v4901 = vmul.f32 %v4900, %v4898
    %v4902 = vmul.f32 %v4901, %v4900
    %v4903 = vmul.f32 0.5, %v4902
    %v4904 = vsub.f32 1.5, %v4903
    %v4905 = vmul.f32 %v4900, %v4904
    %vm4906 = vweird.f32 %v4898
    %vm4907 = vweird.f32 %v4900
    %vm4908 = vmor %vm4906, %vm4907
    %v4909 = vsel %vm4908, %v4900, %v4905
    %v4910 = vrsqrt.pop %v4899
    %v4911 = vmul.f32 %v4910, %v4899
    %v4912 = vmul.f32 %v4911, %v4910
    %v4913 = vmul.f32 0.5, %v4912
    %v4914 = vsub.f32 1.5, %v4913
    %v4915 = vmul.f32 %v4910, %v4914
    %vm4916 = vweird.f32 %v4899
    %vm4917 = vweird.f32 %v4910
    %vm4918 = vmor %vm4916, %vm4917
    %v4919 = vsel %vm4918, %v4910, %v4915
    %v4920 = vmul.f32 %v4886, %v4909
    %v4921 = vmul.f32 %v4887, %v4919
    %v4922 = vperm.slane %v467, 3
    %v4923 = vmul.f32 %v4920, %v4922
    %v4924 = vmul.f32 %v4921, %v4922
    %v4925 = vperm.slane %v468, 3
    %v4926 = vadd.f32 %v4923, %v4925
    %v4927 = vadd.f32 %v4924, %v4925
    %v4928 = vld [vmem:[#allocation11] sm:$0x1]
    %v4929 = vld [vmem:[#allocation13] sm:$0x1]
    %v4930 = vsel %vm241, %v4926, 0.0
    %4931 = vadd.xlane.f32.xlu0 %v4930
    %v4932 = vpop.xlane.xlu0 %4931
    %v4933 = vsel %vm241, %v4927, 0.0
    %4934 = vadd.xlane.f32.xlu0 %v4933
    %v4935 = vpop.xlane.xlu0 %4934
    %v4936 = vmul.f32 %v4932, %v254
    %v4937 = vmul.f32 %v4935, %v254
    %v4938 = vsub.f32 %v4926, %v4936
    %v4939 = vsub.f32 %v4927, %v4937
    %v4940 = vmul.f32 %v4938, %v4938
    %v4941 = vmul.f32 %v4939, %v4939
    %v4942 = vsel %vm241, %v4940, 0.0
    %4943 = vadd.xlane.f32.xlu0 %v4942
    %v4944 = vpop.xlane.xlu0 %4943
    %v4945 = vsel %vm241, %v4941, 0.0
    %4946 = vadd.xlane.f32.xlu0 %v4945
    %v4947 = vpop.xlane.xlu0 %4946
    %v4948 = vmul.f32 %v4944, %v254
    %v4949 = vmul.f32 %v4947, %v254
    %v4950 = vadd.f32 %v4948, 1e-05
    %v4951 = vadd.f32 %v4949, 1e-05
    %v4952 = vrsqrt.pop %v4950
    %v4953 = vmul.f32 %v4952, %v4950
    %v4954 = vmul.f32 %v4953, %v4952
    %v4955 = vmul.f32 0.5, %v4954
    %v4956 = vsub.f32 1.5, %v4955
    %v4957 = vmul.f32 %v4952, %v4956
    %vm4958 = vweird.f32 %v4950
    %vm4959 = vweird.f32 %v4952
    %vm4960 = vmor %vm4958, %vm4959
    %v4961 = vsel %vm4960, %v4952, %v4957
    %v4962 = vrsqrt.pop %v4951
    %v4963 = vmul.f32 %v4962, %v4951
    %v4964 = vmul.f32 %v4963, %v4962
    %v4965 = vmul.f32 0.5, %v4964
    %v4966 = vsub.f32 1.5, %v4965
    %v4967 = vmul.f32 %v4962, %v4966
    %vm4968 = vweird.f32 %v4951
    %vm4969 = vweird.f32 %v4962
    %vm4970 = vmor %vm4968, %vm4969
    %v4971 = vsel %vm4970, %v4962, %v4967
    %v4972 = vmul.f32 %v4938, %v4961
    %v4973 = vmul.f32 %v4939, %v4971
    %v4975 = vperm.slane %v4928, 0
    %v4977 = vmul.f32 %v4972, %v4975
    %v4978 = vmul.f32 %v4973, %v4975
    %v4980 = vperm.slane %v4929, 0
    %v4982 = vadd.f32 %v4977, %v4980
    %v4983 = vadd.f32 %v4978, %v4980
    %v4984 = vmul.f32 %v4982, %v4982
    %v4985 = vsel %vm241, %v4984, 0.0
    %v4986 = vrot.slane %v4985, 4
    %v4987 = vadd.f32 %v4985, %v4986
    %v4988 = vrot.slane %v4987, 2
    %v4989 = vadd.f32 %v4987, %v4988
    %v4990 = vrot.slane %v4989, 1
    %v4991 = vadd.f32 %v4989, %v4990
    %v4992 = vrsqrt.pop %v4991
    %v4993 = vmul.f32 %v4992, %v4991
    %v4994 = vmul.f32 %v4993, %v4992
    %v4995 = vmul.f32 0.5, %v4994
    %v4996 = vsub.f32 1.5, %v4995
    %v4997 = vmul.f32 %v4992, %v4996
    %v4998 = vmul.f32 %v4991, %v4997
    %vm4999 = vcmp.eq.f32.partialorder %v4991, inf
    %v5000 = vsel %vm4999, %v4991, %v4998
    %vm5001 = vcmp.eq.f32.partialorder %v4991, 0.0
    %v5002 = vand.u32 %v4991, 2147483648
    %v5003 = vsel %vm5001, %v5002, %v5000
    %v5004 = vmax.f32 %v5003, 1e-12
    %v5005 = vrcp.pop %v5004
    %v5006 = vmul.f32 %v4982, %v5005
    %v5007 = vmul.f32 %v4983, %v4983
    %v5008 = vsel %vm241, %v5007, 0.0
    %v5009 = vrot.slane %v5008, 4
    %v5010 = vadd.f32 %v5008, %v5009
    %v5011 = vrot.slane %v5010, 2
    %v5012 = vadd.f32 %v5010, %v5011
    %v5013 = vrot.slane %v5012, 1
    %v5014 = vadd.f32 %v5012, %v5013
    %v5015 = vrsqrt.pop %v5014
    %v5016 = vmul.f32 %v5015, %v5014
    %v5017 = vmul.f32 %v5016, %v5015
    %v5018 = vmul.f32 0.5, %v5017
    %v5019 = vsub.f32 1.5, %v5018
    %v5020 = vmul.f32 %v5015, %v5019
    %v5021 = vmul.f32 %v5014, %v5020
    %vm5022 = vcmp.eq.f32.partialorder %v5014, inf
    %v5023 = vsel %vm5022, %v5014, %v5021
    %vm5024 = vcmp.eq.f32.partialorder %v5014, 0.0
    %v5025 = vand.u32 %v5014, 2147483648
    %v5026 = vsel %vm5024, %v5025, %v5023
    %v5027 = vmax.f32 %v5026, 1e-12
    %v5028 = vrcp.pop %v5027
    %v5029 = vmul.f32 %v4983, %v5028
    %v5030 = vld [vmem:[%s22] sm:$0xff]
    %v5031 = vld [vmem:[%s22 + $0x8] sm:$0xff]
    %v5032 = vld [vmem:[%s22 + $0x10] sm:$0xff]
    %v5033 = vld [vmem:[%s22 + $0x18] sm:$0xff]
    %v5034 = vld [vmem:[#allocation14] sm:$0x1]
    %v5036 = vperm.slane %v5034, 0
    %v5039 = vrot.slane %v5006, 1
    %v5040 = vsel %vm241, %v5039, 0
    %5042 = vmatpush.msra.mxu0 0.0
    %5043 = vmatpush.msra.mxu0 0.0
    %5044 = vmatpush.msra.mxu0 0.0
    %5045 = vmatpush.msra.mxu0 0.0
    %5046 = vmatpush.msra.mxu0 0.0
    %5047 = vmatpush.msra.mxu0 0.0
    %5048 = vmatpush.msra.mxu0 0.0
    %5049 = vmatpush.msra.mxu0 0.0
    %5050 = vmatpush.msra.mxu0 0.0
    %5051 = vmatpush.msra.mxu0 0.0
    %5052 = vmatpush.msra.mxu0 0.0
    %5053 = vmatpush.msra.mxu0 0.0
    %5054 = vmatpush.msra.mxu0 %v5033
    %5055 = vmatpush.msra.mxu0 %v5032
    %5056 = vmatpush.msra.mxu0 %v5031
    %5057 = vmatpush.msra.mxu0 %v5030
    %5058 = vmatmul.f32.gmra.mxu0 %v5040
    %v5059 = vpop.f32.mrf.mxu0
    %v5060 = vadd.f32 %v5036, %v5059
    %5061 = vdwg.mxu0
    %v5062 = vmul.f32 %v5060, 0.5
    %v5063 = vmul.f32 %v5060, 0.70710677
    %vm5064 = vcmp.ge.f32.partialorder %v5063, 0.0
    %v5065 = vsel %vm5064, 1.0, -1.0
    %v5066 = vand.u32 2147483647, %v5063
    %v5067 = vmul.f32 %v5066, 0.3275911
    %v5068 = vadd.f32 %v5067, 1.0
    %v5069 = vrcp.pop %v5068
    %v5070 = vmul.f32 %v5068, %v5069
    %v5071 = vsub.f32 1.0, %v5070
    %v5072 = vmul.f32 %v5069, %v5071
    %v5073 = vadd.f32 %v5069, %v5072
    %vm5074 = vweird.f32 %v5068
    %vm5075 = vweird.f32 %v5069
    %vm5076 = vmor %vm5074, %vm5075
    %v5077 = vsel %vm5076, %v5069, %v5073
    %v5078 = vand.u32 2147483647, %v5068
    %vm5079 = vcmp.eq.f32.partialorder %v5078, 8.507059e+37
    %v5080 = vand.u32 %v5068, 2147483648
    %v5081 = vor.u32 1.1754944e-38, %v5080
    %v5082 = vsel %vm5079, %v5081, %v5077
    %v5083 = vmul.f32 1.0, %v5082
    %v5084 = vmul.f32 %v5083, 1.0614054
    %v5085 = vadd.f32 %v5084, -1.4531521
    %v5086 = vmul.f32 %v5085, %v5083
    %v5087 = vadd.f32 %v5086, 1.4214138
    %v5088 = vmul.f32 %v5087, %v5083
    %v5089 = vadd.f32 %v5088, -0.28449672
    %v5090 = vmul.f32 %v5089, %v5083
    %v5091 = vadd.f32 %v5090, 0.2548296
    %v5092 = vmul.f32 %v5091, %v5083
    %v5093 = vsub.f32 0.0, %v5066
    %v5094 = vmul.f32 %v5093, %v5066
    %v5095 = vmul.f32 %v5094, 1.442695
    %v5096 = vpow.pop %v5095
    %v5097 = vmul.f32 %v5092, %v5096
    %v5098 = vsub.f32 1.0, %v5097
    %v5099 = vmul.f32 %v5065, %v5098
    %v5100 = vadd.f32 %v5099, 1.0
    %v5101 = vmul.f32 %v5062, %v5100
    %v5102 = vld [vmem:[%s24] sm:$0xff]
    %v5103 = vld [vmem:[%s24 + $0x8] sm:$0xff]
    %v5104 = vld [vmem:[%s24 + $0x10] sm:$0xff]
    %v5105 = vld [vmem:[%s24 + $0x18] sm:$0xff]
    %v5106 = vld [vmem:[#allocation2] sm:$0x1]
    %v5108 = vperm.slane %v5106, 0
    %v5111 = vsel %vm241, %v5101, 0
    %5113 = vmatpush.msra.mxu0 0.0
    %5114 = vmatpush.msra.mxu0 0.0
    %5115 = vmatpush.msra.mxu0 0.0
    %5116 = vmatpush.msra.mxu0 0.0
    %5117 = vmatpush.msra.mxu0 0.0
    %5118 = vmatpush.msra.mxu0 0.0
    %5119 = vmatpush.msra.mxu0 0.0
    %5120 = vmatpush.msra.mxu0 0.0
    %5121 = vmatpush.msra.mxu0 0.0
    %5122 = vmatpush.msra.mxu0 0.0
    %5123 = vmatpush.msra.mxu0 0.0
    %5124 = vmatpush.msra.mxu0 0.0
    %5125 = vmatpush.msra.mxu0 %v5105
    %5126 = vmatpush.msra.mxu0 %v5104
    %5127 = vmatpush.msra.mxu0 %v5103
    %5128 = vmatpush.msra.mxu0 %v5102
    %5129 = vmatmul.f32.gmra.mxu0 %v5111
    %v5130 = vpop.f32.mrf.mxu0
    %v5131 = vadd.f32 %v5108, %v5130
    %5132 = vdwg.mxu0
    %v5134 = vrot.slane %v5029, 1
    %v5135 = vsel %vm241, %v5134, 0
    %5137 = vmatpush.msra.mxu0 0.0
    %5138 = vmatpush.msra.mxu0 0.0
    %5139 = vmatpush.msra.mxu0 0.0
    %5140 = vmatpush.msra.mxu0 0.0
    %5141 = vmatpush.msra.mxu0 0.0
    %5142 = vmatpush.msra.mxu0 0.0
    %5143 = vmatpush.msra.mxu0 0.0
    %5144 = vmatpush.msra.mxu0 0.0
    %5145 = vmatpush.msra.mxu0 0.0
    %5146 = vmatpush.msra.mxu0 0.0
    %5147 = vmatpush.msra.mxu0 0.0
    %5148 = vmatpush.msra.mxu0 0.0
    %5149 = vmatpush.msra.mxu0 %v5033
    %5150 = vmatpush.msra.mxu0 %v5032
    %5151 = vmatpush.msra.mxu0 %v5031
    %5152 = vmatpush.msra.mxu0 %v5030
    %5153 = vmatmul.f32.gmra.mxu0 %v5135
    %v5154 = vpop.f32.mrf.mxu0
    %v5155 = vadd.f32 %v5036, %v5154
    %5156 = vdwg.mxu0
    %v5157 = vmul.f32 %v5155, 0.5
    %v5158 = vmul.f32 %v5155, 0.70710677
    %vm5159 = vcmp.ge.f32.partialorder %v5158, 0.0
    %v5160 = vsel %vm5159, 1.0, -1.0
    %v5161 = vand.u32 2147483647, %v5158
    %v5162 = vmul.f32 %v5161, 0.3275911
    %v5163 = vadd.f32 %v5162, 1.0
    %v5164 = vrcp.pop %v5163
    %v5165 = vmul.f32 %v5163, %v5164
    %v5166 = vsub.f32 1.0, %v5165
    %v5167 = vmul.f32 %v5164, %v5166
    %v5168 = vadd.f32 %v5164, %v5167
    %vm5169 = vweird.f32 %v5163
    %vm5170 = vweird.f32 %v5164
    %vm5171 = vmor %vm5169, %vm5170
    %v5172 = vsel %vm5171, %v5164, %v5168
    %v5173 = vand.u32 2147483647, %v5163
    %vm5174 = vcmp.eq.f32.partialorder %v5173, 8.507059e+37
    %v5175 = vand.u32 %v5163, 2147483648
    %v5176 = vor.u32 1.1754944e-38, %v5175
    %v5177 = vsel %vm5174, %v5176, %v5172
    %v5178 = vmul.f32 1.0, %v5177
    %v5179 = vmul.f32 %v5178, 1.0614054
    %v5180 = vadd.f32 %v5179, -1.4531521
    %v5181 = vmul.f32 %v5180, %v5178
    %v5182 = vadd.f32 %v5181, 1.4214138
    %v5183 = vmul.f32 %v5182, %v5178
    %v5184 = vadd.f32 %v5183, -0.28449672
    %v5185 = vmul.f32 %v5184, %v5178
    %v5186 = vadd.f32 %v5185, 0.2548296
    %v5187 = vmul.f32 %v5186, %v5178
    %v5188 = vsub.f32 0.0, %v5161
    %v5189 = vmul.f32 %v5188, %v5161
    %v5190 = vmul.f32 %v5189, 1.442695
    %v5191 = vpow.pop %v5190
    %v5192 = vmul.f32 %v5187, %v5191
    %v5193 = vsub.f32 1.0, %v5192
    %v5194 = vmul.f32 %v5160, %v5193
    %v5195 = vadd.f32 %v5194, 1.0
    %v5196 = vmul.f32 %v5157, %v5195
    %v5198 = vsel %vm241, %v5196, 0
    %5200 = vmatpush.msra.mxu0 0.0
    %5201 = vmatpush.msra.mxu0 0.0
    %5202 = vmatpush.msra.mxu0 0.0
    %5203 = vmatpush.msra.mxu0 0.0
    %5204 = vmatpush.msra.mxu0 0.0
    %5205 = vmatpush.msra.mxu0 0.0
    %5206 = vmatpush.msra.mxu0 0.0
    %5207 = vmatpush.msra.mxu0 0.0
    %5208 = vmatpush.msra.mxu0 0.0
    %5209 = vmatpush.msra.mxu0 0.0
    %5210 = vmatpush.msra.mxu0 0.0
    %5211 = vmatpush.msra.mxu0 0.0
    %5212 = vmatpush.msra.mxu0 %v5105
    %5213 = vmatpush.msra.mxu0 %v5104
    %5214 = vmatpush.msra.mxu0 %v5103
    %5215 = vmatpush.msra.mxu0 %v5102
    %5216 = vmatmul.f32.gmra.mxu0 %v5198
    %v5217 = vpop.f32.mrf.mxu0
    %v5218 = vadd.f32 %v5108, %v5217
    %5219 = vdwg.mxu0
    %5221 = vrot.lane.b32.xlu0 %v5218, 1
    %v5222 = vpop.permute.xlu0 %5221
    %vm5224 = vcmask 7168
    %v5225 = vsel %vm5224, %v5131, %v5222
    %vm5226 = vcmask 14336
    %v5227 = vsel %vm5226, %v5225, -inf
    %5228 = vmax.xlane.f32.xlu0 %v5227
    %v5229 = vpop.xlane.xlu0 %5228
    %v5230 = vsub.f32 %v5225, %v5229
    %v5231 = vmul.f32 %v5230, 1.442695
    %v5232 = vpow.pop %v5231
    %v5233 = vsel %vm5226, %v5232, 0.0
    %5234 = vadd.xlane.f32.xlu0 %v5233
    %v5235 = vpop.xlane.xlu0 %5234
    %v5236 = vrcp.pop %v5235
    %v5237 = vmul.f32 %v5232, %v5236
    %v5238 = vld [vmem:[#allocation16] sm:$0xff]
    %v5239 = vld [vmem:[#allocation16 + $0x8] sm:$0xff]
    %v5240 = vld [vmem:[#allocation16 + $0x10] sm:$0xff]
    %v5241 = vld [vmem:[#allocation16 + $0x18] sm:$0xff]
    %v5242 = vld [vmem:[#allocation17] sm:$0x1]
    %v5244 = vperm.slane %v5242, 0
    %5246 = vmatpush.msra.mxu0 0.0
    %5247 = vmatpush.msra.mxu0 0.0
    %5248 = vmatpush.msra.mxu0 0.0
    %5249 = vmatpush.msra.mxu0 0.0
    %5250 = vmatpush.msra.mxu0 0.0
    %5251 = vmatpush.msra.mxu0 0.0
    %5252 = vmatpush.msra.mxu0 0.0
    %5253 = vmatpush.msra.mxu0 0.0
    %5254 = vmatpush.msra.mxu0 0.0
    %5255 = vmatpush.msra.mxu0 0.0
    %5256 = vmatpush.msra.mxu0 0.0
    %5257 = vmatpush.msra.mxu0 0.0
    %5258 = vmatpush.msra.mxu0 %v5241
    %5259 = vmatpush.msra.mxu0 %v5240
    %5260 = vmatpush.msra.mxu0 %v5239
    %5261 = vmatpush.msra.mxu0 %v5238
    %5262 = vmatmul.f32.gmra.mxu0 %v5040
    %v5263 = vpop.f32.mrf.mxu0
    %v5264 = vadd.f32 %v5244, %v5263
    %5265 = vdwg.mxu0
    %5267 = vset.pattern.permute.xlu0 0
    %5268 = vperm.xlu0 %5267, %v5237
    %v5269 = vpop.permute.xlu0 %5268
    %v5271 = vmul.f32 %v5269, %v5264
    %vm5272 = vcmask 260096
    %v5273 = vsel %vm5272, %v5271, 0.0
    %v5274 = vrot.slane %v5273, 4
    %v5275 = vadd.f32 %v5273, %v5274
    %v5276 = vrot.slane %v5275, 2
    %v5277 = vadd.f32 %v5275, %v5276
    %v5278 = vrot.slane %v5277, 1
    %v5279 = vadd.f32 %v5277, %v5278
    %v5280 = vadd.f32 %v5279, %v5006
    %5281 = vmatpush.msra.mxu0 0.0
    %5282 = vmatpush.msra.mxu0 0.0
    %5283 = vmatpush.msra.mxu0 0.0
    %5284 = vmatpush.msra.mxu0 0.0
    %5285 = vmatpush.msra.mxu0 0.0
    %5286 = vmatpush.msra.mxu0 0.0
    %5287 = vmatpush.msra.mxu0 0.0
    %5288 = vmatpush.msra.mxu0 0.0
    %5289 = vmatpush.msra.mxu0 0.0
    %5290 = vmatpush.msra.mxu0 0.0
    %5291 = vmatpush.msra.mxu0 0.0
    %5292 = vmatpush.msra.mxu0 0.0
    %5293 = vmatpush.msra.mxu0 %v5241
    %5294 = vmatpush.msra.mxu0 %v5240
    %5295 = vmatpush.msra.mxu0 %v5239
    %5296 = vmatpush.msra.mxu0 %v5238
    %5297 = vmatmul.f32.gmra.mxu0 %v5135
    %v5298 = vpop.f32.mrf.mxu0
    %v5299 = vadd.f32 %v5244, %v5298
    %5300 = vdwg.mxu0
    %5301 = vset.pattern.permute.xlu0 1
    %5302 = vperm.xlu0 %5301, %v5237
    %v5303 = vpop.permute.xlu0 %5302
    %v5305 = vmul.f32 %v5303, %v5299
    %v5306 = vsel %vm5272, %v5305, 0.0
    %v5307 = vrot.slane %v5306, 4
    %v5308 = vadd.f32 %v5306, %v5307
    %v5309 = vrot.slane %v5308, 2
    %v5310 = vadd.f32 %v5308, %v5309
    %v5311 = vrot.slane %v5310, 1
    %v5312 = vadd.f32 %v5310, %v5311
    %v5313 = vadd.f32 %v5312, %v5029
    %v5315 = vrot.slane %v5313, 7
    %vm5317 = vcmask 1040384
    %v5318 = vsel %vm5317, %v5280, %v5315
    %vm5319 = vcmask 254976
    %5320 = vst.msk [vmem:[%s28] sm:$0x3] %vm5319, %v5318
    // Predicated region
    $region154: #{classifier_forward.3} parent=1 // pred_check
      _
    $region155: #{classifier_forward.3} parent=1 // pred_check_branch
      %5322 = sbr.rel (0) target = $region157
    $region156: #{classifier_forward.3} parent=1 // pred_region
      _
    $region157: #{classifier_forward.3} parent=1 // pred_fallthru
      _
    // Predicated region
    $region158: #{classifier_forward.3} parent=1 // pred_check
      _
    $region159: #{classifier_forward.3} parent=1 // pred_check_branch
      %5324 = sbr.rel (0) target = $region161
    $region160: #{classifier_forward.3} parent=1 // pred_region
      _
    $region161: #{classifier_forward.3} parent=1 // pred_fallthru
      _
    %5325 = vsyncpa [#allocation4], 1
    %5326 = vsyncpa [#allocation6], 1
    %5327 = vsyncpa [#allocation9], 1
    %5328 = vsyncpa [#allocation12], 1
    %5329 = vsyncpa [#allocation15], 1
    %5330 = vsyncpa [#allocation18], 1

</llo_original>
